<compile_context>
chip_gen: v6e
topology: v6e:2x2x1
jax: 0.10.0
libtpu: 0.0.40
codegen_flags: <defaults>
</compile_context>

<pallas_src>
import functools

import jax
import jax.numpy as jnp
from jax.experimental import pallas as pl
from jax.experimental.pallas import tpu as pltpu


# Safe on every generation: <= scoped default on v7x (32/64 MiB) and well under
# physical VMEM on v5e/v6e (128 MiB).
_VMEM_LIMIT_BYTES = 32 * 1024 * 1024


# ----------------------------- Pallas kernels ------------------------------ #

def _pw_kernel(x_ref, w_ref, b_ref, o_ref, *, relu):
    # x: (tile_n, Cin), w: (Cin, Cout), b: (1, Cout) -> o: (tile_n, Cout)
    acc = jnp.dot(x_ref[...], w_ref[...], preferred_element_type=jnp.float32)
    acc = acc + b_ref[...]
    if relu:
        acc = jnp.maximum(acc, 0.0)
    o_ref[...] = acc.astype(o_ref.dtype)


def _fpn_level_kernel(*refs, H, W, has_skip):
    # Fused FPN level for one image: o = conv3x3(lateral1x1(c) [+ skip]).
    #   c:    (1, H*W, Cin)   flattened NHWC feature map
    #   skip: (1, H*W, Cout)  optional upsampled higher pyramid level
    #   wl:   (Cin, Cout), bl: (1, Cout)        lateral 1x1 conv
    #   w9:   (9, Cout, Cout), bo: (1, Cout)    output 3x3 conv (pad=1)
    #   o:    (1, H*W, Cout)
    #   latv: VMEM scratch (H*W + 2*W + 2, Cout): lateral result with zero
    #         halo rows before/after (handles the height pad in VMEM).
    if has_skip:
        c_ref, s_ref, wl_ref, bl_ref, w9_ref, bo_ref, o_ref, latv_ref = refs
    else:
        c_ref, wl_ref, bl_ref, w9_ref, bo_ref, o_ref, latv_ref = refs
        s_ref = None
    HW = H * W
    Cout = o_ref.shape[2]
    pad = W + 1

    # ---- lateral 1x1 conv (+ fused top-down add): one big MXU matmul ----
    lat = jnp.dot(c_ref[0], wl_ref[...], preferred_element_type=jnp.float32)
    lat = lat + bl_ref[...]
    if has_skip:
        lat = lat + s_ref[0]

    # ---- stage lateral into the zero-extended flattened scratch ----
    zeros_pad = jnp.zeros((pad, Cout), jnp.float32)
    latv_ref[pl.ds(0, pad), :] = zeros_pad
    latv_ref[pl.ds(pad + HW, pad), :] = zeros_pad
    latv_ref[pl.ds(pad, HW), :] = lat

    # Column-validity masks: tap (di, dj) reads lat[h+di-1, w+dj-1]; in the
    # flattened view a left/right tap wraps across rows, so zero those rows.
    col = jax.lax.broadcasted_iota(jnp.int32, (HW, 1), 0) % W
    mask_l = (col >= 1).astype(jnp.float32)        # dj == 0 needs w-1 >= 0
    mask_r = (col <= W - 2).astype(jnp.float32)    # dj == 2 needs w+1 <  W

    # ---- 3x3 conv = 9 shifted (HW, Cout) x (Cout, Cout) matmuls (f32 acc) ----
    acc = jnp.zeros((HW, Cout), jnp.float32)
    for di in range(3):
        for dj in range(3):
            xs = latv_ref[pl.ds(di * W + dj, HW), :]
            if dj == 0:
                xs = xs * mask_l
            elif dj == 2:
                xs = xs * mask_r
            acc = acc + jnp.dot(xs, w9_ref[di * 3 + dj],
                                preferred_element_type=jnp.float32)

    # Single coalesced store of the whole image.
    o_ref[0, :, :] = (acc + bo_ref[...]).astype(o_ref.dtype)


# ------------------------------ kernel wrappers ----------------------------- #

def _pick_rows(n, cin, cout, budget_bytes=8 * 1024 * 1024, max_rows=2048):
    """Largest row-tile that divides n, is a multiple of 8 and keeps the
    double-buffered (x + o) tiles inside a conservative VMEM budget."""
    if n % 8 != 0:
        return n
    cap = min(max_rows, max(8, budget_bytes // (8 * (cin + cout))), n)
    t = (cap // 8) * 8
    while t >= 8:
        if n % t == 0:
            return t
        t -= 8
    return n


def pointwise_conv(x_nhwc, w, b, relu=False):
    """1x1 conv (NHWC) as a Pallas matmul tiled over flattened spatial rows."""
    B, H, W, Cin = x_nhwc.shape
    Cout = w.shape[1]
    N = B * H * W
    xf = x_nhwc.reshape(N, Cin)
    bf = b.reshape(1, Cout)
    tn = _pick_rows(N, Cin, Cout)

    of = pl.pallas_call(
        functools.partial(_pw_kernel, relu=relu),
        out_shape=jax.ShapeDtypeStruct((N, Cout), jnp.float32),
        grid=(N // tn,),
        in_specs=[
            pl.BlockSpec((tn, Cin), lambda i: (i, 0)),
            pl.BlockSpec((Cin, Cout), lambda i: (0, 0)),
            pl.BlockSpec((1, Cout), lambda i: (0, 0)),
        ],
        out_specs=pl.BlockSpec((tn, Cout), lambda i: (i, 0)),
        compiler_params=pltpu.CompilerParams(
            dimension_semantics=("parallel",),
            vmem_limit_bytes=_VMEM_LIMIT_BYTES),
    )(xf, w, bf)
    return of.reshape(B, H, W, Cout)


def fpn_level(c_nhwc, wl, bl, w9, bo, skip_nhwc=None):
    """Fused lateral 1x1 conv (+ top-down add) + output 3x3 conv, per image."""
    B, H, W, Cin = c_nhwc.shape
    Cout = wl.shape[1]
    HW = H * W
    has_skip = skip_nhwc is not None

    cf = c_nhwc.reshape(B, HW, Cin)          # free XLA reshape (NHWC contiguous)
    blf = bl.reshape(1, Cout)
    bof = bo.reshape(1, Cout)

    in_specs = [pl.BlockSpec((1, HW, Cin), lambda bi: (bi, 0, 0))]
    args = [cf]
    if has_skip:
        in_specs.append(pl.BlockSpec((1, HW, Cout), lambda bi: (bi, 0, 0)))
        args.append(skip_nhwc.reshape(B, HW, Cout))
    in_specs += [
        pl.BlockSpec((Cin, Cout), lambda bi: (0, 0)),
        pl.BlockSpec((1, Cout), lambda bi: (0, 0)),
        pl.BlockSpec((9, Cout, Cout), lambda bi: (0, 0, 0)),
        pl.BlockSpec((1, Cout), lambda bi: (0, 0)),
    ]
    args += [wl, blf, w9, bof]

    of = pl.pallas_call(
        functools.partial(_fpn_level_kernel, H=H, W=W, has_skip=has_skip),
        out_shape=jax.ShapeDtypeStruct((B, HW, Cout), jnp.float32),
        grid=(B,),
        in_specs=in_specs,
        out_specs=pl.BlockSpec((1, HW, Cout), lambda bi: (bi, 0, 0)),
        scratch_shapes=[pltpu.VMEM((HW + 2 * W + 2, Cout), jnp.float32)],
        compiler_params=pltpu.CompilerParams(
            dimension_semantics=("parallel",),
            vmem_limit_bytes=_VMEM_LIMIT_BYTES),
    )(*args)
    return of.reshape(B, H, W, Cout)


# ------------------------------- JAX glue ----------------------------------- #

def nearest_up2(x_nhwc):
    """F.interpolate(scale_factor=2, mode='nearest'): out[2i+a,2j+b]=in[i,j]."""
    B, H, W, C = x_nhwc.shape
    x = jnp.broadcast_to(x_nhwc[:, :, None, :, None, :], (B, H, 2, W, 2, C))
    return x.reshape(B, 2 * H, 2 * W, C)


def space_to_depth2(x_nhwc):
    B, H, W, C = x_nhwc.shape
    x = x_nhwc.reshape(B, H // 2, 2, W // 2, 2, C)
    x = jnp.transpose(x, (0, 1, 3, 2, 4, 5))
    return x.reshape(B, H // 2, W // 2, 4 * C)


# ------------------------------ parameters ---------------------------------- #

# Synthetic backbone: 5 space-to-depth(2) + pointwise-conv stages -> channel
# widths 16, 32, 64 (c3), 160 (c4), 400 (c5), matching regnet_x_400mf taps.
_BACKBONE_IO = [(12, 16), (64, 32), (128, 64), (256, 160), (640, 400)]
_LATERAL_CIN = {"c3": 64, "c4": 160, "c5": 400}


def init_params(key, out_channels):
    keys = iter(jax.random.split(key, 32))
    p = {}
    for i, (ci, co) in enumerate(_BACKBONE_IO):
        p[f"bb_w{i}"] = 0.1 * jax.random.normal(next(keys), (ci, co), jnp.float32)
        p[f"bb_b{i}"] = 0.1 * jax.random.normal(next(keys), (co,), jnp.float32)
    for name, cin in _LATERAL_CIN.items():
        # PyTorch Conv2d weight (Cout, Cin, 1, 1) -> (Cin, Cout) matmul form.
        w = 0.1 * jax.random.normal(next(keys), (out_channels, cin, 1, 1), jnp.float32)
        p[f"lateral_{name}_w"] = w[:, :, 0, 0].T
        p[f"lateral_{name}_b"] = 0.1 * jax.random.normal(next(keys), (out_channels,), jnp.float32)
    for lvl in ("p3", "p4", "p5"):
        # PyTorch Conv2d weight (Cout, Cin, 3, 3) -> (kh, kw, Cin, Cout) -> (9, Cin, Cout)
        w = 0.1 * jax.random.normal(next(keys), (out_channels, out_channels, 3, 3), jnp.float32)
        p[f"output_{lvl}_w"] = jnp.transpose(w, (2, 3, 1, 0)).reshape(9, out_channels, out_channels)
        p[f"output_{lvl}_b"] = 0.1 * jax.random.normal(next(keys), (out_channels,), jnp.float32)
    return p


# ------------------------------- forward ------------------------------------ #

def backbone_forward(params, images_nchw):
    x = jnp.transpose(images_nchw, (0, 2, 3, 1))   # NCHW -> NHWC
    feats = {}
    for i in range(5):
        x = space_to_depth2(x)                                       # stride x2
        x = pointwise_conv(x, params[f"bb_w{i}"], params[f"bb_b{i}"], relu=True)
        if i == 2:
            feats["c3"] = x   # stride 8,  64 ch
        elif i == 3:
            feats["c4"] = x   # stride 16, 160 ch
        elif i == 4:
            feats["c5"] = x   # stride 32, 400 ch
    return feats


def fpn_forward(params, images_nchw):
    feats = backbone_forward(params, images_nchw)
    c3, c4, c5 = feats["c3"], feats["c4"], feats["c5"]

    # p5 = output_p5(lateral_c5(c5))                       (fused, one kernel)
    p5 = fpn_level(c5, params["lateral_c5_w"], params["lateral_c5_b"],
                   params["output_p5_w"], params["output_p5_b"])

    # p4 = output_p4(lateral_c4(c4) + up2(p5))             (fused, one kernel)
    p4 = fpn_level(c4, params["lateral_c4_w"], params["lateral_c4_b"],
                   params["output_p4_w"], params["output_p4_b"],
                   skip_nhwc=nearest_up2(p5))

    # p3 = output_p3(lateral_c3(c3) + up2(p4))             (fused, one kernel)
    p3 = fpn_level(c3, params["lateral_c3_w"], params["lateral_c3_b"],
                   params["output_p3_w"], params["output_p3_b"],
                   skip_nhwc=nearest_up2(p4))

    to_nchw = lambda t: jnp.transpose(t, (0, 3, 1, 2))
    return {"p3": to_nchw(p3), "p4": to_nchw(p4), "p5": to_nchw(p5)}


FPN_STRIDES = {"p3": 8, "p4": 16, "p5": 32}


# --------------------------------- main -------------------------------------- #

if __name__ == "__main__":
    out_channels = 64
    key = jax.random.PRNGKey(0)
    pkey, xkey = jax.random.split(key)
    params = init_params(pkey, out_channels)

    # (B, 3, H, W) like the PyTorch module; H, W divisible by 32.
    images = jax.random.normal(xkey, (2, 3, 64, 64), dtype=jnp.float32)

    fpn_feats = jax.jit(lambda im: fpn_forward(params, im))(images)
    jax.block_until_ready(fpn_feats)

    assert fpn_feats["p3"].shape == (2, out_channels, 8, 8)    # stride 8
    assert fpn_feats["p4"].shape == (2, out_channels, 4, 4)    # stride 16
    assert fpn_feats["p5"].shape == (2, out_channels, 2, 2)    # stride 32
    for v in fpn_feats.values():
        assert v.dtype == jnp.float32
        assert bool(jnp.all(jnp.isfinite(v)))

    print("KERNEL_OK")
</pallas_src>

<mosaic_0001>
module attributes {stable_mosaic.version = 11 : i64} {
  func.func @_pw_kernel(%arg0: i32, %arg1: memref<2048x12xf32, #tpu.memory_space<vmem>>, %arg2: memref<12x16xf32, #tpu.memory_space<vmem>>, %arg3: memref<1x16xf32, #tpu.memory_space<vmem>>, %arg4: memref<2048x16xf32, #tpu.memory_space<vmem>>) attributes {dimension_semantics = [#tpu.dimension_semantics<parallel>], iteration_bounds = array<i64: 1>, scalar_prefetch = 0 : i64, scratch_operands = 0 : i64, tpu.core_type = #tpu.core_type<tc>, window_params = [{transform_indices = @transform_0, window_bounds = array<i64: 2048, 12>}, {pipeline_mode = #tpu.pipeline_mode<synchronous>, transform_indices = @transform_1, window_bounds = array<i64: 12, 16>}, {pipeline_mode = #tpu.pipeline_mode<synchronous>, transform_indices = @transform_2, window_bounds = array<i64: 1, 16>}, {transform_indices = @transform_3, window_bounds = array<i64: 2048, 16>}]} {
    %c0 = arith.constant 0 : index
    %c0_0 = arith.constant 0 : index
    %0 = vector.load %arg1[%c0, %c0_0] : memref<2048x12xf32, #tpu.memory_space<vmem>>, vector<2048x12xf32>
    %c0_1 = arith.constant 0 : index
    %c0_2 = arith.constant 0 : index
    %1 = vector.load %arg2[%c0_1, %c0_2] : memref<12x16xf32, #tpu.memory_space<vmem>>, vector<12x16xf32>
    %cst = arith.constant dense<0.000000e+00> : vector<2048x16xf32>
    %2 = tpu.matmul %0, %1, %cst {dimension_numbers = #tpu.dot_dimension_numbers<[1], [0], [0], [1], [0, 0, 1, 1], [], []>} : vector<2048x12xf32>, vector<12x16xf32>, vector<2048x16xf32> -> vector<2048x16xf32>
    %c0_3 = arith.constant 0 : index
    %c0_4 = arith.constant 0 : index
    %3 = vector.load %arg3[%c0_3, %c0_4] : memref<1x16xf32, #tpu.memory_space<vmem>>, vector<1x16xf32>
    %4 = vector.broadcast %3 : vector<1x16xf32> to vector<2048x16xf32>
    %5 = arith.addf %2, %4 : vector<2048x16xf32>
    %cst_5 = arith.constant 0.000000e+00 : f32
    %6 = vector.broadcast %cst_5 : f32 to vector<2048x16xf32>
    %7 = arith.maximumf %5, %6 : vector<2048x16xf32>
    %c0_6 = arith.constant 0 : index
    %c0_7 = arith.constant 0 : index
    %8 = vector.load %arg4[%c0_6, %c0_7] : memref<2048x16xf32, #tpu.memory_space<vmem>>, vector<2048x16xf32>
    tpu.vector_store %arg4[%c0_6, %c0_7], %7 {strides = array<i32>} : memref<2048x16xf32, #tpu.memory_space<vmem>>, vector<2048x16xf32>,
    return
  }
  func.func @transform_0(%arg0: i32) -> (i32, i32) {
    %c0_i32 = arith.constant 0 : i32
    %c0_i32_0 = arith.constant 0 : i32
    return %arg0, %c0_i32 : i32, i32
  }
  func.func @transform_1(%arg0: i32) -> (i32, i32) {
    %c0_i32 = arith.constant 0 : i32
    %c0_i32_0 = arith.constant 0 : i32
    %c0_i32_1 = arith.constant 0 : i32
    return %c0_i32, %c0_i32_0 : i32, i32
  }
  func.func @transform_2(%arg0: i32) -> (i32, i32) {
    %c0_i32 = arith.constant 0 : i32
    %c0_i32_0 = arith.constant 0 : i32
    %c0_i32_1 = arith.constant 0 : i32
    return %c0_i32, %c0_i32_0 : i32, i32
  }
  func.func @transform_3(%arg0: i32) -> (i32, i32) {
    %c0_i32 = arith.constant 0 : i32
    %c0_i32_0 = arith.constant 0 : i32
    return %arg0, %c0_i32 : i32, i32
  }
}

module attributes {stable_mosaic.version = 11 : i64} {
  func.func @_pw_kernel(%arg0: i32, %arg1: memref<512x64xf32, #tpu.memory_space<vmem>>, %arg2: memref<64x32xf32, #tpu.memory_space<vmem>>, %arg3: memref<1x32xf32, #tpu.memory_space<vmem>>, %arg4: memref<512x32xf32, #tpu.memory_space<vmem>>) attributes {dimension_semantics = [#tpu.dimension_semantics<parallel>], iteration_bounds = array<i64: 1>, scalar_prefetch = 0 : i64, scratch_operands = 0 : i64, tpu.core_type = #tpu.core_type<tc>, window_params = [{transform_indices = @transform_0, window_bounds = array<i64: 512, 64>}, {pipeline_mode = #tpu.pipeline_mode<synchronous>, transform_indices = @transform_1, window_bounds = array<i64: 64, 32>}, {pipeline_mode = #tpu.pipeline_mode<synchronous>, transform_indices = @transform_2, window_bounds = array<i64: 1, 32>}, {transform_indices = @transform_3, window_bounds = array<i64: 512, 32>}]} {
    %c0 = arith.constant 0 : index
    %c0_0 = arith.constant 0 : index
    %0 = vector.load %arg1[%c0, %c0_0] : memref<512x64xf32, #tpu.memory_space<vmem>>, vector<512x64xf32>
    %c0_1 = arith.constant 0 : index
    %c0_2 = arith.constant 0 : index
    %1 = vector.load %arg2[%c0_1, %c0_2] : memref<64x32xf32, #tpu.memory_space<vmem>>, vector<64x32xf32>
    %cst = arith.constant dense<0.000000e+00> : vector<512x32xf32>
    %2 = tpu.matmul %0, %1, %cst {dimension_numbers = #tpu.dot_dimension_numbers<[1], [0], [0], [1], [0, 0, 1, 1], [], []>} : vector<512x64xf32>, vector<64x32xf32>, vector<512x32xf32> -> vector<512x32xf32>
    %c0_3 = arith.constant 0 : index
    %c0_4 = arith.constant 0 : index
    %3 = vector.load %arg3[%c0_3, %c0_4] : memref<1x32xf32, #tpu.memory_space<vmem>>, vector<1x32xf32>
    %4 = vector.broadcast %3 : vector<1x32xf32> to vector<512x32xf32>
    %5 = arith.addf %2, %4 : vector<512x32xf32>
    %cst_5 = arith.constant 0.000000e+00 : f32
    %6 = vector.broadcast %cst_5 : f32 to vector<512x32xf32>
    %7 = arith.maximumf %5, %6 : vector<512x32xf32>
    %c0_6 = arith.constant 0 : index
    %c0_7 = arith.constant 0 : index
    %8 = vector.load %arg4[%c0_6, %c0_7] : memref<512x32xf32, #tpu.memory_space<vmem>>, vector<512x32xf32>
    tpu.vector_store %arg4[%c0_6, %c0_7], %7 {strides = array<i32>} : memref<512x32xf32, #tpu.memory_space<vmem>>, vector<512x32xf32>,
    return
  }
  func.func @transform_0(%arg0: i32) -> (i32, i32) {
    %c0_i32 = arith.constant 0 : i32
    %c0_i32_0 = arith.constant 0 : i32
    return %arg0, %c0_i32 : i32, i32
  }
  func.func @transform_1(%arg0: i32) -> (i32, i32) {
    %c0_i32 = arith.constant 0 : i32
    %c0_i32_0 = arith.constant 0 : i32
    %c0_i32_1 = arith.constant 0 : i32
    return %c0_i32, %c0_i32_0 : i32, i32
  }
  func.func @transform_2(%arg0: i32) -> (i32, i32) {
    %c0_i32 = arith.constant 0 : i32
    %c0_i32_0 = arith.constant 0 : i32
    %c0_i32_1 = arith.constant 0 : i32
    return %c0_i32, %c0_i32_0 : i32, i32
  }
  func.func @transform_3(%arg0: i32) -> (i32, i32) {
    %c0_i32 = arith.constant 0 : i32
    %c0_i32_0 = arith.constant 0 : i32
    return %arg0, %c0_i32 : i32, i32
  }
}

module attributes {stable_mosaic.version = 11 : i64} {
  func.func @_pw_kernel(%arg0: i32, %arg1: memref<128x128xf32, #tpu.memory_space<vmem>>, %arg2: memref<128x64xf32, #tpu.memory_space<vmem>>, %arg3: memref<1x64xf32, #tpu.memory_space<vmem>>, %arg4: memref<128x64xf32, #tpu.memory_space<vmem>>) attributes {dimension_semantics = [#tpu.dimension_semantics<parallel>], iteration_bounds = array<i64: 1>, scalar_prefetch = 0 : i64, scratch_operands = 0 : i64, tpu.core_type = #tpu.core_type<tc>, window_params = [{transform_indices = @transform_0, window_bounds = array<i64: 128, 128>}, {pipeline_mode = #tpu.pipeline_mode<synchronous>, transform_indices = @transform_1, window_bounds = array<i64: 128, 64>}, {pipeline_mode = #tpu.pipeline_mode<synchronous>, transform_indices = @transform_2, window_bounds = array<i64: 1, 64>}, {transform_indices = @transform_3, window_bounds = array<i64: 128, 64>}]} {
    %c0 = arith.constant 0 : index
    %c0_0 = arith.constant 0 : index
    %0 = vector.load %arg1[%c0, %c0_0] : memref<128x128xf32, #tpu.memory_space<vmem>>, vector<128x128xf32>
    %c0_1 = arith.constant 0 : index
    %c0_2 = arith.constant 0 : index
    %1 = vector.load %arg2[%c0_1, %c0_2] : memref<128x64xf32, #tpu.memory_space<vmem>>, vector<128x64xf32>
    %cst = arith.constant dense<0.000000e+00> : vector<128x64xf32>
    %2 = tpu.matmul %0, %1, %cst {dimension_numbers = #tpu.dot_dimension_numbers<[1], [0], [0], [1], [0, 0, 1, 1], [], []>} : vector<128x128xf32>, vector<128x64xf32>, vector<128x64xf32> -> vector<128x64xf32>
    %c0_3 = arith.constant 0 : index
    %c0_4 = arith.constant 0 : index
    %3 = vector.load %arg3[%c0_3, %c0_4] : memref<1x64xf32, #tpu.memory_space<vmem>>, vector<1x64xf32>
    %4 = vector.broadcast %3 : vector<1x64xf32> to vector<128x64xf32>
    %5 = arith.addf %2, %4 : vector<128x64xf32>
    %cst_5 = arith.constant 0.000000e+00 : f32
    %6 = vector.broadcast %cst_5 : f32 to vector<128x64xf32>
    %7 = arith.maximumf %5, %6 : vector<128x64xf32>
    %c0_6 = arith.constant 0 : index
    %c0_7 = arith.constant 0 : index
    %8 = vector.load %arg4[%c0_6, %c0_7] : memref<128x64xf32, #tpu.memory_space<vmem>>, vector<128x64xf32>
    tpu.vector_store %arg4[%c0_6, %c0_7], %7 {strides = array<i32>} : memref<128x64xf32, #tpu.memory_space<vmem>>, vector<128x64xf32>,
    return
  }
  func.func @transform_0(%arg0: i32) -> (i32, i32) {
    %c0_i32 = arith.constant 0 : i32
    %c0_i32_0 = arith.constant 0 : i32
    return %arg0, %c0_i32 : i32, i32
  }
  func.func @transform_1(%arg0: i32) -> (i32, i32) {
    %c0_i32 = arith.constant 0 : i32
    %c0_i32_0 = arith.constant 0 : i32
    %c0_i32_1 = arith.constant 0 : i32
    return %c0_i32, %c0_i32_0 : i32, i32
  }
  func.func @transform_2(%arg0: i32) -> (i32, i32) {
    %c0_i32 = arith.constant 0 : i32
    %c0_i32_0 = arith.constant 0 : i32
    %c0_i32_1 = arith.constant 0 : i32
    return %c0_i32, %c0_i32_0 : i32, i32
  }
  func.func @transform_3(%arg0: i32) -> (i32, i32) {
    %c0_i32 = arith.constant 0 : i32
    %c0_i32_0 = arith.constant 0 : i32
    return %arg0, %c0_i32 : i32, i32
  }
}

module attributes {stable_mosaic.version = 11 : i64} {
  func.func @_pw_kernel(%arg0: i32, %arg1: memref<32x256xf32, #tpu.memory_space<vmem>>, %arg2: memref<256x160xf32, #tpu.memory_space<vmem>>, %arg3: memref<1x160xf32, #tpu.memory_space<vmem>>, %arg4: memref<32x160xf32, #tpu.memory_space<vmem>>) attributes {dimension_semantics = [#tpu.dimension_semantics<parallel>], iteration_bounds = array<i64: 1>, scalar_prefetch = 0 : i64, scratch_operands = 0 : i64, tpu.core_type = #tpu.core_type<tc>, window_params = [{transform_indices = @transform_0, window_bounds = array<i64: 32, 256>}, {pipeline_mode = #tpu.pipeline_mode<synchronous>, transform_indices = @transform_1, window_bounds = array<i64: 256, 160>}, {pipeline_mode = #tpu.pipeline_mode<synchronous>, transform_indices = @transform_2, window_bounds = array<i64: 1, 160>}, {transform_indices = @transform_3, window_bounds = array<i64: 32, 160>}]} {
    %c0 = arith.constant 0 : index
    %c0_0 = arith.constant 0 : index
    %0 = vector.load %arg1[%c0, %c0_0] : memref<32x256xf32, #tpu.memory_space<vmem>>, vector<32x256xf32>
    %c0_1 = arith.constant 0 : index
    %c0_2 = arith.constant 0 : index
    %1 = vector.load %arg2[%c0_1, %c0_2] : memref<256x160xf32, #tpu.memory_space<vmem>>, vector<256x160xf32>
    %cst = arith.constant dense<0.000000e+00> : vector<32x160xf32>
    %2 = tpu.matmul %0, %1, %cst {dimension_numbers = #tpu.dot_dimension_numbers<[1], [0], [0], [1], [0, 0, 1, 1], [], []>} : vector<32x256xf32>, vector<256x160xf32>, vector<32x160xf32> -> vector<32x160xf32>
    %c0_3 = arith.constant 0 : index
    %c0_4 = arith.constant 0 : index
    %3 = vector.load %arg3[%c0_3, %c0_4] : memref<1x160xf32, #tpu.memory_space<vmem>>, vector<1x160xf32>
    %4 = vector.broadcast %3 : vector<1x160xf32> to vector<32x160xf32>
    %5 = arith.addf %2, %4 : vector<32x160xf32>
    %cst_5 = arith.constant 0.000000e+00 : f32
    %6 = vector.broadcast %cst_5 : f32 to vector<32x160xf32>
    %7 = arith.maximumf %5, %6 : vector<32x160xf32>
    %c0_6 = arith.constant 0 : index
    %c0_7 = arith.constant 0 : index
    %8 = vector.load %arg4[%c0_6, %c0_7] : memref<32x160xf32, #tpu.memory_space<vmem>>, vector<32x160xf32>
    tpu.vector_store %arg4[%c0_6, %c0_7], %7 {strides = array<i32>} : memref<32x160xf32, #tpu.memory_space<vmem>>, vector<32x160xf32>,
    return
  }
  func.func @transform_0(%arg0: i32) -> (i32, i32) {
    %c0_i32 = arith.constant 0 : i32
    %c0_i32_0 = arith.constant 0 : i32
    return %arg0, %c0_i32 : i32, i32
  }
  func.func @transform_1(%arg0: i32) -> (i32, i32) {
    %c0_i32 = arith.constant 0 : i32
    %c0_i32_0 = arith.constant 0 : i32
    %c0_i32_1 = arith.constant 0 : i32
    return %c0_i32, %c0_i32_0 : i32, i32
  }
  func.func @transform_2(%arg0: i32) -> (i32, i32) {
    %c0_i32 = arith.constant 0 : i32
    %c0_i32_0 = arith.constant 0 : i32
    %c0_i32_1 = arith.constant 0 : i32
    return %c0_i32, %c0_i32_0 : i32, i32
  }
  func.func @transform_3(%arg0: i32) -> (i32, i32) {
    %c0_i32 = arith.constant 0 : i32
    %c0_i32_0 = arith.constant 0 : i32
    return %arg0, %c0_i32 : i32, i32
  }
}

module attributes {stable_mosaic.version = 11 : i64} {
  func.func @_pw_kernel(%arg0: i32, %arg1: memref<8x640xf32, #tpu.memory_space<vmem>>, %arg2: memref<640x400xf32, #tpu.memory_space<vmem>>, %arg3: memref<1x400xf32, #tpu.memory_space<vmem>>, %arg4: memref<8x400xf32, #tpu.memory_space<vmem>>) attributes {dimension_semantics = [#tpu.dimension_semantics<parallel>], iteration_bounds = array<i64: 1>, scalar_prefetch = 0 : i64, scratch_operands = 0 : i64, tpu.core_type = #tpu.core_type<tc>, window_params = [{transform_indices = @transform_0, window_bounds = array<i64: 8, 640>}, {pipeline_mode = #tpu.pipeline_mode<synchronous>, transform_indices = @transform_1, window_bounds = array<i64: 640, 400>}, {pipeline_mode = #tpu.pipeline_mode<synchronous>, transform_indices = @transform_2, window_bounds = array<i64: 1, 400>}, {transform_indices = @transform_3, window_bounds = array<i64: 8, 400>}]} {
    %c0 = arith.constant 0 : index
    %c0_0 = arith.constant 0 : index
    %0 = vector.load %arg1[%c0, %c0_0] : memref<8x640xf32, #tpu.memory_space<vmem>>, vector<8x640xf32>
    %c0_1 = arith.constant 0 : index
    %c0_2 = arith.constant 0 : index
    %1 = vector.load %arg2[%c0_1, %c0_2] : memref<640x400xf32, #tpu.memory_space<vmem>>, vector<640x400xf32>
    %cst = arith.constant dense<0.000000e+00> : vector<8x400xf32>
    %2 = tpu.matmul %0, %1, %cst {dimension_numbers = #tpu.dot_dimension_numbers<[1], [0], [0], [1], [0, 0, 1, 1], [], []>} : vector<8x640xf32>, vector<640x400xf32>, vector<8x400xf32> -> vector<8x400xf32>
    %c0_3 = arith.constant 0 : index
    %c0_4 = arith.constant 0 : index
    %3 = vector.load %arg3[%c0_3, %c0_4] : memref<1x400xf32, #tpu.memory_space<vmem>>, vector<1x400xf32>
    %4 = vector.broadcast %3 : vector<1x400xf32> to vector<8x400xf32>
    %5 = arith.addf %2, %4 : vector<8x400xf32>
    %cst_5 = arith.constant 0.000000e+00 : f32
    %6 = vector.broadcast %cst_5 : f32 to vector<8x400xf32>
    %7 = arith.maximumf %5, %6 : vector<8x400xf32>
    %c0_6 = arith.constant 0 : index
    %c0_7 = arith.constant 0 : index
    %8 = vector.load %arg4[%c0_6, %c0_7] : memref<8x400xf32, #tpu.memory_space<vmem>>, vector<8x400xf32>
    tpu.vector_store %arg4[%c0_6, %c0_7], %7 {strides = array<i32>} : memref<8x400xf32, #tpu.memory_space<vmem>>, vector<8x400xf32>,
    return
  }
  func.func @transform_0(%arg0: i32) -> (i32, i32) {
    %c0_i32 = arith.constant 0 : i32
    %c0_i32_0 = arith.constant 0 : i32
    return %arg0, %c0_i32 : i32, i32
  }
  func.func @transform_1(%arg0: i32) -> (i32, i32) {
    %c0_i32 = arith.constant 0 : i32
    %c0_i32_0 = arith.constant 0 : i32
    %c0_i32_1 = arith.constant 0 : i32
    return %c0_i32, %c0_i32_0 : i32, i32
  }
  func.func @transform_2(%arg0: i32) -> (i32, i32) {
    %c0_i32 = arith.constant 0 : i32
    %c0_i32_0 = arith.constant 0 : i32
    %c0_i32_1 = arith.constant 0 : i32
    return %c0_i32, %c0_i32_0 : i32, i32
  }
  func.func @transform_3(%arg0: i32) -> (i32, i32) {
    %c0_i32 = arith.constant 0 : i32
    %c0_i32_0 = arith.constant 0 : i32
    return %arg0, %c0_i32 : i32, i32
  }
}

module attributes {stable_mosaic.version = 11 : i64} {
  func.func @_fpn_level_kernel(%arg0: i32, %arg1: memref<1x4x400xf32, #tpu.memory_space<vmem>>, %arg2: memref<400x64xf32, #tpu.memory_space<vmem>>, %arg3: memref<1x64xf32, #tpu.memory_space<vmem>>, %arg4: memref<9x64x64xf32, #tpu.memory_space<vmem>>, %arg5: memref<1x64xf32, #tpu.memory_space<vmem>>, %arg6: memref<1x4x64xf32, #tpu.memory_space<vmem>>, %arg7: memref<10x64xf32, #tpu.memory_space<vmem>>) attributes {dimension_semantics = [#tpu.dimension_semantics<parallel>], iteration_bounds = array<i64: 2>, scalar_prefetch = 0 : i64, scratch_operands = 1 : i64, tpu.core_type = #tpu.core_type<tc>, window_params = [{transform_indices = @transform_0, window_bounds = array<i64: 1, 4, 400>}, {pipeline_mode = #tpu.pipeline_mode<synchronous>, transform_indices = @transform_1, window_bounds = array<i64: 400, 64>}, {pipeline_mode = #tpu.pipeline_mode<synchronous>, transform_indices = @transform_2, window_bounds = array<i64: 1, 64>}, {pipeline_mode = #tpu.pipeline_mode<synchronous>, transform_indices = @transform_3, window_bounds = array<i64: 9, 64, 64>}, {pipeline_mode = #tpu.pipeline_mode<synchronous>, transform_indices = @transform_4, window_bounds = array<i64: 1, 64>}, {transform_indices = @transform_5, window_bounds = array<i64: 1, 4, 64>}]} {
    %c0 = arith.constant 0 : index
    %c0_0 = arith.constant 0 : index
    %c0_1 = arith.constant 0 : index
    %0 = vector.load %arg1[%c0, %c0_0, %c0_1] : memref<1x4x400xf32, #tpu.memory_space<vmem>>, vector<1x4x400xf32>
    %1 = vector.shape_cast %0 : vector<1x4x400xf32> to vector<4x400xf32>
    %c0_2 = arith.constant 0 : index
    %c0_3 = arith.constant 0 : index
    %2 = vector.load %arg2[%c0_2, %c0_3] : memref<400x64xf32, #tpu.memory_space<vmem>>, vector<400x64xf32>
    %cst = arith.constant dense<0.000000e+00> : vector<4x64xf32>
    %3 = tpu.matmul %1, %2, %cst {dimension_numbers = #tpu.dot_dimension_numbers<[1], [0], [0], [1], [0, 0, 1, 1], [], []>} : vector<4x400xf32>, vector<400x64xf32>, vector<4x64xf32> -> vector<4x64xf32>
    %c0_4 = arith.constant 0 : index
    %c0_5 = arith.constant 0 : index
    %4 = vector.load %arg3[%c0_4, %c0_5] : memref<1x64xf32, #tpu.memory_space<vmem>>, vector<1x64xf32>
    %5 = vector.broadcast %4 : vector<1x64xf32> to vector<4x64xf32>
    %6 = arith.addf %3, %5 : vector<4x64xf32>
    %cst_6 = arith.constant 0.000000e+00 : f32
    %7 = vector.broadcast %cst_6 : f32 to vector<3x64xf32>
    %c0_7 = arith.constant 0 : index
    %c0_8 = arith.constant 0 : index
    %8 = vector.load %arg7[%c0_7, %c0_8] : memref<10x64xf32, #tpu.memory_space<vmem>>, vector<3x64xf32>
    tpu.vector_store %arg7[%c0_7, %c0_8], %7 {strides = array<i32>} : memref<10x64xf32, #tpu.memory_space<vmem>>, vector<3x64xf32>,
    %c7 = arith.constant 7 : index
    %c0_9 = arith.constant 0 : index
    %9 = vector.load %arg7[%c7, %c0_9] : memref<10x64xf32, #tpu.memory_space<vmem>>, vector<3x64xf32>
    tpu.vector_store %arg7[%c7, %c0_9], %7 {strides = array<i32>} : memref<10x64xf32, #tpu.memory_space<vmem>>, vector<3x64xf32>,
    %c3 = arith.constant 3 : index
    %c0_10 = arith.constant 0 : index
    %10 = vector.load %arg7[%c3, %c0_10] : memref<10x64xf32, #tpu.memory_space<vmem>>, vector<4x64xf32>
    tpu.vector_store %arg7[%c3, %c0_10], %6 {strides = array<i32>} : memref<10x64xf32, #tpu.memory_space<vmem>>, vector<4x64xf32>,
    %11 = tpu.iota {dimensions = array<i32: 0>} : vector<4x1xi32>
    %c2_i32 = arith.constant 2 : i32
    %c0_i32 = arith.constant 0 : i32
    %12 = arith.cmpi eq, %c2_i32, %c0_i32 : i32
    %c1_i32 = arith.constant 1 : i32
    %13 = arith.select %12, %c1_i32, %c2_i32 : i32
    %14 = vector.broadcast %13 : i32 to vector<4x1xi32>
    %15 = arith.remsi %11, %14 : vector<4x1xi32>
    %c0_i32_11 = arith.constant 0 : i32
    %16 = vector.broadcast %c0_i32_11 : i32 to vector<4x1xi32>
    %17 = arith.cmpi ne, %15, %16 : vector<4x1xi32>
    %c0_i32_12 = arith.constant 0 : i32
    %18 = vector.broadcast %c0_i32_12 : i32 to vector<4x1xi32>
    %19 = arith.cmpi slt, %15, %18 : vector<4x1xi32>
    %c0_i32_13 = arith.constant 0 : i32
    %20 = arith.cmpi slt, %13, %c0_i32_13 : i32
    %21 = vector.broadcast %20 : i1 to vector<4x1xi1>
    %22 = vector.broadcast %21 : vector<4x1xi1> to vector<4x1xi1>
    %23 = arith.xori %19, %22 : vector<4x1xi1>
    %24 = arith.andi %23, %17 : vector<4x1xi1>
    %25 = vector.broadcast %13 : i32 to vector<4x1xi32>
    %26 = arith.addi %15, %25 : vector<4x1xi32>
    %27 = arith.select %24, %26, %15 : vector<4x1xi1>, vector<4x1xi32>
    %c1_i32_14 = arith.constant 1 : i32
    %28 = vector.broadcast %c1_i32_14 : i32 to vector<4x1xi32>
    %29 = arith.cmpi sge, %27, %28 : vector<4x1xi32>
    %30 = arith.extui %29 : vector<4x1xi1> to vector<4x1xi32>
    %31 = arith.sitofp %30 : vector<4x1xi32> to vector<4x1xf32>
    %c0_i32_15 = arith.constant 0 : i32
    %32 = vector.broadcast %c0_i32_15 : i32 to vector<4x1xi32>
    %33 = arith.cmpi sle, %27, %32 : vector<4x1xi32>
    %34 = arith.extui %33 : vector<4x1xi1> to vector<4x1xi32>
    %35 = arith.sitofp %34 : vector<4x1xi32> to vector<4x1xf32>
    %cst_16 = arith.constant 0.000000e+00 : f32
    %36 = vector.broadcast %cst_16 : f32 to vector<4x64xf32>
    %c0_17 = arith.constant 0 : index
    %c0_18 = arith.constant 0 : index
    %37 = vector.load %arg7[%c0_17, %c0_18] : memref<10x64xf32, #tpu.memory_space<vmem>>, vector<4x64xf32>
    %38 = vector.broadcast %31 : vector<4x1xf32> to vector<4x64xf32>
    %39 = arith.mulf %37, %38 : vector<4x64xf32>
    %c0_19 = arith.constant 0 : index
    %c0_20 = arith.constant 0 : index
    %c0_21 = arith.constant 0 : index
    %40 = vector.load %arg4[%c0_19, %c0_20, %c0_21] : memref<9x64x64xf32, #tpu.memory_space<vmem>>, vector<1x64x64xf32>
    %41 = vector.shape_cast %40 : vector<1x64x64xf32> to vector<64x64xf32>
    %cst_22 = arith.constant dense<0.000000e+00> : vector<4x64xf32>
    %42 = tpu.matmul %39, %41, %cst_22 {dimension_numbers = #tpu.dot_dimension_numbers<[1], [0], [0], [1], [0, 0, 1, 1], [], []>} : vector<4x64xf32>, vector<64x64xf32>, vector<4x64xf32> -> vector<4x64xf32>
    %43 = arith.addf %36, %42 : vector<4x64xf32>
    %c1 = arith.constant 1 : index
    %c0_23 = arith.constant 0 : index
    %44 = vector.load %arg7[%c1, %c0_23] : memref<10x64xf32, #tpu.memory_space<vmem>>, vector<4x64xf32>
    %c1_24 = arith.constant 1 : index
    %c0_25 = arith.constant 0 : index
    %c0_26 = arith.constant 0 : index
    %45 = vector.load %arg4[%c1_24, %c0_25, %c0_26] : memref<9x64x64xf32, #tpu.memory_space<vmem>>, vector<1x64x64xf32>
    %46 = vector.shape_cast %45 : vector<1x64x64xf32> to vector<64x64xf32>
    %cst_27 = arith.constant dense<0.000000e+00> : vector<4x64xf32>
    %47 = tpu.matmul %44, %46, %cst_27 {dimension_numbers = #tpu.dot_dimension_numbers<[1], [0], [0], [1], [0, 0, 1, 1], [], []>} : vector<4x64xf32>, vector<64x64xf32>, vector<4x64xf32> -> vector<4x64xf32>
    %48 = arith.addf %43, %47 : vector<4x64xf32>
    %c2 = arith.constant 2 : index
    %c0_28 = arith.constant 0 : index
    %49 = vector.load %arg7[%c2, %c0_28] : memref<10x64xf32, #tpu.memory_space<vmem>>, vector<4x64xf32>
    %50 = vector.broadcast %35 : vector<4x1xf32> to vector<4x64xf32>
    %51 = arith.mulf %49, %50 : vector<4x64xf32>
    %c2_29 = arith.constant 2 : index
    %c0_30 = arith.constant 0 : index
    %c0_31 = arith.constant 0 : index
    %52 = vector.load %arg4[%c2_29, %c0_30, %c0_31] : memref<9x64x64xf32, #tpu.memory_space<vmem>>, vector<1x64x64xf32>
    %53 = vector.shape_cast %52 : vector<1x64x64xf32> to vector<64x64xf32>
    %cst_32 = arith.constant dense<0.000000e+00> : vector<4x64xf32>
    %54 = tpu.matmul %51, %53, %cst_32 {dimension_numbers = #tpu.dot_dimension_numbers<[1], [0], [0], [1], [0, 0, 1, 1], [], []>} : vector<4x64xf32>, vector<64x64xf32>, vector<4x64xf32> -> vector<4x64xf32>
    %55 = arith.addf %48, %54 : vector<4x64xf32>
    %c2_33 = arith.constant 2 : index
    %c0_34 = arith.constant 0 : index
    %56 = vector.load %arg7[%c2_33, %c0_34] : memref<10x64xf32, #tpu.memory_space<vmem>>, vector<4x64xf32>
    %57 = vector.broadcast %31 : vector<4x1xf32> to vector<4x64xf32>
    %58 = arith.mulf %56, %57 : vector<4x64xf32>
    %c3_35 = arith.constant 3 : index
    %c0_36 = arith.constant 0 : index
    %c0_37 = arith.constant 0 : index
    %59 = vector.load %arg4[%c3_35, %c0_36, %c0_37] : memref<9x64x64xf32, #tpu.memory_space<vmem>>, vector<1x64x64xf32>
    %60 = vector.shape_cast %59 : vector<1x64x64xf32> to vector<64x64xf32>
    %cst_38 = arith.constant dense<0.000000e+00> : vector<4x64xf32>
    %61 = tpu.matmul %58, %60, %cst_38 {dimension_numbers = #tpu.dot_dimension_numbers<[1], [0], [0], [1], [0, 0, 1, 1], [], []>} : vector<4x64xf32>, vector<64x64xf32>, vector<4x64xf32> -> vector<4x64xf32>
    %62 = arith.addf %55, %61 : vector<4x64xf32>
    %c3_39 = arith.constant 3 : index
    %c0_40 = arith.constant 0 : index
    %63 = vector.load %arg7[%c3_39, %c0_40] : memref<10x64xf32, #tpu.memory_space<vmem>>, vector<4x64xf32>
    %c4 = arith.constant 4 : index
    %c0_41 = arith.constant 0 : index
    %c0_42 = arith.constant 0 : index
    %64 = vector.load %arg4[%c4, %c0_41, %c0_42] : memref<9x64x64xf32, #tpu.memory_space<vmem>>, vector<1x64x64xf32>
    %65 = vector.shape_cast %64 : vector<1x64x64xf32> to vector<64x64xf32>
    %cst_43 = arith.constant dense<0.000000e+00> : vector<4x64xf32>
    %66 = tpu.matmul %63, %65, %cst_43 {dimension_numbers = #tpu.dot_dimension_numbers<[1], [0], [0], [1], [0, 0, 1, 1], [], []>} : vector<4x64xf32>, vector<64x64xf32>, vector<4x64xf32> -> vector<4x64xf32>
    %67 = arith.addf %62, %66 : vector<4x64xf32>
    %c4_44 = arith.constant 4 : index
    %c0_45 = arith.constant 0 : index
    %68 = vector.load %arg7[%c4_44, %c0_45] : memref<10x64xf32, #tpu.memory_space<vmem>>, vector<4x64xf32>
    %69 = vector.broadcast %35 : vector<4x1xf32> to vector<4x64xf32>
    %70 = arith.mulf %68, %69 : vector<4x64xf32>
    %c5 = arith.constant 5 : index
    %c0_46 = arith.constant 0 : index
    %c0_47 = arith.constant 0 : index
    %71 = vector.load %arg4[%c5, %c0_46, %c0_47] : memref<9x64x64xf32, #tpu.memory_space<vmem>>, vector<1x64x64xf32>
    %72 = vector.shape_cast %71 : vector<1x64x64xf32> to vector<64x64xf32>
    %cst_48 = arith.constant dense<0.000000e+00> : vector<4x64xf32>
    %73 = tpu.matmul %70, %72, %cst_48 {dimension_numbers = #tpu.dot_dimension_numbers<[1], [0], [0], [1], [0, 0, 1, 1], [], []>} : vector<4x64xf32>, vector<64x64xf32>, vector<4x64xf32> -> vector<4x64xf32>
    %74 = arith.addf %67, %73 : vector<4x64xf32>
    %c4_49 = arith.constant 4 : index
    %c0_50 = arith.constant 0 : index
    %75 = vector.load %arg7[%c4_49, %c0_50] : memref<10x64xf32, #tpu.memory_space<vmem>>, vector<4x64xf32>
    %76 = vector.broadcast %31 : vector<4x1xf32> to vector<4x64xf32>
    %77 = arith.mulf %75, %76 : vector<4x64xf32>
    %c6 = arith.constant 6 : index
    %c0_51 = arith.constant 0 : index
    %c0_52 = arith.constant 0 : index
    %78 = vector.load %arg4[%c6, %c0_51, %c0_52] : memref<9x64x64xf32, #tpu.memory_space<vmem>>, vector<1x64x64xf32>
    %79 = vector.shape_cast %78 : vector<1x64x64xf32> to vector<64x64xf32>
    %cst_53 = arith.constant dense<0.000000e+00> : vector<4x64xf32>
    %80 = tpu.matmul %77, %79, %cst_53 {dimension_numbers = #tpu.dot_dimension_numbers<[1], [0], [0], [1], [0, 0, 1, 1], [], []>} : vector<4x64xf32>, vector<64x64xf32>, vector<4x64xf32> -> vector<4x64xf32>
    %81 = arith.addf %74, %80 : vector<4x64xf32>
    %c5_54 = arith.constant 5 : index
    %c0_55 = arith.constant 0 : index
    %82 = vector.load %arg7[%c5_54, %c0_55] : memref<10x64xf32, #tpu.memory_space<vmem>>, vector<4x64xf32>
    %c7_56 = arith.constant 7 : index
    %c0_57 = arith.constant 0 : index
    %c0_58 = arith.constant 0 : index
    %83 = vector.load %arg4[%c7_56, %c0_57, %c0_58] : memref<9x64x64xf32, #tpu.memory_space<vmem>>, vector<1x64x64xf32>
    %84 = vector.shape_cast %83 : vector<1x64x64xf32> to vector<64x64xf32>
    %cst_59 = arith.constant dense<0.000000e+00> : vector<4x64xf32>
    %85 = tpu.matmul %82, %84, %cst_59 {dimension_numbers = #tpu.dot_dimension_numbers<[1], [0], [0], [1], [0, 0, 1, 1], [], []>} : vector<4x64xf32>, vector<64x64xf32>, vector<4x64xf32> -> vector<4x64xf32>
    %86 = arith.addf %81, %85 : vector<4x64xf32>
    %c6_60 = arith.constant 6 : index
    %c0_61 = arith.constant 0 : index
    %87 = vector.load %arg7[%c6_60, %c0_61] : memref<10x64xf32, #tpu.memory_space<vmem>>, vector<4x64xf32>
    %88 = vector.broadcast %35 : vector<4x1xf32> to vector<4x64xf32>
    %89 = arith.mulf %87, %88 : vector<4x64xf32>
    %c8 = arith.constant 8 : index
    %c0_62 = arith.constant 0 : index
    %c0_63 = arith.constant 0 : index
    %90 = vector.load %arg4[%c8, %c0_62, %c0_63] : memref<9x64x64xf32, #tpu.memory_space<vmem>>, vector<1x64x64xf32>
    %91 = vector.shape_cast %90 : vector<1x64x64xf32> to vector<64x64xf32>
    %cst_64 = arith.constant dense<0.000000e+00> : vector<4x64xf32>
    %92 = tpu.matmul %89, %91, %cst_64 {dimension_numbers = #tpu.dot_dimension_numbers<[1], [0], [0], [1], [0, 0, 1, 1], [], []>} : vector<4x64xf32>, vector<64x64xf32>, vector<4x64xf32> -> vector<4x64xf32>
    %93 = arith.addf %86, %92 : vector<4x64xf32>
    %c0_65 = arith.constant 0 : index
    %c0_66 = arith.constant 0 : index
    %94 = vector.load %arg5[%c0_65, %c0_66] : memref<1x64xf32, #tpu.memory_space<vmem>>, vector<1x64xf32>
    %95 = vector.broadcast %94 : vector<1x64xf32> to vector<4x64xf32>
    %96 = arith.addf %93, %95 : vector<4x64xf32>
    %c0_67 = arith.constant 0 : index
    %c0_68 = arith.constant 0 : index
    %c0_69 = arith.constant 0 : index
    %97 = vector.load %arg6[%c0_67, %c0_68, %c0_69] : memref<1x4x64xf32, #tpu.memory_space<vmem>>, vector<1x4x64xf32>
    %98 = vector.shape_cast %97 : vector<1x4x64xf32> to vector<4x64xf32>
    %99 = vector.shape_cast %96 : vector<4x64xf32> to vector<1x4x64xf32>
    tpu.vector_store %arg6[%c0_67, %c0_68, %c0_69], %99 {strides = array<i32>} : memref<1x4x64xf32, #tpu.memory_space<vmem>>, vector<1x4x64xf32>,
    return
  }
  func.func @transform_0(%arg0: i32) -> (i32, i32, i32) {
    %c0_i32 = arith.constant 0 : i32
    %c0_i32_0 = arith.constant 0 : i32
    %c0_i32_1 = arith.constant 0 : i32
    return %arg0, %c0_i32, %c0_i32_0 : i32, i32, i32
  }
  func.func @transform_1(%arg0: i32) -> (i32, i32) {
    %c0_i32 = arith.constant 0 : i32
    %c0_i32_0 = arith.constant 0 : i32
    %c0_i32_1 = arith.constant 0 : i32
    return %c0_i32, %c0_i32_0 : i32, i32
  }
  func.func @transform_2(%arg0: i32) -> (i32, i32) {
    %c0_i32 = arith.constant 0 : i32
    %c0_i32_0 = arith.constant 0 : i32
    %c0_i32_1 = arith.constant 0 : i32
    return %c0_i32, %c0_i32_0 : i32, i32
  }
  func.func @transform_3(%arg0: i32) -> (i32, i32, i32) {
    %c0_i32 = arith.constant 0 : i32
    %c0_i32_0 = arith.constant 0 : i32
    %c0_i32_1 = arith.constant 0 : i32
    %c0_i32_2 = arith.constant 0 : i32
    return %c0_i32, %c0_i32_0, %c0_i32_1 : i32, i32, i32
  }
  func.func @transform_4(%arg0: i32) -> (i32, i32) {
    %c0_i32 = arith.constant 0 : i32
    %c0_i32_0 = arith.constant 0 : i32
    %c0_i32_1 = arith.constant 0 : i32
    return %c0_i32, %c0_i32_0 : i32, i32
  }
  func.func @transform_5(%arg0: i32) -> (i32, i32, i32) {
    %c0_i32 = arith.constant 0 : i32
    %c0_i32_0 = arith.constant 0 : i32
    %c0_i32_1 = arith.constant 0 : i32
    return %arg0, %c0_i32, %c0_i32_0 : i32, i32, i32
  }
}

module attributes {stable_mosaic.version = 11 : i64} {
  func.func @_fpn_level_kernel(%arg0: i32, %arg1: memref<1x16x160xf32, #tpu.memory_space<vmem>>, %arg2: memref<1x16x64xf32, #tpu.memory_space<vmem>>, %arg3: memref<160x64xf32, #tpu.memory_space<vmem>>, %arg4: memref<1x64xf32, #tpu.memory_space<vmem>>, %arg5: memref<9x64x64xf32, #tpu.memory_space<vmem>>, %arg6: memref<1x64xf32, #tpu.memory_space<vmem>>, %arg7: memref<1x16x64xf32, #tpu.memory_space<vmem>>, %arg8: memref<26x64xf32, #tpu.memory_space<vmem>>) attributes {dimension_semantics = [#tpu.dimension_semantics<parallel>], iteration_bounds = array<i64: 2>, scalar_prefetch = 0 : i64, scratch_operands = 1 : i64, tpu.core_type = #tpu.core_type<tc>, window_params = [{transform_indices = @transform_0, window_bounds = array<i64: 1, 16, 160>}, {transform_indices = @transform_1, window_bounds = array<i64: 1, 16, 64>}, {pipeline_mode = #tpu.pipeline_mode<synchronous>, transform_indices = @transform_2, window_bounds = array<i64: 160, 64>}, {pipeline_mode = #tpu.pipeline_mode<synchronous>, transform_indices = @transform_3, window_bounds = array<i64: 1, 64>}, {pipeline_mode = #tpu.pipeline_mode<synchronous>, transform_indices = @transform_4, window_bounds = array<i64: 9, 64, 64>}, {pipeline_mode = #tpu.pipeline_mode<synchronous>, transform_indices = @transform_5, window_bounds = array<i64: 1, 64>}, {transform_indices = @transform_6, window_bounds = array<i64: 1, 16, 64>}]} {
    %c0 = arith.constant 0 : index
    %c0_0 = arith.constant 0 : index
    %c0_1 = arith.constant 0 : index
    %0 = vector.load %arg1[%c0, %c0_0, %c0_1] : memref<1x16x160xf32, #tpu.memory_space<vmem>>, vector<1x16x160xf32>
    %1 = vector.shape_cast %0 : vector<1x16x160xf32> to vector<16x160xf32>
    %c0_2 = arith.constant 0 : index
    %c0_3 = arith.constant 0 : index
    %2 = vector.load %arg3[%c0_2, %c0_3] : memref<160x64xf32, #tpu.memory_space<vmem>>, vector<160x64xf32>
    %cst = arith.constant dense<0.000000e+00> : vector<16x64xf32>
    %3 = tpu.matmul %1, %2, %cst {dimension_numbers = #tpu.dot_dimension_numbers<[1], [0], [0], [1], [0, 0, 1, 1], [], []>} : vector<16x160xf32>, vector<160x64xf32>, vector<16x64xf32> -> vector<16x64xf32>
    %c0_4 = arith.constant 0 : index
    %c0_5 = arith.constant 0 : index
    %4 = vector.load %arg4[%c0_4, %c0_5] : memref<1x64xf32, #tpu.memory_space<vmem>>, vector<1x64xf32>
    %5 = vector.broadcast %4 : vector<1x64xf32> to vector<16x64xf32>
    %6 = arith.addf %3, %5 : vector<16x64xf32>
    %c0_6 = arith.constant 0 : index
    %c0_7 = arith.constant 0 : index
    %c0_8 = arith.constant 0 : index
    %7 = vector.load %arg2[%c0_6, %c0_7, %c0_8] : memref<1x16x64xf32, #tpu.memory_space<vmem>>, vector<1x16x64xf32>
    %8 = vector.shape_cast %7 : vector<1x16x64xf32> to vector<16x64xf32>
    %9 = arith.addf %6, %8 : vector<16x64xf32>
    %cst_9 = arith.constant 0.000000e+00 : f32
    %10 = vector.broadcast %cst_9 : f32 to vector<5x64xf32>
    %c0_10 = arith.constant 0 : index
    %c0_11 = arith.constant 0 : index
    %11 = vector.load %arg8[%c0_10, %c0_11] : memref<26x64xf32, #tpu.memory_space<vmem>>, vector<5x64xf32>
    tpu.vector_store %arg8[%c0_10, %c0_11], %10 {strides = array<i32>} : memref<26x64xf32, #tpu.memory_space<vmem>>, vector<5x64xf32>,
    %c21 = arith.constant 21 : index
    %c0_12 = arith.constant 0 : index
    %12 = vector.load %arg8[%c21, %c0_12] : memref<26x64xf32, #tpu.memory_space<vmem>>, vector<5x64xf32>
    tpu.vector_store %arg8[%c21, %c0_12], %10 {strides = array<i32>} : memref<26x64xf32, #tpu.memory_space<vmem>>, vector<5x64xf32>,
    %c5 = arith.constant 5 : index
    %c0_13 = arith.constant 0 : index
    %13 = vector.load %arg8[%c5, %c0_13] : memref<26x64xf32, #tpu.memory_space<vmem>>, vector<16x64xf32>
    tpu.vector_store %arg8[%c5, %c0_13], %9 {strides = array<i32>} : memref<26x64xf32, #tpu.memory_space<vmem>>, vector<16x64xf32>,
    %14 = tpu.iota {dimensions = array<i32: 0>} : vector<16x1xi32>
    %c4_i32 = arith.constant 4 : i32
    %c0_i32 = arith.constant 0 : i32
    %15 = arith.cmpi eq, %c4_i32, %c0_i32 : i32
    %c1_i32 = arith.constant 1 : i32
    %16 = arith.select %15, %c1_i32, %c4_i32 : i32
    %17 = vector.broadcast %16 : i32 to vector<16x1xi32>
    %18 = arith.remsi %14, %17 : vector<16x1xi32>
    %c0_i32_14 = arith.constant 0 : i32
    %19 = vector.broadcast %c0_i32_14 : i32 to vector<16x1xi32>
    %20 = arith.cmpi ne, %18, %19 : vector<16x1xi32>
    %c0_i32_15 = arith.constant 0 : i32
    %21 = vector.broadcast %c0_i32_15 : i32 to vector<16x1xi32>
    %22 = arith.cmpi slt, %18, %21 : vector<16x1xi32>
    %c0_i32_16 = arith.constant 0 : i32
    %23 = arith.cmpi slt, %16, %c0_i32_16 : i32
    %24 = vector.broadcast %23 : i1 to vector<16x1xi1>
    %25 = vector.broadcast %24 : vector<16x1xi1> to vector<16x1xi1>
    %26 = arith.xori %22, %25 : vector<16x1xi1>
    %27 = arith.andi %26, %20 : vector<16x1xi1>
    %28 = vector.broadcast %16 : i32 to vector<16x1xi32>
    %29 = arith.addi %18, %28 : vector<16x1xi32>
    %30 = arith.select %27, %29, %18 : vector<16x1xi1>, vector<16x1xi32>
    %c1_i32_17 = arith.constant 1 : i32
    %31 = vector.broadcast %c1_i32_17 : i32 to vector<16x1xi32>
    %32 = arith.cmpi sge, %30, %31 : vector<16x1xi32>
    %33 = arith.extui %32 : vector<16x1xi1> to vector<16x1xi32>
    %34 = arith.sitofp %33 : vector<16x1xi32> to vector<16x1xf32>
    %c2_i32 = arith.constant 2 : i32
    %35 = vector.broadcast %c2_i32 : i32 to vector<16x1xi32>
    %36 = arith.cmpi sle, %30, %35 : vector<16x1xi32>
    %37 = arith.extui %36 : vector<16x1xi1> to vector<16x1xi32>
    %38 = arith.sitofp %37 : vector<16x1xi32> to vector<16x1xf32>
    %cst_18 = arith.constant 0.000000e+00 : f32
    %39 = vector.broadcast %cst_18 : f32 to vector<16x64xf32>
    %c0_19 = arith.constant 0 : index
    %c0_20 = arith.constant 0 : index
    %40 = vector.load %arg8[%c0_19, %c0_20] : memref<26x64xf32, #tpu.memory_space<vmem>>, vector<16x64xf32>
    %41 = vector.broadcast %34 : vector<16x1xf32> to vector<16x64xf32>
    %42 = arith.mulf %40, %41 : vector<16x64xf32>
    %c0_21 = arith.constant 0 : index
    %c0_22 = arith.constant 0 : index
    %c0_23 = arith.constant 0 : index
    %43 = vector.load %arg5[%c0_21, %c0_22, %c0_23] : memref<9x64x64xf32, #tpu.memory_space<vmem>>, vector<1x64x64xf32>
    %44 = vector.shape_cast %43 : vector<1x64x64xf32> to vector<64x64xf32>
    %cst_24 = arith.constant dense<0.000000e+00> : vector<16x64xf32>
    %45 = tpu.matmul %42, %44, %cst_24 {dimension_numbers = #tpu.dot_dimension_numbers<[1], [0], [0], [1], [0, 0, 1, 1], [], []>} : vector<16x64xf32>, vector<64x64xf32>, vector<16x64xf32> -> vector<16x64xf32>
    %46 = arith.addf %39, %45 : vector<16x64xf32>
    %c1 = arith.constant 1 : index
    %c0_25 = arith.constant 0 : index
    %47 = vector.load %arg8[%c1, %c0_25] : memref<26x64xf32, #tpu.memory_space<vmem>>, vector<16x64xf32>
    %c1_26 = arith.constant 1 : index
    %c0_27 = arith.constant 0 : index
    %c0_28 = arith.constant 0 : index
    %48 = vector.load %arg5[%c1_26, %c0_27, %c0_28] : memref<9x64x64xf32, #tpu.memory_space<vmem>>, vector<1x64x64xf32>
    %49 = vector.shape_cast %48 : vector<1x64x64xf32> to vector<64x64xf32>
    %cst_29 = arith.constant dense<0.000000e+00> : vector<16x64xf32>
    %50 = tpu.matmul %47, %49, %cst_29 {dimension_numbers = #tpu.dot_dimension_numbers<[1], [0], [0], [1], [0, 0, 1, 1], [], []>} : vector<16x64xf32>, vector<64x64xf32>, vector<16x64xf32> -> vector<16x64xf32>
    %51 = arith.addf %46, %50 : vector<16x64xf32>
    %c2 = arith.constant 2 : index
    %c0_30 = arith.constant 0 : index
    %52 = vector.load %arg8[%c2, %c0_30] : memref<26x64xf32, #tpu.memory_space<vmem>>, vector<16x64xf32>
    %53 = vector.broadcast %38 : vector<16x1xf32> to vector<16x64xf32>
    %54 = arith.mulf %52, %53 : vector<16x64xf32>
    %c2_31 = arith.constant 2 : index
    %c0_32 = arith.constant 0 : index
    %c0_33 = arith.constant 0 : index
    %55 = vector.load %arg5[%c2_31, %c0_32, %c0_33] : memref<9x64x64xf32, #tpu.memory_space<vmem>>, vector<1x64x64xf32>
    %56 = vector.shape_cast %55 : vector<1x64x64xf32> to vector<64x64xf32>
    %cst_34 = arith.constant dense<0.000000e+00> : vector<16x64xf32>
    %57 = tpu.matmul %54, %56, %cst_34 {dimension_numbers = #tpu.dot_dimension_numbers<[1], [0], [0], [1], [0, 0, 1, 1], [], []>} : vector<16x64xf32>, vector<64x64xf32>, vector<16x64xf32> -> vector<16x64xf32>
    %58 = arith.addf %51, %57 : vector<16x64xf32>
    %c4 = arith.constant 4 : index
    %c0_35 = arith.constant 0 : index
    %59 = vector.load %arg8[%c4, %c0_35] : memref<26x64xf32, #tpu.memory_space<vmem>>, vector<16x64xf32>
    %60 = vector.broadcast %34 : vector<16x1xf32> to vector<16x64xf32>
    %61 = arith.mulf %59, %60 : vector<16x64xf32>
    %c3 = arith.constant 3 : index
    %c0_36 = arith.constant 0 : index
    %c0_37 = arith.constant 0 : index
    %62 = vector.load %arg5[%c3, %c0_36, %c0_37] : memref<9x64x64xf32, #tpu.memory_space<vmem>>, vector<1x64x64xf32>
    %63 = vector.shape_cast %62 : vector<1x64x64xf32> to vector<64x64xf32>
    %cst_38 = arith.constant dense<0.000000e+00> : vector<16x64xf32>
    %64 = tpu.matmul %61, %63, %cst_38 {dimension_numbers = #tpu.dot_dimension_numbers<[1], [0], [0], [1], [0, 0, 1, 1], [], []>} : vector<16x64xf32>, vector<64x64xf32>, vector<16x64xf32> -> vector<16x64xf32>
    %65 = arith.addf %58, %64 : vector<16x64xf32>
    %c5_39 = arith.constant 5 : index
    %c0_40 = arith.constant 0 : index
    %66 = vector.load %arg8[%c5_39, %c0_40] : memref<26x64xf32, #tpu.memory_space<vmem>>, vector<16x64xf32>
    %c4_41 = arith.constant 4 : index
    %c0_42 = arith.constant 0 : index
    %c0_43 = arith.constant 0 : index
    %67 = vector.load %arg5[%c4_41, %c0_42, %c0_43] : memref<9x64x64xf32, #tpu.memory_space<vmem>>, vector<1x64x64xf32>
    %68 = vector.shape_cast %67 : vector<1x64x64xf32> to vector<64x64xf32>
    %cst_44 = arith.constant dense<0.000000e+00> : vector<16x64xf32>
    %69 = tpu.matmul %66, %68, %cst_44 {dimension_numbers = #tpu.dot_dimension_numbers<[1], [0], [0], [1], [0, 0, 1, 1], [], []>} : vector<16x64xf32>, vector<64x64xf32>, vector<16x64xf32> -> vector<16x64xf32>
    %70 = arith.addf %65, %69 : vector<16x64xf32>
    %c6 = arith.constant 6 : index
    %c0_45 = arith.constant 0 : index
    %71 = vector.load %arg8[%c6, %c0_45] : memref<26x64xf32, #tpu.memory_space<vmem>>, vector<16x64xf32>
    %72 = vector.broadcast %38 : vector<16x1xf32> to vector<16x64xf32>
    %73 = arith.mulf %71, %72 : vector<16x64xf32>
    %c5_46 = arith.constant 5 : index
    %c0_47 = arith.constant 0 : index
    %c0_48 = arith.constant 0 : index
    %74 = vector.load %arg5[%c5_46, %c0_47, %c0_48] : memref<9x64x64xf32, #tpu.memory_space<vmem>>, vector<1x64x64xf32>
    %75 = vector.shape_cast %74 : vector<1x64x64xf32> to vector<64x64xf32>
    %cst_49 = arith.constant dense<0.000000e+00> : vector<16x64xf32>
    %76 = tpu.matmul %73, %75, %cst_49 {dimension_numbers = #tpu.dot_dimension_numbers<[1], [0], [0], [1], [0, 0, 1, 1], [], []>} : vector<16x64xf32>, vector<64x64xf32>, vector<16x64xf32> -> vector<16x64xf32>
    %77 = arith.addf %70, %76 : vector<16x64xf32>
    %c8 = arith.constant 8 : index
    %c0_50 = arith.constant 0 : index
    %78 = vector.load %arg8[%c8, %c0_50] : memref<26x64xf32, #tpu.memory_space<vmem>>, vector<16x64xf32>
    %79 = vector.broadcast %34 : vector<16x1xf32> to vector<16x64xf32>
    %80 = arith.mulf %78, %79 : vector<16x64xf32>
    %c6_51 = arith.constant 6 : index
    %c0_52 = arith.constant 0 : index
    %c0_53 = arith.constant 0 : index
    %81 = vector.load %arg5[%c6_51, %c0_52, %c0_53] : memref<9x64x64xf32, #tpu.memory_space<vmem>>, vector<1x64x64xf32>
    %82 = vector.shape_cast %81 : vector<1x64x64xf32> to vector<64x64xf32>
    %cst_54 = arith.constant dense<0.000000e+00> : vector<16x64xf32>
    %83 = tpu.matmul %80, %82, %cst_54 {dimension_numbers = #tpu.dot_dimension_numbers<[1], [0], [0], [1], [0, 0, 1, 1], [], []>} : vector<16x64xf32>, vector<64x64xf32>, vector<16x64xf32> -> vector<16x64xf32>
    %84 = arith.addf %77, %83 : vector<16x64xf32>
    %c9 = arith.constant 9 : index
    %c0_55 = arith.constant 0 : index
    %85 = vector.load %arg8[%c9, %c0_55] : memref<26x64xf32, #tpu.memory_space<vmem>>, vector<16x64xf32>
    %c7 = arith.constant 7 : index
    %c0_56 = arith.constant 0 : index
    %c0_57 = arith.constant 0 : index
    %86 = vector.load %arg5[%c7, %c0_56, %c0_57] : memref<9x64x64xf32, #tpu.memory_space<vmem>>, vector<1x64x64xf32>
    %87 = vector.shape_cast %86 : vector<1x64x64xf32> to vector<64x64xf32>
    %cst_58 = arith.constant dense<0.000000e+00> : vector<16x64xf32>
    %88 = tpu.matmul %85, %87, %cst_58 {dimension_numbers = #tpu.dot_dimension_numbers<[1], [0], [0], [1], [0, 0, 1, 1], [], []>} : vector<16x64xf32>, vector<64x64xf32>, vector<16x64xf32> -> vector<16x64xf32>
    %89 = arith.addf %84, %88 : vector<16x64xf32>
    %c10 = arith.constant 10 : index
    %c0_59 = arith.constant 0 : index
    %90 = vector.load %arg8[%c10, %c0_59] : memref<26x64xf32, #tpu.memory_space<vmem>>, vector<16x64xf32>
    %91 = vector.broadcast %38 : vector<16x1xf32> to vector<16x64xf32>
    %92 = arith.mulf %90, %91 : vector<16x64xf32>
    %c8_60 = arith.constant 8 : index
    %c0_61 = arith.constant 0 : index
    %c0_62 = arith.constant 0 : index
    %93 = vector.load %arg5[%c8_60, %c0_61, %c0_62] : memref<9x64x64xf32, #tpu.memory_space<vmem>>, vector<1x64x64xf32>
    %94 = vector.shape_cast %93 : vector<1x64x64xf32> to vector<64x64xf32>
    %cst_63 = arith.constant dense<0.000000e+00> : vector<16x64xf32>
    %95 = tpu.matmul %92, %94, %cst_63 {dimension_numbers = #tpu.dot_dimension_numbers<[1], [0], [0], [1], [0, 0, 1, 1], [], []>} : vector<16x64xf32>, vector<64x64xf32>, vector<16x64xf32> -> vector<16x64xf32>
    %96 = arith.addf %89, %95 : vector<16x64xf32>
    %c0_64 = arith.constant 0 : index
    %c0_65 = arith.constant 0 : index
    %97 = vector.load %arg6[%c0_64, %c0_65] : memref<1x64xf32, #tpu.memory_space<vmem>>, vector<1x64xf32>
    %98 = vector.broadcast %97 : vector<1x64xf32> to vector<16x64xf32>
    %99 = arith.addf %96, %98 : vector<16x64xf32>
    %c0_66 = arith.constant 0 : index
    %c0_67 = arith.constant 0 : index
    %c0_68 = arith.constant 0 : index
    %100 = vector.load %arg7[%c0_66, %c0_67, %c0_68] : memref<1x16x64xf32, #tpu.memory_space<vmem>>, vector<1x16x64xf32>
    %101 = vector.shape_cast %100 : vector<1x16x64xf32> to vector<16x64xf32>
    %102 = vector.shape_cast %99 : vector<16x64xf32> to vector<1x16x64xf32>
    tpu.vector_store %arg7[%c0_66, %c0_67, %c0_68], %102 {strides = array<i32>} : memref<1x16x64xf32, #tpu.memory_space<vmem>>, vector<1x16x64xf32>,
    return
  }
  func.func @transform_0(%arg0: i32) -> (i32, i32, i32) {
    %c0_i32 = arith.constant 0 : i32
    %c0_i32_0 = arith.constant 0 : i32
    %c0_i32_1 = arith.constant 0 : i32
    return %arg0, %c0_i32, %c0_i32_0 : i32, i32, i32
  }
  func.func @transform_1(%arg0: i32) -> (i32, i32, i32) {
    %c0_i32 = arith.constant 0 : i32
    %c0_i32_0 = arith.constant 0 : i32
    %c0_i32_1 = arith.constant 0 : i32
    return %arg0, %c0_i32, %c0_i32_0 : i32, i32, i32
  }
  func.func @transform_2(%arg0: i32) -> (i32, i32) {
    %c0_i32 = arith.constant 0 : i32
    %c0_i32_0 = arith.constant 0 : i32
    %c0_i32_1 = arith.constant 0 : i32
    return %c0_i32, %c0_i32_0 : i32, i32
  }
  func.func @transform_3(%arg0: i32) -> (i32, i32) {
    %c0_i32 = arith.constant 0 : i32
    %c0_i32_0 = arith.constant 0 : i32
    %c0_i32_1 = arith.constant 0 : i32
    return %c0_i32, %c0_i32_0 : i32, i32
  }
  func.func @transform_4(%arg0: i32) -> (i32, i32, i32) {
    %c0_i32 = arith.constant 0 : i32
    %c0_i32_0 = arith.constant 0 : i32
    %c0_i32_1 = arith.constant 0 : i32
    %c0_i32_2 = arith.constant 0 : i32
    return %c0_i32, %c0_i32_0, %c0_i32_1 : i32, i32, i32
  }
  func.func @transform_5(%arg0: i32) -> (i32, i32) {
    %c0_i32 = arith.constant 0 : i32
    %c0_i32_0 = arith.constant 0 : i32
    %c0_i32_1 = arith.constant 0 : i32
    return %c0_i32, %c0_i32_0 : i32, i32
  }
  func.func @transform_6(%arg0: i32) -> (i32, i32, i32) {
    %c0_i32 = arith.constant 0 : i32
    %c0_i32_0 = arith.constant 0 : i32
    %c0_i32_1 = arith.constant 0 : i32
    return %arg0, %c0_i32, %c0_i32_0 : i32, i32, i32
  }
}

module attributes {stable_mosaic.version = 11 : i64} {
  func.func @_fpn_level_kernel(%arg0: i32, %arg1: memref<1x64x64xf32, #tpu.memory_space<vmem>>, %arg2: memref<1x64x64xf32, #tpu.memory_space<vmem>>, %arg3: memref<64x64xf32, #tpu.memory_space<vmem>>, %arg4: memref<1x64xf32, #tpu.memory_space<vmem>>, %arg5: memref<9x64x64xf32, #tpu.memory_space<vmem>>, %arg6: memref<1x64xf32, #tpu.memory_space<vmem>>, %arg7: memref<1x64x64xf32, #tpu.memory_space<vmem>>, %arg8: memref<82x64xf32, #tpu.memory_space<vmem>>) attributes {dimension_semantics = [#tpu.dimension_semantics<parallel>], iteration_bounds = array<i64: 2>, scalar_prefetch = 0 : i64, scratch_operands = 1 : i64, tpu.core_type = #tpu.core_type<tc>, window_params = [{transform_indices = @transform_0, window_bounds = array<i64: 1, 64, 64>}, {transform_indices = @transform_1, window_bounds = array<i64: 1, 64, 64>}, {pipeline_mode = #tpu.pipeline_mode<synchronous>, transform_indices = @transform_2, window_bounds = array<i64: 64, 64>}, {pipeline_mode = #tpu.pipeline_mode<synchronous>, transform_indices = @transform_3, window_bounds = array<i64: 1, 64>}, {pipeline_mode = #tpu.pipeline_mode<synchronous>, transform_indices = @transform_4, window_bounds = array<i64: 9, 64, 64>}, {pipeline_mode = #tpu.pipeline_mode<synchronous>, transform_indices = @transform_5, window_bounds = array<i64: 1, 64>}, {transform_indices = @transform_6, window_bounds = array<i64: 1, 64, 64>}]} {
    %c0 = arith.constant 0 : index
    %c0_0 = arith.constant 0 : index
    %c0_1 = arith.constant 0 : index
    %0 = vector.load %arg1[%c0, %c0_0, %c0_1] : memref<1x64x64xf32, #tpu.memory_space<vmem>>, vector<1x64x64xf32>
    %1 = vector.shape_cast %0 : vector<1x64x64xf32> to vector<64x64xf32>
    %c0_2 = arith.constant 0 : index
    %c0_3 = arith.constant 0 : index
    %2 = vector.load %arg3[%c0_2, %c0_3] : memref<64x64xf32, #tpu.memory_space<vmem>>, vector<64x64xf32>
    %cst = arith.constant dense<0.000000e+00> : vector<64x64xf32>
    %3 = tpu.matmul %1, %2, %cst {dimension_numbers = #tpu.dot_dimension_numbers<[1], [0], [0], [1], [0, 0, 1, 1], [], []>} : vector<64x64xf32>, vector<64x64xf32>, vector<64x64xf32> -> vector<64x64xf32>
    %c0_4 = arith.constant 0 : index
    %c0_5 = arith.constant 0 : index
    %4 = vector.load %arg4[%c0_4, %c0_5] : memref<1x64xf32, #tpu.memory_space<vmem>>, vector<1x64xf32>
    %5 = vector.broadcast %4 : vector<1x64xf32> to vector<64x64xf32>
    %6 = arith.addf %3, %5 : vector<64x64xf32>
    %c0_6 = arith.constant 0 : index
    %c0_7 = arith.constant 0 : index
    %c0_8 = arith.constant 0 : index
    %7 = vector.load %arg2[%c0_6, %c0_7, %c0_8] : memref<1x64x64xf32, #tpu.memory_space<vmem>>, vector<1x64x64xf32>
    %8 = vector.shape_cast %7 : vector<1x64x64xf32> to vector<64x64xf32>
    %9 = arith.addf %6, %8 : vector<64x64xf32>
    %cst_9 = arith.constant 0.000000e+00 : f32
    %10 = vector.broadcast %cst_9 : f32 to vector<9x64xf32>
    %c0_10 = arith.constant 0 : index
    %c0_11 = arith.constant 0 : index
    %11 = vector.load %arg8[%c0_10, %c0_11] : memref<82x64xf32, #tpu.memory_space<vmem>>, vector<9x64xf32>
    tpu.vector_store %arg8[%c0_10, %c0_11], %10 {strides = array<i32>} : memref<82x64xf32, #tpu.memory_space<vmem>>, vector<9x64xf32>,
    %c73 = arith.constant 73 : index
    %c0_12 = arith.constant 0 : index
    %12 = vector.load %arg8[%c73, %c0_12] : memref<82x64xf32, #tpu.memory_space<vmem>>, vector<9x64xf32>
    tpu.vector_store %arg8[%c73, %c0_12], %10 {strides = array<i32>} : memref<82x64xf32, #tpu.memory_space<vmem>>, vector<9x64xf32>,
    %c9 = arith.constant 9 : index
    %c0_13 = arith.constant 0 : index
    %13 = vector.load %arg8[%c9, %c0_13] : memref<82x64xf32, #tpu.memory_space<vmem>>, vector<64x64xf32>
    tpu.vector_store %arg8[%c9, %c0_13], %9 {strides = array<i32>} : memref<82x64xf32, #tpu.memory_space<vmem>>, vector<64x64xf32>,
    %14 = tpu.iota {dimensions = array<i32: 0>} : vector<64x1xi32>
    %c8_i32 = arith.constant 8 : i32
    %c0_i32 = arith.constant 0 : i32
    %15 = arith.cmpi eq, %c8_i32, %c0_i32 : i32
    %c1_i32 = arith.constant 1 : i32
    %16 = arith.select %15, %c1_i32, %c8_i32 : i32
    %17 = vector.broadcast %16 : i32 to vector<64x1xi32>
    %18 = arith.remsi %14, %17 : vector<64x1xi32>
    %c0_i32_14 = arith.constant 0 : i32
    %19 = vector.broadcast %c0_i32_14 : i32 to vector<64x1xi32>
    %20 = arith.cmpi ne, %18, %19 : vector<64x1xi32>
    %c0_i32_15 = arith.constant 0 : i32
    %21 = vector.broadcast %c0_i32_15 : i32 to vector<64x1xi32>
    %22 = arith.cmpi slt, %18, %21 : vector<64x1xi32>
    %c0_i32_16 = arith.constant 0 : i32
    %23 = arith.cmpi slt, %16, %c0_i32_16 : i32
    %24 = vector.broadcast %23 : i1 to vector<64x1xi1>
    %25 = vector.broadcast %24 : vector<64x1xi1> to vector<64x1xi1>
    %26 = arith.xori %22, %25 : vector<64x1xi1>
    %27 = arith.andi %26, %20 : vector<64x1xi1>
    %28 = vector.broadcast %16 : i32 to vector<64x1xi32>
    %29 = arith.addi %18, %28 : vector<64x1xi32>
    %30 = arith.select %27, %29, %18 : vector<64x1xi1>, vector<64x1xi32>
    %c1_i32_17 = arith.constant 1 : i32
    %31 = vector.broadcast %c1_i32_17 : i32 to vector<64x1xi32>
    %32 = arith.cmpi sge, %30, %31 : vector<64x1xi32>
    %33 = arith.extui %32 : vector<64x1xi1> to vector<64x1xi32>
    %34 = arith.sitofp %33 : vector<64x1xi32> to vector<64x1xf32>
    %c6_i32 = arith.constant 6 : i32
    %35 = vector.broadcast %c6_i32 : i32 to vector<64x1xi32>
    %36 = arith.cmpi sle, %30, %35 : vector<64x1xi32>
    %37 = arith.extui %36 : vector<64x1xi1> to vector<64x1xi32>
    %38 = arith.sitofp %37 : vector<64x1xi32> to vector<64x1xf32>
    %cst_18 = arith.constant 0.000000e+00 : f32
    %39 = vector.broadcast %cst_18 : f32 to vector<64x64xf32>
    %c0_19 = arith.constant 0 : index
    %c0_20 = arith.constant 0 : index
    %40 = vector.load %arg8[%c0_19, %c0_20] : memref<82x64xf32, #tpu.memory_space<vmem>>, vector<64x64xf32>
    %41 = vector.broadcast %34 : vector<64x1xf32> to vector<64x64xf32>
    %42 = arith.mulf %40, %41 : vector<64x64xf32>
    %c0_21 = arith.constant 0 : index
    %c0_22 = arith.constant 0 : index
    %c0_23 = arith.constant 0 : index
    %43 = vector.load %arg5[%c0_21, %c0_22, %c0_23] : memref<9x64x64xf32, #tpu.memory_space<vmem>>, vector<1x64x64xf32>
    %44 = vector.shape_cast %43 : vector<1x64x64xf32> to vector<64x64xf32>
    %cst_24 = arith.constant dense<0.000000e+00> : vector<64x64xf32>
    %45 = tpu.matmul %42, %44, %cst_24 {dimension_numbers = #tpu.dot_dimension_numbers<[1], [0], [0], [1], [0, 0, 1, 1], [], []>} : vector<64x64xf32>, vector<64x64xf32>, vector<64x64xf32> -> vector<64x64xf32>
    %46 = arith.addf %39, %45 : vector<64x64xf32>
    %c1 = arith.constant 1 : index
    %c0_25 = arith.constant 0 : index
    %47 = vector.load %arg8[%c1, %c0_25] : memref<82x64xf32, #tpu.memory_space<vmem>>, vector<64x64xf32>
    %c1_26 = arith.constant 1 : index
    %c0_27 = arith.constant 0 : index
    %c0_28 = arith.constant 0 : index
    %48 = vector.load %arg5[%c1_26, %c0_27, %c0_28] : memref<9x64x64xf32, #tpu.memory_space<vmem>>, vector<1x64x64xf32>
    %49 = vector.shape_cast %48 : vector<1x64x64xf32> to vector<64x64xf32>
    %cst_29 = arith.constant dense<0.000000e+00> : vector<64x64xf32>
    %50 = tpu.matmul %47, %49, %cst_29 {dimension_numbers = #tpu.dot_dimension_numbers<[1], [0], [0], [1], [0, 0, 1, 1], [], []>} : vector<64x64xf32>, vector<64x64xf32>, vector<64x64xf32> -> vector<64x64xf32>
    %51 = arith.addf %46, %50 : vector<64x64xf32>
    %c2 = arith.constant 2 : index
    %c0_30 = arith.constant 0 : index
    %52 = vector.load %arg8[%c2, %c0_30] : memref<82x64xf32, #tpu.memory_space<vmem>>, vector<64x64xf32>
    %53 = vector.broadcast %38 : vector<64x1xf32> to vector<64x64xf32>
    %54 = arith.mulf %52, %53 : vector<64x64xf32>
    %c2_31 = arith.constant 2 : index
    %c0_32 = arith.constant 0 : index
    %c0_33 = arith.constant 0 : index
    %55 = vector.load %arg5[%c2_31, %c0_32, %c0_33] : memref<9x64x64xf32, #tpu.memory_space<vmem>>, vector<1x64x64xf32>
    %56 = vector.shape_cast %55 : vector<1x64x64xf32> to vector<64x64xf32>
    %cst_34 = arith.constant dense<0.000000e+00> : vector<64x64xf32>
    %57 = tpu.matmul %54, %56, %cst_34 {dimension_numbers = #tpu.dot_dimension_numbers<[1], [0], [0], [1], [0, 0, 1, 1], [], []>} : vector<64x64xf32>, vector<64x64xf32>, vector<64x64xf32> -> vector<64x64xf32>
    %58 = arith.addf %51, %57 : vector<64x64xf32>
    %c8 = arith.constant 8 : index
    %c0_35 = arith.constant 0 : index
    %59 = vector.load %arg8[%c8, %c0_35] : memref<82x64xf32, #tpu.memory_space<vmem>>, vector<64x64xf32>
    %60 = vector.broadcast %34 : vector<64x1xf32> to vector<64x64xf32>
    %61 = arith.mulf %59, %60 : vector<64x64xf32>
    %c3 = arith.constant 3 : index
    %c0_36 = arith.constant 0 : index
    %c0_37 = arith.constant 0 : index
    %62 = vector.load %arg5[%c3, %c0_36, %c0_37] : memref<9x64x64xf32, #tpu.memory_space<vmem>>, vector<1x64x64xf32>
    %63 = vector.shape_cast %62 : vector<1x64x64xf32> to vector<64x64xf32>
    %cst_38 = arith.constant dense<0.000000e+00> : vector<64x64xf32>
    %64 = tpu.matmul %61, %63, %cst_38 {dimension_numbers = #tpu.dot_dimension_numbers<[1], [0], [0], [1], [0, 0, 1, 1], [], []>} : vector<64x64xf32>, vector<64x64xf32>, vector<64x64xf32> -> vector<64x64xf32>
    %65 = arith.addf %58, %64 : vector<64x64xf32>
    %c9_39 = arith.constant 9 : index
    %c0_40 = arith.constant 0 : index
    %66 = vector.load %arg8[%c9_39, %c0_40] : memref<82x64xf32, #tpu.memory_space<vmem>>, vector<64x64xf32>
    %c4 = arith.constant 4 : index
    %c0_41 = arith.constant 0 : index
    %c0_42 = arith.constant 0 : index
    %67 = vector.load %arg5[%c4, %c0_41, %c0_42] : memref<9x64x64xf32, #tpu.memory_space<vmem>>, vector<1x64x64xf32>
    %68 = vector.shape_cast %67 : vector<1x64x64xf32> to vector<64x64xf32>
    %cst_43 = arith.constant dense<0.000000e+00> : vector<64x64xf32>
    %69 = tpu.matmul %66, %68, %cst_43 {dimension_numbers = #tpu.dot_dimension_numbers<[1], [0], [0], [1], [0, 0, 1, 1], [], []>} : vector<64x64xf32>, vector<64x64xf32>, vector<64x64xf32> -> vector<64x64xf32>
    %70 = arith.addf %65, %69 : vector<64x64xf32>
    %c10 = arith.constant 10 : index
    %c0_44 = arith.constant 0 : index
    %71 = vector.load %arg8[%c10, %c0_44] : memref<82x64xf32, #tpu.memory_space<vmem>>, vector<64x64xf32>
    %72 = vector.broadcast %38 : vector<64x1xf32> to vector<64x64xf32>
    %73 = arith.mulf %71, %72 : vector<64x64xf32>
    %c5 = arith.constant 5 : index
    %c0_45 = arith.constant 0 : index
    %c0_46 = arith.constant 0 : index
    %74 = vector.load %arg5[%c5, %c0_45, %c0_46] : memref<9x64x64xf32, #tpu.memory_space<vmem>>, vector<1x64x64xf32>
    %75 = vector.shape_cast %74 : vector<1x64x64xf32> to vector<64x64xf32>
    %cst_47 = arith.constant dense<0.000000e+00> : vector<64x64xf32>
    %76 = tpu.matmul %73, %75, %cst_47 {dimension_numbers = #tpu.dot_dimension_numbers<[1], [0], [0], [1], [0, 0, 1, 1], [], []>} : vector<64x64xf32>, vector<64x64xf32>, vector<64x64xf32> -> vector<64x64xf32>
    %77 = arith.addf %70, %76 : vector<64x64xf32>
    %c16 = arith.constant 16 : index
    %c0_48 = arith.constant 0 : index
    %78 = vector.load %arg8[%c16, %c0_48] : memref<82x64xf32, #tpu.memory_space<vmem>>, vector<64x64xf32>
    %79 = vector.broadcast %34 : vector<64x1xf32> to vector<64x64xf32>
    %80 = arith.mulf %78, %79 : vector<64x64xf32>
    %c6 = arith.constant 6 : index
    %c0_49 = arith.constant 0 : index
    %c0_50 = arith.constant 0 : index
    %81 = vector.load %arg5[%c6, %c0_49, %c0_50] : memref<9x64x64xf32, #tpu.memory_space<vmem>>, vector<1x64x64xf32>
    %82 = vector.shape_cast %81 : vector<1x64x64xf32> to vector<64x64xf32>
    %cst_51 = arith.constant dense<0.000000e+00> : vector<64x64xf32>
    %83 = tpu.matmul %80, %82, %cst_51 {dimension_numbers = #tpu.dot_dimension_numbers<[1], [0], [0], [1], [0, 0, 1, 1], [], []>} : vector<64x64xf32>, vector<64x64xf32>, vector<64x64xf32> -> vector<64x64xf32>
    %84 = arith.addf %77, %83 : vector<64x64xf32>
    %c17 = arith.constant 17 : index
    %c0_52 = arith.constant 0 : index
    %85 = vector.load %arg8[%c17, %c0_52] : memref<82x64xf32, #tpu.memory_space<vmem>>, vector<64x64xf32>
    %c7 = arith.constant 7 : index
    %c0_53 = arith.constant 0 : index
    %c0_54 = arith.constant 0 : index
    %86 = vector.load %arg5[%c7, %c0_53, %c0_54] : memref<9x64x64xf32, #tpu.memory_space<vmem>>, vector<1x64x64xf32>
    %87 = vector.shape_cast %86 : vector<1x64x64xf32> to vector<64x64xf32>
    %cst_55 = arith.constant dense<0.000000e+00> : vector<64x64xf32>
    %88 = tpu.matmul %85, %87, %cst_55 {dimension_numbers = #tpu.dot_dimension_numbers<[1], [0], [0], [1], [0, 0, 1, 1], [], []>} : vector<64x64xf32>, vector<64x64xf32>, vector<64x64xf32> -> vector<64x64xf32>
    %89 = arith.addf %84, %88 : vector<64x64xf32>
    %c18 = arith.constant 18 : index
    %c0_56 = arith.constant 0 : index
    %90 = vector.load %arg8[%c18, %c0_56] : memref<82x64xf32, #tpu.memory_space<vmem>>, vector<64x64xf32>
    %91 = vector.broadcast %38 : vector<64x1xf32> to vector<64x64xf32>
    %92 = arith.mulf %90, %91 : vector<64x64xf32>
    %c8_57 = arith.constant 8 : index
    %c0_58 = arith.constant 0 : index
    %c0_59 = arith.constant 0 : index
    %93 = vector.load %arg5[%c8_57, %c0_58, %c0_59] : memref<9x64x64xf32, #tpu.memory_space<vmem>>, vector<1x64x64xf32>
    %94 = vector.shape_cast %93 : vector<1x64x64xf32> to vector<64x64xf32>
    %cst_60 = arith.constant dense<0.000000e+00> : vector<64x64xf32>
    %95 = tpu.matmul %92, %94, %cst_60 {dimension_numbers = #tpu.dot_dimension_numbers<[1], [0], [0], [1], [0, 0, 1, 1], [], []>} : vector<64x64xf32>, vector<64x64xf32>, vector<64x64xf32> -> vector<64x64xf32>
    %96 = arith.addf %89, %95 : vector<64x64xf32>
    %c0_61 = arith.constant 0 : index
    %c0_62 = arith.constant 0 : index
    %97 = vector.load %arg6[%c0_61, %c0_62] : memref<1x64xf32, #tpu.memory_space<vmem>>, vector<1x64xf32>
    %98 = vector.broadcast %97 : vector<1x64xf32> to vector<64x64xf32>
    %99 = arith.addf %96, %98 : vector<64x64xf32>
    %c0_63 = arith.constant 0 : index
    %c0_64 = arith.constant 0 : index
    %c0_65 = arith.constant 0 : index
    %100 = vector.load %arg7[%c0_63, %c0_64, %c0_65] : memref<1x64x64xf32, #tpu.memory_space<vmem>>, vector<1x64x64xf32>
    %101 = vector.shape_cast %100 : vector<1x64x64xf32> to vector<64x64xf32>
    %102 = vector.shape_cast %99 : vector<64x64xf32> to vector<1x64x64xf32>
    tpu.vector_store %arg7[%c0_63, %c0_64, %c0_65], %102 {strides = array<i32>} : memref<1x64x64xf32, #tpu.memory_space<vmem>>, vector<1x64x64xf32>,
    return
  }
  func.func @transform_0(%arg0: i32) -> (i32, i32, i32) {
    %c0_i32 = arith.constant 0 : i32
    %c0_i32_0 = arith.constant 0 : i32
    %c0_i32_1 = arith.constant 0 : i32
    return %arg0, %c0_i32, %c0_i32_0 : i32, i32, i32
  }
  func.func @transform_1(%arg0: i32) -> (i32, i32, i32) {
    %c0_i32 = arith.constant 0 : i32
    %c0_i32_0 = arith.constant 0 : i32
    %c0_i32_1 = arith.constant 0 : i32
    return %arg0, %c0_i32, %c0_i32_0 : i32, i32, i32
  }
  func.func @transform_2(%arg0: i32) -> (i32, i32) {
    %c0_i32 = arith.constant 0 : i32
    %c0_i32_0 = arith.constant 0 : i32
    %c0_i32_1 = arith.constant 0 : i32
    return %c0_i32, %c0_i32_0 : i32, i32
  }
  func.func @transform_3(%arg0: i32) -> (i32, i32) {
    %c0_i32 = arith.constant 0 : i32
    %c0_i32_0 = arith.constant 0 : i32
    %c0_i32_1 = arith.constant 0 : i32
    return %c0_i32, %c0_i32_0 : i32, i32
  }
  func.func @transform_4(%arg0: i32) -> (i32, i32, i32) {
    %c0_i32 = arith.constant 0 : i32
    %c0_i32_0 = arith.constant 0 : i32
    %c0_i32_1 = arith.constant 0 : i32
    %c0_i32_2 = arith.constant 0 : i32
    return %c0_i32, %c0_i32_0, %c0_i32_1 : i32, i32, i32
  }
  func.func @transform_5(%arg0: i32) -> (i32, i32) {
    %c0_i32 = arith.constant 0 : i32
    %c0_i32_0 = arith.constant 0 : i32
    %c0_i32_1 = arith.constant 0 : i32
    return %c0_i32, %c0_i32_0 : i32, i32
  }
  func.func @transform_6(%arg0: i32) -> (i32, i32, i32) {
    %c0_i32 = arith.constant 0 : i32
    %c0_i32_0 = arith.constant 0 : i32
    %c0_i32_1 = arith.constant 0 : i32
    return %arg0, %c0_i32, %c0_i32_0 : i32, i32, i32
  }
}

</mosaic_0001>

<llo_original>
// kernel: _lambda_.8
$region0: #{_lambda_.8}
  #allocation0 [shape = 'u32[]', space=smem, size = 0x4, offset = 0x4, fixed_abs, tag = 'smem constant byte address 0x4 - core index']
  #allocation1 [shape = 'u32[144,128]{1,0:T(1,128)}', space=vmem, size = 0x12000, scoped, tag = 'internal scratch']
  %s0 = inlined_call_operand.vmem [shape: f32[2048,12], index: 0, kind: input, shape index: {}]
  %s1 = inlined_call_operand.vmem [shape: f32[12,16], index: 1, kind: input, shape index: {}]
  %s2 = inlined_call_operand.vmem [shape: f32[1,16], index: 2, kind: input, shape index: {}]
  %s3 = inlined_call_operand.vmem [shape: f32[2048,16], index: 3, kind: output, shape index: {}]
  %s4 = sld [smem:[#allocation0]]
  $region22: #{_lambda_.8} parent=0
    _
  %s6 = ssub.s32 1, %s4
  %s7 = scalar_select 0, %s6, %s4
  // Predicated region
  $region2: #{_lambda_.8} parent=0 // pred_check
    _
  $region3: #{_lambda_.8} parent=0 // pred_check_branch
    %9 = sbr.rel (0) target = $region5
  $region4: #{_lambda_.8} parent=0 // pred_region
    _
  $region5: #{_lambda_.8} parent=0 // pred_fallthru
    _
  // Predicated region
  $region6: #{_lambda_.8} parent=0 // pred_check
    _
  $region7: #{_lambda_.8} parent=0 // pred_check_branch
    %11 = sbr.rel (0) target = $region9
  $region8: #{_lambda_.8} parent=0 // pred_region
    _
  $region9: #{_lambda_.8} parent=0 // pred_fallthru
    _
  // Predicated region
  $region10: #{_lambda_.8} parent=0 // pred_check
    _
  $region11: #{_lambda_.8} parent=0 // pred_check_branch
    %13 = sbr.rel (0) target = $region13
  $region12: #{_lambda_.8} parent=0 // pred_region
    _
  $region13: #{_lambda_.8} parent=0 // pred_fallthru
    _
  %v14 = vld [vmem:[%s0] sm:$0xff]
  %v15 = vld [vmem:[%s0 + $0x8] sm:$0xff]
  %v16 = vld [vmem:[%s0 + $0x10] sm:$0xff]
  %v17 = vld [vmem:[%s0 + $0x18] sm:$0xff]
  %v18 = vld [vmem:[%s0 + $0x20] sm:$0xff]
  %v19 = vld [vmem:[%s0 + $0x28] sm:$0xff]
  %v20 = vld [vmem:[%s0 + $0x30] sm:$0xff]
  %v21 = vld [vmem:[%s0 + $0x38] sm:$0xff]
  %v22 = vld [vmem:[%s0 + $0x40] sm:$0xff]
  %v23 = vld [vmem:[%s0 + $0x48] sm:$0xff]
  %v24 = vld [vmem:[%s0 + $0x50] sm:$0xff]
  %v25 = vld [vmem:[%s0 + $0x58] sm:$0xff]
  %v26 = vld [vmem:[%s0 + $0x60] sm:$0xff]
  %v27 = vld [vmem:[%s0 + $0x68] sm:$0xff]
  %v28 = vld [vmem:[%s0 + $0x70] sm:$0xff]
  %v29 = vld [vmem:[%s0 + $0x78] sm:$0xff]
  %v30 = vld [vmem:[%s0 + $0x80] sm:$0xff]
  %v31 = vld [vmem:[%s0 + $0x88] sm:$0xff]
  %v32 = vld [vmem:[%s0 + $0x90] sm:$0xff]
  %v33 = vld [vmem:[%s0 + $0x98] sm:$0xff]
  %v34 = vld [vmem:[%s0 + $0xa0] sm:$0xff]
  %v35 = vld [vmem:[%s0 + $0xa8] sm:$0xff]
  %v36 = vld [vmem:[%s0 + $0xb0] sm:$0xff]
  %v37 = vld [vmem:[%s0 + $0xb8] sm:$0xff]
  %v38 = vld [vmem:[%s0 + $0xc0] sm:$0xff]
  %v39 = vld [vmem:[%s0 + $0xc8] sm:$0xff]
  %v40 = vld [vmem:[%s0 + $0xd0] sm:$0xff]
  %v41 = vld [vmem:[%s0 + $0xd8] sm:$0xff]
  %v42 = vld [vmem:[%s0 + $0xe0] sm:$0xff]
  %v43 = vld [vmem:[%s0 + $0xe8] sm:$0xff]
  %v44 = vld [vmem:[%s0 + $0xf0] sm:$0xff]
  %v45 = vld [vmem:[%s0 + $0xf8] sm:$0xff]
  %v46 = vld [vmem:[%s0 + $0x100] sm:$0xff]
  %v47 = vld [vmem:[%s0 + $0x108] sm:$0xff]
  %v48 = vld [vmem:[%s0 + $0x110] sm:$0xff]
  %v49 = vld [vmem:[%s0 + $0x118] sm:$0xff]
  %v50 = vld [vmem:[%s0 + $0x120] sm:$0xff]
  %v51 = vld [vmem:[%s0 + $0x128] sm:$0xff]
  %v52 = vld [vmem:[%s0 + $0x130] sm:$0xff]
  %v53 = vld [vmem:[%s0 + $0x138] sm:$0xff]
  %v54 = vld [vmem:[%s0 + $0x140] sm:$0xff]
  %v55 = vld [vmem:[%s0 + $0x148] sm:$0xff]
  %v56 = vld [vmem:[%s0 + $0x150] sm:$0xff]
  %v57 = vld [vmem:[%s0 + $0x158] sm:$0xff]
  %v58 = vld [vmem:[%s0 + $0x160] sm:$0xff]
  %v59 = vld [vmem:[%s0 + $0x168] sm:$0xff]
  %v60 = vld [vmem:[%s0 + $0x170] sm:$0xff]
  %v61 = vld [vmem:[%s0 + $0x178] sm:$0xff]
  %v62 = vld [vmem:[%s0 + $0x180] sm:$0xff]
  %v63 = vld [vmem:[%s0 + $0x188] sm:$0xff]
  %v64 = vld [vmem:[%s0 + $0x190] sm:$0xff]
  %v65 = vld [vmem:[%s0 + $0x198] sm:$0xff]
  %v66 = vld [vmem:[%s0 + $0x1a0] sm:$0xff]
  %v67 = vld [vmem:[%s0 + $0x1a8] sm:$0xff]
  %v68 = vld [vmem:[%s0 + $0x1b0] sm:$0xff]
  %v69 = vld [vmem:[%s0 + $0x1b8] sm:$0xff]
  %v70 = vld [vmem:[%s0 + $0x1c0] sm:$0xff]
  %v71 = vld [vmem:[%s0 + $0x1c8] sm:$0xff]
  %v72 = vld [vmem:[%s0 + $0x1d0] sm:$0xff]
  %v73 = vld [vmem:[%s0 + $0x1d8] sm:$0xff]
  %v74 = vld [vmem:[%s0 + $0x1e0] sm:$0xff]
  %v75 = vld [vmem:[%s0 + $0x1e8] sm:$0xff]
  %v76 = vld [vmem:[%s0 + $0x1f0] sm:$0xff]
  %v77 = vld [vmem:[%s0 + $0x1f8] sm:$0xff]
  %v78 = vld [vmem:[%s0 + $0x200] sm:$0xff]
  %v79 = vld [vmem:[%s0 + $0x208] sm:$0xff]
  %v80 = vld [vmem:[%s0 + $0x210] sm:$0xff]
  %v81 = vld [vmem:[%s0 + $0x218] sm:$0xff]
  %v82 = vld [vmem:[%s0 + $0x220] sm:$0xff]
  %v83 = vld [vmem:[%s0 + $0x228] sm:$0xff]
  %v84 = vld [vmem:[%s0 + $0x230] sm:$0xff]
  %v85 = vld [vmem:[%s0 + $0x238] sm:$0xff]
  %v86 = vld [vmem:[%s0 + $0x240] sm:$0xff]
  %v87 = vld [vmem:[%s0 + $0x248] sm:$0xff]
  %v88 = vld [vmem:[%s0 + $0x250] sm:$0xff]
  %v89 = vld [vmem:[%s0 + $0x258] sm:$0xff]
  %v90 = vld [vmem:[%s0 + $0x260] sm:$0xff]
  %v91 = vld [vmem:[%s0 + $0x268] sm:$0xff]
  %v92 = vld [vmem:[%s0 + $0x270] sm:$0xff]
  %v93 = vld [vmem:[%s0 + $0x278] sm:$0xff]
  %v94 = vld [vmem:[%s0 + $0x280] sm:$0xff]
  %v95 = vld [vmem:[%s0 + $0x288] sm:$0xff]
  %v96 = vld [vmem:[%s0 + $0x290] sm:$0xff]
  %v97 = vld [vmem:[%s0 + $0x298] sm:$0xff]
  %v98 = vld [vmem:[%s0 + $0x2a0] sm:$0xff]
  %v99 = vld [vmem:[%s0 + $0x2a8] sm:$0xff]
  %v100 = vld [vmem:[%s0 + $0x2b0] sm:$0xff]
  %v101 = vld [vmem:[%s0 + $0x2b8] sm:$0xff]
  %v102 = vld [vmem:[%s0 + $0x2c0] sm:$0xff]
  %v103 = vld [vmem:[%s0 + $0x2c8] sm:$0xff]
  %v104 = vld [vmem:[%s0 + $0x2d0] sm:$0xff]
  %v105 = vld [vmem:[%s0 + $0x2d8] sm:$0xff]
  %v106 = vld [vmem:[%s0 + $0x2e0] sm:$0xff]
  %v107 = vld [vmem:[%s0 + $0x2e8] sm:$0xff]
  %v108 = vld [vmem:[%s0 + $0x2f0] sm:$0xff]
  %v109 = vld [vmem:[%s0 + $0x2f8] sm:$0xff]
  %v110 = vld [vmem:[%s0 + $0x300] sm:$0xff]
  %v111 = vld [vmem:[%s0 + $0x308] sm:$0xff]
  %v112 = vld [vmem:[%s0 + $0x310] sm:$0xff]
  %v113 = vld [vmem:[%s0 + $0x318] sm:$0xff]
  %v114 = vld [vmem:[%s0 + $0x320] sm:$0xff]
  %v115 = vld [vmem:[%s0 + $0x328] sm:$0xff]
  %v116 = vld [vmem:[%s0 + $0x330] sm:$0xff]
  %v117 = vld [vmem:[%s0 + $0x338] sm:$0xff]
  %v118 = vld [vmem:[%s0 + $0x340] sm:$0xff]
  %v119 = vld [vmem:[%s0 + $0x348] sm:$0xff]
  %v120 = vld [vmem:[%s0 + $0x350] sm:$0xff]
  %v121 = vld [vmem:[%s0 + $0x358] sm:$0xff]
  %v122 = vld [vmem:[%s0 + $0x360] sm:$0xff]
  %v123 = vld [vmem:[%s0 + $0x368] sm:$0xff]
  %v124 = vld [vmem:[%s0 + $0x370] sm:$0xff]
  %v125 = vld [vmem:[%s0 + $0x378] sm:$0xff]
  %v126 = vld [vmem:[%s0 + $0x380] sm:$0xff]
  %v127 = vld [vmem:[%s0 + $0x388] sm:$0xff]
  %v128 = vld [vmem:[%s0 + $0x390] sm:$0xff]
  %v129 = vld [vmem:[%s0 + $0x398] sm:$0xff]
  %v130 = vld [vmem:[%s0 + $0x3a0] sm:$0xff]
  %v131 = vld [vmem:[%s0 + $0x3a8] sm:$0xff]
  %v132 = vld [vmem:[%s0 + $0x3b0] sm:$0xff]
  %v133 = vld [vmem:[%s0 + $0x3b8] sm:$0xff]
  %v134 = vld [vmem:[%s0 + $0x3c0] sm:$0xff]
  %v135 = vld [vmem:[%s0 + $0x3c8] sm:$0xff]
  %v136 = vld [vmem:[%s0 + $0x3d0] sm:$0xff]
  %v137 = vld [vmem:[%s0 + $0x3d8] sm:$0xff]
  %v138 = vld [vmem:[%s0 + $0x3e0] sm:$0xff]
  %v139 = vld [vmem:[%s0 + $0x3e8] sm:$0xff]
  %v140 = vld [vmem:[%s0 + $0x3f0] sm:$0xff]
  %v141 = vld [vmem:[%s0 + $0x3f8] sm:$0xff]
  %v142 = vld [vmem:[%s0 + $0x400] sm:$0xff]
  %v143 = vld [vmem:[%s0 + $0x408] sm:$0xff]
  %v144 = vld [vmem:[%s0 + $0x410] sm:$0xff]
  %v145 = vld [vmem:[%s0 + $0x418] sm:$0xff]
  %v146 = vld [vmem:[%s0 + $0x420] sm:$0xff]
  %v147 = vld [vmem:[%s0 + $0x428] sm:$0xff]
  %v148 = vld [vmem:[%s0 + $0x430] sm:$0xff]
  %v149 = vld [vmem:[%s0 + $0x438] sm:$0xff]
  %v150 = vld [vmem:[%s0 + $0x440] sm:$0xff]
  %v151 = vld [vmem:[%s0 + $0x448] sm:$0xff]
  %v152 = vld [vmem:[%s0 + $0x450] sm:$0xff]
  %v153 = vld [vmem:[%s0 + $0x458] sm:$0xff]
  %v154 = vld [vmem:[%s0 + $0x460] sm:$0xff]
  %v155 = vld [vmem:[%s0 + $0x468] sm:$0xff]
  %v156 = vld [vmem:[%s0 + $0x470] sm:$0xff]
  %v157 = vld [vmem:[%s0 + $0x478] sm:$0xff]
  %v158 = vld [vmem:[%s0 + $0x480] sm:$0xff]
  %v159 = vld [vmem:[%s0 + $0x488] sm:$0xff]
  %v160 = vld [vmem:[%s0 + $0x490] sm:$0xff]
  %v161 = vld [vmem:[%s0 + $0x498] sm:$0xff]
  %v162 = vld [vmem:[%s0 + $0x4a0] sm:$0xff]
  %v163 = vld [vmem:[%s0 + $0x4a8] sm:$0xff]
  %v164 = vld [vmem:[%s0 + $0x4b0] sm:$0xff]
  %v165 = vld [vmem:[%s0 + $0x4b8] sm:$0xff]
  %v166 = vld [vmem:[%s0 + $0x4c0] sm:$0xff]
  %v167 = vld [vmem:[%s0 + $0x4c8] sm:$0xff]
  %v168 = vld [vmem:[%s0 + $0x4d0] sm:$0xff]
  %v169 = vld [vmem:[%s0 + $0x4d8] sm:$0xff]
  %v170 = vld [vmem:[%s0 + $0x4e0] sm:$0xff]
  %v171 = vld [vmem:[%s0 + $0x4e8] sm:$0xff]
  %v172 = vld [vmem:[%s0 + $0x4f0] sm:$0xff]
  %v173 = vld [vmem:[%s0 + $0x4f8] sm:$0xff]
  %v174 = vld [vmem:[%s0 + $0x500] sm:$0xff]
  %v175 = vld [vmem:[%s0 + $0x508] sm:$0xff]
  %v176 = vld [vmem:[%s0 + $0x510] sm:$0xff]
  %v177 = vld [vmem:[%s0 + $0x518] sm:$0xff]
  %v178 = vld [vmem:[%s0 + $0x520] sm:$0xff]
  %v179 = vld [vmem:[%s0 + $0x528] sm:$0xff]
  %v180 = vld [vmem:[%s0 + $0x530] sm:$0xff]
  %v181 = vld [vmem:[%s0 + $0x538] sm:$0xff]
  %v182 = vld [vmem:[%s0 + $0x540] sm:$0xff]
  %v183 = vld [vmem:[%s0 + $0x548] sm:$0xff]
  %v184 = vld [vmem:[%s0 + $0x550] sm:$0xff]
  %v185 = vld [vmem:[%s0 + $0x558] sm:$0xff]
  %v186 = vld [vmem:[%s0 + $0x560] sm:$0xff]
  %v187 = vld [vmem:[%s0 + $0x568] sm:$0xff]
  %v188 = vld [vmem:[%s0 + $0x570] sm:$0xff]
  %v189 = vld [vmem:[%s0 + $0x578] sm:$0xff]
  %v190 = vld [vmem:[%s0 + $0x580] sm:$0xff]
  %v191 = vld [vmem:[%s0 + $0x588] sm:$0xff]
  %v192 = vld [vmem:[%s0 + $0x590] sm:$0xff]
  %v193 = vld [vmem:[%s0 + $0x598] sm:$0xff]
  %v194 = vld [vmem:[%s0 + $0x5a0] sm:$0xff]
  %v195 = vld [vmem:[%s0 + $0x5a8] sm:$0xff]
  %v196 = vld [vmem:[%s0 + $0x5b0] sm:$0xff]
  %v197 = vld [vmem:[%s0 + $0x5b8] sm:$0xff]
  %v198 = vld [vmem:[%s0 + $0x5c0] sm:$0xff]
  %v199 = vld [vmem:[%s0 + $0x5c8] sm:$0xff]
  %v200 = vld [vmem:[%s0 + $0x5d0] sm:$0xff]
  %v201 = vld [vmem:[%s0 + $0x5d8] sm:$0xff]
  %v202 = vld [vmem:[%s0 + $0x5e0] sm:$0xff]
  %v203 = vld [vmem:[%s0 + $0x5e8] sm:$0xff]
  %v204 = vld [vmem:[%s0 + $0x5f0] sm:$0xff]
  %v205 = vld [vmem:[%s0 + $0x5f8] sm:$0xff]
  %v206 = vld [vmem:[%s0 + $0x600] sm:$0xff]
  %v207 = vld [vmem:[%s0 + $0x608] sm:$0xff]
  %v208 = vld [vmem:[%s0 + $0x610] sm:$0xff]
  %v209 = vld [vmem:[%s0 + $0x618] sm:$0xff]
  %v210 = vld [vmem:[%s0 + $0x620] sm:$0xff]
  %v211 = vld [vmem:[%s0 + $0x628] sm:$0xff]
  %v212 = vld [vmem:[%s0 + $0x630] sm:$0xff]
  %v213 = vld [vmem:[%s0 + $0x638] sm:$0xff]
  %v214 = vld [vmem:[%s0 + $0x640] sm:$0xff]
  %v215 = vld [vmem:[%s0 + $0x648] sm:$0xff]
  %v216 = vld [vmem:[%s0 + $0x650] sm:$0xff]
  %v217 = vld [vmem:[%s0 + $0x658] sm:$0xff]
  %v218 = vld [vmem:[%s0 + $0x660] sm:$0xff]
  %v219 = vld [vmem:[%s0 + $0x668] sm:$0xff]
  %v220 = vld [vmem:[%s0 + $0x670] sm:$0xff]
  %v221 = vld [vmem:[%s0 + $0x678] sm:$0xff]
  %v222 = vld [vmem:[%s0 + $0x680] sm:$0xff]
  %v223 = vld [vmem:[%s0 + $0x688] sm:$0xff]
  %v224 = vld [vmem:[%s0 + $0x690] sm:$0xff]
  %v225 = vld [vmem:[%s0 + $0x698] sm:$0xff]
  %v226 = vld [vmem:[%s0 + $0x6a0] sm:$0xff]
  %v227 = vld [vmem:[%s0 + $0x6a8] sm:$0xff]
  %v228 = vld [vmem:[%s0 + $0x6b0] sm:$0xff]
  %v229 = vld [vmem:[%s0 + $0x6b8] sm:$0xff]
  %v230 = vld [vmem:[%s0 + $0x6c0] sm:$0xff]
  %v231 = vld [vmem:[%s0 + $0x6c8] sm:$0xff]
  %v232 = vld [vmem:[%s0 + $0x6d0] sm:$0xff]
  %v233 = vld [vmem:[%s0 + $0x6d8] sm:$0xff]
  %v234 = vld [vmem:[%s0 + $0x6e0] sm:$0xff]
  %v235 = vld [vmem:[%s0 + $0x6e8] sm:$0xff]
  %v236 = vld [vmem:[%s0 + $0x6f0] sm:$0xff]
  %v237 = vld [vmem:[%s0 + $0x6f8] sm:$0xff]
  %v238 = vld [vmem:[%s0 + $0x700] sm:$0xff]
  %v239 = vld [vmem:[%s0 + $0x708] sm:$0xff]
  %v240 = vld [vmem:[%s0 + $0x710] sm:$0xff]
  %v241 = vld [vmem:[%s0 + $0x718] sm:$0xff]
  %v242 = vld [vmem:[%s0 + $0x720] sm:$0xff]
  %v243 = vld [vmem:[%s0 + $0x728] sm:$0xff]
  %v244 = vld [vmem:[%s0 + $0x730] sm:$0xff]
  %v245 = vld [vmem:[%s0 + $0x738] sm:$0xff]
  %v246 = vld [vmem:[%s0 + $0x740] sm:$0xff]
  %v247 = vld [vmem:[%s0 + $0x748] sm:$0xff]
  %v248 = vld [vmem:[%s0 + $0x750] sm:$0xff]
  %v249 = vld [vmem:[%s0 + $0x758] sm:$0xff]
  %v250 = vld [vmem:[%s0 + $0x760] sm:$0xff]
  %v251 = vld [vmem:[%s0 + $0x768] sm:$0xff]
  %v252 = vld [vmem:[%s0 + $0x770] sm:$0xff]
  %v253 = vld [vmem:[%s0 + $0x778] sm:$0xff]
  %v254 = vld [vmem:[%s0 + $0x780] sm:$0xff]
  %v255 = vld [vmem:[%s0 + $0x788] sm:$0xff]
  %v256 = vld [vmem:[%s0 + $0x790] sm:$0xff]
  %v257 = vld [vmem:[%s0 + $0x798] sm:$0xff]
  %v258 = vld [vmem:[%s0 + $0x7a0] sm:$0xff]
  %v259 = vld [vmem:[%s0 + $0x7a8] sm:$0xff]
  %v260 = vld [vmem:[%s0 + $0x7b0] sm:$0xff]
  %v261 = vld [vmem:[%s0 + $0x7b8] sm:$0xff]
  %v262 = vld [vmem:[%s0 + $0x7c0] sm:$0xff]
  %v263 = vld [vmem:[%s0 + $0x7c8] sm:$0xff]
  %v264 = vld [vmem:[%s0 + $0x7d0] sm:$0xff]
  %v265 = vld [vmem:[%s0 + $0x7d8] sm:$0xff]
  %v266 = vld [vmem:[%s0 + $0x7e0] sm:$0xff]
  %v267 = vld [vmem:[%s0 + $0x7e8] sm:$0xff]
  %v268 = vld [vmem:[%s0 + $0x7f0] sm:$0xff]
  %v269 = vld [vmem:[%s0 + $0x7f8] sm:$0xff]
  %v270 = vld [vmem:[%s1] sm:$0xff]
  %v271 = vld [vmem:[%s1 + $0x8] sm:$0xf]
  %v272 = vld [vmem:[%s2] sm:$0x1]
  %v274 = vlaneseq
  %v275 = vshrl.u32 %v274, 7
  %v276 = vsub.s32 0, %v275
  %v277 = vrot.slane %v272, %v276
  %vm279 = vcmask 97280
  %v281 = vsel %vm279, %v14, 0
  %v284 = vsel %vm279, %v15, 0
  %v287 = vsel %vm279, %v16, 0
  %v290 = vsel %vm279, %v17, 0
  %v293 = vsel %vm279, %v18, 0
  %v296 = vsel %vm279, %v19, 0
  %v299 = vsel %vm279, %v20, 0
  %v302 = vsel %vm279, %v21, 0
  %v305 = vsel %vm279, %v22, 0
  %v308 = vsel %vm279, %v23, 0
  %v311 = vsel %vm279, %v24, 0
  %v314 = vsel %vm279, %v25, 0
  %v317 = vsel %vm279, %v26, 0
  %v320 = vsel %vm279, %v27, 0
  %v323 = vsel %vm279, %v28, 0
  %v326 = vsel %vm279, %v29, 0
  %v329 = vsel %vm279, %v30, 0
  %v332 = vsel %vm279, %v31, 0
  %v335 = vsel %vm279, %v32, 0
  %v338 = vsel %vm279, %v33, 0
  %v341 = vsel %vm279, %v34, 0
  %v344 = vsel %vm279, %v35, 0
  %v347 = vsel %vm279, %v36, 0
  %v350 = vsel %vm279, %v37, 0
  %v353 = vsel %vm279, %v38, 0
  %v356 = vsel %vm279, %v39, 0
  %v359 = vsel %vm279, %v40, 0
  %v362 = vsel %vm279, %v41, 0
  %v365 = vsel %vm279, %v42, 0
  %v368 = vsel %vm279, %v43, 0
  %v371 = vsel %vm279, %v44, 0
  %v374 = vsel %vm279, %v45, 0
  %v377 = vsel %vm279, %v46, 0
  %v380 = vsel %vm279, %v47, 0
  %v383 = vsel %vm279, %v48, 0
  %v386 = vsel %vm279, %v49, 0
  %v389 = vsel %vm279, %v50, 0
  %v392 = vsel %vm279, %v51, 0
  %v395 = vsel %vm279, %v52, 0
  %v398 = vsel %vm279, %v53, 0
  %v401 = vsel %vm279, %v54, 0
  %v404 = vsel %vm279, %v55, 0
  %v407 = vsel %vm279, %v56, 0
  %v410 = vsel %vm279, %v57, 0
  %v413 = vsel %vm279, %v58, 0
  %v416 = vsel %vm279, %v59, 0
  %v419 = vsel %vm279, %v60, 0
  %v422 = vsel %vm279, %v61, 0
  %v425 = vsel %vm279, %v62, 0
  %v428 = vsel %vm279, %v63, 0
  %v431 = vsel %vm279, %v64, 0
  %v434 = vsel %vm279, %v65, 0
  %v437 = vsel %vm279, %v66, 0
  %v440 = vsel %vm279, %v67, 0
  %v443 = vsel %vm279, %v68, 0
  %v446 = vsel %vm279, %v69, 0
  %v449 = vsel %vm279, %v70, 0
  %v452 = vsel %vm279, %v71, 0
  %v455 = vsel %vm279, %v72, 0
  %v458 = vsel %vm279, %v73, 0
  %v461 = vsel %vm279, %v74, 0
  %v464 = vsel %vm279, %v75, 0
  %v467 = vsel %vm279, %v76, 0
  %v470 = vsel %vm279, %v77, 0
  %v473 = vsel %vm279, %v78, 0
  %v476 = vsel %vm279, %v79, 0
  %v479 = vsel %vm279, %v80, 0
  %v482 = vsel %vm279, %v81, 0
  %v485 = vsel %vm279, %v82, 0
  %v488 = vsel %vm279, %v83, 0
  %v491 = vsel %vm279, %v84, 0
  %v494 = vsel %vm279, %v85, 0
  %v497 = vsel %vm279, %v86, 0
  %v500 = vsel %vm279, %v87, 0
  %v503 = vsel %vm279, %v88, 0
  %v506 = vsel %vm279, %v89, 0
  %v509 = vsel %vm279, %v90, 0
  %v512 = vsel %vm279, %v91, 0
  %v515 = vsel %vm279, %v92, 0
  %v518 = vsel %vm279, %v93, 0
  %v521 = vsel %vm279, %v94, 0
  %v524 = vsel %vm279, %v95, 0
  %v527 = vsel %vm279, %v96, 0
  %v530 = vsel %vm279, %v97, 0
  %v533 = vsel %vm279, %v98, 0
  %v536 = vsel %vm279, %v99, 0
  %v539 = vsel %vm279, %v100, 0
  %v542 = vsel %vm279, %v101, 0
  %v545 = vsel %vm279, %v102, 0
  %v548 = vsel %vm279, %v103, 0
  %v551 = vsel %vm279, %v104, 0
  %v554 = vsel %vm279, %v105, 0
  %v557 = vsel %vm279, %v106, 0
  %v560 = vsel %vm279, %v107, 0
  %v563 = vsel %vm279, %v108, 0
  %v566 = vsel %vm279, %v109, 0
  %v569 = vsel %vm279, %v110, 0
  %v572 = vsel %vm279, %v111, 0
  %v575 = vsel %vm279, %v112, 0
  %v578 = vsel %vm279, %v113, 0
  %v581 = vsel %vm279, %v114, 0
  %v584 = vsel %vm279, %v115, 0
  %v587 = vsel %vm279, %v116, 0
  %v590 = vsel %vm279, %v117, 0
  %v593 = vsel %vm279, %v118, 0
  %v596 = vsel %vm279, %v119, 0
  %v599 = vsel %vm279, %v120, 0
  %v602 = vsel %vm279, %v121, 0
  %v605 = vsel %vm279, %v122, 0
  %v608 = vsel %vm279, %v123, 0
  %v611 = vsel %vm279, %v124, 0
  %v614 = vsel %vm279, %v125, 0
  %v617 = vsel %vm279, %v126, 0
  %v620 = vsel %vm279, %v127, 0
  %v623 = vsel %vm279, %v128, 0
  %v626 = vsel %vm279, %v129, 0
  %v629 = vsel %vm279, %v130, 0
  %v632 = vsel %vm279, %v131, 0
  %v635 = vsel %vm279, %v132, 0
  %v638 = vsel %vm279, %v133, 0
  %v641 = vsel %vm279, %v134, 0
  %v644 = vsel %vm279, %v135, 0
  %v647 = vsel %vm279, %v136, 0
  %v650 = vsel %vm279, %v137, 0
  %v653 = vsel %vm279, %v138, 0
  %v656 = vsel %vm279, %v139, 0
  %v659 = vsel %vm279, %v140, 0
  %v662 = vsel %vm279, %v141, 0
  %v665 = vsel %vm279, %v142, 0
  %v668 = vsel %vm279, %v143, 0
  %v671 = vsel %vm279, %v144, 0
  %v674 = vsel %vm279, %v145, 0
  %v677 = vsel %vm279, %v146, 0
  %v680 = vsel %vm279, %v147, 0
  %v683 = vsel %vm279, %v148, 0
  %v686 = vsel %vm279, %v149, 0
  %v689 = vsel %vm279, %v150, 0
  %v692 = vsel %vm279, %v151, 0
  %v695 = vsel %vm279, %v152, 0
  %v698 = vsel %vm279, %v153, 0
  %v701 = vsel %vm279, %v154, 0
  %v704 = vsel %vm279, %v155, 0
  %v707 = vsel %vm279, %v156, 0
  %v710 = vsel %vm279, %v157, 0
  %v713 = vsel %vm279, %v158, 0
  %v716 = vsel %vm279, %v159, 0
  %v719 = vsel %vm279, %v160, 0
  %v722 = vsel %vm279, %v161, 0
  %v725 = vsel %vm279, %v162, 0
  %v728 = vsel %vm279, %v163, 0
  %v731 = vsel %vm279, %v164, 0
  %v734 = vsel %vm279, %v165, 0
  %v737 = vsel %vm279, %v166, 0
  %v740 = vsel %vm279, %v167, 0
  %v743 = vsel %vm279, %v168, 0
  %v746 = vsel %vm279, %v169, 0
  %v749 = vsel %vm279, %v170, 0
  %v752 = vsel %vm279, %v171, 0
  %v755 = vsel %vm279, %v172, 0
  %v758 = vsel %vm279, %v173, 0
  %v761 = vsel %vm279, %v174, 0
  %v764 = vsel %vm279, %v175, 0
  %v767 = vsel %vm279, %v176, 0
  %v770 = vsel %vm279, %v177, 0
  %v773 = vsel %vm279, %v178, 0
  %v776 = vsel %vm279, %v179, 0
  %v779 = vsel %vm279, %v180, 0
  %v782 = vsel %vm279, %v181, 0
  %v785 = vsel %vm279, %v182, 0
  %v788 = vsel %vm279, %v183, 0
  %v791 = vsel %vm279, %v184, 0
  %v794 = vsel %vm279, %v185, 0
  %v797 = vsel %vm279, %v186, 0
  %v800 = vsel %vm279, %v187, 0
  %v803 = vsel %vm279, %v188, 0
  %v806 = vsel %vm279, %v189, 0
  %v809 = vsel %vm279, %v190, 0
  %v812 = vsel %vm279, %v191, 0
  %v815 = vsel %vm279, %v192, 0
  %v818 = vsel %vm279, %v193, 0
  %v821 = vsel %vm279, %v194, 0
  %v824 = vsel %vm279, %v195, 0
  %v827 = vsel %vm279, %v196, 0
  %v830 = vsel %vm279, %v197, 0
  %v833 = vsel %vm279, %v198, 0
  %v836 = vsel %vm279, %v199, 0
  %v839 = vsel %vm279, %v200, 0
  %v842 = vsel %vm279, %v201, 0
  %v845 = vsel %vm279, %v202, 0
  %v848 = vsel %vm279, %v203, 0
  %v851 = vsel %vm279, %v204, 0
  %v854 = vsel %vm279, %v205, 0
  %v857 = vsel %vm279, %v206, 0
  %v860 = vsel %vm279, %v207, 0
  %v863 = vsel %vm279, %v208, 0
  %v866 = vsel %vm279, %v209, 0
  %v869 = vsel %vm279, %v210, 0
  %v872 = vsel %vm279, %v211, 0
  %v875 = vsel %vm279, %v212, 0
  %v878 = vsel %vm279, %v213, 0
  %v881 = vsel %vm279, %v214, 0
  %v884 = vsel %vm279, %v215, 0
  %v887 = vsel %vm279, %v216, 0
  %v890 = vsel %vm279, %v217, 0
  %v893 = vsel %vm279, %v218, 0
  %v896 = vsel %vm279, %v219, 0
  %v899 = vsel %vm279, %v220, 0
  %v902 = vsel %vm279, %v221, 0
  %v905 = vsel %vm279, %v222, 0
  %v908 = vsel %vm279, %v223, 0
  %v911 = vsel %vm279, %v224, 0
  %v914 = vsel %vm279, %v225, 0
  %v917 = vsel %vm279, %v226, 0
  %v920 = vsel %vm279, %v227, 0
  %v923 = vsel %vm279, %v228, 0
  %v926 = vsel %vm279, %v229, 0
  %v929 = vsel %vm279, %v230, 0
  %v932 = vsel %vm279, %v231, 0
  %v935 = vsel %vm279, %v232, 0
  %v938 = vsel %vm279, %v233, 0
  %v941 = vsel %vm279, %v234, 0
  %v944 = vsel %vm279, %v235, 0
  %v947 = vsel %vm279, %v236, 0
  %v950 = vsel %vm279, %v237, 0
  %v953 = vsel %vm279, %v238, 0
  %v956 = vsel %vm279, %v239, 0
  %v959 = vsel %vm279, %v240, 0
  %v962 = vsel %vm279, %v241, 0
  %v965 = vsel %vm279, %v242, 0
  %v968 = vsel %vm279, %v243, 0
  %v971 = vsel %vm279, %v244, 0
  %v974 = vsel %vm279, %v245, 0
  %v977 = vsel %vm279, %v246, 0
  %v980 = vsel %vm279, %v247, 0
  %v983 = vsel %vm279, %v248, 0
  %v986 = vsel %vm279, %v249, 0
  %v989 = vsel %vm279, %v250, 0
  %v992 = vsel %vm279, %v251, 0
  %v995 = vsel %vm279, %v252, 0
  %v998 = vsel %vm279, %v253, 0
  %v1001 = vsel %vm279, %v254, 0
  %v1004 = vsel %vm279, %v255, 0
  %v1007 = vsel %vm279, %v256, 0
  %v1010 = vsel %vm279, %v257, 0
  %v1013 = vsel %vm279, %v258, 0
  %v1016 = vsel %vm279, %v259, 0
  %v1019 = vsel %vm279, %v260, 0
  %v1022 = vsel %vm279, %v261, 0
  %v1025 = vsel %vm279, %v262, 0
  %v1028 = vsel %vm279, %v263, 0
  %v1031 = vsel %vm279, %v264, 0
  %v1034 = vsel %vm279, %v265, 0
  %v1037 = vsel %vm279, %v266, 0
  %v1040 = vsel %vm279, %v267, 0
  %v1043 = vsel %vm279, %v268, 0
  %v1046 = vsel %vm279, %v269, 0
  %vm1048 = vcmask 1043456
  %v1050 = vsel %vm1048, %v271, 0
  %1052 = vmatprep.subr.mxu0 0.0
  %1053 = vmatpush1.msra.mxu0 0.0
  %1054 = vmatprep.subr.mxu0 0.0
  %1055 = vmatpush1.msra.mxu0 0.0
  %1056 = vmatprep.subr.mxu0 0.0
  %1057 = vmatpush1.msra.mxu0 0.0
  %1058 = vmatprep.subr.mxu0 0.0
  %1059 = vmatpush1.msra.mxu0 0.0
  %1060 = vmatprep.subr.mxu0 0.0
  %1061 = vmatpush1.msra.mxu0 0.0
  %1062 = vmatprep.subr.mxu0 0.0
  %1063 = vmatpush1.msra.mxu0 0.0
  %1064 = vmatprep.subr.mxu0 0.0
  %1065 = vmatpush1.msra.mxu0 0.0
  %1066 = vmatprep.subr.mxu0 0.0
  %1067 = vmatpush1.msra.mxu0 0.0
  %1068 = vmatprep.subr.mxu0 0.0
  %1069 = vmatpush1.msra.mxu0 0.0
  %1070 = vmatprep.subr.mxu0 0.0
  %1071 = vmatpush1.msra.mxu0 0.0
  %1072 = vmatprep.subr.mxu0 0.0
  %1073 = vmatpush1.msra.mxu0 0.0
  %1074 = vmatprep.subr.mxu0 0.0
  %1075 = vmatpush1.msra.mxu0 0.0
  %1076 = vmatprep.subr.mxu0 0.0
  %1077 = vmatpush1.msra.mxu0 0.0
  %1078 = vmatprep.subr.mxu0 0.0
  %1079 = vmatpush1.msra.mxu0 0.0
  %1080 = vmatprep.subr.mxu0 0.0
  %1081 = vmatpush1.msra.mxu0 %v1050
  %1082 = vmatprep.subr.mxu0 0.0
  %1083 = vmatpush1.msra.mxu0 %v270
  %1084 = vmatprep.subr.mxu0 0.0
  %1085 = vmatpush2.msra.mxu0 0.0
  %1086 = vmatprep.subr.mxu0 0.0
  %1087 = vmatpush2.msra.mxu0 0.0
  %1088 = vmatprep.subr.mxu0 0.0
  %1089 = vmatpush2.msra.mxu0 0.0
  %1090 = vmatprep.subr.mxu0 0.0
  %1091 = vmatpush2.msra.mxu0 0.0
  %1092 = vmatprep.subr.mxu0 0.0
  %1093 = vmatpush2.msra.mxu0 0.0
  %1094 = vmatprep.subr.mxu0 0.0
  %1095 = vmatpush2.msra.mxu0 0.0
  %1096 = vmatprep.subr.mxu0 0.0
  %1097 = vmatpush2.msra.mxu0 0.0
  %1098 = vmatprep.subr.mxu0 0.0
  %1099 = vmatpush2.msra.mxu0 0.0
  %1100 = vmatprep.subr.mxu0 0.0
  %1101 = vmatpush2.msra.mxu0 0.0
  %1102 = vmatprep.subr.mxu0 0.0
  %1103 = vmatpush2.msra.mxu0 0.0
  %1104 = vmatprep.subr.mxu0 0.0
  %1105 = vmatpush2.msra.mxu0 0.0
  %1106 = vmatprep.subr.mxu0 0.0
  %1107 = vmatpush2.msra.mxu0 0.0
  %1108 = vmatprep.subr.mxu0 0.0
  %1109 = vmatpush2.msra.mxu0 0.0
  %1110 = vmatprep.subr.mxu0 0.0
  %1111 = vmatpush2.msra.mxu0 0.0
  %1112 = vmatprep.subr.mxu0 0.0
  %1113 = vmatpush2.msra.mxu0 0.0
  %1114 = vmatprep.subr.mxu0 0.0
  %1115 = vmatpush2.msra.mxu0 0.0
  %1116 = vmatprep.mubr.f32.mxu0 0.0
  %1117 = vmatmul.mubr.f32.gmra.mxu0 %v281
  %v1118 = vpop.f32.mrf.mxu0
  %v1119 = vadd.f32 %v277, %v1118
  %v1120 = vpop.f32.mrf.mxu0
  %1121 = vmatprep.mubr.f32.mxu0 0.0
  %1122 = vmatmul.mubr.f32.gmra.mxu0 %v284
  %v1123 = vpop.f32.mrf.mxu0
  %v1124 = vadd.f32 %v277, %v1123
  %v1125 = vpop.f32.mrf.mxu0
  %1126 = vmatprep.mubr.f32.mxu0 0.0
  %1127 = vmatmul.mubr.f32.gmra.mxu0 %v287
  %v1128 = vpop.f32.mrf.mxu0
  %v1129 = vadd.f32 %v277, %v1128
  %v1130 = vpop.f32.mrf.mxu0
  %1131 = vmatprep.mubr.f32.mxu0 0.0
  %1132 = vmatmul.mubr.f32.gmra.mxu0 %v290
  %v1133 = vpop.f32.mrf.mxu0
  %v1134 = vadd.f32 %v277, %v1133
  %v1135 = vpop.f32.mrf.mxu0
  %1136 = vmatprep.mubr.f32.mxu0 0.0
  %1137 = vmatmul.mubr.f32.gmra.mxu0 %v293
  %v1138 = vpop.f32.mrf.mxu0
  %v1139 = vadd.f32 %v277, %v1138
  %v1140 = vpop.f32.mrf.mxu0
  %1141 = vmatprep.mubr.f32.mxu0 0.0
  %1142 = vmatmul.mubr.f32.gmra.mxu0 %v296
  %v1143 = vpop.f32.mrf.mxu0
  %v1144 = vadd.f32 %v277, %v1143
  %v1145 = vpop.f32.mrf.mxu0
  %1146 = vmatprep.mubr.f32.mxu0 0.0
  %1147 = vmatmul.mubr.f32.gmra.mxu0 %v299
  %v1148 = vpop.f32.mrf.mxu0
  %v1149 = vadd.f32 %v277, %v1148
  %v1150 = vpop.f32.mrf.mxu0
  %1151 = vmatprep.mubr.f32.mxu0 0.0
  %1152 = vmatmul.mubr.f32.gmra.mxu0 %v302
  %v1153 = vpop.f32.mrf.mxu0
  %v1154 = vadd.f32 %v277, %v1153
  %v1155 = vpop.f32.mrf.mxu0
  %1156 = vmatprep.mubr.f32.mxu0 0.0
  %1157 = vmatmul.mubr.f32.gmra.mxu0 %v305
  %v1158 = vpop.f32.mrf.mxu0
  %v1159 = vadd.f32 %v277, %v1158
  %v1160 = vpop.f32.mrf.mxu0
  %1161 = vmatprep.mubr.f32.mxu0 0.0
  %1162 = vmatmul.mubr.f32.gmra.mxu0 %v308
  %v1163 = vpop.f32.mrf.mxu0
  %v1164 = vadd.f32 %v277, %v1163
  %v1165 = vpop.f32.mrf.mxu0
  %1166 = vmatprep.mubr.f32.mxu0 0.0
  %1167 = vmatmul.mubr.f32.gmra.mxu0 %v311
  %v1168 = vpop.f32.mrf.mxu0
  %v1169 = vadd.f32 %v277, %v1168
  %v1170 = vpop.f32.mrf.mxu0
  %1171 = vmatprep.mubr.f32.mxu0 0.0
  %1172 = vmatmul.mubr.f32.gmra.mxu0 %v314
  %v1173 = vpop.f32.mrf.mxu0
  %v1174 = vadd.f32 %v277, %v1173
  %v1175 = vpop.f32.mrf.mxu0
  %1176 = vmatprep.mubr.f32.mxu0 0.0
  %1177 = vmatmul.mubr.f32.gmra.mxu0 %v317
  %v1178 = vpop.f32.mrf.mxu0
  %v1179 = vadd.f32 %v277, %v1178
  %v1180 = vpop.f32.mrf.mxu0
  %1181 = vmatprep.mubr.f32.mxu0 0.0
  %1182 = vmatmul.mubr.f32.gmra.mxu0 %v320
  %v1183 = vpop.f32.mrf.mxu0
  %v1184 = vadd.f32 %v277, %v1183
  %v1185 = vpop.f32.mrf.mxu0
  %1186 = vmatprep.mubr.f32.mxu0 0.0
  %1187 = vmatmul.mubr.f32.gmra.mxu0 %v323
  %v1188 = vpop.f32.mrf.mxu0
  %v1189 = vadd.f32 %v277, %v1188
  %v1190 = vpop.f32.mrf.mxu0
  %1191 = vmatprep.mubr.f32.mxu0 0.0
  %1192 = vmatmul.mubr.f32.gmra.mxu0 %v326
  %v1193 = vpop.f32.mrf.mxu0
  %v1194 = vadd.f32 %v277, %v1193
  %v1195 = vpop.f32.mrf.mxu0
  %1196 = vmatprep.mubr.f32.mxu0 0.0
  %1197 = vmatmul.mubr.f32.gmra.mxu0 %v329
  %v1198 = vpop.f32.mrf.mxu0
  %v1199 = vadd.f32 %v277, %v1198
  %v1200 = vpop.f32.mrf.mxu0
  %1201 = vmatprep.mubr.f32.mxu0 0.0
  %1202 = vmatmul.mubr.f32.gmra.mxu0 %v332
  %v1203 = vpop.f32.mrf.mxu0
  %v1204 = vadd.f32 %v277, %v1203
  %v1205 = vpop.f32.mrf.mxu0
  %1206 = vmatprep.mubr.f32.mxu0 0.0
  %1207 = vmatmul.mubr.f32.gmra.mxu0 %v335
  %v1208 = vpop.f32.mrf.mxu0
  %v1209 = vadd.f32 %v277, %v1208
  %v1210 = vpop.f32.mrf.mxu0
  %1211 = vmatprep.mubr.f32.mxu0 0.0
  %1212 = vmatmul.mubr.f32.gmra.mxu0 %v338
  %v1213 = vpop.f32.mrf.mxu0
  %v1214 = vadd.f32 %v277, %v1213
  %v1215 = vpop.f32.mrf.mxu0
  %1216 = vmatprep.mubr.f32.mxu0 0.0
  %1217 = vmatmul.mubr.f32.gmra.mxu0 %v341
  %v1218 = vpop.f32.mrf.mxu0
  %v1219 = vadd.f32 %v277, %v1218
  %v1220 = vpop.f32.mrf.mxu0
  %1221 = vmatprep.mubr.f32.mxu0 0.0
  %1222 = vmatmul.mubr.f32.gmra.mxu0 %v344
  %v1223 = vpop.f32.mrf.mxu0
  %v1224 = vadd.f32 %v277, %v1223
  %v1225 = vpop.f32.mrf.mxu0
  %1226 = vmatprep.mubr.f32.mxu0 0.0
  %1227 = vmatmul.mubr.f32.gmra.mxu0 %v347
  %v1228 = vpop.f32.mrf.mxu0
  %v1229 = vadd.f32 %v277, %v1228
  %v1230 = vpop.f32.mrf.mxu0
  %1231 = vmatprep.mubr.f32.mxu0 0.0
  %1232 = vmatmul.mubr.f32.gmra.mxu0 %v350
  %v1233 = vpop.f32.mrf.mxu0
  %v1234 = vadd.f32 %v277, %v1233
  %v1235 = vpop.f32.mrf.mxu0
  %1236 = vmatprep.mubr.f32.mxu0 0.0
  %1237 = vmatmul.mubr.f32.gmra.mxu0 %v353
  %v1238 = vpop.f32.mrf.mxu0
  %v1239 = vadd.f32 %v277, %v1238
  %v1240 = vpop.f32.mrf.mxu0
  %1241 = vmatprep.mubr.f32.mxu0 0.0
  %1242 = vmatmul.mubr.f32.gmra.mxu0 %v356
  %v1243 = vpop.f32.mrf.mxu0
  %v1244 = vadd.f32 %v277, %v1243
  %v1245 = vpop.f32.mrf.mxu0
  %1246 = vmatprep.mubr.f32.mxu0 0.0
  %1247 = vmatmul.mubr.f32.gmra.mxu0 %v359
  %v1248 = vpop.f32.mrf.mxu0
  %v1249 = vadd.f32 %v277, %v1248
  %v1250 = vpop.f32.mrf.mxu0
  %1251 = vmatprep.mubr.f32.mxu0 0.0
  %1252 = vmatmul.mubr.f32.gmra.mxu0 %v362
  %v1253 = vpop.f32.mrf.mxu0
  %v1254 = vadd.f32 %v277, %v1253
  %v1255 = vpop.f32.mrf.mxu0
  %1256 = vmatprep.mubr.f32.mxu0 0.0
  %1257 = vmatmul.mubr.f32.gmra.mxu0 %v365
  %v1258 = vpop.f32.mrf.mxu0
  %v1259 = vadd.f32 %v277, %v1258
  %v1260 = vpop.f32.mrf.mxu0
  %1261 = vmatprep.mubr.f32.mxu0 0.0
  %1262 = vmatmul.mubr.f32.gmra.mxu0 %v368
  %v1263 = vpop.f32.mrf.mxu0
  %v1264 = vadd.f32 %v277, %v1263
  %v1265 = vpop.f32.mrf.mxu0
  %1266 = vmatprep.mubr.f32.mxu0 0.0
  %1267 = vmatmul.mubr.f32.gmra.mxu0 %v371
  %v1268 = vpop.f32.mrf.mxu0
  %v1269 = vadd.f32 %v277, %v1268
  %v1270 = vpop.f32.mrf.mxu0
  %1271 = vmatprep.mubr.f32.mxu0 0.0
  %1272 = vmatmul.mubr.f32.gmra.mxu0 %v374
  %v1273 = vpop.f32.mrf.mxu0
  %v1274 = vadd.f32 %v277, %v1273
  %v1275 = vpop.f32.mrf.mxu0
  %1276 = vmatprep.mubr.f32.mxu0 0.0
  %1277 = vmatmul.mubr.f32.gmra.mxu0 %v377
  %v1278 = vpop.f32.mrf.mxu0
  %v1279 = vadd.f32 %v277, %v1278
  %v1280 = vpop.f32.mrf.mxu0
  %1281 = vmatprep.mubr.f32.mxu0 0.0
  %1282 = vmatmul.mubr.f32.gmra.mxu0 %v380
  %v1283 = vpop.f32.mrf.mxu0
  %v1284 = vadd.f32 %v277, %v1283
  %v1285 = vpop.f32.mrf.mxu0
  %1286 = vmatprep.mubr.f32.mxu0 0.0
  %1287 = vmatmul.mubr.f32.gmra.mxu0 %v383
  %v1288 = vpop.f32.mrf.mxu0
  %v1289 = vadd.f32 %v277, %v1288
  %v1290 = vpop.f32.mrf.mxu0
  %1291 = vmatprep.mubr.f32.mxu0 0.0
  %1292 = vmatmul.mubr.f32.gmra.mxu0 %v386
  %v1293 = vpop.f32.mrf.mxu0
  %v1294 = vadd.f32 %v277, %v1293
  %v1295 = vpop.f32.mrf.mxu0
  %1296 = vmatprep.mubr.f32.mxu0 0.0
  %1297 = vmatmul.mubr.f32.gmra.mxu0 %v389
  %v1298 = vpop.f32.mrf.mxu0
  %v1299 = vadd.f32 %v277, %v1298
  %v1300 = vpop.f32.mrf.mxu0
  %1301 = vmatprep.mubr.f32.mxu0 0.0
  %1302 = vmatmul.mubr.f32.gmra.mxu0 %v392
  %v1303 = vpop.f32.mrf.mxu0
  %v1304 = vadd.f32 %v277, %v1303
  %v1305 = vpop.f32.mrf.mxu0
  %1306 = vmatprep.mubr.f32.mxu0 0.0
  %1307 = vmatmul.mubr.f32.gmra.mxu0 %v395
  %v1308 = vpop.f32.mrf.mxu0
  %v1309 = vadd.f32 %v277, %v1308
  %v1310 = vpop.f32.mrf.mxu0
  %1311 = vmatprep.mubr.f32.mxu0 0.0
  %1312 = vmatmul.mubr.f32.gmra.mxu0 %v398
  %v1313 = vpop.f32.mrf.mxu0
  %v1314 = vadd.f32 %v277, %v1313
  %v1315 = vpop.f32.mrf.mxu0
  %1316 = vmatprep.mubr.f32.mxu0 0.0
  %1317 = vmatmul.mubr.f32.gmra.mxu0 %v401
  %v1318 = vpop.f32.mrf.mxu0
  %v1319 = vadd.f32 %v277, %v1318
  %v1320 = vpop.f32.mrf.mxu0
  %1321 = vmatprep.mubr.f32.mxu0 0.0
  %1322 = vmatmul.mubr.f32.gmra.mxu0 %v404
  %v1323 = vpop.f32.mrf.mxu0
  %v1324 = vadd.f32 %v277, %v1323
  %v1325 = vpop.f32.mrf.mxu0
  %1326 = vmatprep.mubr.f32.mxu0 0.0
  %1327 = vmatmul.mubr.f32.gmra.mxu0 %v407
  %v1328 = vpop.f32.mrf.mxu0
  %v1329 = vadd.f32 %v277, %v1328
  %v1330 = vpop.f32.mrf.mxu0
  %1331 = vmatprep.mubr.f32.mxu0 0.0
  %1332 = vmatmul.mubr.f32.gmra.mxu0 %v410
  %v1333 = vpop.f32.mrf.mxu0
  %v1334 = vadd.f32 %v277, %v1333
  %v1335 = vpop.f32.mrf.mxu0
  %1336 = vmatprep.mubr.f32.mxu0 0.0
  %1337 = vmatmul.mubr.f32.gmra.mxu0 %v413
  %v1338 = vpop.f32.mrf.mxu0
  %v1339 = vadd.f32 %v277, %v1338
  %v1340 = vpop.f32.mrf.mxu0
  %1341 = vmatprep.mubr.f32.mxu0 0.0
  %1342 = vmatmul.mubr.f32.gmra.mxu0 %v416
  %v1343 = vpop.f32.mrf.mxu0
  %v1344 = vadd.f32 %v277, %v1343
  %v1345 = vpop.f32.mrf.mxu0
  %1346 = vmatprep.mubr.f32.mxu0 0.0
  %1347 = vmatmul.mubr.f32.gmra.mxu0 %v419
  %v1348 = vpop.f32.mrf.mxu0
  %v1349 = vadd.f32 %v277, %v1348
  %v1350 = vpop.f32.mrf.mxu0
  %1351 = vmatprep.mubr.f32.mxu0 0.0
  %1352 = vmatmul.mubr.f32.gmra.mxu0 %v422
  %v1353 = vpop.f32.mrf.mxu0
  %v1354 = vadd.f32 %v277, %v1353
  %v1355 = vpop.f32.mrf.mxu0
  %1356 = vmatprep.mubr.f32.mxu0 0.0
  %1357 = vmatmul.mubr.f32.gmra.mxu0 %v425
  %v1358 = vpop.f32.mrf.mxu0
  %v1359 = vadd.f32 %v277, %v1358
  %v1360 = vpop.f32.mrf.mxu0
  %1361 = vmatprep.mubr.f32.mxu0 0.0
  %1362 = vmatmul.mubr.f32.gmra.mxu0 %v428
  %v1363 = vpop.f32.mrf.mxu0
  %v1364 = vadd.f32 %v277, %v1363
  %v1365 = vpop.f32.mrf.mxu0
  %1366 = vmatprep.mubr.f32.mxu0 0.0
  %1367 = vmatmul.mubr.f32.gmra.mxu0 %v431
  %v1368 = vpop.f32.mrf.mxu0
  %v1369 = vadd.f32 %v277, %v1368
  %v1370 = vpop.f32.mrf.mxu0
  %1371 = vmatprep.mubr.f32.mxu0 0.0
  %1372 = vmatmul.mubr.f32.gmra.mxu0 %v434
  %v1373 = vpop.f32.mrf.mxu0
  %v1374 = vadd.f32 %v277, %v1373
  %v1375 = vpop.f32.mrf.mxu0
  %1376 = vmatprep.mubr.f32.mxu0 0.0
  %1377 = vmatmul.mubr.f32.gmra.mxu0 %v437
  %v1378 = vpop.f32.mrf.mxu0
  %v1379 = vadd.f32 %v277, %v1378
  %v1380 = vpop.f32.mrf.mxu0
  %1381 = vmatprep.mubr.f32.mxu0 0.0
  %1382 = vmatmul.mubr.f32.gmra.mxu0 %v440
  %v1383 = vpop.f32.mrf.mxu0
  %v1384 = vadd.f32 %v277, %v1383
  %v1385 = vpop.f32.mrf.mxu0
  %1386 = vmatprep.mubr.f32.mxu0 0.0
  %1387 = vmatmul.mubr.f32.gmra.mxu0 %v443
  %v1388 = vpop.f32.mrf.mxu0
  %v1389 = vadd.f32 %v277, %v1388
  %v1390 = vpop.f32.mrf.mxu0
  %1391 = vmatprep.mubr.f32.mxu0 0.0
  %1392 = vmatmul.mubr.f32.gmra.mxu0 %v446
  %v1393 = vpop.f32.mrf.mxu0
  %v1394 = vadd.f32 %v277, %v1393
  %v1395 = vpop.f32.mrf.mxu0
  %1396 = vmatprep.mubr.f32.mxu0 0.0
  %1397 = vmatmul.mubr.f32.gmra.mxu0 %v449
  %v1398 = vpop.f32.mrf.mxu0
  %v1399 = vadd.f32 %v277, %v1398
  %v1400 = vpop.f32.mrf.mxu0
  %1401 = vmatprep.mubr.f32.mxu0 0.0
  %1402 = vmatmul.mubr.f32.gmra.mxu0 %v452
  %v1403 = vpop.f32.mrf.mxu0
  %v1404 = vadd.f32 %v277, %v1403
  %v1405 = vpop.f32.mrf.mxu0
  %1406 = vmatprep.mubr.f32.mxu0 0.0
  %1407 = vmatmul.mubr.f32.gmra.mxu0 %v455
  %v1408 = vpop.f32.mrf.mxu0
  %v1409 = vadd.f32 %v277, %v1408
  %v1410 = vpop.f32.mrf.mxu0
  %1411 = vmatprep.mubr.f32.mxu0 0.0
  %1412 = vmatmul.mubr.f32.gmra.mxu0 %v458
  %v1413 = vpop.f32.mrf.mxu0
  %v1414 = vadd.f32 %v277, %v1413
  %v1415 = vpop.f32.mrf.mxu0
  %1416 = vmatprep.mubr.f32.mxu0 0.0
  %1417 = vmatmul.mubr.f32.gmra.mxu0 %v461
  %v1418 = vpop.f32.mrf.mxu0
  %v1419 = vadd.f32 %v277, %v1418
  %v1420 = vpop.f32.mrf.mxu0
  %1421 = vmatprep.mubr.f32.mxu0 0.0
  %1422 = vmatmul.mubr.f32.gmra.mxu0 %v464
  %v1423 = vpop.f32.mrf.mxu0
  %v1424 = vadd.f32 %v277, %v1423
  %v1425 = vpop.f32.mrf.mxu0
  %1426 = vmatprep.mubr.f32.mxu0 0.0
  %1427 = vmatmul.mubr.f32.gmra.mxu0 %v467
  %v1428 = vpop.f32.mrf.mxu0
  %v1429 = vadd.f32 %v277, %v1428
  %v1430 = vpop.f32.mrf.mxu0
  %1431 = vmatprep.mubr.f32.mxu0 0.0
  %1432 = vmatmul.mubr.f32.gmra.mxu0 %v470
  %v1433 = vpop.f32.mrf.mxu0
  %v1434 = vadd.f32 %v277, %v1433
  %v1435 = vpop.f32.mrf.mxu0
  %1436 = vmatprep.mubr.f32.mxu0 0.0
  %1437 = vmatmul.mubr.f32.gmra.mxu0 %v473
  %v1438 = vpop.f32.mrf.mxu0
  %v1439 = vadd.f32 %v277, %v1438
  %v1440 = vpop.f32.mrf.mxu0
  %1441 = vmatprep.mubr.f32.mxu0 0.0
  %1442 = vmatmul.mubr.f32.gmra.mxu0 %v476
  %v1443 = vpop.f32.mrf.mxu0
  %v1444 = vadd.f32 %v277, %v1443
  %v1445 = vpop.f32.mrf.mxu0
  %1446 = vmatprep.mubr.f32.mxu0 0.0
  %1447 = vmatmul.mubr.f32.gmra.mxu0 %v479
  %v1448 = vpop.f32.mrf.mxu0
  %v1449 = vadd.f32 %v277, %v1448
  %v1450 = vpop.f32.mrf.mxu0
  %1451 = vmatprep.mubr.f32.mxu0 0.0
  %1452 = vmatmul.mubr.f32.gmra.mxu0 %v482
  %v1453 = vpop.f32.mrf.mxu0
  %v1454 = vadd.f32 %v277, %v1453
  %v1455 = vpop.f32.mrf.mxu0
  %1456 = vmatprep.mubr.f32.mxu0 0.0
  %1457 = vmatmul.mubr.f32.gmra.mxu0 %v485
  %v1458 = vpop.f32.mrf.mxu0
  %v1459 = vadd.f32 %v277, %v1458
  %v1460 = vpop.f32.mrf.mxu0
  %1461 = vmatprep.mubr.f32.mxu0 0.0
  %1462 = vmatmul.mubr.f32.gmra.mxu0 %v488
  %v1463 = vpop.f32.mrf.mxu0
  %v1464 = vadd.f32 %v277, %v1463
  %v1465 = vpop.f32.mrf.mxu0
  %1466 = vmatprep.mubr.f32.mxu0 0.0
  %1467 = vmatmul.mubr.f32.gmra.mxu0 %v491
  %v1468 = vpop.f32.mrf.mxu0
  %v1469 = vadd.f32 %v277, %v1468
  %v1470 = vpop.f32.mrf.mxu0
  %1471 = vmatprep.mubr.f32.mxu0 0.0
  %1472 = vmatmul.mubr.f32.gmra.mxu0 %v494
  %v1473 = vpop.f32.mrf.mxu0
  %v1474 = vadd.f32 %v277, %v1473
  %v1475 = vpop.f32.mrf.mxu0
  %1476 = vmatprep.mubr.f32.mxu0 0.0
  %1477 = vmatmul.mubr.f32.gmra.mxu0 %v497
  %v1478 = vpop.f32.mrf.mxu0
  %v1479 = vadd.f32 %v277, %v1478
  %v1480 = vpop.f32.mrf.mxu0
  %1481 = vmatprep.mubr.f32.mxu0 0.0
  %1482 = vmatmul.mubr.f32.gmra.mxu0 %v500
  %v1483 = vpop.f32.mrf.mxu0
  %v1484 = vadd.f32 %v277, %v1483
  %v1485 = vpop.f32.mrf.mxu0
  %1486 = vmatprep.mubr.f32.mxu0 0.0
  %1487 = vmatmul.mubr.f32.gmra.mxu0 %v503
  %v1488 = vpop.f32.mrf.mxu0
  %v1489 = vadd.f32 %v277, %v1488
  %v1490 = vpop.f32.mrf.mxu0
  %1491 = vmatprep.mubr.f32.mxu0 0.0
  %1492 = vmatmul.mubr.f32.gmra.mxu0 %v506
  %v1493 = vpop.f32.mrf.mxu0
  %v1494 = vadd.f32 %v277, %v1493
  %v1495 = vpop.f32.mrf.mxu0
  %1496 = vmatprep.mubr.f32.mxu0 0.0
  %1497 = vmatmul.mubr.f32.gmra.mxu0 %v509
  %v1498 = vpop.f32.mrf.mxu0
  %v1499 = vadd.f32 %v277, %v1498
  %v1500 = vpop.f32.mrf.mxu0
  %1501 = vmatprep.mubr.f32.mxu0 0.0
  %1502 = vmatmul.mubr.f32.gmra.mxu0 %v512
  %v1503 = vpop.f32.mrf.mxu0
  %v1504 = vadd.f32 %v277, %v1503
  %v1505 = vpop.f32.mrf.mxu0
  %1506 = vmatprep.mubr.f32.mxu0 0.0
  %1507 = vmatmul.mubr.f32.gmra.mxu0 %v515
  %v1508 = vpop.f32.mrf.mxu0
  %v1509 = vadd.f32 %v277, %v1508
  %v1510 = vpop.f32.mrf.mxu0
  %1511 = vmatprep.mubr.f32.mxu0 0.0
  %1512 = vmatmul.mubr.f32.gmra.mxu0 %v518
  %v1513 = vpop.f32.mrf.mxu0
  %v1514 = vadd.f32 %v277, %v1513
  %v1515 = vpop.f32.mrf.mxu0
  %1516 = vmatprep.mubr.f32.mxu0 0.0
  %1517 = vmatmul.mubr.f32.gmra.mxu0 %v521
  %v1518 = vpop.f32.mrf.mxu0
  %v1519 = vadd.f32 %v277, %v1518
  %v1520 = vpop.f32.mrf.mxu0
  %1521 = vmatprep.mubr.f32.mxu0 0.0
  %1522 = vmatmul.mubr.f32.gmra.mxu0 %v524
  %v1523 = vpop.f32.mrf.mxu0
  %v1524 = vadd.f32 %v277, %v1523
  %v1525 = vpop.f32.mrf.mxu0
  %1526 = vmatprep.mubr.f32.mxu0 0.0
  %1527 = vmatmul.mubr.f32.gmra.mxu0 %v527
  %v1528 = vpop.f32.mrf.mxu0
  %v1529 = vadd.f32 %v277, %v1528
  %v1530 = vpop.f32.mrf.mxu0
  %1531 = vmatprep.mubr.f32.mxu0 0.0
  %1532 = vmatmul.mubr.f32.gmra.mxu0 %v530
  %v1533 = vpop.f32.mrf.mxu0
  %v1534 = vadd.f32 %v277, %v1533
  %v1535 = vpop.f32.mrf.mxu0
  %1536 = vmatprep.mubr.f32.mxu0 0.0
  %1537 = vmatmul.mubr.f32.gmra.mxu0 %v533
  %v1538 = vpop.f32.mrf.mxu0
  %v1539 = vadd.f32 %v277, %v1538
  %v1540 = vpop.f32.mrf.mxu0
  %1541 = vmatprep.mubr.f32.mxu0 0.0
  %1542 = vmatmul.mubr.f32.gmra.mxu0 %v536
  %v1543 = vpop.f32.mrf.mxu0
  %v1544 = vadd.f32 %v277, %v1543
  %v1545 = vpop.f32.mrf.mxu0
  %1546 = vmatprep.mubr.f32.mxu0 0.0
  %1547 = vmatmul.mubr.f32.gmra.mxu0 %v539
  %v1548 = vpop.f32.mrf.mxu0
  %v1549 = vadd.f32 %v277, %v1548
  %v1550 = vpop.f32.mrf.mxu0
  %1551 = vmatprep.mubr.f32.mxu0 0.0
  %1552 = vmatmul.mubr.f32.gmra.mxu0 %v542
  %v1553 = vpop.f32.mrf.mxu0
  %v1554 = vadd.f32 %v277, %v1553
  %v1555 = vpop.f32.mrf.mxu0
  %1556 = vmatprep.mubr.f32.mxu0 0.0
  %1557 = vmatmul.mubr.f32.gmra.mxu0 %v545
  %v1558 = vpop.f32.mrf.mxu0
  %v1559 = vadd.f32 %v277, %v1558
  %v1560 = vpop.f32.mrf.mxu0
  %1561 = vmatprep.mubr.f32.mxu0 0.0
  %1562 = vmatmul.mubr.f32.gmra.mxu0 %v548
  %v1563 = vpop.f32.mrf.mxu0
  %v1564 = vadd.f32 %v277, %v1563
  %v1565 = vpop.f32.mrf.mxu0
  %1566 = vmatprep.mubr.f32.mxu0 0.0
  %1567 = vmatmul.mubr.f32.gmra.mxu0 %v551
  %v1568 = vpop.f32.mrf.mxu0
  %v1569 = vadd.f32 %v277, %v1568
  %v1570 = vpop.f32.mrf.mxu0
  %1571 = vmatprep.mubr.f32.mxu0 0.0
  %1572 = vmatmul.mubr.f32.gmra.mxu0 %v554
  %v1573 = vpop.f32.mrf.mxu0
  %v1574 = vadd.f32 %v277, %v1573
  %v1575 = vpop.f32.mrf.mxu0
  %1576 = vmatprep.mubr.f32.mxu0 0.0
  %1577 = vmatmul.mubr.f32.gmra.mxu0 %v557
  %v1578 = vpop.f32.mrf.mxu0
  %v1579 = vadd.f32 %v277, %v1578
  %v1580 = vpop.f32.mrf.mxu0
  %1581 = vmatprep.mubr.f32.mxu0 0.0
  %1582 = vmatmul.mubr.f32.gmra.mxu0 %v560
  %v1583 = vpop.f32.mrf.mxu0
  %v1584 = vadd.f32 %v277, %v1583
  %v1585 = vpop.f32.mrf.mxu0
  %1586 = vmatprep.mubr.f32.mxu0 0.0
  %1587 = vmatmul.mubr.f32.gmra.mxu0 %v563
  %v1588 = vpop.f32.mrf.mxu0
  %v1589 = vadd.f32 %v277, %v1588
  %v1590 = vpop.f32.mrf.mxu0
  %1591 = vmatprep.mubr.f32.mxu0 0.0
  %1592 = vmatmul.mubr.f32.gmra.mxu0 %v566
  %v1593 = vpop.f32.mrf.mxu0
  %v1594 = vadd.f32 %v277, %v1593
  %v1595 = vpop.f32.mrf.mxu0
  %1596 = vmatprep.mubr.f32.mxu0 0.0
  %1597 = vmatmul.mubr.f32.gmra.mxu0 %v569
  %v1598 = vpop.f32.mrf.mxu0
  %v1599 = vadd.f32 %v277, %v1598
  %v1600 = vpop.f32.mrf.mxu0
  %1601 = vmatprep.mubr.f32.mxu0 0.0
  %1602 = vmatmul.mubr.f32.gmra.mxu0 %v572
  %v1603 = vpop.f32.mrf.mxu0
  %v1604 = vadd.f32 %v277, %v1603
  %v1605 = vpop.f32.mrf.mxu0
  %1606 = vmatprep.mubr.f32.mxu0 0.0
  %1607 = vmatmul.mubr.f32.gmra.mxu0 %v575
  %v1608 = vpop.f32.mrf.mxu0
  %v1609 = vadd.f32 %v277, %v1608
  %v1610 = vpop.f32.mrf.mxu0
  %1611 = vmatprep.mubr.f32.mxu0 0.0
  %1612 = vmatmul.mubr.f32.gmra.mxu0 %v578
  %v1613 = vpop.f32.mrf.mxu0
  %v1614 = vadd.f32 %v277, %v1613
  %v1615 = vpop.f32.mrf.mxu0
  %1616 = vmatprep.mubr.f32.mxu0 0.0
  %1617 = vmatmul.mubr.f32.gmra.mxu0 %v581
  %v1618 = vpop.f32.mrf.mxu0
  %v1619 = vadd.f32 %v277, %v1618
  %v1620 = vpop.f32.mrf.mxu0
  %1621 = vmatprep.mubr.f32.mxu0 0.0
  %1622 = vmatmul.mubr.f32.gmra.mxu0 %v584
  %v1623 = vpop.f32.mrf.mxu0
  %v1624 = vadd.f32 %v277, %v1623
  %v1625 = vpop.f32.mrf.mxu0
  %1626 = vmatprep.mubr.f32.mxu0 0.0
  %1627 = vmatmul.mubr.f32.gmra.mxu0 %v587
  %v1628 = vpop.f32.mrf.mxu0
  %v1629 = vadd.f32 %v277, %v1628
  %v1630 = vpop.f32.mrf.mxu0
  %1631 = vmatprep.mubr.f32.mxu0 0.0
  %1632 = vmatmul.mubr.f32.gmra.mxu0 %v590
  %v1633 = vpop.f32.mrf.mxu0
  %v1634 = vadd.f32 %v277, %v1633
  %v1635 = vpop.f32.mrf.mxu0
  %1636 = vmatprep.mubr.f32.mxu0 0.0
  %1637 = vmatmul.mubr.f32.gmra.mxu0 %v593
  %v1638 = vpop.f32.mrf.mxu0
  %v1639 = vadd.f32 %v277, %v1638
  %v1640 = vpop.f32.mrf.mxu0
  %1641 = vmatprep.mubr.f32.mxu0 0.0
  %1642 = vmatmul.mubr.f32.gmra.mxu0 %v596
  %v1643 = vpop.f32.mrf.mxu0
  %v1644 = vadd.f32 %v277, %v1643
  %v1645 = vpop.f32.mrf.mxu0
  %1646 = vmatprep.mubr.f32.mxu0 0.0
  %1647 = vmatmul.mubr.f32.gmra.mxu0 %v599
  %v1648 = vpop.f32.mrf.mxu0
  %v1649 = vadd.f32 %v277, %v1648
  %v1650 = vpop.f32.mrf.mxu0
  %1651 = vmatprep.mubr.f32.mxu0 0.0
  %1652 = vmatmul.mubr.f32.gmra.mxu0 %v602
  %v1653 = vpop.f32.mrf.mxu0
  %v1654 = vadd.f32 %v277, %v1653
  %v1655 = vpop.f32.mrf.mxu0
  %1656 = vmatprep.mubr.f32.mxu0 0.0
  %1657 = vmatmul.mubr.f32.gmra.mxu0 %v605
  %v1658 = vpop.f32.mrf.mxu0
  %v1659 = vadd.f32 %v277, %v1658
  %v1660 = vpop.f32.mrf.mxu0
  %1661 = vmatprep.mubr.f32.mxu0 0.0
  %1662 = vmatmul.mubr.f32.gmra.mxu0 %v608
  %v1663 = vpop.f32.mrf.mxu0
  %v1664 = vadd.f32 %v277, %v1663
  %v1665 = vpop.f32.mrf.mxu0
  %1666 = vmatprep.mubr.f32.mxu0 0.0
  %1667 = vmatmul.mubr.f32.gmra.mxu0 %v611
  %v1668 = vpop.f32.mrf.mxu0
  %v1669 = vadd.f32 %v277, %v1668
  %v1670 = vpop.f32.mrf.mxu0
  %1671 = vmatprep.mubr.f32.mxu0 0.0
  %1672 = vmatmul.mubr.f32.gmra.mxu0 %v614
  %v1673 = vpop.f32.mrf.mxu0
  %v1674 = vadd.f32 %v277, %v1673
  %v1675 = vpop.f32.mrf.mxu0
  %1676 = vmatprep.mubr.f32.mxu0 0.0
  %1677 = vmatmul.mubr.f32.gmra.mxu0 %v617
  %v1678 = vpop.f32.mrf.mxu0
  %v1679 = vadd.f32 %v277, %v1678
  %v1680 = vpop.f32.mrf.mxu0
  %1681 = vmatprep.mubr.f32.mxu0 0.0
  %1682 = vmatmul.mubr.f32.gmra.mxu0 %v620
  %v1683 = vpop.f32.mrf.mxu0
  %v1684 = vadd.f32 %v277, %v1683
  %v1685 = vpop.f32.mrf.mxu0
  %1686 = vmatprep.mubr.f32.mxu0 0.0
  %1687 = vmatmul.mubr.f32.gmra.mxu0 %v623
  %v1688 = vpop.f32.mrf.mxu0
  %v1689 = vadd.f32 %v277, %v1688
  %v1690 = vpop.f32.mrf.mxu0
  %1691 = vmatprep.mubr.f32.mxu0 0.0
  %1692 = vmatmul.mubr.f32.gmra.mxu0 %v626
  %v1693 = vpop.f32.mrf.mxu0
  %v1694 = vadd.f32 %v277, %v1693
  %v1695 = vpop.f32.mrf.mxu0
  %1696 = vmatprep.mubr.f32.mxu0 0.0
  %1697 = vmatmul.mubr.f32.gmra.mxu0 %v629
  %v1698 = vpop.f32.mrf.mxu0
  %v1699 = vadd.f32 %v277, %v1698
  %v1700 = vpop.f32.mrf.mxu0
  %1701 = vmatprep.mubr.f32.mxu0 0.0
  %1702 = vmatmul.mubr.f32.gmra.mxu0 %v632
  %v1703 = vpop.f32.mrf.mxu0
  %v1704 = vadd.f32 %v277, %v1703
  %v1705 = vpop.f32.mrf.mxu0
  %1706 = vmatprep.mubr.f32.mxu0 0.0
  %1707 = vmatmul.mubr.f32.gmra.mxu0 %v635
  %v1708 = vpop.f32.mrf.mxu0
  %v1709 = vadd.f32 %v277, %v1708
  %v1710 = vpop.f32.mrf.mxu0
  %1711 = vmatprep.mubr.f32.mxu0 0.0
  %1712 = vmatmul.mubr.f32.gmra.mxu0 %v638
  %v1713 = vpop.f32.mrf.mxu0
  %v1714 = vadd.f32 %v277, %v1713
  %v1715 = vpop.f32.mrf.mxu0
  %1716 = vmatprep.mubr.f32.mxu0 0.0
  %1717 = vmatmul.mubr.f32.gmra.mxu0 %v641
  %v1718 = vpop.f32.mrf.mxu0
  %v1719 = vadd.f32 %v277, %v1718
  %v1720 = vpop.f32.mrf.mxu0
  %1721 = vmatprep.mubr.f32.mxu0 0.0
  %1722 = vmatmul.mubr.f32.gmra.mxu0 %v644
  %v1723 = vpop.f32.mrf.mxu0
  %v1724 = vadd.f32 %v277, %v1723
  %v1725 = vpop.f32.mrf.mxu0
  %1726 = vmatprep.mubr.f32.mxu0 0.0
  %1727 = vmatmul.mubr.f32.gmra.mxu0 %v647
  %v1728 = vpop.f32.mrf.mxu0
  %v1729 = vadd.f32 %v277, %v1728
  %v1730 = vpop.f32.mrf.mxu0
  %1731 = vmatprep.mubr.f32.mxu0 0.0
  %1732 = vmatmul.mubr.f32.gmra.mxu0 %v650
  %v1733 = vpop.f32.mrf.mxu0
  %v1734 = vadd.f32 %v277, %v1733
  %v1735 = vpop.f32.mrf.mxu0
  %1736 = vmatprep.mubr.f32.mxu0 0.0
  %1737 = vmatmul.mubr.f32.gmra.mxu0 %v653
  %v1738 = vpop.f32.mrf.mxu0
  %v1739 = vadd.f32 %v277, %v1738
  %v1740 = vpop.f32.mrf.mxu0
  %1741 = vmatprep.mubr.f32.mxu0 0.0
  %1742 = vmatmul.mubr.f32.gmra.mxu0 %v656
  %v1743 = vpop.f32.mrf.mxu0
  %v1744 = vadd.f32 %v277, %v1743
  %v1745 = vpop.f32.mrf.mxu0
  %1746 = vmatprep.mubr.f32.mxu0 0.0
  %1747 = vmatmul.mubr.f32.gmra.mxu0 %v659
  %v1748 = vpop.f32.mrf.mxu0
  %v1749 = vadd.f32 %v277, %v1748
  %v1750 = vpop.f32.mrf.mxu0
  %1751 = vmatprep.mubr.f32.mxu0 0.0
  %1752 = vmatmul.mubr.f32.gmra.mxu0 %v662
  %v1753 = vpop.f32.mrf.mxu0
  %v1754 = vadd.f32 %v277, %v1753
  %v1755 = vpop.f32.mrf.mxu0
  %1756 = vmatprep.mubr.f32.mxu0 0.0
  %1757 = vmatmul.mubr.f32.gmra.mxu0 %v665
  %v1758 = vpop.f32.mrf.mxu0
  %v1759 = vadd.f32 %v277, %v1758
  %v1760 = vpop.f32.mrf.mxu0
  %1761 = vmatprep.mubr.f32.mxu0 0.0
  %1762 = vmatmul.mubr.f32.gmra.mxu0 %v668
  %v1763 = vpop.f32.mrf.mxu0
  %v1764 = vadd.f32 %v277, %v1763
  %v1765 = vpop.f32.mrf.mxu0
  %1766 = vmatprep.mubr.f32.mxu0 0.0
  %1767 = vmatmul.mubr.f32.gmra.mxu0 %v671
  %v1768 = vpop.f32.mrf.mxu0
  %v1769 = vadd.f32 %v277, %v1768
  %v1770 = vpop.f32.mrf.mxu0
  %1771 = vmatprep.mubr.f32.mxu0 0.0
  %1772 = vmatmul.mubr.f32.gmra.mxu0 %v674
  %v1773 = vpop.f32.mrf.mxu0
  %v1774 = vadd.f32 %v277, %v1773
  %v1775 = vpop.f32.mrf.mxu0
  %1776 = vmatprep.mubr.f32.mxu0 0.0
  %1777 = vmatmul.mubr.f32.gmra.mxu0 %v677
  %v1778 = vpop.f32.mrf.mxu0
  %v1779 = vadd.f32 %v277, %v1778
  %v1780 = vpop.f32.mrf.mxu0
  %1781 = vmatprep.mubr.f32.mxu0 0.0
  %1782 = vmatmul.mubr.f32.gmra.mxu0 %v680
  %v1783 = vpop.f32.mrf.mxu0
  %v1784 = vadd.f32 %v277, %v1783
  %v1785 = vpop.f32.mrf.mxu0
  %1786 = vmatprep.mubr.f32.mxu0 0.0
  %1787 = vmatmul.mubr.f32.gmra.mxu0 %v683
  %v1788 = vpop.f32.mrf.mxu0
  %v1789 = vadd.f32 %v277, %v1788
  %v1790 = vpop.f32.mrf.mxu0
  %1791 = vmatprep.mubr.f32.mxu0 0.0
  %1792 = vmatmul.mubr.f32.gmra.mxu0 %v686
  %v1793 = vpop.f32.mrf.mxu0
  %v1794 = vadd.f32 %v277, %v1793
  %v1795 = vpop.f32.mrf.mxu0
  %1796 = vmatprep.mubr.f32.mxu0 0.0
  %1797 = vmatmul.mubr.f32.gmra.mxu0 %v689
  %v1798 = vpop.f32.mrf.mxu0
  %v1799 = vadd.f32 %v277, %v1798
  %v1800 = vpop.f32.mrf.mxu0
  %1801 = vmatprep.mubr.f32.mxu0 0.0
  %1802 = vmatmul.mubr.f32.gmra.mxu0 %v692
  %v1803 = vpop.f32.mrf.mxu0
  %v1804 = vadd.f32 %v277, %v1803
  %v1805 = vpop.f32.mrf.mxu0
  %1806 = vmatprep.mubr.f32.mxu0 0.0
  %1807 = vmatmul.mubr.f32.gmra.mxu0 %v695
  %v1808 = vpop.f32.mrf.mxu0
  %v1809 = vadd.f32 %v277, %v1808
  %v1810 = vpop.f32.mrf.mxu0
  %1811 = vmatprep.mubr.f32.mxu0 0.0
  %1812 = vmatmul.mubr.f32.gmra.mxu0 %v698
  %v1813 = vpop.f32.mrf.mxu0
  %v1814 = vadd.f32 %v277, %v1813
  %v1815 = vpop.f32.mrf.mxu0
  %1816 = vmatprep.mubr.f32.mxu0 0.0
  %1817 = vmatmul.mubr.f32.gmra.mxu0 %v701
  %v1818 = vpop.f32.mrf.mxu0
  %v1819 = vadd.f32 %v277, %v1818
  %v1820 = vpop.f32.mrf.mxu0
  %1821 = vmatprep.mubr.f32.mxu0 0.0
  %1822 = vmatmul.mubr.f32.gmra.mxu0 %v704
  %v1823 = vpop.f32.mrf.mxu0
  %v1824 = vadd.f32 %v277, %v1823
  %v1825 = vpop.f32.mrf.mxu0
  %1826 = vmatprep.mubr.f32.mxu0 0.0
  %1827 = vmatmul.mubr.f32.gmra.mxu0 %v707
  %v1828 = vpop.f32.mrf.mxu0
  %v1829 = vadd.f32 %v277, %v1828
  %v1830 = vpop.f32.mrf.mxu0
  %1831 = vmatprep.mubr.f32.mxu0 0.0
  %1832 = vmatmul.mubr.f32.gmra.mxu0 %v710
  %v1833 = vpop.f32.mrf.mxu0
  %v1834 = vadd.f32 %v277, %v1833
  %v1835 = vpop.f32.mrf.mxu0
  %1836 = vmatprep.mubr.f32.mxu0 0.0
  %1837 = vmatmul.mubr.f32.gmra.mxu0 %v713
  %v1838 = vpop.f32.mrf.mxu0
  %v1839 = vadd.f32 %v277, %v1838
  %v1840 = vpop.f32.mrf.mxu0
  %1841 = vmatprep.mubr.f32.mxu0 0.0
  %1842 = vmatmul.mubr.f32.gmra.mxu0 %v716
  %v1843 = vpop.f32.mrf.mxu0
  %v1844 = vadd.f32 %v277, %v1843
  %v1845 = vpop.f32.mrf.mxu0
  %1846 = vmatprep.mubr.f32.mxu0 0.0
  %1847 = vmatmul.mubr.f32.gmra.mxu0 %v719
  %v1848 = vpop.f32.mrf.mxu0
  %v1849 = vadd.f32 %v277, %v1848
  %v1850 = vpop.f32.mrf.mxu0
  %1851 = vmatprep.mubr.f32.mxu0 0.0
  %1852 = vmatmul.mubr.f32.gmra.mxu0 %v722
  %v1853 = vpop.f32.mrf.mxu0
  %v1854 = vadd.f32 %v277, %v1853
  %v1855 = vpop.f32.mrf.mxu0
  %1856 = vmatprep.mubr.f32.mxu0 0.0
  %1857 = vmatmul.mubr.f32.gmra.mxu0 %v725
  %v1858 = vpop.f32.mrf.mxu0
  %v1859 = vadd.f32 %v277, %v1858
  %v1860 = vpop.f32.mrf.mxu0
  %1861 = vmatprep.mubr.f32.mxu0 0.0
  %1862 = vmatmul.mubr.f32.gmra.mxu0 %v728
  %v1863 = vpop.f32.mrf.mxu0
  %v1864 = vadd.f32 %v277, %v1863
  %v1865 = vpop.f32.mrf.mxu0
  %1866 = vmatprep.mubr.f32.mxu0 0.0
  %1867 = vmatmul.mubr.f32.gmra.mxu0 %v731
  %v1868 = vpop.f32.mrf.mxu0
  %v1869 = vadd.f32 %v277, %v1868
  %v1870 = vpop.f32.mrf.mxu0
  %1871 = vmatprep.mubr.f32.mxu0 0.0
  %1872 = vmatmul.mubr.f32.gmra.mxu0 %v734
  %v1873 = vpop.f32.mrf.mxu0
  %v1874 = vadd.f32 %v277, %v1873
  %v1875 = vpop.f32.mrf.mxu0
  %1876 = vmatprep.mubr.f32.mxu0 0.0
  %1877 = vmatmul.mubr.f32.gmra.mxu0 %v737
  %v1878 = vpop.f32.mrf.mxu0
  %v1879 = vadd.f32 %v277, %v1878
  %v1880 = vpop.f32.mrf.mxu0
  %1881 = vmatprep.mubr.f32.mxu0 0.0
  %1882 = vmatmul.mubr.f32.gmra.mxu0 %v740
  %v1883 = vpop.f32.mrf.mxu0
  %v1884 = vadd.f32 %v277, %v1883
  %v1885 = vpop.f32.mrf.mxu0
  %1886 = vmatprep.mubr.f32.mxu0 0.0
  %1887 = vmatmul.mubr.f32.gmra.mxu0 %v743
  %v1888 = vpop.f32.mrf.mxu0
  %v1889 = vadd.f32 %v277, %v1888
  %v1890 = vpop.f32.mrf.mxu0
  %1891 = vmatprep.mubr.f32.mxu0 0.0
  %1892 = vmatmul.mubr.f32.gmra.mxu0 %v746
  %v1893 = vpop.f32.mrf.mxu0
  %v1894 = vadd.f32 %v277, %v1893
  %v1895 = vpop.f32.mrf.mxu0
  %1896 = vmatprep.mubr.f32.mxu0 0.0
  %1897 = vmatmul.mubr.f32.gmra.mxu0 %v749
  %v1898 = vpop.f32.mrf.mxu0
  %v1899 = vadd.f32 %v277, %v1898
  %v1900 = vpop.f32.mrf.mxu0
  %1901 = vmatprep.mubr.f32.mxu0 0.0
  %1902 = vmatmul.mubr.f32.gmra.mxu0 %v752
  %v1903 = vpop.f32.mrf.mxu0
  %v1904 = vadd.f32 %v277, %v1903
  %v1905 = vpop.f32.mrf.mxu0
  %1906 = vmatprep.mubr.f32.mxu0 0.0
  %1907 = vmatmul.mubr.f32.gmra.mxu0 %v755
  %v1908 = vpop.f32.mrf.mxu0
  %v1909 = vadd.f32 %v277, %v1908
  %v1910 = vpop.f32.mrf.mxu0
  %1911 = vmatprep.mubr.f32.mxu0 0.0
  %1912 = vmatmul.mubr.f32.gmra.mxu0 %v758
  %v1913 = vpop.f32.mrf.mxu0
  %v1914 = vadd.f32 %v277, %v1913
  %v1915 = vpop.f32.mrf.mxu0
  %1916 = vmatprep.mubr.f32.mxu0 0.0
  %1917 = vmatmul.mubr.f32.gmra.mxu0 %v761
  %v1918 = vpop.f32.mrf.mxu0
  %v1919 = vadd.f32 %v277, %v1918
  %v1920 = vpop.f32.mrf.mxu0
  %1921 = vmatprep.mubr.f32.mxu0 0.0
  %1922 = vmatmul.mubr.f32.gmra.mxu0 %v764
  %v1923 = vpop.f32.mrf.mxu0
  %v1924 = vadd.f32 %v277, %v1923
  %v1925 = vpop.f32.mrf.mxu0
  %1926 = vmatprep.mubr.f32.mxu0 0.0
  %1927 = vmatmul.mubr.f32.gmra.mxu0 %v767
  %v1928 = vpop.f32.mrf.mxu0
  %v1929 = vadd.f32 %v277, %v1928
  %v1930 = vpop.f32.mrf.mxu0
  %1931 = vmatprep.mubr.f32.mxu0 0.0
  %1932 = vmatmul.mubr.f32.gmra.mxu0 %v770
  %v1933 = vpop.f32.mrf.mxu0
  %v1934 = vadd.f32 %v277, %v1933
  %v1935 = vpop.f32.mrf.mxu0
  %1936 = vmatprep.mubr.f32.mxu0 0.0
  %1937 = vmatmul.mubr.f32.gmra.mxu0 %v773
  %v1938 = vpop.f32.mrf.mxu0
  %v1939 = vadd.f32 %v277, %v1938
  %v1940 = vpop.f32.mrf.mxu0
  %1941 = vmatprep.mubr.f32.mxu0 0.0
  %1942 = vmatmul.mubr.f32.gmra.mxu0 %v776
  %v1943 = vpop.f32.mrf.mxu0
  %v1944 = vadd.f32 %v277, %v1943
  %v1945 = vpop.f32.mrf.mxu0
  %1946 = vmatprep.mubr.f32.mxu0 0.0
  %1947 = vmatmul.mubr.f32.gmra.mxu0 %v779
  %v1948 = vpop.f32.mrf.mxu0
  %v1949 = vadd.f32 %v277, %v1948
  %v1950 = vpop.f32.mrf.mxu0
  %1951 = vmatprep.mubr.f32.mxu0 0.0
  %1952 = vmatmul.mubr.f32.gmra.mxu0 %v782
  %v1953 = vpop.f32.mrf.mxu0
  %v1954 = vadd.f32 %v277, %v1953
  %v1955 = vpop.f32.mrf.mxu0
  %1956 = vmatprep.mubr.f32.mxu0 0.0
  %1957 = vmatmul.mubr.f32.gmra.mxu0 %v785
  %v1958 = vpop.f32.mrf.mxu0
  %v1959 = vadd.f32 %v277, %v1958
  %v1960 = vpop.f32.mrf.mxu0
  %1961 = vmatprep.mubr.f32.mxu0 0.0
  %1962 = vmatmul.mubr.f32.gmra.mxu0 %v788
  %v1963 = vpop.f32.mrf.mxu0
  %v1964 = vadd.f32 %v277, %v1963
  %v1965 = vpop.f32.mrf.mxu0
  %1966 = vmatprep.mubr.f32.mxu0 0.0
  %1967 = vmatmul.mubr.f32.gmra.mxu0 %v791
  %v1968 = vpop.f32.mrf.mxu0
  %v1969 = vadd.f32 %v277, %v1968
  %v1970 = vpop.f32.mrf.mxu0
  %1971 = vmatprep.mubr.f32.mxu0 0.0
  %1972 = vmatmul.mubr.f32.gmra.mxu0 %v794
  %v1973 = vpop.f32.mrf.mxu0
  %v1974 = vadd.f32 %v277, %v1973
  %v1975 = vpop.f32.mrf.mxu0
  %1976 = vmatprep.mubr.f32.mxu0 0.0
  %1977 = vmatmul.mubr.f32.gmra.mxu0 %v797
  %v1978 = vpop.f32.mrf.mxu0
  %v1979 = vadd.f32 %v277, %v1978
  %v1980 = vpop.f32.mrf.mxu0
  %1981 = vmatprep.mubr.f32.mxu0 0.0
  %1982 = vmatmul.mubr.f32.gmra.mxu0 %v800
  %v1983 = vpop.f32.mrf.mxu0
  %v1984 = vadd.f32 %v277, %v1983
  %v1985 = vpop.f32.mrf.mxu0
  %1986 = vmatprep.mubr.f32.mxu0 0.0
  %1987 = vmatmul.mubr.f32.gmra.mxu0 %v803
  %v1988 = vpop.f32.mrf.mxu0
  %v1989 = vadd.f32 %v277, %v1988
  %v1990 = vpop.f32.mrf.mxu0
  %1991 = vmatprep.mubr.f32.mxu0 0.0
  %1992 = vmatmul.mubr.f32.gmra.mxu0 %v806
  %v1993 = vpop.f32.mrf.mxu0
  %v1994 = vadd.f32 %v277, %v1993
  %v1995 = vpop.f32.mrf.mxu0
  %1996 = vmatprep.mubr.f32.mxu0 0.0
  %1997 = vmatmul.mubr.f32.gmra.mxu0 %v809
  %v1998 = vpop.f32.mrf.mxu0
  %v1999 = vadd.f32 %v277, %v1998
  %v2000 = vpop.f32.mrf.mxu0
  %2001 = vmatprep.mubr.f32.mxu0 0.0
  %2002 = vmatmul.mubr.f32.gmra.mxu0 %v812
  %v2003 = vpop.f32.mrf.mxu0
  %v2004 = vadd.f32 %v277, %v2003
  %v2005 = vpop.f32.mrf.mxu0
  %2006 = vmatprep.mubr.f32.mxu0 0.0
  %2007 = vmatmul.mubr.f32.gmra.mxu0 %v815
  %v2008 = vpop.f32.mrf.mxu0
  %v2009 = vadd.f32 %v277, %v2008
  %v2010 = vpop.f32.mrf.mxu0
  %2011 = vmatprep.mubr.f32.mxu0 0.0
  %2012 = vmatmul.mubr.f32.gmra.mxu0 %v818
  %v2013 = vpop.f32.mrf.mxu0
  %v2014 = vadd.f32 %v277, %v2013
  %v2015 = vpop.f32.mrf.mxu0
  %2016 = vmatprep.mubr.f32.mxu0 0.0
  %2017 = vmatmul.mubr.f32.gmra.mxu0 %v821
  %v2018 = vpop.f32.mrf.mxu0
  %v2019 = vadd.f32 %v277, %v2018
  %v2020 = vpop.f32.mrf.mxu0
  %2021 = vmatprep.mubr.f32.mxu0 0.0
  %2022 = vmatmul.mubr.f32.gmra.mxu0 %v824
  %v2023 = vpop.f32.mrf.mxu0
  %v2024 = vadd.f32 %v277, %v2023
  %v2025 = vpop.f32.mrf.mxu0
  %2026 = vmatprep.mubr.f32.mxu0 0.0
  %2027 = vmatmul.mubr.f32.gmra.mxu0 %v827
  %v2028 = vpop.f32.mrf.mxu0
  %v2029 = vadd.f32 %v277, %v2028
  %v2030 = vpop.f32.mrf.mxu0
  %2031 = vmatprep.mubr.f32.mxu0 0.0
  %2032 = vmatmul.mubr.f32.gmra.mxu0 %v830
  %v2033 = vpop.f32.mrf.mxu0
  %v2034 = vadd.f32 %v277, %v2033
  %v2035 = vpop.f32.mrf.mxu0
  %2036 = vmatprep.mubr.f32.mxu0 0.0
  %2037 = vmatmul.mubr.f32.gmra.mxu0 %v833
  %v2038 = vpop.f32.mrf.mxu0
  %v2039 = vadd.f32 %v277, %v2038
  %v2040 = vpop.f32.mrf.mxu0
  %2041 = vmatprep.mubr.f32.mxu0 0.0
  %2042 = vmatmul.mubr.f32.gmra.mxu0 %v836
  %v2043 = vpop.f32.mrf.mxu0
  %v2044 = vadd.f32 %v277, %v2043
  %v2045 = vpop.f32.mrf.mxu0
  %2046 = vmatprep.mubr.f32.mxu0 0.0
  %2047 = vmatmul.mubr.f32.gmra.mxu0 %v839
  %v2048 = vpop.f32.mrf.mxu0
  %v2049 = vadd.f32 %v277, %v2048
  %v2050 = vpop.f32.mrf.mxu0
  %2051 = vmatprep.mubr.f32.mxu0 0.0
  %2052 = vmatmul.mubr.f32.gmra.mxu0 %v842
  %v2053 = vpop.f32.mrf.mxu0
  %v2054 = vadd.f32 %v277, %v2053
  %v2055 = vpop.f32.mrf.mxu0
  %2056 = vmatprep.mubr.f32.mxu0 0.0
  %2057 = vmatmul.mubr.f32.gmra.mxu0 %v845
  %v2058 = vpop.f32.mrf.mxu0
  %v2059 = vadd.f32 %v277, %v2058
  %v2060 = vpop.f32.mrf.mxu0
  %2061 = vmatprep.mubr.f32.mxu0 0.0
  %2062 = vmatmul.mubr.f32.gmra.mxu0 %v848
  %v2063 = vpop.f32.mrf.mxu0
  %v2064 = vadd.f32 %v277, %v2063
  %v2065 = vpop.f32.mrf.mxu0
  %2066 = vmatprep.mubr.f32.mxu0 0.0
  %2067 = vmatmul.mubr.f32.gmra.mxu0 %v851
  %v2068 = vpop.f32.mrf.mxu0
  %v2069 = vadd.f32 %v277, %v2068
  %v2070 = vpop.f32.mrf.mxu0
  %2071 = vmatprep.mubr.f32.mxu0 0.0
  %2072 = vmatmul.mubr.f32.gmra.mxu0 %v854
  %v2073 = vpop.f32.mrf.mxu0
  %v2074 = vadd.f32 %v277, %v2073
  %v2075 = vpop.f32.mrf.mxu0
  %2076 = vmatprep.mubr.f32.mxu0 0.0
  %2077 = vmatmul.mubr.f32.gmra.mxu0 %v857
  %v2078 = vpop.f32.mrf.mxu0
  %v2079 = vadd.f32 %v277, %v2078
  %v2080 = vpop.f32.mrf.mxu0
  %2081 = vmatprep.mubr.f32.mxu0 0.0
  %2082 = vmatmul.mubr.f32.gmra.mxu0 %v860
  %v2083 = vpop.f32.mrf.mxu0
  %v2084 = vadd.f32 %v277, %v2083
  %v2085 = vpop.f32.mrf.mxu0
  %2086 = vmatprep.mubr.f32.mxu0 0.0
  %2087 = vmatmul.mubr.f32.gmra.mxu0 %v863
  %v2088 = vpop.f32.mrf.mxu0
  %v2089 = vadd.f32 %v277, %v2088
  %v2090 = vpop.f32.mrf.mxu0
  %2091 = vmatprep.mubr.f32.mxu0 0.0
  %2092 = vmatmul.mubr.f32.gmra.mxu0 %v866
  %v2093 = vpop.f32.mrf.mxu0
  %v2094 = vadd.f32 %v277, %v2093
  %v2095 = vpop.f32.mrf.mxu0
  %2096 = vmatprep.mubr.f32.mxu0 0.0
  %2097 = vmatmul.mubr.f32.gmra.mxu0 %v869
  %v2098 = vpop.f32.mrf.mxu0
  %v2099 = vadd.f32 %v277, %v2098
  %v2100 = vpop.f32.mrf.mxu0
  %2101 = vmatprep.mubr.f32.mxu0 0.0
  %2102 = vmatmul.mubr.f32.gmra.mxu0 %v872
  %v2103 = vpop.f32.mrf.mxu0
  %v2104 = vadd.f32 %v277, %v2103
  %v2105 = vpop.f32.mrf.mxu0
  %2106 = vmatprep.mubr.f32.mxu0 0.0
  %2107 = vmatmul.mubr.f32.gmra.mxu0 %v875
  %v2108 = vpop.f32.mrf.mxu0
  %v2109 = vadd.f32 %v277, %v2108
  %v2110 = vpop.f32.mrf.mxu0
  %2111 = vmatprep.mubr.f32.mxu0 0.0
  %2112 = vmatmul.mubr.f32.gmra.mxu0 %v878
  %v2113 = vpop.f32.mrf.mxu0
  %v2114 = vadd.f32 %v277, %v2113
  %v2115 = vpop.f32.mrf.mxu0
  %2116 = vmatprep.mubr.f32.mxu0 0.0
  %2117 = vmatmul.mubr.f32.gmra.mxu0 %v881
  %v2118 = vpop.f32.mrf.mxu0
  %v2119 = vadd.f32 %v277, %v2118
  %v2120 = vpop.f32.mrf.mxu0
  %2121 = vmatprep.mubr.f32.mxu0 0.0
  %2122 = vmatmul.mubr.f32.gmra.mxu0 %v884
  %v2123 = vpop.f32.mrf.mxu0
  %v2124 = vadd.f32 %v277, %v2123
  %v2125 = vpop.f32.mrf.mxu0
  %2126 = vmatprep.mubr.f32.mxu0 0.0
  %2127 = vmatmul.mubr.f32.gmra.mxu0 %v887
  %v2128 = vpop.f32.mrf.mxu0
  %v2129 = vadd.f32 %v277, %v2128
  %v2130 = vpop.f32.mrf.mxu0
  %2131 = vmatprep.mubr.f32.mxu0 0.0
  %2132 = vmatmul.mubr.f32.gmra.mxu0 %v890
  %v2133 = vpop.f32.mrf.mxu0
  %v2134 = vadd.f32 %v277, %v2133
  %v2135 = vpop.f32.mrf.mxu0
  %2136 = vmatprep.mubr.f32.mxu0 0.0
  %2137 = vmatmul.mubr.f32.gmra.mxu0 %v893
  %v2138 = vpop.f32.mrf.mxu0
  %v2139 = vadd.f32 %v277, %v2138
  %v2140 = vpop.f32.mrf.mxu0
  %2141 = vmatprep.mubr.f32.mxu0 0.0
  %2142 = vmatmul.mubr.f32.gmra.mxu0 %v896
  %v2143 = vpop.f32.mrf.mxu0
  %v2144 = vadd.f32 %v277, %v2143
  %v2145 = vpop.f32.mrf.mxu0
  %2146 = vmatprep.mubr.f32.mxu0 0.0
  %2147 = vmatmul.mubr.f32.gmra.mxu0 %v899
  %v2148 = vpop.f32.mrf.mxu0
  %v2149 = vadd.f32 %v277, %v2148
  %v2150 = vpop.f32.mrf.mxu0
  %2151 = vmatprep.mubr.f32.mxu0 0.0
  %2152 = vmatmul.mubr.f32.gmra.mxu0 %v902
  %v2153 = vpop.f32.mrf.mxu0
  %v2154 = vadd.f32 %v277, %v2153
  %v2155 = vpop.f32.mrf.mxu0
  %2156 = vmatprep.mubr.f32.mxu0 0.0
  %2157 = vmatmul.mubr.f32.gmra.mxu0 %v905
  %v2158 = vpop.f32.mrf.mxu0
  %v2159 = vadd.f32 %v277, %v2158
  %v2160 = vpop.f32.mrf.mxu0
  %2161 = vmatprep.mubr.f32.mxu0 0.0
  %2162 = vmatmul.mubr.f32.gmra.mxu0 %v908
  %v2163 = vpop.f32.mrf.mxu0
  %v2164 = vadd.f32 %v277, %v2163
  %v2165 = vpop.f32.mrf.mxu0
  %2166 = vmatprep.mubr.f32.mxu0 0.0
  %2167 = vmatmul.mubr.f32.gmra.mxu0 %v911
  %v2168 = vpop.f32.mrf.mxu0
  %v2169 = vadd.f32 %v277, %v2168
  %v2170 = vpop.f32.mrf.mxu0
  %2171 = vmatprep.mubr.f32.mxu0 0.0
  %2172 = vmatmul.mubr.f32.gmra.mxu0 %v914
  %v2173 = vpop.f32.mrf.mxu0
  %v2174 = vadd.f32 %v277, %v2173
  %v2175 = vpop.f32.mrf.mxu0
  %2176 = vmatprep.mubr.f32.mxu0 0.0
  %2177 = vmatmul.mubr.f32.gmra.mxu0 %v917
  %v2178 = vpop.f32.mrf.mxu0
  %v2179 = vadd.f32 %v277, %v2178
  %v2180 = vpop.f32.mrf.mxu0
  %2181 = vmatprep.mubr.f32.mxu0 0.0
  %2182 = vmatmul.mubr.f32.gmra.mxu0 %v920
  %v2183 = vpop.f32.mrf.mxu0
  %v2184 = vadd.f32 %v277, %v2183
  %v2185 = vpop.f32.mrf.mxu0
  %2186 = vmatprep.mubr.f32.mxu0 0.0
  %2187 = vmatmul.mubr.f32.gmra.mxu0 %v923
  %v2188 = vpop.f32.mrf.mxu0
  %v2189 = vadd.f32 %v277, %v2188
  %v2190 = vpop.f32.mrf.mxu0
  %2191 = vmatprep.mubr.f32.mxu0 0.0
  %2192 = vmatmul.mubr.f32.gmra.mxu0 %v926
  %v2193 = vpop.f32.mrf.mxu0
  %v2194 = vadd.f32 %v277, %v2193
  %v2195 = vpop.f32.mrf.mxu0
  %2196 = vmatprep.mubr.f32.mxu0 0.0
  %2197 = vmatmul.mubr.f32.gmra.mxu0 %v929
  %v2198 = vpop.f32.mrf.mxu0
  %v2199 = vadd.f32 %v277, %v2198
  %v2200 = vpop.f32.mrf.mxu0
  %2201 = vmatprep.mubr.f32.mxu0 0.0
  %2202 = vmatmul.mubr.f32.gmra.mxu0 %v932
  %v2203 = vpop.f32.mrf.mxu0
  %v2204 = vadd.f32 %v277, %v2203
  %v2205 = vpop.f32.mrf.mxu0
  %2206 = vmatprep.mubr.f32.mxu0 0.0
  %2207 = vmatmul.mubr.f32.gmra.mxu0 %v935
  %v2208 = vpop.f32.mrf.mxu0
  %v2209 = vadd.f32 %v277, %v2208
  %v2210 = vpop.f32.mrf.mxu0
  %2211 = vmatprep.mubr.f32.mxu0 0.0
  %2212 = vmatmul.mubr.f32.gmra.mxu0 %v938
  %v2213 = vpop.f32.mrf.mxu0
  %v2214 = vadd.f32 %v277, %v2213
  %v2215 = vpop.f32.mrf.mxu0
  %2216 = vmatprep.mubr.f32.mxu0 0.0
  %2217 = vmatmul.mubr.f32.gmra.mxu0 %v941
  %v2218 = vpop.f32.mrf.mxu0
  %v2219 = vadd.f32 %v277, %v2218
  %v2220 = vpop.f32.mrf.mxu0
  %2221 = vmatprep.mubr.f32.mxu0 0.0
  %2222 = vmatmul.mubr.f32.gmra.mxu0 %v944
  %v2223 = vpop.f32.mrf.mxu0
  %v2224 = vadd.f32 %v277, %v2223
  %v2225 = vpop.f32.mrf.mxu0
  %2226 = vmatprep.mubr.f32.mxu0 0.0
  %2227 = vmatmul.mubr.f32.gmra.mxu0 %v947
  %v2228 = vpop.f32.mrf.mxu0
  %v2229 = vadd.f32 %v277, %v2228
  %v2230 = vpop.f32.mrf.mxu0
  %2231 = vmatprep.mubr.f32.mxu0 0.0
  %2232 = vmatmul.mubr.f32.gmra.mxu0 %v950
  %v2233 = vpop.f32.mrf.mxu0
  %v2234 = vadd.f32 %v277, %v2233
  %v2235 = vpop.f32.mrf.mxu0
  %2236 = vmatprep.mubr.f32.mxu0 0.0
  %2237 = vmatmul.mubr.f32.gmra.mxu0 %v953
  %v2238 = vpop.f32.mrf.mxu0
  %v2239 = vadd.f32 %v277, %v2238
  %v2240 = vpop.f32.mrf.mxu0
  %2241 = vmatprep.mubr.f32.mxu0 0.0
  %2242 = vmatmul.mubr.f32.gmra.mxu0 %v956
  %v2243 = vpop.f32.mrf.mxu0
  %v2244 = vadd.f32 %v277, %v2243
  %v2245 = vpop.f32.mrf.mxu0
  %2246 = vmatprep.mubr.f32.mxu0 0.0
  %2247 = vmatmul.mubr.f32.gmra.mxu0 %v959
  %v2248 = vpop.f32.mrf.mxu0
  %v2249 = vadd.f32 %v277, %v2248
  %v2250 = vpop.f32.mrf.mxu0
  %2251 = vmatprep.mubr.f32.mxu0 0.0
  %2252 = vmatmul.mubr.f32.gmra.mxu0 %v962
  %v2253 = vpop.f32.mrf.mxu0
  %v2254 = vadd.f32 %v277, %v2253
  %v2255 = vpop.f32.mrf.mxu0
  %2256 = vmatprep.mubr.f32.mxu0 0.0
  %2257 = vmatmul.mubr.f32.gmra.mxu0 %v965
  %v2258 = vpop.f32.mrf.mxu0
  %v2259 = vadd.f32 %v277, %v2258
  %v2260 = vpop.f32.mrf.mxu0
  %2261 = vmatprep.mubr.f32.mxu0 0.0
  %2262 = vmatmul.mubr.f32.gmra.mxu0 %v968
  %v2263 = vpop.f32.mrf.mxu0
  %v2264 = vadd.f32 %v277, %v2263
  %v2265 = vpop.f32.mrf.mxu0
  %2266 = vmatprep.mubr.f32.mxu0 0.0
  %2267 = vmatmul.mubr.f32.gmra.mxu0 %v971
  %v2268 = vpop.f32.mrf.mxu0
  %v2269 = vadd.f32 %v277, %v2268
  %v2270 = vpop.f32.mrf.mxu0
  %2271 = vmatprep.mubr.f32.mxu0 0.0
  %2272 = vmatmul.mubr.f32.gmra.mxu0 %v974
  %v2273 = vpop.f32.mrf.mxu0
  %v2274 = vadd.f32 %v277, %v2273
  %v2275 = vpop.f32.mrf.mxu0
  %2276 = vmatprep.mubr.f32.mxu0 0.0
  %2277 = vmatmul.mubr.f32.gmra.mxu0 %v977
  %v2278 = vpop.f32.mrf.mxu0
  %v2279 = vadd.f32 %v277, %v2278
  %v2280 = vpop.f32.mrf.mxu0
  %2281 = vmatprep.mubr.f32.mxu0 0.0
  %2282 = vmatmul.mubr.f32.gmra.mxu0 %v980
  %v2283 = vpop.f32.mrf.mxu0
  %v2284 = vadd.f32 %v277, %v2283
  %v2285 = vpop.f32.mrf.mxu0
  %2286 = vmatprep.mubr.f32.mxu0 0.0
  %2287 = vmatmul.mubr.f32.gmra.mxu0 %v983
  %v2288 = vpop.f32.mrf.mxu0
  %v2289 = vadd.f32 %v277, %v2288
  %v2290 = vpop.f32.mrf.mxu0
  %2291 = vmatprep.mubr.f32.mxu0 0.0
  %2292 = vmatmul.mubr.f32.gmra.mxu0 %v986
  %v2293 = vpop.f32.mrf.mxu0
  %v2294 = vadd.f32 %v277, %v2293
  %v2295 = vpop.f32.mrf.mxu0
  %2296 = vmatprep.mubr.f32.mxu0 0.0
  %2297 = vmatmul.mubr.f32.gmra.mxu0 %v989
  %v2298 = vpop.f32.mrf.mxu0
  %v2299 = vadd.f32 %v277, %v2298
  %v2300 = vpop.f32.mrf.mxu0
  %2301 = vmatprep.mubr.f32.mxu0 0.0
  %2302 = vmatmul.mubr.f32.gmra.mxu0 %v992
  %v2303 = vpop.f32.mrf.mxu0
  %v2304 = vadd.f32 %v277, %v2303
  %v2305 = vpop.f32.mrf.mxu0
  %2306 = vmatprep.mubr.f32.mxu0 0.0
  %2307 = vmatmul.mubr.f32.gmra.mxu0 %v995
  %v2308 = vpop.f32.mrf.mxu0
  %v2309 = vadd.f32 %v277, %v2308
  %v2310 = vpop.f32.mrf.mxu0
  %2311 = vmatprep.mubr.f32.mxu0 0.0
  %2312 = vmatmul.mubr.f32.gmra.mxu0 %v998
  %v2313 = vpop.f32.mrf.mxu0
  %v2314 = vadd.f32 %v277, %v2313
  %v2315 = vpop.f32.mrf.mxu0
  %2316 = vmatprep.mubr.f32.mxu0 0.0
  %2317 = vmatmul.mubr.f32.gmra.mxu0 %v1001
  %v2318 = vpop.f32.mrf.mxu0
  %v2319 = vadd.f32 %v277, %v2318
  %v2320 = vpop.f32.mrf.mxu0
  %2321 = vmatprep.mubr.f32.mxu0 0.0
  %2322 = vmatmul.mubr.f32.gmra.mxu0 %v1004
  %v2323 = vpop.f32.mrf.mxu0
  %v2324 = vadd.f32 %v277, %v2323
  %v2325 = vpop.f32.mrf.mxu0
  %2326 = vmatprep.mubr.f32.mxu0 0.0
  %2327 = vmatmul.mubr.f32.gmra.mxu0 %v1007
  %v2328 = vpop.f32.mrf.mxu0
  %v2329 = vadd.f32 %v277, %v2328
  %v2330 = vpop.f32.mrf.mxu0
  %2331 = vmatprep.mubr.f32.mxu0 0.0
  %2332 = vmatmul.mubr.f32.gmra.mxu0 %v1010
  %v2333 = vpop.f32.mrf.mxu0
  %v2334 = vadd.f32 %v277, %v2333
  %v2335 = vpop.f32.mrf.mxu0
  %2336 = vmatprep.mubr.f32.mxu0 0.0
  %2337 = vmatmul.mubr.f32.gmra.mxu0 %v1013
  %v2338 = vpop.f32.mrf.mxu0
  %v2339 = vadd.f32 %v277, %v2338
  %v2340 = vpop.f32.mrf.mxu0
  %2341 = vmatprep.mubr.f32.mxu0 0.0
  %2342 = vmatmul.mubr.f32.gmra.mxu0 %v1016
  %v2343 = vpop.f32.mrf.mxu0
  %v2344 = vadd.f32 %v277, %v2343
  %v2345 = vpop.f32.mrf.mxu0
  %2346 = vmatprep.mubr.f32.mxu0 0.0
  %2347 = vmatmul.mubr.f32.gmra.mxu0 %v1019
  %v2348 = vpop.f32.mrf.mxu0
  %v2349 = vadd.f32 %v277, %v2348
  %v2350 = vpop.f32.mrf.mxu0
  %2351 = vmatprep.mubr.f32.mxu0 0.0
  %2352 = vmatmul.mubr.f32.gmra.mxu0 %v1022
  %v2353 = vpop.f32.mrf.mxu0
  %v2354 = vadd.f32 %v277, %v2353
  %v2355 = vpop.f32.mrf.mxu0
  %2356 = vmatprep.mubr.f32.mxu0 0.0
  %2357 = vmatmul.mubr.f32.gmra.mxu0 %v1025
  %v2358 = vpop.f32.mrf.mxu0
  %v2359 = vadd.f32 %v277, %v2358
  %v2360 = vpop.f32.mrf.mxu0
  %2361 = vmatprep.mubr.f32.mxu0 0.0
  %2362 = vmatmul.mubr.f32.gmra.mxu0 %v1028
  %v2363 = vpop.f32.mrf.mxu0
  %v2364 = vadd.f32 %v277, %v2363
  %v2365 = vpop.f32.mrf.mxu0
  %2366 = vmatprep.mubr.f32.mxu0 0.0
  %2367 = vmatmul.mubr.f32.gmra.mxu0 %v1031
  %v2368 = vpop.f32.mrf.mxu0
  %v2369 = vadd.f32 %v277, %v2368
  %v2370 = vpop.f32.mrf.mxu0
  %2371 = vmatprep.mubr.f32.mxu0 0.0
  %2372 = vmatmul.mubr.f32.gmra.mxu0 %v1034
  %v2373 = vpop.f32.mrf.mxu0
  %v2374 = vadd.f32 %v277, %v2373
  %v2375 = vpop.f32.mrf.mxu0
  %2376 = vmatprep.mubr.f32.mxu0 0.0
  %2377 = vmatmul.mubr.f32.gmra.mxu0 %v1037
  %v2378 = vpop.f32.mrf.mxu0
  %v2379 = vadd.f32 %v277, %v2378
  %v2380 = vpop.f32.mrf.mxu0
  %2381 = vmatprep.mubr.f32.mxu0 0.0
  %2382 = vmatmul.mubr.f32.gmra.mxu0 %v1040
  %v2383 = vpop.f32.mrf.mxu0
  %v2384 = vadd.f32 %v277, %v2383
  %v2385 = vpop.f32.mrf.mxu0
  %2386 = vmatprep.mubr.f32.mxu0 0.0
  %2387 = vmatmul.mubr.f32.gmra.mxu0 %v1043
  %v2388 = vpop.f32.mrf.mxu0
  %v2389 = vadd.f32 %v277, %v2388
  %v2390 = vpop.f32.mrf.mxu0
  %2391 = vmatprep.mubr.f32.mxu0 0.0
  %2392 = vmatmul.mubr.f32.gmra.mxu0 %v1046
  %v2393 = vpop.f32.mrf.mxu0
  %v2394 = vadd.f32 %v277, %v2393
  %v2395 = vpop.f32.mrf.mxu0
  %2396 = vdwg.mxu0
  %v2397 = vmax.f32 %v1119, 0.0
  %v2398 = vmax.f32 %v1124, 0.0
  %v2399 = vmax.f32 %v1129, 0.0
  %v2400 = vmax.f32 %v1134, 0.0
  %v2401 = vmax.f32 %v1139, 0.0
  %v2402 = vmax.f32 %v1144, 0.0
  %v2403 = vmax.f32 %v1149, 0.0
  %v2404 = vmax.f32 %v1154, 0.0
  %v2405 = vmax.f32 %v1159, 0.0
  %v2406 = vmax.f32 %v1164, 0.0
  %v2407 = vmax.f32 %v1169, 0.0
  %v2408 = vmax.f32 %v1174, 0.0
  %v2409 = vmax.f32 %v1179, 0.0
  %v2410 = vmax.f32 %v1184, 0.0
  %v2411 = vmax.f32 %v1189, 0.0
  %v2412 = vmax.f32 %v1194, 0.0
  %v2413 = vmax.f32 %v1199, 0.0
  %v2414 = vmax.f32 %v1204, 0.0
  %v2415 = vmax.f32 %v1209, 0.0
  %v2416 = vmax.f32 %v1214, 0.0
  %v2417 = vmax.f32 %v1219, 0.0
  %v2418 = vmax.f32 %v1224, 0.0
  %v2419 = vmax.f32 %v1229, 0.0
  %v2420 = vmax.f32 %v1234, 0.0
  %v2421 = vmax.f32 %v1239, 0.0
  %v2422 = vmax.f32 %v1244, 0.0
  %v2423 = vmax.f32 %v1249, 0.0
  %v2424 = vmax.f32 %v1254, 0.0
  %v2425 = vmax.f32 %v1259, 0.0
  %v2426 = vmax.f32 %v1264, 0.0
  %v2427 = vmax.f32 %v1269, 0.0
  %v2428 = vmax.f32 %v1274, 0.0
  %v2429 = vmax.f32 %v1279, 0.0
  %v2430 = vmax.f32 %v1284, 0.0
  %v2431 = vmax.f32 %v1289, 0.0
  %v2432 = vmax.f32 %v1294, 0.0
  %v2433 = vmax.f32 %v1299, 0.0
  %v2434 = vmax.f32 %v1304, 0.0
  %v2435 = vmax.f32 %v1309, 0.0
  %v2436 = vmax.f32 %v1314, 0.0
  %v2437 = vmax.f32 %v1319, 0.0
  %v2438 = vmax.f32 %v1324, 0.0
  %v2439 = vmax.f32 %v1329, 0.0
  %v2440 = vmax.f32 %v1334, 0.0
  %v2441 = vmax.f32 %v1339, 0.0
  %v2442 = vmax.f32 %v1344, 0.0
  %v2443 = vmax.f32 %v1349, 0.0
  %v2444 = vmax.f32 %v1354, 0.0
  %v2445 = vmax.f32 %v1359, 0.0
  %v2446 = vmax.f32 %v1364, 0.0
  %v2447 = vmax.f32 %v1369, 0.0
  %v2448 = vmax.f32 %v1374, 0.0
  %v2449 = vmax.f32 %v1379, 0.0
  %v2450 = vmax.f32 %v1384, 0.0
  %v2451 = vmax.f32 %v1389, 0.0
  %v2452 = vmax.f32 %v1394, 0.0
  %v2453 = vmax.f32 %v1399, 0.0
  %v2454 = vmax.f32 %v1404, 0.0
  %v2455 = vmax.f32 %v1409, 0.0
  %v2456 = vmax.f32 %v1414, 0.0
  %v2457 = vmax.f32 %v1419, 0.0
  %v2458 = vmax.f32 %v1424, 0.0
  %v2459 = vmax.f32 %v1429, 0.0
  %v2460 = vmax.f32 %v1434, 0.0
  %v2461 = vmax.f32 %v1439, 0.0
  %v2462 = vmax.f32 %v1444, 0.0
  %v2463 = vmax.f32 %v1449, 0.0
  %v2464 = vmax.f32 %v1454, 0.0
  %v2465 = vmax.f32 %v1459, 0.0
  %v2466 = vmax.f32 %v1464, 0.0
  %v2467 = vmax.f32 %v1469, 0.0
  %v2468 = vmax.f32 %v1474, 0.0
  %v2469 = vmax.f32 %v1479, 0.0
  %v2470 = vmax.f32 %v1484, 0.0
  %v2471 = vmax.f32 %v1489, 0.0
  %v2472 = vmax.f32 %v1494, 0.0
  %v2473 = vmax.f32 %v1499, 0.0
  %v2474 = vmax.f32 %v1504, 0.0
  %v2475 = vmax.f32 %v1509, 0.0
  %v2476 = vmax.f32 %v1514, 0.0
  %v2477 = vmax.f32 %v1519, 0.0
  %v2478 = vmax.f32 %v1524, 0.0
  %v2479 = vmax.f32 %v1529, 0.0
  %v2480 = vmax.f32 %v1534, 0.0
  %v2481 = vmax.f32 %v1539, 0.0
  %v2482 = vmax.f32 %v1544, 0.0
  %v2483 = vmax.f32 %v1549, 0.0
  %v2484 = vmax.f32 %v1554, 0.0
  %v2485 = vmax.f32 %v1559, 0.0
  %v2486 = vmax.f32 %v1564, 0.0
  %v2487 = vmax.f32 %v1569, 0.0
  %v2488 = vmax.f32 %v1574, 0.0
  %v2489 = vmax.f32 %v1579, 0.0
  %v2490 = vmax.f32 %v1584, 0.0
  %v2491 = vmax.f32 %v1589, 0.0
  %v2492 = vmax.f32 %v1594, 0.0
  %v2493 = vmax.f32 %v1599, 0.0
  %v2494 = vmax.f32 %v1604, 0.0
  %v2495 = vmax.f32 %v1609, 0.0
  %v2496 = vmax.f32 %v1614, 0.0
  %v2497 = vmax.f32 %v1619, 0.0
  %v2498 = vmax.f32 %v1624, 0.0
  %v2499 = vmax.f32 %v1629, 0.0
  %v2500 = vmax.f32 %v1634, 0.0
  %v2501 = vmax.f32 %v1639, 0.0
  %v2502 = vmax.f32 %v1644, 0.0
  %v2503 = vmax.f32 %v1649, 0.0
  %v2504 = vmax.f32 %v1654, 0.0
  %v2505 = vmax.f32 %v1659, 0.0
  %v2506 = vmax.f32 %v1664, 0.0
  %v2507 = vmax.f32 %v1669, 0.0
  %v2508 = vmax.f32 %v1674, 0.0
  %v2509 = vmax.f32 %v1679, 0.0
  %v2510 = vmax.f32 %v1684, 0.0
  %v2511 = vmax.f32 %v1689, 0.0
  %v2512 = vmax.f32 %v1694, 0.0
  %v2513 = vmax.f32 %v1699, 0.0
  %v2514 = vmax.f32 %v1704, 0.0
  %v2515 = vmax.f32 %v1709, 0.0
  %v2516 = vmax.f32 %v1714, 0.0
  %v2517 = vmax.f32 %v1719, 0.0
  %v2518 = vmax.f32 %v1724, 0.0
  %v2519 = vmax.f32 %v1729, 0.0
  %v2520 = vmax.f32 %v1734, 0.0
  %v2521 = vmax.f32 %v1739, 0.0
  %v2522 = vmax.f32 %v1744, 0.0
  %v2523 = vmax.f32 %v1749, 0.0
  %v2524 = vmax.f32 %v1754, 0.0
  %v2525 = vmax.f32 %v1759, 0.0
  %v2526 = vmax.f32 %v1764, 0.0
  %v2527 = vmax.f32 %v1769, 0.0
  %v2528 = vmax.f32 %v1774, 0.0
  %v2529 = vmax.f32 %v1779, 0.0
  %v2530 = vmax.f32 %v1784, 0.0
  %v2531 = vmax.f32 %v1789, 0.0
  %v2532 = vmax.f32 %v1794, 0.0
  %v2533 = vmax.f32 %v1799, 0.0
  %v2534 = vmax.f32 %v1804, 0.0
  %v2535 = vmax.f32 %v1809, 0.0
  %v2536 = vmax.f32 %v1814, 0.0
  %v2537 = vmax.f32 %v1819, 0.0
  %v2538 = vmax.f32 %v1824, 0.0
  %v2539 = vmax.f32 %v1829, 0.0
  %v2540 = vmax.f32 %v1834, 0.0
  %v2541 = vmax.f32 %v1839, 0.0
  %v2542 = vmax.f32 %v1844, 0.0
  %v2543 = vmax.f32 %v1849, 0.0
  %v2544 = vmax.f32 %v1854, 0.0
  %v2545 = vmax.f32 %v1859, 0.0
  %v2546 = vmax.f32 %v1864, 0.0
  %v2547 = vmax.f32 %v1869, 0.0
  %v2548 = vmax.f32 %v1874, 0.0
  %v2549 = vmax.f32 %v1879, 0.0
  %v2550 = vmax.f32 %v1884, 0.0
  %v2551 = vmax.f32 %v1889, 0.0
  %v2552 = vmax.f32 %v1894, 0.0
  %v2553 = vmax.f32 %v1899, 0.0
  %v2554 = vmax.f32 %v1904, 0.0
  %v2555 = vmax.f32 %v1909, 0.0
  %v2556 = vmax.f32 %v1914, 0.0
  %v2557 = vmax.f32 %v1919, 0.0
  %v2558 = vmax.f32 %v1924, 0.0
  %v2559 = vmax.f32 %v1929, 0.0
  %v2560 = vmax.f32 %v1934, 0.0
  %v2561 = vmax.f32 %v1939, 0.0
  %v2562 = vmax.f32 %v1944, 0.0
  %v2563 = vmax.f32 %v1949, 0.0
  %v2564 = vmax.f32 %v1954, 0.0
  %v2565 = vmax.f32 %v1959, 0.0
  %v2566 = vmax.f32 %v1964, 0.0
  %v2567 = vmax.f32 %v1969, 0.0
  %v2568 = vmax.f32 %v1974, 0.0
  %v2569 = vmax.f32 %v1979, 0.0
  %v2570 = vmax.f32 %v1984, 0.0
  %v2571 = vmax.f32 %v1989, 0.0
  %v2572 = vmax.f32 %v1994, 0.0
  %v2573 = vmax.f32 %v1999, 0.0
  %v2574 = vmax.f32 %v2004, 0.0
  %v2575 = vmax.f32 %v2009, 0.0
  %v2576 = vmax.f32 %v2014, 0.0
  %v2577 = vmax.f32 %v2019, 0.0
  %v2578 = vmax.f32 %v2024, 0.0
  %v2579 = vmax.f32 %v2029, 0.0
  %v2580 = vmax.f32 %v2034, 0.0
  %v2581 = vmax.f32 %v2039, 0.0
  %v2582 = vmax.f32 %v2044, 0.0
  %v2583 = vmax.f32 %v2049, 0.0
  %v2584 = vmax.f32 %v2054, 0.0
  %v2585 = vmax.f32 %v2059, 0.0
  %v2586 = vmax.f32 %v2064, 0.0
  %v2587 = vmax.f32 %v2069, 0.0
  %v2588 = vmax.f32 %v2074, 0.0
  %v2589 = vmax.f32 %v2079, 0.0
  %v2590 = vmax.f32 %v2084, 0.0
  %v2591 = vmax.f32 %v2089, 0.0
  %v2592 = vmax.f32 %v2094, 0.0
  %v2593 = vmax.f32 %v2099, 0.0
  %v2594 = vmax.f32 %v2104, 0.0
  %v2595 = vmax.f32 %v2109, 0.0
  %v2596 = vmax.f32 %v2114, 0.0
  %v2597 = vmax.f32 %v2119, 0.0
  %v2598 = vmax.f32 %v2124, 0.0
  %v2599 = vmax.f32 %v2129, 0.0
  %v2600 = vmax.f32 %v2134, 0.0
  %v2601 = vmax.f32 %v2139, 0.0
  %v2602 = vmax.f32 %v2144, 0.0
  %v2603 = vmax.f32 %v2149, 0.0
  %v2604 = vmax.f32 %v2154, 0.0
  %v2605 = vmax.f32 %v2159, 0.0
  %v2606 = vmax.f32 %v2164, 0.0
  %v2607 = vmax.f32 %v2169, 0.0
  %v2608 = vmax.f32 %v2174, 0.0
  %v2609 = vmax.f32 %v2179, 0.0
  %v2610 = vmax.f32 %v2184, 0.0
  %v2611 = vmax.f32 %v2189, 0.0
  %v2612 = vmax.f32 %v2194, 0.0
  %v2613 = vmax.f32 %v2199, 0.0
  %v2614 = vmax.f32 %v2204, 0.0
  %v2615 = vmax.f32 %v2209, 0.0
  %v2616 = vmax.f32 %v2214, 0.0
  %v2617 = vmax.f32 %v2219, 0.0
  %v2618 = vmax.f32 %v2224, 0.0
  %v2619 = vmax.f32 %v2229, 0.0
  %v2620 = vmax.f32 %v2234, 0.0
  %v2621 = vmax.f32 %v2239, 0.0
  %v2622 = vmax.f32 %v2244, 0.0
  %v2623 = vmax.f32 %v2249, 0.0
  %v2624 = vmax.f32 %v2254, 0.0
  %v2625 = vmax.f32 %v2259, 0.0
  %v2626 = vmax.f32 %v2264, 0.0
  %v2627 = vmax.f32 %v2269, 0.0
  %v2628 = vmax.f32 %v2274, 0.0
  %v2629 = vmax.f32 %v2279, 0.0
  %v2630 = vmax.f32 %v2284, 0.0
  %v2631 = vmax.f32 %v2289, 0.0
  %v2632 = vmax.f32 %v2294, 0.0
  %v2633 = vmax.f32 %v2299, 0.0
  %v2634 = vmax.f32 %v2304, 0.0
  %v2635 = vmax.f32 %v2309, 0.0
  %v2636 = vmax.f32 %v2314, 0.0
  %v2637 = vmax.f32 %v2319, 0.0
  %v2638 = vmax.f32 %v2324, 0.0
  %v2639 = vmax.f32 %v2329, 0.0
  %v2640 = vmax.f32 %v2334, 0.0
  %v2641 = vmax.f32 %v2339, 0.0
  %v2642 = vmax.f32 %v2344, 0.0
  %v2643 = vmax.f32 %v2349, 0.0
  %v2644 = vmax.f32 %v2354, 0.0
  %v2645 = vmax.f32 %v2359, 0.0
  %v2646 = vmax.f32 %v2364, 0.0
  %v2647 = vmax.f32 %v2369, 0.0
  %v2648 = vmax.f32 %v2374, 0.0
  %v2649 = vmax.f32 %v2379, 0.0
  %v2650 = vmax.f32 %v2384, 0.0
  %v2651 = vmax.f32 %v2389, 0.0
  %v2652 = vmax.f32 %v2394, 0.0
  %vm2653 = vcmask 130048
  %2654 = vst.msk [vmem:[%s3] sm:$0xff] %vm2653, %v2397
  %2655 = vst.msk [vmem:[%s3 + $0x8] sm:$0xff] %vm2653, %v2398
  %2656 = vst.msk [vmem:[%s3 + $0x10] sm:$0xff] %vm2653, %v2399
  %2657 = vst.msk [vmem:[%s3 + $0x18] sm:$0xff] %vm2653, %v2400
  %2658 = vst.msk [vmem:[%s3 + $0x20] sm:$0xff] %vm2653, %v2401
  %2659 = vst.msk [vmem:[%s3 + $0x28] sm:$0xff] %vm2653, %v2402
  %2660 = vst.msk [vmem:[%s3 + $0x30] sm:$0xff] %vm2653, %v2403
  %2661 = vst.msk [vmem:[%s3 + $0x38] sm:$0xff] %vm2653, %v2404
  %2662 = vst.msk [vmem:[%s3 + $0x40] sm:$0xff] %vm2653, %v2405
  %2663 = vst.msk [vmem:[%s3 + $0x48] sm:$0xff] %vm2653, %v2406
  %2664 = vst.msk [vmem:[%s3 + $0x50] sm:$0xff] %vm2653, %v2407
  %2665 = vst.msk [vmem:[%s3 + $0x58] sm:$0xff] %vm2653, %v2408
  %2666 = vst.msk [vmem:[%s3 + $0x60] sm:$0xff] %vm2653, %v2409
  %2667 = vst.msk [vmem:[%s3 + $0x68] sm:$0xff] %vm2653, %v2410
  %2668 = vst.msk [vmem:[%s3 + $0x70] sm:$0xff] %vm2653, %v2411
  %2669 = vst.msk [vmem:[%s3 + $0x78] sm:$0xff] %vm2653, %v2412
  %2670 = vst.msk [vmem:[%s3 + $0x80] sm:$0xff] %vm2653, %v2413
  %2671 = vst.msk [vmem:[%s3 + $0x88] sm:$0xff] %vm2653, %v2414
  %2672 = vst.msk [vmem:[%s3 + $0x90] sm:$0xff] %vm2653, %v2415
  %2673 = vst.msk [vmem:[%s3 + $0x98] sm:$0xff] %vm2653, %v2416
  %2674 = vst.msk [vmem:[%s3 + $0xa0] sm:$0xff] %vm2653, %v2417
  %2675 = vst.msk [vmem:[%s3 + $0xa8] sm:$0xff] %vm2653, %v2418
  %2676 = vst.msk [vmem:[%s3 + $0xb0] sm:$0xff] %vm2653, %v2419
  %2677 = vst.msk [vmem:[%s3 + $0xb8] sm:$0xff] %vm2653, %v2420
  %2678 = vst.msk [vmem:[%s3 + $0xc0] sm:$0xff] %vm2653, %v2421
  %2679 = vst.msk [vmem:[%s3 + $0xc8] sm:$0xff] %vm2653, %v2422
  %2680 = vst.msk [vmem:[%s3 + $0xd0] sm:$0xff] %vm2653, %v2423
  %2681 = vst.msk [vmem:[%s3 + $0xd8] sm:$0xff] %vm2653, %v2424
  %2682 = vst.msk [vmem:[%s3 + $0xe0] sm:$0xff] %vm2653, %v2425
  %2683 = vst.msk [vmem:[%s3 + $0xe8] sm:$0xff] %vm2653, %v2426
  %2684 = vst.msk [vmem:[%s3 + $0xf0] sm:$0xff] %vm2653, %v2427
  %2685 = vst.msk [vmem:[%s3 + $0xf8] sm:$0xff] %vm2653, %v2428
  %2686 = vst.msk [vmem:[%s3 + $0x100] sm:$0xff] %vm2653, %v2429
  %2687 = vst.msk [vmem:[%s3 + $0x108] sm:$0xff] %vm2653, %v2430
  %2688 = vst.msk [vmem:[%s3 + $0x110] sm:$0xff] %vm2653, %v2431
  %2689 = vst.msk [vmem:[%s3 + $0x118] sm:$0xff] %vm2653, %v2432
  %2690 = vst.msk [vmem:[%s3 + $0x120] sm:$0xff] %vm2653, %v2433
  %2691 = vst.msk [vmem:[%s3 + $0x128] sm:$0xff] %vm2653, %v2434
  %2692 = vst.msk [vmem:[%s3 + $0x130] sm:$0xff] %vm2653, %v2435
  %2693 = vst.msk [vmem:[%s3 + $0x138] sm:$0xff] %vm2653, %v2436
  %2694 = vst.msk [vmem:[%s3 + $0x140] sm:$0xff] %vm2653, %v2437
  %2695 = vst.msk [vmem:[%s3 + $0x148] sm:$0xff] %vm2653, %v2438
  %2696 = vst.msk [vmem:[%s3 + $0x150] sm:$0xff] %vm2653, %v2439
  %2697 = vst.msk [vmem:[%s3 + $0x158] sm:$0xff] %vm2653, %v2440
  %2698 = vst.msk [vmem:[%s3 + $0x160] sm:$0xff] %vm2653, %v2441
  %2699 = vst.msk [vmem:[%s3 + $0x168] sm:$0xff] %vm2653, %v2442
  %2700 = vst.msk [vmem:[%s3 + $0x170] sm:$0xff] %vm2653, %v2443
  %2701 = vst.msk [vmem:[%s3 + $0x178] sm:$0xff] %vm2653, %v2444
  %2702 = vst.msk [vmem:[%s3 + $0x180] sm:$0xff] %vm2653, %v2445
  %2703 = vst.msk [vmem:[%s3 + $0x188] sm:$0xff] %vm2653, %v2446
  %2704 = vst.msk [vmem:[%s3 + $0x190] sm:$0xff] %vm2653, %v2447
  %2705 = vst.msk [vmem:[%s3 + $0x198] sm:$0xff] %vm2653, %v2448
  %2706 = vst.msk [vmem:[%s3 + $0x1a0] sm:$0xff] %vm2653, %v2449
  %2707 = vst.msk [vmem:[%s3 + $0x1a8] sm:$0xff] %vm2653, %v2450
  %2708 = vst.msk [vmem:[%s3 + $0x1b0] sm:$0xff] %vm2653, %v2451
  %2709 = vst.msk [vmem:[%s3 + $0x1b8] sm:$0xff] %vm2653, %v2452
  %2710 = vst.msk [vmem:[%s3 + $0x1c0] sm:$0xff] %vm2653, %v2453
  %2711 = vst.msk [vmem:[%s3 + $0x1c8] sm:$0xff] %vm2653, %v2454
  %2712 = vst.msk [vmem:[%s3 + $0x1d0] sm:$0xff] %vm2653, %v2455
  %2713 = vst.msk [vmem:[%s3 + $0x1d8] sm:$0xff] %vm2653, %v2456
  %2714 = vst.msk [vmem:[%s3 + $0x1e0] sm:$0xff] %vm2653, %v2457
  %2715 = vst.msk [vmem:[%s3 + $0x1e8] sm:$0xff] %vm2653, %v2458
  %2716 = vst.msk [vmem:[%s3 + $0x1f0] sm:$0xff] %vm2653, %v2459
  %2717 = vst.msk [vmem:[%s3 + $0x1f8] sm:$0xff] %vm2653, %v2460
  %2718 = vst.msk [vmem:[%s3 + $0x200] sm:$0xff] %vm2653, %v2461
  %2719 = vst.msk [vmem:[%s3 + $0x208] sm:$0xff] %vm2653, %v2462
  %2720 = vst.msk [vmem:[%s3 + $0x210] sm:$0xff] %vm2653, %v2463
  %2721 = vst.msk [vmem:[%s3 + $0x218] sm:$0xff] %vm2653, %v2464
  %2722 = vst.msk [vmem:[%s3 + $0x220] sm:$0xff] %vm2653, %v2465
  %2723 = vst.msk [vmem:[%s3 + $0x228] sm:$0xff] %vm2653, %v2466
  %2724 = vst.msk [vmem:[%s3 + $0x230] sm:$0xff] %vm2653, %v2467
  %2725 = vst.msk [vmem:[%s3 + $0x238] sm:$0xff] %vm2653, %v2468
  %2726 = vst.msk [vmem:[%s3 + $0x240] sm:$0xff] %vm2653, %v2469
  %2727 = vst.msk [vmem:[%s3 + $0x248] sm:$0xff] %vm2653, %v2470
  %2728 = vst.msk [vmem:[%s3 + $0x250] sm:$0xff] %vm2653, %v2471
  %2729 = vst.msk [vmem:[%s3 + $0x258] sm:$0xff] %vm2653, %v2472
  %2730 = vst.msk [vmem:[%s3 + $0x260] sm:$0xff] %vm2653, %v2473
  %2731 = vst.msk [vmem:[%s3 + $0x268] sm:$0xff] %vm2653, %v2474
  %2732 = vst.msk [vmem:[%s3 + $0x270] sm:$0xff] %vm2653, %v2475
  %2733 = vst.msk [vmem:[%s3 + $0x278] sm:$0xff] %vm2653, %v2476
  %2734 = vst.msk [vmem:[%s3 + $0x280] sm:$0xff] %vm2653, %v2477
  %2735 = vst.msk [vmem:[%s3 + $0x288] sm:$0xff] %vm2653, %v2478
  %2736 = vst.msk [vmem:[%s3 + $0x290] sm:$0xff] %vm2653, %v2479
  %2737 = vst.msk [vmem:[%s3 + $0x298] sm:$0xff] %vm2653, %v2480
  %2738 = vst.msk [vmem:[%s3 + $0x2a0] sm:$0xff] %vm2653, %v2481
  %2739 = vst.msk [vmem:[%s3 + $0x2a8] sm:$0xff] %vm2653, %v2482
  %2740 = vst.msk [vmem:[%s3 + $0x2b0] sm:$0xff] %vm2653, %v2483
  %2741 = vst.msk [vmem:[%s3 + $0x2b8] sm:$0xff] %vm2653, %v2484
  %2742 = vst.msk [vmem:[%s3 + $0x2c0] sm:$0xff] %vm2653, %v2485
  %2743 = vst.msk [vmem:[%s3 + $0x2c8] sm:$0xff] %vm2653, %v2486
  %2744 = vst.msk [vmem:[%s3 + $0x2d0] sm:$0xff] %vm2653, %v2487
  %2745 = vst.msk [vmem:[%s3 + $0x2d8] sm:$0xff] %vm2653, %v2488
  %2746 = vst.msk [vmem:[%s3 + $0x2e0] sm:$0xff] %vm2653, %v2489
  %2747 = vst.msk [vmem:[%s3 + $0x2e8] sm:$0xff] %vm2653, %v2490
  %2748 = vst.msk [vmem:[%s3 + $0x2f0] sm:$0xff] %vm2653, %v2491
  %2749 = vst.msk [vmem:[%s3 + $0x2f8] sm:$0xff] %vm2653, %v2492
  %2750 = vst.msk [vmem:[%s3 + $0x300] sm:$0xff] %vm2653, %v2493
  %2751 = vst.msk [vmem:[%s3 + $0x308] sm:$0xff] %vm2653, %v2494
  %2752 = vst.msk [vmem:[%s3 + $0x310] sm:$0xff] %vm2653, %v2495
  %2753 = vst.msk [vmem:[%s3 + $0x318] sm:$0xff] %vm2653, %v2496
  %2754 = vst.msk [vmem:[%s3 + $0x320] sm:$0xff] %vm2653, %v2497
  %2755 = vst.msk [vmem:[%s3 + $0x328] sm:$0xff] %vm2653, %v2498
  %2756 = vst.msk [vmem:[%s3 + $0x330] sm:$0xff] %vm2653, %v2499
  %2757 = vst.msk [vmem:[%s3 + $0x338] sm:$0xff] %vm2653, %v2500
  %2758 = vst.msk [vmem:[%s3 + $0x340] sm:$0xff] %vm2653, %v2501
  %2759 = vst.msk [vmem:[%s3 + $0x348] sm:$0xff] %vm2653, %v2502
  %2760 = vst.msk [vmem:[%s3 + $0x350] sm:$0xff] %vm2653, %v2503
  %2761 = vst.msk [vmem:[%s3 + $0x358] sm:$0xff] %vm2653, %v2504
  %2762 = vst.msk [vmem:[%s3 + $0x360] sm:$0xff] %vm2653, %v2505
  %2763 = vst.msk [vmem:[%s3 + $0x368] sm:$0xff] %vm2653, %v2506
  %2764 = vst.msk [vmem:[%s3 + $0x370] sm:$0xff] %vm2653, %v2507
  %2765 = vst.msk [vmem:[%s3 + $0x378] sm:$0xff] %vm2653, %v2508
  %2766 = vst.msk [vmem:[%s3 + $0x380] sm:$0xff] %vm2653, %v2509
  %2767 = vst.msk [vmem:[%s3 + $0x388] sm:$0xff] %vm2653, %v2510
  %2768 = vst.msk [vmem:[%s3 + $0x390] sm:$0xff] %vm2653, %v2511
  %2769 = vst.msk [vmem:[%s3 + $0x398] sm:$0xff] %vm2653, %v2512
  %2770 = vst.msk [vmem:[%s3 + $0x3a0] sm:$0xff] %vm2653, %v2513
  %2771 = vst.msk [vmem:[%s3 + $0x3a8] sm:$0xff] %vm2653, %v2514
  %2772 = vst.msk [vmem:[%s3 + $0x3b0] sm:$0xff] %vm2653, %v2515
  %2773 = vst.msk [vmem:[%s3 + $0x3b8] sm:$0xff] %vm2653, %v2516
  %2774 = vst.msk [vmem:[%s3 + $0x3c0] sm:$0xff] %vm2653, %v2517
  %2775 = vst.msk [vmem:[%s3 + $0x3c8] sm:$0xff] %vm2653, %v2518
  %2776 = vst.msk [vmem:[%s3 + $0x3d0] sm:$0xff] %vm2653, %v2519
  %2777 = vst.msk [vmem:[%s3 + $0x3d8] sm:$0xff] %vm2653, %v2520
  %2778 = vst.msk [vmem:[%s3 + $0x3e0] sm:$0xff] %vm2653, %v2521
  %2779 = vst.msk [vmem:[%s3 + $0x3e8] sm:$0xff] %vm2653, %v2522
  %2780 = vst.msk [vmem:[%s3 + $0x3f0] sm:$0xff] %vm2653, %v2523
  %2781 = vst.msk [vmem:[%s3 + $0x3f8] sm:$0xff] %vm2653, %v2524
  %2782 = vst.msk [vmem:[%s3 + $0x400] sm:$0xff] %vm2653, %v2525
  %2783 = vst.msk [vmem:[%s3 + $0x408] sm:$0xff] %vm2653, %v2526
  %2784 = vst.msk [vmem:[%s3 + $0x410] sm:$0xff] %vm2653, %v2527
  %2785 = vst.msk [vmem:[%s3 + $0x418] sm:$0xff] %vm2653, %v2528
  %2786 = vst.msk [vmem:[%s3 + $0x420] sm:$0xff] %vm2653, %v2529
  %2787 = vst.msk [vmem:[%s3 + $0x428] sm:$0xff] %vm2653, %v2530
  %2788 = vst.msk [vmem:[%s3 + $0x430] sm:$0xff] %vm2653, %v2531
  %2789 = vst.msk [vmem:[%s3 + $0x438] sm:$0xff] %vm2653, %v2532
  %2790 = vst.msk [vmem:[%s3 + $0x440] sm:$0xff] %vm2653, %v2533
  %2791 = vst.msk [vmem:[%s3 + $0x448] sm:$0xff] %vm2653, %v2534
  %2792 = vst.msk [vmem:[%s3 + $0x450] sm:$0xff] %vm2653, %v2535
  %2793 = vst.msk [vmem:[%s3 + $0x458] sm:$0xff] %vm2653, %v2536
  %2794 = vst.msk [vmem:[%s3 + $0x460] sm:$0xff] %vm2653, %v2537
  %2795 = vst.msk [vmem:[%s3 + $0x468] sm:$0xff] %vm2653, %v2538
  %2796 = vst.msk [vmem:[%s3 + $0x470] sm:$0xff] %vm2653, %v2539
  %2797 = vst.msk [vmem:[%s3 + $0x478] sm:$0xff] %vm2653, %v2540
  %2798 = vst.msk [vmem:[%s3 + $0x480] sm:$0xff] %vm2653, %v2541
  %2799 = vst.msk [vmem:[%s3 + $0x488] sm:$0xff] %vm2653, %v2542
  %2800 = vst.msk [vmem:[%s3 + $0x490] sm:$0xff] %vm2653, %v2543
  %2801 = vst.msk [vmem:[%s3 + $0x498] sm:$0xff] %vm2653, %v2544
  %2802 = vst.msk [vmem:[%s3 + $0x4a0] sm:$0xff] %vm2653, %v2545
  %2803 = vst.msk [vmem:[%s3 + $0x4a8] sm:$0xff] %vm2653, %v2546
  %2804 = vst.msk [vmem:[%s3 + $0x4b0] sm:$0xff] %vm2653, %v2547
  %2805 = vst.msk [vmem:[%s3 + $0x4b8] sm:$0xff] %vm2653, %v2548
  %2806 = vst.msk [vmem:[%s3 + $0x4c0] sm:$0xff] %vm2653, %v2549
  %2807 = vst.msk [vmem:[%s3 + $0x4c8] sm:$0xff] %vm2653, %v2550
  %2808 = vst.msk [vmem:[%s3 + $0x4d0] sm:$0xff] %vm2653, %v2551
  %2809 = vst.msk [vmem:[%s3 + $0x4d8] sm:$0xff] %vm2653, %v2552
  %2810 = vst.msk [vmem:[%s3 + $0x4e0] sm:$0xff] %vm2653, %v2553
  %2811 = vst.msk [vmem:[%s3 + $0x4e8] sm:$0xff] %vm2653, %v2554
  %2812 = vst.msk [vmem:[%s3 + $0x4f0] sm:$0xff] %vm2653, %v2555
  %2813 = vst.msk [vmem:[%s3 + $0x4f8] sm:$0xff] %vm2653, %v2556
  %2814 = vst.msk [vmem:[%s3 + $0x500] sm:$0xff] %vm2653, %v2557
  %2815 = vst.msk [vmem:[%s3 + $0x508] sm:$0xff] %vm2653, %v2558
  %2816 = vst.msk [vmem:[%s3 + $0x510] sm:$0xff] %vm2653, %v2559
  %2817 = vst.msk [vmem:[%s3 + $0x518] sm:$0xff] %vm2653, %v2560
  %2818 = vst.msk [vmem:[%s3 + $0x520] sm:$0xff] %vm2653, %v2561
  %2819 = vst.msk [vmem:[%s3 + $0x528] sm:$0xff] %vm2653, %v2562
  %2820 = vst.msk [vmem:[%s3 + $0x530] sm:$0xff] %vm2653, %v2563
  %2821 = vst.msk [vmem:[%s3 + $0x538] sm:$0xff] %vm2653, %v2564
  %2822 = vst.msk [vmem:[%s3 + $0x540] sm:$0xff] %vm2653, %v2565
  %2823 = vst.msk [vmem:[%s3 + $0x548] sm:$0xff] %vm2653, %v2566
  %2824 = vst.msk [vmem:[%s3 + $0x550] sm:$0xff] %vm2653, %v2567
  %2825 = vst.msk [vmem:[%s3 + $0x558] sm:$0xff] %vm2653, %v2568
  %2826 = vst.msk [vmem:[%s3 + $0x560] sm:$0xff] %vm2653, %v2569
  %2827 = vst.msk [vmem:[%s3 + $0x568] sm:$0xff] %vm2653, %v2570
  %2828 = vst.msk [vmem:[%s3 + $0x570] sm:$0xff] %vm2653, %v2571
  %2829 = vst.msk [vmem:[%s3 + $0x578] sm:$0xff] %vm2653, %v2572
  %2830 = vst.msk [vmem:[%s3 + $0x580] sm:$0xff] %vm2653, %v2573
  %2831 = vst.msk [vmem:[%s3 + $0x588] sm:$0xff] %vm2653, %v2574
  %2832 = vst.msk [vmem:[%s3 + $0x590] sm:$0xff] %vm2653, %v2575
  %2833 = vst.msk [vmem:[%s3 + $0x598] sm:$0xff] %vm2653, %v2576
  %2834 = vst.msk [vmem:[%s3 + $0x5a0] sm:$0xff] %vm2653, %v2577
  %2835 = vst.msk [vmem:[%s3 + $0x5a8] sm:$0xff] %vm2653, %v2578
  %2836 = vst.msk [vmem:[%s3 + $0x5b0] sm:$0xff] %vm2653, %v2579
  %2837 = vst.msk [vmem:[%s3 + $0x5b8] sm:$0xff] %vm2653, %v2580
  %2838 = vst.msk [vmem:[%s3 + $0x5c0] sm:$0xff] %vm2653, %v2581
  %2839 = vst.msk [vmem:[%s3 + $0x5c8] sm:$0xff] %vm2653, %v2582
  %2840 = vst.msk [vmem:[%s3 + $0x5d0] sm:$0xff] %vm2653, %v2583
  %2841 = vst.msk [vmem:[%s3 + $0x5d8] sm:$0xff] %vm2653, %v2584
  %2842 = vst.msk [vmem:[%s3 + $0x5e0] sm:$0xff] %vm2653, %v2585
  %2843 = vst.msk [vmem:[%s3 + $0x5e8] sm:$0xff] %vm2653, %v2586
  %2844 = vst.msk [vmem:[%s3 + $0x5f0] sm:$0xff] %vm2653, %v2587
  %2845 = vst.msk [vmem:[%s3 + $0x5f8] sm:$0xff] %vm2653, %v2588
  %2846 = vst.msk [vmem:[%s3 + $0x600] sm:$0xff] %vm2653, %v2589
  %2847 = vst.msk [vmem:[%s3 + $0x608] sm:$0xff] %vm2653, %v2590
  %2848 = vst.msk [vmem:[%s3 + $0x610] sm:$0xff] %vm2653, %v2591
  %2849 = vst.msk [vmem:[%s3 + $0x618] sm:$0xff] %vm2653, %v2592
  %2850 = vst.msk [vmem:[%s3 + $0x620] sm:$0xff] %vm2653, %v2593
  %2851 = vst.msk [vmem:[%s3 + $0x628] sm:$0xff] %vm2653, %v2594
  %2852 = vst.msk [vmem:[%s3 + $0x630] sm:$0xff] %vm2653, %v2595
  %2853 = vst.msk [vmem:[%s3 + $0x638] sm:$0xff] %vm2653, %v2596
  %2854 = vst.msk [vmem:[%s3 + $0x640] sm:$0xff] %vm2653, %v2597
  %2855 = vst.msk [vmem:[%s3 + $0x648] sm:$0xff] %vm2653, %v2598
  %2856 = vst.msk [vmem:[%s3 + $0x650] sm:$0xff] %vm2653, %v2599
  %2857 = vst.msk [vmem:[%s3 + $0x658] sm:$0xff] %vm2653, %v2600
  %2858 = vst.msk [vmem:[%s3 + $0x660] sm:$0xff] %vm2653, %v2601
  %2859 = vst.msk [vmem:[%s3 + $0x668] sm:$0xff] %vm2653, %v2602
  %2860 = vst.msk [vmem:[%s3 + $0x670] sm:$0xff] %vm2653, %v2603
  %2861 = vst.msk [vmem:[%s3 + $0x678] sm:$0xff] %vm2653, %v2604
  %2862 = vst.msk [vmem:[%s3 + $0x680] sm:$0xff] %vm2653, %v2605
  %2863 = vst.msk [vmem:[%s3 + $0x688] sm:$0xff] %vm2653, %v2606
  %2864 = vst.msk [vmem:[%s3 + $0x690] sm:$0xff] %vm2653, %v2607
  %2865 = vst.msk [vmem:[%s3 + $0x698] sm:$0xff] %vm2653, %v2608
  %2866 = vst.msk [vmem:[%s3 + $0x6a0] sm:$0xff] %vm2653, %v2609
  %2867 = vst.msk [vmem:[%s3 + $0x6a8] sm:$0xff] %vm2653, %v2610
  %2868 = vst.msk [vmem:[%s3 + $0x6b0] sm:$0xff] %vm2653, %v2611
  %2869 = vst.msk [vmem:[%s3 + $0x6b8] sm:$0xff] %vm2653, %v2612
  %2870 = vst.msk [vmem:[%s3 + $0x6c0] sm:$0xff] %vm2653, %v2613
  %2871 = vst.msk [vmem:[%s3 + $0x6c8] sm:$0xff] %vm2653, %v2614
  %2872 = vst.msk [vmem:[%s3 + $0x6d0] sm:$0xff] %vm2653, %v2615
  %2873 = vst.msk [vmem:[%s3 + $0x6d8] sm:$0xff] %vm2653, %v2616
  %2874 = vst.msk [vmem:[%s3 + $0x6e0] sm:$0xff] %vm2653, %v2617
  %2875 = vst.msk [vmem:[%s3 + $0x6e8] sm:$0xff] %vm2653, %v2618
  %2876 = vst.msk [vmem:[%s3 + $0x6f0] sm:$0xff] %vm2653, %v2619
  %2877 = vst.msk [vmem:[%s3 + $0x6f8] sm:$0xff] %vm2653, %v2620
  %2878 = vst.msk [vmem:[%s3 + $0x700] sm:$0xff] %vm2653, %v2621
  %2879 = vst.msk [vmem:[%s3 + $0x708] sm:$0xff] %vm2653, %v2622
  %2880 = vst.msk [vmem:[%s3 + $0x710] sm:$0xff] %vm2653, %v2623
  %2881 = vst.msk [vmem:[%s3 + $0x718] sm:$0xff] %vm2653, %v2624
  %2882 = vst.msk [vmem:[%s3 + $0x720] sm:$0xff] %vm2653, %v2625
  %2883 = vst.msk [vmem:[%s3 + $0x728] sm:$0xff] %vm2653, %v2626
  %2884 = vst.msk [vmem:[%s3 + $0x730] sm:$0xff] %vm2653, %v2627
  %2885 = vst.msk [vmem:[%s3 + $0x738] sm:$0xff] %vm2653, %v2628
  %2886 = vst.msk [vmem:[%s3 + $0x740] sm:$0xff] %vm2653, %v2629
  %2887 = vst.msk [vmem:[%s3 + $0x748] sm:$0xff] %vm2653, %v2630
  %2888 = vst.msk [vmem:[%s3 + $0x750] sm:$0xff] %vm2653, %v2631
  %2889 = vst.msk [vmem:[%s3 + $0x758] sm:$0xff] %vm2653, %v2632
  %2890 = vst.msk [vmem:[%s3 + $0x760] sm:$0xff] %vm2653, %v2633
  %2891 = vst.msk [vmem:[%s3 + $0x768] sm:$0xff] %vm2653, %v2634
  %2892 = vst.msk [vmem:[%s3 + $0x770] sm:$0xff] %vm2653, %v2635
  %2893 = vst.msk [vmem:[%s3 + $0x778] sm:$0xff] %vm2653, %v2636
  %2894 = vst.msk [vmem:[%s3 + $0x780] sm:$0xff] %vm2653, %v2637
  %2895 = vst.msk [vmem:[%s3 + $0x788] sm:$0xff] %vm2653, %v2638
  %2896 = vst.msk [vmem:[%s3 + $0x790] sm:$0xff] %vm2653, %v2639
  %2897 = vst.msk [vmem:[%s3 + $0x798] sm:$0xff] %vm2653, %v2640
  %2898 = vst.msk [vmem:[%s3 + $0x7a0] sm:$0xff] %vm2653, %v2641
  %2899 = vst.msk [vmem:[%s3 + $0x7a8] sm:$0xff] %vm2653, %v2642
  %2900 = vst.msk [vmem:[%s3 + $0x7b0] sm:$0xff] %vm2653, %v2643
  %2901 = vst.msk [vmem:[%s3 + $0x7b8] sm:$0xff] %vm2653, %v2644
  %2902 = vst.msk [vmem:[%s3 + $0x7c0] sm:$0xff] %vm2653, %v2645
  %2903 = vst.msk [vmem:[%s3 + $0x7c8] sm:$0xff] %vm2653, %v2646
  %2904 = vst.msk [vmem:[%s3 + $0x7d0] sm:$0xff] %vm2653, %v2647
  %2905 = vst.msk [vmem:[%s3 + $0x7d8] sm:$0xff] %vm2653, %v2648
  %2906 = vst.msk [vmem:[%s3 + $0x7e0] sm:$0xff] %vm2653, %v2649
  %2907 = vst.msk [vmem:[%s3 + $0x7e8] sm:$0xff] %vm2653, %v2650
  %2908 = vst.msk [vmem:[%s3 + $0x7f0] sm:$0xff] %vm2653, %v2651
  %2909 = vst.msk [vmem:[%s3 + $0x7f8] sm:$0xff] %vm2653, %v2652
  // Predicated region
  $region14: #{_lambda_.8} parent=0 // pred_check
    _
  $region15: #{_lambda_.8} parent=0 // pred_check_branch
    %2911 = sbr.rel (0) target = $region17
  $region16: #{_lambda_.8} parent=0 // pred_region
    _
  $region17: #{_lambda_.8} parent=0 // pred_fallthru
    _
  // Predicated region
  $region18: #{_lambda_.8} parent=0 // pred_check
    _
  $region19: #{_lambda_.8} parent=0 // pred_check_branch
    %2913 = sbr.rel (0) target = $region21
  $region20: #{_lambda_.8} parent=0 // pred_region
    _
  $region21: #{_lambda_.8} parent=0 // pred_fallthru
    _

// kernel: _lambda_.9
$region0: #{_lambda_.9}
  #allocation0 [shape = 'u32[]', space=smem, size = 0x4, offset = 0x4, fixed_abs, tag = 'smem constant byte address 0x4 - core index']
  #allocation1 [shape = 'u32[144,128]{1,0:T(1,128)}', space=vmem, size = 0x12000, scoped, tag = 'internal scratch']
  %s0 = inlined_call_operand.vmem [shape: f32[512,64], index: 0, kind: input, shape index: {}]
  %s1 = inlined_call_operand.vmem [shape: f32[64,32], index: 1, kind: input, shape index: {}]
  %s2 = inlined_call_operand.vmem [shape: f32[1,32], index: 2, kind: input, shape index: {}]
  %s3 = inlined_call_operand.vmem [shape: f32[512,32], index: 3, kind: output, shape index: {}]
  %s4 = sld [smem:[#allocation0]]
  $region22: #{_lambda_.9} parent=0
    _
  %s6 = ssub.s32 1, %s4
  %s7 = scalar_select 0, %s6, %s4
  // Predicated region
  $region2: #{_lambda_.9} parent=0 // pred_check
    _
  $region3: #{_lambda_.9} parent=0 // pred_check_branch
    %9 = sbr.rel (0) target = $region5
  $region4: #{_lambda_.9} parent=0 // pred_region
    _
  $region5: #{_lambda_.9} parent=0 // pred_fallthru
    _
  // Predicated region
  $region6: #{_lambda_.9} parent=0 // pred_check
    _
  $region7: #{_lambda_.9} parent=0 // pred_check_branch
    %11 = sbr.rel (0) target = $region9
  $region8: #{_lambda_.9} parent=0 // pred_region
    _
  $region9: #{_lambda_.9} parent=0 // pred_fallthru
    _
  // Predicated region
  $region10: #{_lambda_.9} parent=0 // pred_check
    _
  $region11: #{_lambda_.9} parent=0 // pred_check_branch
    %13 = sbr.rel (0) target = $region13
  $region12: #{_lambda_.9} parent=0 // pred_region
    _
  $region13: #{_lambda_.9} parent=0 // pred_fallthru
    _
  %v14 = vld [vmem:[%s0] sm:$0xff]
  %v15 = vld [vmem:[%s0 + $0x8] sm:$0xff]
  %v16 = vld [vmem:[%s0 + $0x10] sm:$0xff]
  %v17 = vld [vmem:[%s0 + $0x18] sm:$0xff]
  %v18 = vld [vmem:[%s0 + $0x20] sm:$0xff]
  %v19 = vld [vmem:[%s0 + $0x28] sm:$0xff]
  %v20 = vld [vmem:[%s0 + $0x30] sm:$0xff]
  %v21 = vld [vmem:[%s0 + $0x38] sm:$0xff]
  %v22 = vld [vmem:[%s0 + $0x40] sm:$0xff]
  %v23 = vld [vmem:[%s0 + $0x48] sm:$0xff]
  %v24 = vld [vmem:[%s0 + $0x50] sm:$0xff]
  %v25 = vld [vmem:[%s0 + $0x58] sm:$0xff]
  %v26 = vld [vmem:[%s0 + $0x60] sm:$0xff]
  %v27 = vld [vmem:[%s0 + $0x68] sm:$0xff]
  %v28 = vld [vmem:[%s0 + $0x70] sm:$0xff]
  %v29 = vld [vmem:[%s0 + $0x78] sm:$0xff]
  %v30 = vld [vmem:[%s0 + $0x80] sm:$0xff]
  %v31 = vld [vmem:[%s0 + $0x88] sm:$0xff]
  %v32 = vld [vmem:[%s0 + $0x90] sm:$0xff]
  %v33 = vld [vmem:[%s0 + $0x98] sm:$0xff]
  %v34 = vld [vmem:[%s0 + $0xa0] sm:$0xff]
  %v35 = vld [vmem:[%s0 + $0xa8] sm:$0xff]
  %v36 = vld [vmem:[%s0 + $0xb0] sm:$0xff]
  %v37 = vld [vmem:[%s0 + $0xb8] sm:$0xff]
  %v38 = vld [vmem:[%s0 + $0xc0] sm:$0xff]
  %v39 = vld [vmem:[%s0 + $0xc8] sm:$0xff]
  %v40 = vld [vmem:[%s0 + $0xd0] sm:$0xff]
  %v41 = vld [vmem:[%s0 + $0xd8] sm:$0xff]
  %v42 = vld [vmem:[%s0 + $0xe0] sm:$0xff]
  %v43 = vld [vmem:[%s0 + $0xe8] sm:$0xff]
  %v44 = vld [vmem:[%s0 + $0xf0] sm:$0xff]
  %v45 = vld [vmem:[%s0 + $0xf8] sm:$0xff]
  %v46 = vld [vmem:[%s0 + $0x100] sm:$0xff]
  %v47 = vld [vmem:[%s0 + $0x108] sm:$0xff]
  %v48 = vld [vmem:[%s0 + $0x110] sm:$0xff]
  %v49 = vld [vmem:[%s0 + $0x118] sm:$0xff]
  %v50 = vld [vmem:[%s0 + $0x120] sm:$0xff]
  %v51 = vld [vmem:[%s0 + $0x128] sm:$0xff]
  %v52 = vld [vmem:[%s0 + $0x130] sm:$0xff]
  %v53 = vld [vmem:[%s0 + $0x138] sm:$0xff]
  %v54 = vld [vmem:[%s0 + $0x140] sm:$0xff]
  %v55 = vld [vmem:[%s0 + $0x148] sm:$0xff]
  %v56 = vld [vmem:[%s0 + $0x150] sm:$0xff]
  %v57 = vld [vmem:[%s0 + $0x158] sm:$0xff]
  %v58 = vld [vmem:[%s0 + $0x160] sm:$0xff]
  %v59 = vld [vmem:[%s0 + $0x168] sm:$0xff]
  %v60 = vld [vmem:[%s0 + $0x170] sm:$0xff]
  %v61 = vld [vmem:[%s0 + $0x178] sm:$0xff]
  %v62 = vld [vmem:[%s0 + $0x180] sm:$0xff]
  %v63 = vld [vmem:[%s0 + $0x188] sm:$0xff]
  %v64 = vld [vmem:[%s0 + $0x190] sm:$0xff]
  %v65 = vld [vmem:[%s0 + $0x198] sm:$0xff]
  %v66 = vld [vmem:[%s0 + $0x1a0] sm:$0xff]
  %v67 = vld [vmem:[%s0 + $0x1a8] sm:$0xff]
  %v68 = vld [vmem:[%s0 + $0x1b0] sm:$0xff]
  %v69 = vld [vmem:[%s0 + $0x1b8] sm:$0xff]
  %v70 = vld [vmem:[%s0 + $0x1c0] sm:$0xff]
  %v71 = vld [vmem:[%s0 + $0x1c8] sm:$0xff]
  %v72 = vld [vmem:[%s0 + $0x1d0] sm:$0xff]
  %v73 = vld [vmem:[%s0 + $0x1d8] sm:$0xff]
  %v74 = vld [vmem:[%s0 + $0x1e0] sm:$0xff]
  %v75 = vld [vmem:[%s0 + $0x1e8] sm:$0xff]
  %v76 = vld [vmem:[%s0 + $0x1f0] sm:$0xff]
  %v77 = vld [vmem:[%s0 + $0x1f8] sm:$0xff]
  %v78 = vld [vmem:[%s1] sm:$0xff]
  %v79 = vld [vmem:[%s1 + $0x8] sm:$0xff]
  %v80 = vld [vmem:[%s1 + $0x10] sm:$0xff]
  %v81 = vld [vmem:[%s1 + $0x18] sm:$0xff]
  %v82 = vld [vmem:[%s1 + $0x20] sm:$0xff]
  %v83 = vld [vmem:[%s1 + $0x28] sm:$0xff]
  %v84 = vld [vmem:[%s1 + $0x30] sm:$0xff]
  %v85 = vld [vmem:[%s1 + $0x38] sm:$0xff]
  %v86 = vld [vmem:[%s2] sm:$0x1]
  %v88 = vlaneseq
  %v89 = vshrl.u32 %v88, 7
  %v90 = vsub.s32 0, %v89
  %v91 = vrot.slane %v86, %v90
  %vm93 = vcmask 523264
  %v95 = vsel %vm93, %v14, 0
  %v98 = vsel %vm93, %v15, 0
  %v101 = vsel %vm93, %v16, 0
  %v104 = vsel %vm93, %v17, 0
  %v107 = vsel %vm93, %v18, 0
  %v110 = vsel %vm93, %v19, 0
  %v113 = vsel %vm93, %v20, 0
  %v116 = vsel %vm93, %v21, 0
  %v119 = vsel %vm93, %v22, 0
  %v122 = vsel %vm93, %v23, 0
  %v125 = vsel %vm93, %v24, 0
  %v128 = vsel %vm93, %v25, 0
  %v131 = vsel %vm93, %v26, 0
  %v134 = vsel %vm93, %v27, 0
  %v137 = vsel %vm93, %v28, 0
  %v140 = vsel %vm93, %v29, 0
  %v143 = vsel %vm93, %v30, 0
  %v146 = vsel %vm93, %v31, 0
  %v149 = vsel %vm93, %v32, 0
  %v152 = vsel %vm93, %v33, 0
  %v155 = vsel %vm93, %v34, 0
  %v158 = vsel %vm93, %v35, 0
  %v161 = vsel %vm93, %v36, 0
  %v164 = vsel %vm93, %v37, 0
  %v167 = vsel %vm93, %v38, 0
  %v170 = vsel %vm93, %v39, 0
  %v173 = vsel %vm93, %v40, 0
  %v176 = vsel %vm93, %v41, 0
  %v179 = vsel %vm93, %v42, 0
  %v182 = vsel %vm93, %v43, 0
  %v185 = vsel %vm93, %v44, 0
  %v188 = vsel %vm93, %v45, 0
  %v191 = vsel %vm93, %v46, 0
  %v194 = vsel %vm93, %v47, 0
  %v197 = vsel %vm93, %v48, 0
  %v200 = vsel %vm93, %v49, 0
  %v203 = vsel %vm93, %v50, 0
  %v206 = vsel %vm93, %v51, 0
  %v209 = vsel %vm93, %v52, 0
  %v212 = vsel %vm93, %v53, 0
  %v215 = vsel %vm93, %v54, 0
  %v218 = vsel %vm93, %v55, 0
  %v221 = vsel %vm93, %v56, 0
  %v224 = vsel %vm93, %v57, 0
  %v227 = vsel %vm93, %v58, 0
  %v230 = vsel %vm93, %v59, 0
  %v233 = vsel %vm93, %v60, 0
  %v236 = vsel %vm93, %v61, 0
  %v239 = vsel %vm93, %v62, 0
  %v242 = vsel %vm93, %v63, 0
  %v245 = vsel %vm93, %v64, 0
  %v248 = vsel %vm93, %v65, 0
  %v251 = vsel %vm93, %v66, 0
  %v254 = vsel %vm93, %v67, 0
  %v257 = vsel %vm93, %v68, 0
  %v260 = vsel %vm93, %v69, 0
  %v263 = vsel %vm93, %v70, 0
  %v266 = vsel %vm93, %v71, 0
  %v269 = vsel %vm93, %v72, 0
  %v272 = vsel %vm93, %v73, 0
  %v275 = vsel %vm93, %v74, 0
  %v278 = vsel %vm93, %v75, 0
  %v281 = vsel %vm93, %v76, 0
  %v284 = vsel %vm93, %v77, 0
  %286 = vmatprep.subr.mxu0 0.0
  %287 = vmatpush1.msra.mxu0 0.0
  %288 = vmatprep.subr.mxu0 0.0
  %289 = vmatpush1.msra.mxu0 0.0
  %290 = vmatprep.subr.mxu0 0.0
  %291 = vmatpush1.msra.mxu0 0.0
  %292 = vmatprep.subr.mxu0 0.0
  %293 = vmatpush1.msra.mxu0 0.0
  %294 = vmatprep.subr.mxu0 0.0
  %295 = vmatpush1.msra.mxu0 0.0
  %296 = vmatprep.subr.mxu0 0.0
  %297 = vmatpush1.msra.mxu0 0.0
  %298 = vmatprep.subr.mxu0 0.0
  %299 = vmatpush1.msra.mxu0 0.0
  %300 = vmatprep.subr.mxu0 0.0
  %301 = vmatpush1.msra.mxu0 0.0
  %302 = vmatprep.subr.mxu0 0.0
  %303 = vmatpush1.msra.mxu0 %v85
  %304 = vmatprep.subr.mxu0 0.0
  %305 = vmatpush1.msra.mxu0 %v84
  %306 = vmatprep.subr.mxu0 0.0
  %307 = vmatpush1.msra.mxu0 %v83
  %308 = vmatprep.subr.mxu0 0.0
  %309 = vmatpush1.msra.mxu0 %v82
  %310 = vmatprep.subr.mxu0 0.0
  %311 = vmatpush1.msra.mxu0 %v81
  %312 = vmatprep.subr.mxu0 0.0
  %313 = vmatpush1.msra.mxu0 %v80
  %314 = vmatprep.subr.mxu0 0.0
  %315 = vmatpush1.msra.mxu0 %v79
  %316 = vmatprep.subr.mxu0 0.0
  %317 = vmatpush1.msra.mxu0 %v78
  %318 = vmatprep.subr.mxu0 0.0
  %319 = vmatpush2.msra.mxu0 0.0
  %320 = vmatprep.subr.mxu0 0.0
  %321 = vmatpush2.msra.mxu0 0.0
  %322 = vmatprep.subr.mxu0 0.0
  %323 = vmatpush2.msra.mxu0 0.0
  %324 = vmatprep.subr.mxu0 0.0
  %325 = vmatpush2.msra.mxu0 0.0
  %326 = vmatprep.subr.mxu0 0.0
  %327 = vmatpush2.msra.mxu0 0.0
  %328 = vmatprep.subr.mxu0 0.0
  %329 = vmatpush2.msra.mxu0 0.0
  %330 = vmatprep.subr.mxu0 0.0
  %331 = vmatpush2.msra.mxu0 0.0
  %332 = vmatprep.subr.mxu0 0.0
  %333 = vmatpush2.msra.mxu0 0.0
  %334 = vmatprep.subr.mxu0 0.0
  %335 = vmatpush2.msra.mxu0 0.0
  %336 = vmatprep.subr.mxu0 0.0
  %337 = vmatpush2.msra.mxu0 0.0
  %338 = vmatprep.subr.mxu0 0.0
  %339 = vmatpush2.msra.mxu0 0.0
  %340 = vmatprep.subr.mxu0 0.0
  %341 = vmatpush2.msra.mxu0 0.0
  %342 = vmatprep.subr.mxu0 0.0
  %343 = vmatpush2.msra.mxu0 0.0
  %344 = vmatprep.subr.mxu0 0.0
  %345 = vmatpush2.msra.mxu0 0.0
  %346 = vmatprep.subr.mxu0 0.0
  %347 = vmatpush2.msra.mxu0 0.0
  %348 = vmatprep.subr.mxu0 0.0
  %349 = vmatpush2.msra.mxu0 0.0
  %350 = vmatprep.mubr.f32.mxu0 0.0
  %351 = vmatmul.mubr.f32.gmra.mxu0 %v95
  %v352 = vpop.f32.mrf.mxu0
  %v353 = vadd.f32 %v91, %v352
  %v354 = vpop.f32.mrf.mxu0
  %355 = vmatprep.mubr.f32.mxu0 0.0
  %356 = vmatmul.mubr.f32.gmra.mxu0 %v98
  %v357 = vpop.f32.mrf.mxu0
  %v358 = vadd.f32 %v91, %v357
  %v359 = vpop.f32.mrf.mxu0
  %360 = vmatprep.mubr.f32.mxu0 0.0
  %361 = vmatmul.mubr.f32.gmra.mxu0 %v101
  %v362 = vpop.f32.mrf.mxu0
  %v363 = vadd.f32 %v91, %v362
  %v364 = vpop.f32.mrf.mxu0
  %365 = vmatprep.mubr.f32.mxu0 0.0
  %366 = vmatmul.mubr.f32.gmra.mxu0 %v104
  %v367 = vpop.f32.mrf.mxu0
  %v368 = vadd.f32 %v91, %v367
  %v369 = vpop.f32.mrf.mxu0
  %370 = vmatprep.mubr.f32.mxu0 0.0
  %371 = vmatmul.mubr.f32.gmra.mxu0 %v107
  %v372 = vpop.f32.mrf.mxu0
  %v373 = vadd.f32 %v91, %v372
  %v374 = vpop.f32.mrf.mxu0
  %375 = vmatprep.mubr.f32.mxu0 0.0
  %376 = vmatmul.mubr.f32.gmra.mxu0 %v110
  %v377 = vpop.f32.mrf.mxu0
  %v378 = vadd.f32 %v91, %v377
  %v379 = vpop.f32.mrf.mxu0
  %380 = vmatprep.mubr.f32.mxu0 0.0
  %381 = vmatmul.mubr.f32.gmra.mxu0 %v113
  %v382 = vpop.f32.mrf.mxu0
  %v383 = vadd.f32 %v91, %v382
  %v384 = vpop.f32.mrf.mxu0
  %385 = vmatprep.mubr.f32.mxu0 0.0
  %386 = vmatmul.mubr.f32.gmra.mxu0 %v116
  %v387 = vpop.f32.mrf.mxu0
  %v388 = vadd.f32 %v91, %v387
  %v389 = vpop.f32.mrf.mxu0
  %390 = vmatprep.mubr.f32.mxu0 0.0
  %391 = vmatmul.mubr.f32.gmra.mxu0 %v119
  %v392 = vpop.f32.mrf.mxu0
  %v393 = vadd.f32 %v91, %v392
  %v394 = vpop.f32.mrf.mxu0
  %395 = vmatprep.mubr.f32.mxu0 0.0
  %396 = vmatmul.mubr.f32.gmra.mxu0 %v122
  %v397 = vpop.f32.mrf.mxu0
  %v398 = vadd.f32 %v91, %v397
  %v399 = vpop.f32.mrf.mxu0
  %400 = vmatprep.mubr.f32.mxu0 0.0
  %401 = vmatmul.mubr.f32.gmra.mxu0 %v125
  %v402 = vpop.f32.mrf.mxu0
  %v403 = vadd.f32 %v91, %v402
  %v404 = vpop.f32.mrf.mxu0
  %405 = vmatprep.mubr.f32.mxu0 0.0
  %406 = vmatmul.mubr.f32.gmra.mxu0 %v128
  %v407 = vpop.f32.mrf.mxu0
  %v408 = vadd.f32 %v91, %v407
  %v409 = vpop.f32.mrf.mxu0
  %410 = vmatprep.mubr.f32.mxu0 0.0
  %411 = vmatmul.mubr.f32.gmra.mxu0 %v131
  %v412 = vpop.f32.mrf.mxu0
  %v413 = vadd.f32 %v91, %v412
  %v414 = vpop.f32.mrf.mxu0
  %415 = vmatprep.mubr.f32.mxu0 0.0
  %416 = vmatmul.mubr.f32.gmra.mxu0 %v134
  %v417 = vpop.f32.mrf.mxu0
  %v418 = vadd.f32 %v91, %v417
  %v419 = vpop.f32.mrf.mxu0
  %420 = vmatprep.mubr.f32.mxu0 0.0
  %421 = vmatmul.mubr.f32.gmra.mxu0 %v137
  %v422 = vpop.f32.mrf.mxu0
  %v423 = vadd.f32 %v91, %v422
  %v424 = vpop.f32.mrf.mxu0
  %425 = vmatprep.mubr.f32.mxu0 0.0
  %426 = vmatmul.mubr.f32.gmra.mxu0 %v140
  %v427 = vpop.f32.mrf.mxu0
  %v428 = vadd.f32 %v91, %v427
  %v429 = vpop.f32.mrf.mxu0
  %430 = vmatprep.mubr.f32.mxu0 0.0
  %431 = vmatmul.mubr.f32.gmra.mxu0 %v143
  %v432 = vpop.f32.mrf.mxu0
  %v433 = vadd.f32 %v91, %v432
  %v434 = vpop.f32.mrf.mxu0
  %435 = vmatprep.mubr.f32.mxu0 0.0
  %436 = vmatmul.mubr.f32.gmra.mxu0 %v146
  %v437 = vpop.f32.mrf.mxu0
  %v438 = vadd.f32 %v91, %v437
  %v439 = vpop.f32.mrf.mxu0
  %440 = vmatprep.mubr.f32.mxu0 0.0
  %441 = vmatmul.mubr.f32.gmra.mxu0 %v149
  %v442 = vpop.f32.mrf.mxu0
  %v443 = vadd.f32 %v91, %v442
  %v444 = vpop.f32.mrf.mxu0
  %445 = vmatprep.mubr.f32.mxu0 0.0
  %446 = vmatmul.mubr.f32.gmra.mxu0 %v152
  %v447 = vpop.f32.mrf.mxu0
  %v448 = vadd.f32 %v91, %v447
  %v449 = vpop.f32.mrf.mxu0
  %450 = vmatprep.mubr.f32.mxu0 0.0
  %451 = vmatmul.mubr.f32.gmra.mxu0 %v155
  %v452 = vpop.f32.mrf.mxu0
  %v453 = vadd.f32 %v91, %v452
  %v454 = vpop.f32.mrf.mxu0
  %455 = vmatprep.mubr.f32.mxu0 0.0
  %456 = vmatmul.mubr.f32.gmra.mxu0 %v158
  %v457 = vpop.f32.mrf.mxu0
  %v458 = vadd.f32 %v91, %v457
  %v459 = vpop.f32.mrf.mxu0
  %460 = vmatprep.mubr.f32.mxu0 0.0
  %461 = vmatmul.mubr.f32.gmra.mxu0 %v161
  %v462 = vpop.f32.mrf.mxu0
  %v463 = vadd.f32 %v91, %v462
  %v464 = vpop.f32.mrf.mxu0
  %465 = vmatprep.mubr.f32.mxu0 0.0
  %466 = vmatmul.mubr.f32.gmra.mxu0 %v164
  %v467 = vpop.f32.mrf.mxu0
  %v468 = vadd.f32 %v91, %v467
  %v469 = vpop.f32.mrf.mxu0
  %470 = vmatprep.mubr.f32.mxu0 0.0
  %471 = vmatmul.mubr.f32.gmra.mxu0 %v167
  %v472 = vpop.f32.mrf.mxu0
  %v473 = vadd.f32 %v91, %v472
  %v474 = vpop.f32.mrf.mxu0
  %475 = vmatprep.mubr.f32.mxu0 0.0
  %476 = vmatmul.mubr.f32.gmra.mxu0 %v170
  %v477 = vpop.f32.mrf.mxu0
  %v478 = vadd.f32 %v91, %v477
  %v479 = vpop.f32.mrf.mxu0
  %480 = vmatprep.mubr.f32.mxu0 0.0
  %481 = vmatmul.mubr.f32.gmra.mxu0 %v173
  %v482 = vpop.f32.mrf.mxu0
  %v483 = vadd.f32 %v91, %v482
  %v484 = vpop.f32.mrf.mxu0
  %485 = vmatprep.mubr.f32.mxu0 0.0
  %486 = vmatmul.mubr.f32.gmra.mxu0 %v176
  %v487 = vpop.f32.mrf.mxu0
  %v488 = vadd.f32 %v91, %v487
  %v489 = vpop.f32.mrf.mxu0
  %490 = vmatprep.mubr.f32.mxu0 0.0
  %491 = vmatmul.mubr.f32.gmra.mxu0 %v179
  %v492 = vpop.f32.mrf.mxu0
  %v493 = vadd.f32 %v91, %v492
  %v494 = vpop.f32.mrf.mxu0
  %495 = vmatprep.mubr.f32.mxu0 0.0
  %496 = vmatmul.mubr.f32.gmra.mxu0 %v182
  %v497 = vpop.f32.mrf.mxu0
  %v498 = vadd.f32 %v91, %v497
  %v499 = vpop.f32.mrf.mxu0
  %500 = vmatprep.mubr.f32.mxu0 0.0
  %501 = vmatmul.mubr.f32.gmra.mxu0 %v185
  %v502 = vpop.f32.mrf.mxu0
  %v503 = vadd.f32 %v91, %v502
  %v504 = vpop.f32.mrf.mxu0
  %505 = vmatprep.mubr.f32.mxu0 0.0
  %506 = vmatmul.mubr.f32.gmra.mxu0 %v188
  %v507 = vpop.f32.mrf.mxu0
  %v508 = vadd.f32 %v91, %v507
  %v509 = vpop.f32.mrf.mxu0
  %510 = vmatprep.mubr.f32.mxu0 0.0
  %511 = vmatmul.mubr.f32.gmra.mxu0 %v191
  %v512 = vpop.f32.mrf.mxu0
  %v513 = vadd.f32 %v91, %v512
  %v514 = vpop.f32.mrf.mxu0
  %515 = vmatprep.mubr.f32.mxu0 0.0
  %516 = vmatmul.mubr.f32.gmra.mxu0 %v194
  %v517 = vpop.f32.mrf.mxu0
  %v518 = vadd.f32 %v91, %v517
  %v519 = vpop.f32.mrf.mxu0
  %520 = vmatprep.mubr.f32.mxu0 0.0
  %521 = vmatmul.mubr.f32.gmra.mxu0 %v197
  %v522 = vpop.f32.mrf.mxu0
  %v523 = vadd.f32 %v91, %v522
  %v524 = vpop.f32.mrf.mxu0
  %525 = vmatprep.mubr.f32.mxu0 0.0
  %526 = vmatmul.mubr.f32.gmra.mxu0 %v200
  %v527 = vpop.f32.mrf.mxu0
  %v528 = vadd.f32 %v91, %v527
  %v529 = vpop.f32.mrf.mxu0
  %530 = vmatprep.mubr.f32.mxu0 0.0
  %531 = vmatmul.mubr.f32.gmra.mxu0 %v203
  %v532 = vpop.f32.mrf.mxu0
  %v533 = vadd.f32 %v91, %v532
  %v534 = vpop.f32.mrf.mxu0
  %535 = vmatprep.mubr.f32.mxu0 0.0
  %536 = vmatmul.mubr.f32.gmra.mxu0 %v206
  %v537 = vpop.f32.mrf.mxu0
  %v538 = vadd.f32 %v91, %v537
  %v539 = vpop.f32.mrf.mxu0
  %540 = vmatprep.mubr.f32.mxu0 0.0
  %541 = vmatmul.mubr.f32.gmra.mxu0 %v209
  %v542 = vpop.f32.mrf.mxu0
  %v543 = vadd.f32 %v91, %v542
  %v544 = vpop.f32.mrf.mxu0
  %545 = vmatprep.mubr.f32.mxu0 0.0
  %546 = vmatmul.mubr.f32.gmra.mxu0 %v212
  %v547 = vpop.f32.mrf.mxu0
  %v548 = vadd.f32 %v91, %v547
  %v549 = vpop.f32.mrf.mxu0
  %550 = vmatprep.mubr.f32.mxu0 0.0
  %551 = vmatmul.mubr.f32.gmra.mxu0 %v215
  %v552 = vpop.f32.mrf.mxu0
  %v553 = vadd.f32 %v91, %v552
  %v554 = vpop.f32.mrf.mxu0
  %555 = vmatprep.mubr.f32.mxu0 0.0
  %556 = vmatmul.mubr.f32.gmra.mxu0 %v218
  %v557 = vpop.f32.mrf.mxu0
  %v558 = vadd.f32 %v91, %v557
  %v559 = vpop.f32.mrf.mxu0
  %560 = vmatprep.mubr.f32.mxu0 0.0
  %561 = vmatmul.mubr.f32.gmra.mxu0 %v221
  %v562 = vpop.f32.mrf.mxu0
  %v563 = vadd.f32 %v91, %v562
  %v564 = vpop.f32.mrf.mxu0
  %565 = vmatprep.mubr.f32.mxu0 0.0
  %566 = vmatmul.mubr.f32.gmra.mxu0 %v224
  %v567 = vpop.f32.mrf.mxu0
  %v568 = vadd.f32 %v91, %v567
  %v569 = vpop.f32.mrf.mxu0
  %570 = vmatprep.mubr.f32.mxu0 0.0
  %571 = vmatmul.mubr.f32.gmra.mxu0 %v227
  %v572 = vpop.f32.mrf.mxu0
  %v573 = vadd.f32 %v91, %v572
  %v574 = vpop.f32.mrf.mxu0
  %575 = vmatprep.mubr.f32.mxu0 0.0
  %576 = vmatmul.mubr.f32.gmra.mxu0 %v230
  %v577 = vpop.f32.mrf.mxu0
  %v578 = vadd.f32 %v91, %v577
  %v579 = vpop.f32.mrf.mxu0
  %580 = vmatprep.mubr.f32.mxu0 0.0
  %581 = vmatmul.mubr.f32.gmra.mxu0 %v233
  %v582 = vpop.f32.mrf.mxu0
  %v583 = vadd.f32 %v91, %v582
  %v584 = vpop.f32.mrf.mxu0
  %585 = vmatprep.mubr.f32.mxu0 0.0
  %586 = vmatmul.mubr.f32.gmra.mxu0 %v236
  %v587 = vpop.f32.mrf.mxu0
  %v588 = vadd.f32 %v91, %v587
  %v589 = vpop.f32.mrf.mxu0
  %590 = vmatprep.mubr.f32.mxu0 0.0
  %591 = vmatmul.mubr.f32.gmra.mxu0 %v239
  %v592 = vpop.f32.mrf.mxu0
  %v593 = vadd.f32 %v91, %v592
  %v594 = vpop.f32.mrf.mxu0
  %595 = vmatprep.mubr.f32.mxu0 0.0
  %596 = vmatmul.mubr.f32.gmra.mxu0 %v242
  %v597 = vpop.f32.mrf.mxu0
  %v598 = vadd.f32 %v91, %v597
  %v599 = vpop.f32.mrf.mxu0
  %600 = vmatprep.mubr.f32.mxu0 0.0
  %601 = vmatmul.mubr.f32.gmra.mxu0 %v245
  %v602 = vpop.f32.mrf.mxu0
  %v603 = vadd.f32 %v91, %v602
  %v604 = vpop.f32.mrf.mxu0
  %605 = vmatprep.mubr.f32.mxu0 0.0
  %606 = vmatmul.mubr.f32.gmra.mxu0 %v248
  %v607 = vpop.f32.mrf.mxu0
  %v608 = vadd.f32 %v91, %v607
  %v609 = vpop.f32.mrf.mxu0
  %610 = vmatprep.mubr.f32.mxu0 0.0
  %611 = vmatmul.mubr.f32.gmra.mxu0 %v251
  %v612 = vpop.f32.mrf.mxu0
  %v613 = vadd.f32 %v91, %v612
  %v614 = vpop.f32.mrf.mxu0
  %615 = vmatprep.mubr.f32.mxu0 0.0
  %616 = vmatmul.mubr.f32.gmra.mxu0 %v254
  %v617 = vpop.f32.mrf.mxu0
  %v618 = vadd.f32 %v91, %v617
  %v619 = vpop.f32.mrf.mxu0
  %620 = vmatprep.mubr.f32.mxu0 0.0
  %621 = vmatmul.mubr.f32.gmra.mxu0 %v257
  %v622 = vpop.f32.mrf.mxu0
  %v623 = vadd.f32 %v91, %v622
  %v624 = vpop.f32.mrf.mxu0
  %625 = vmatprep.mubr.f32.mxu0 0.0
  %626 = vmatmul.mubr.f32.gmra.mxu0 %v260
  %v627 = vpop.f32.mrf.mxu0
  %v628 = vadd.f32 %v91, %v627
  %v629 = vpop.f32.mrf.mxu0
  %630 = vmatprep.mubr.f32.mxu0 0.0
  %631 = vmatmul.mubr.f32.gmra.mxu0 %v263
  %v632 = vpop.f32.mrf.mxu0
  %v633 = vadd.f32 %v91, %v632
  %v634 = vpop.f32.mrf.mxu0
  %635 = vmatprep.mubr.f32.mxu0 0.0
  %636 = vmatmul.mubr.f32.gmra.mxu0 %v266
  %v637 = vpop.f32.mrf.mxu0
  %v638 = vadd.f32 %v91, %v637
  %v639 = vpop.f32.mrf.mxu0
  %640 = vmatprep.mubr.f32.mxu0 0.0
  %641 = vmatmul.mubr.f32.gmra.mxu0 %v269
  %v642 = vpop.f32.mrf.mxu0
  %v643 = vadd.f32 %v91, %v642
  %v644 = vpop.f32.mrf.mxu0
  %645 = vmatprep.mubr.f32.mxu0 0.0
  %646 = vmatmul.mubr.f32.gmra.mxu0 %v272
  %v647 = vpop.f32.mrf.mxu0
  %v648 = vadd.f32 %v91, %v647
  %v649 = vpop.f32.mrf.mxu0
  %650 = vmatprep.mubr.f32.mxu0 0.0
  %651 = vmatmul.mubr.f32.gmra.mxu0 %v275
  %v652 = vpop.f32.mrf.mxu0
  %v653 = vadd.f32 %v91, %v652
  %v654 = vpop.f32.mrf.mxu0
  %655 = vmatprep.mubr.f32.mxu0 0.0
  %656 = vmatmul.mubr.f32.gmra.mxu0 %v278
  %v657 = vpop.f32.mrf.mxu0
  %v658 = vadd.f32 %v91, %v657
  %v659 = vpop.f32.mrf.mxu0
  %660 = vmatprep.mubr.f32.mxu0 0.0
  %661 = vmatmul.mubr.f32.gmra.mxu0 %v281
  %v662 = vpop.f32.mrf.mxu0
  %v663 = vadd.f32 %v91, %v662
  %v664 = vpop.f32.mrf.mxu0
  %665 = vmatprep.mubr.f32.mxu0 0.0
  %666 = vmatmul.mubr.f32.gmra.mxu0 %v284
  %v667 = vpop.f32.mrf.mxu0
  %v668 = vadd.f32 %v91, %v667
  %v669 = vpop.f32.mrf.mxu0
  %670 = vdwg.mxu0
  %v671 = vmax.f32 %v353, 0.0
  %v672 = vmax.f32 %v358, 0.0
  %v673 = vmax.f32 %v363, 0.0
  %v674 = vmax.f32 %v368, 0.0
  %v675 = vmax.f32 %v373, 0.0
  %v676 = vmax.f32 %v378, 0.0
  %v677 = vmax.f32 %v383, 0.0
  %v678 = vmax.f32 %v388, 0.0
  %v679 = vmax.f32 %v393, 0.0
  %v680 = vmax.f32 %v398, 0.0
  %v681 = vmax.f32 %v403, 0.0
  %v682 = vmax.f32 %v408, 0.0
  %v683 = vmax.f32 %v413, 0.0
  %v684 = vmax.f32 %v418, 0.0
  %v685 = vmax.f32 %v423, 0.0
  %v686 = vmax.f32 %v428, 0.0
  %v687 = vmax.f32 %v433, 0.0
  %v688 = vmax.f32 %v438, 0.0
  %v689 = vmax.f32 %v443, 0.0
  %v690 = vmax.f32 %v448, 0.0
  %v691 = vmax.f32 %v453, 0.0
  %v692 = vmax.f32 %v458, 0.0
  %v693 = vmax.f32 %v463, 0.0
  %v694 = vmax.f32 %v468, 0.0
  %v695 = vmax.f32 %v473, 0.0
  %v696 = vmax.f32 %v478, 0.0
  %v697 = vmax.f32 %v483, 0.0
  %v698 = vmax.f32 %v488, 0.0
  %v699 = vmax.f32 %v493, 0.0
  %v700 = vmax.f32 %v498, 0.0
  %v701 = vmax.f32 %v503, 0.0
  %v702 = vmax.f32 %v508, 0.0
  %v703 = vmax.f32 %v513, 0.0
  %v704 = vmax.f32 %v518, 0.0
  %v705 = vmax.f32 %v523, 0.0
  %v706 = vmax.f32 %v528, 0.0
  %v707 = vmax.f32 %v533, 0.0
  %v708 = vmax.f32 %v538, 0.0
  %v709 = vmax.f32 %v543, 0.0
  %v710 = vmax.f32 %v548, 0.0
  %v711 = vmax.f32 %v553, 0.0
  %v712 = vmax.f32 %v558, 0.0
  %v713 = vmax.f32 %v563, 0.0
  %v714 = vmax.f32 %v568, 0.0
  %v715 = vmax.f32 %v573, 0.0
  %v716 = vmax.f32 %v578, 0.0
  %v717 = vmax.f32 %v583, 0.0
  %v718 = vmax.f32 %v588, 0.0
  %v719 = vmax.f32 %v593, 0.0
  %v720 = vmax.f32 %v598, 0.0
  %v721 = vmax.f32 %v603, 0.0
  %v722 = vmax.f32 %v608, 0.0
  %v723 = vmax.f32 %v613, 0.0
  %v724 = vmax.f32 %v618, 0.0
  %v725 = vmax.f32 %v623, 0.0
  %v726 = vmax.f32 %v628, 0.0
  %v727 = vmax.f32 %v633, 0.0
  %v728 = vmax.f32 %v638, 0.0
  %v729 = vmax.f32 %v643, 0.0
  %v730 = vmax.f32 %v648, 0.0
  %v731 = vmax.f32 %v653, 0.0
  %v732 = vmax.f32 %v658, 0.0
  %v733 = vmax.f32 %v663, 0.0
  %v734 = vmax.f32 %v668, 0.0
  %vm735 = vcmask 261120
  %736 = vst.msk [vmem:[%s3] sm:$0xff] %vm735, %v671
  %737 = vst.msk [vmem:[%s3 + $0x8] sm:$0xff] %vm735, %v672
  %738 = vst.msk [vmem:[%s3 + $0x10] sm:$0xff] %vm735, %v673
  %739 = vst.msk [vmem:[%s3 + $0x18] sm:$0xff] %vm735, %v674
  %740 = vst.msk [vmem:[%s3 + $0x20] sm:$0xff] %vm735, %v675
  %741 = vst.msk [vmem:[%s3 + $0x28] sm:$0xff] %vm735, %v676
  %742 = vst.msk [vmem:[%s3 + $0x30] sm:$0xff] %vm735, %v677
  %743 = vst.msk [vmem:[%s3 + $0x38] sm:$0xff] %vm735, %v678
  %744 = vst.msk [vmem:[%s3 + $0x40] sm:$0xff] %vm735, %v679
  %745 = vst.msk [vmem:[%s3 + $0x48] sm:$0xff] %vm735, %v680
  %746 = vst.msk [vmem:[%s3 + $0x50] sm:$0xff] %vm735, %v681
  %747 = vst.msk [vmem:[%s3 + $0x58] sm:$0xff] %vm735, %v682
  %748 = vst.msk [vmem:[%s3 + $0x60] sm:$0xff] %vm735, %v683
  %749 = vst.msk [vmem:[%s3 + $0x68] sm:$0xff] %vm735, %v684
  %750 = vst.msk [vmem:[%s3 + $0x70] sm:$0xff] %vm735, %v685
  %751 = vst.msk [vmem:[%s3 + $0x78] sm:$0xff] %vm735, %v686
  %752 = vst.msk [vmem:[%s3 + $0x80] sm:$0xff] %vm735, %v687
  %753 = vst.msk [vmem:[%s3 + $0x88] sm:$0xff] %vm735, %v688
  %754 = vst.msk [vmem:[%s3 + $0x90] sm:$0xff] %vm735, %v689
  %755 = vst.msk [vmem:[%s3 + $0x98] sm:$0xff] %vm735, %v690
  %756 = vst.msk [vmem:[%s3 + $0xa0] sm:$0xff] %vm735, %v691
  %757 = vst.msk [vmem:[%s3 + $0xa8] sm:$0xff] %vm735, %v692
  %758 = vst.msk [vmem:[%s3 + $0xb0] sm:$0xff] %vm735, %v693
  %759 = vst.msk [vmem:[%s3 + $0xb8] sm:$0xff] %vm735, %v694
  %760 = vst.msk [vmem:[%s3 + $0xc0] sm:$0xff] %vm735, %v695
  %761 = vst.msk [vmem:[%s3 + $0xc8] sm:$0xff] %vm735, %v696
  %762 = vst.msk [vmem:[%s3 + $0xd0] sm:$0xff] %vm735, %v697
  %763 = vst.msk [vmem:[%s3 + $0xd8] sm:$0xff] %vm735, %v698
  %764 = vst.msk [vmem:[%s3 + $0xe0] sm:$0xff] %vm735, %v699
  %765 = vst.msk [vmem:[%s3 + $0xe8] sm:$0xff] %vm735, %v700
  %766 = vst.msk [vmem:[%s3 + $0xf0] sm:$0xff] %vm735, %v701
  %767 = vst.msk [vmem:[%s3 + $0xf8] sm:$0xff] %vm735, %v702
  %768 = vst.msk [vmem:[%s3 + $0x100] sm:$0xff] %vm735, %v703
  %769 = vst.msk [vmem:[%s3 + $0x108] sm:$0xff] %vm735, %v704
  %770 = vst.msk [vmem:[%s3 + $0x110] sm:$0xff] %vm735, %v705
  %771 = vst.msk [vmem:[%s3 + $0x118] sm:$0xff] %vm735, %v706
  %772 = vst.msk [vmem:[%s3 + $0x120] sm:$0xff] %vm735, %v707
  %773 = vst.msk [vmem:[%s3 + $0x128] sm:$0xff] %vm735, %v708
  %774 = vst.msk [vmem:[%s3 + $0x130] sm:$0xff] %vm735, %v709
  %775 = vst.msk [vmem:[%s3 + $0x138] sm:$0xff] %vm735, %v710
  %776 = vst.msk [vmem:[%s3 + $0x140] sm:$0xff] %vm735, %v711
  %777 = vst.msk [vmem:[%s3 + $0x148] sm:$0xff] %vm735, %v712
  %778 = vst.msk [vmem:[%s3 + $0x150] sm:$0xff] %vm735, %v713
  %779 = vst.msk [vmem:[%s3 + $0x158] sm:$0xff] %vm735, %v714
  %780 = vst.msk [vmem:[%s3 + $0x160] sm:$0xff] %vm735, %v715
  %781 = vst.msk [vmem:[%s3 + $0x168] sm:$0xff] %vm735, %v716
  %782 = vst.msk [vmem:[%s3 + $0x170] sm:$0xff] %vm735, %v717
  %783 = vst.msk [vmem:[%s3 + $0x178] sm:$0xff] %vm735, %v718
  %784 = vst.msk [vmem:[%s3 + $0x180] sm:$0xff] %vm735, %v719
  %785 = vst.msk [vmem:[%s3 + $0x188] sm:$0xff] %vm735, %v720
  %786 = vst.msk [vmem:[%s3 + $0x190] sm:$0xff] %vm735, %v721
  %787 = vst.msk [vmem:[%s3 + $0x198] sm:$0xff] %vm735, %v722
  %788 = vst.msk [vmem:[%s3 + $0x1a0] sm:$0xff] %vm735, %v723
  %789 = vst.msk [vmem:[%s3 + $0x1a8] sm:$0xff] %vm735, %v724
  %790 = vst.msk [vmem:[%s3 + $0x1b0] sm:$0xff] %vm735, %v725
  %791 = vst.msk [vmem:[%s3 + $0x1b8] sm:$0xff] %vm735, %v726
  %792 = vst.msk [vmem:[%s3 + $0x1c0] sm:$0xff] %vm735, %v727
  %793 = vst.msk [vmem:[%s3 + $0x1c8] sm:$0xff] %vm735, %v728
  %794 = vst.msk [vmem:[%s3 + $0x1d0] sm:$0xff] %vm735, %v729
  %795 = vst.msk [vmem:[%s3 + $0x1d8] sm:$0xff] %vm735, %v730
  %796 = vst.msk [vmem:[%s3 + $0x1e0] sm:$0xff] %vm735, %v731
  %797 = vst.msk [vmem:[%s3 + $0x1e8] sm:$0xff] %vm735, %v732
  %798 = vst.msk [vmem:[%s3 + $0x1f0] sm:$0xff] %vm735, %v733
  %799 = vst.msk [vmem:[%s3 + $0x1f8] sm:$0xff] %vm735, %v734
  // Predicated region
  $region14: #{_lambda_.9} parent=0 // pred_check
    _
  $region15: #{_lambda_.9} parent=0 // pred_check_branch
    %801 = sbr.rel (0) target = $region17
  $region16: #{_lambda_.9} parent=0 // pred_region
    _
  $region17: #{_lambda_.9} parent=0 // pred_fallthru
    _
  // Predicated region
  $region18: #{_lambda_.9} parent=0 // pred_check
    _
  $region19: #{_lambda_.9} parent=0 // pred_check_branch
    %803 = sbr.rel (0) target = $region21
  $region20: #{_lambda_.9} parent=0 // pred_region
    _
  $region21: #{_lambda_.9} parent=0 // pred_fallthru
    _

// kernel: _lambda_.10
$region0: #{_lambda_.10}
  #allocation0 [shape = 'u32[]', space=smem, size = 0x4, offset = 0x4, fixed_abs, tag = 'smem constant byte address 0x4 - core index']
  #allocation1 [shape = 'u32[144,128]{1,0:T(1,128)}', space=vmem, size = 0x12000, scoped, tag = 'internal scratch']
  %s0 = inlined_call_operand.vmem [shape: f32[128,128], index: 0, kind: input, shape index: {}]
  %s1 = inlined_call_operand.vmem [shape: f32[128,64], index: 1, kind: input, shape index: {}]
  %s2 = inlined_call_operand.vmem [shape: f32[1,64], index: 2, kind: input, shape index: {}]
  %s3 = inlined_call_operand.vmem [shape: f32[128,64], index: 3, kind: output, shape index: {}]
  %s4 = sld [smem:[#allocation0]]
  $region22: #{_lambda_.10} parent=0
    _
  %s6 = ssub.s32 1, %s4
  %s7 = scalar_select 0, %s6, %s4
  // Predicated region
  $region2: #{_lambda_.10} parent=0 // pred_check
    _
  $region3: #{_lambda_.10} parent=0 // pred_check_branch
    %9 = sbr.rel (0) target = $region5
  $region4: #{_lambda_.10} parent=0 // pred_region
    _
  $region5: #{_lambda_.10} parent=0 // pred_fallthru
    _
  // Predicated region
  $region6: #{_lambda_.10} parent=0 // pred_check
    _
  $region7: #{_lambda_.10} parent=0 // pred_check_branch
    %11 = sbr.rel (0) target = $region9
  $region8: #{_lambda_.10} parent=0 // pred_region
    _
  $region9: #{_lambda_.10} parent=0 // pred_fallthru
    _
  // Predicated region
  $region10: #{_lambda_.10} parent=0 // pred_check
    _
  $region11: #{_lambda_.10} parent=0 // pred_check_branch
    %13 = sbr.rel (0) target = $region13
  $region12: #{_lambda_.10} parent=0 // pred_region
    _
  $region13: #{_lambda_.10} parent=0 // pred_fallthru
    _
  %v14 = vld [vmem:[%s0] sm:$0xff]
  %v15 = vld [vmem:[%s0 + $0x8] sm:$0xff]
  %v16 = vld [vmem:[%s0 + $0x10] sm:$0xff]
  %v17 = vld [vmem:[%s0 + $0x18] sm:$0xff]
  %v18 = vld [vmem:[%s0 + $0x20] sm:$0xff]
  %v19 = vld [vmem:[%s0 + $0x28] sm:$0xff]
  %v20 = vld [vmem:[%s0 + $0x30] sm:$0xff]
  %v21 = vld [vmem:[%s0 + $0x38] sm:$0xff]
  %v22 = vld [vmem:[%s0 + $0x40] sm:$0xff]
  %v23 = vld [vmem:[%s0 + $0x48] sm:$0xff]
  %v24 = vld [vmem:[%s0 + $0x50] sm:$0xff]
  %v25 = vld [vmem:[%s0 + $0x58] sm:$0xff]
  %v26 = vld [vmem:[%s0 + $0x60] sm:$0xff]
  %v27 = vld [vmem:[%s0 + $0x68] sm:$0xff]
  %v28 = vld [vmem:[%s0 + $0x70] sm:$0xff]
  %v29 = vld [vmem:[%s0 + $0x78] sm:$0xff]
  %v30 = vld [vmem:[%s1] sm:$0xff]
  %v31 = vld [vmem:[%s1 + $0x8] sm:$0xff]
  %v32 = vld [vmem:[%s1 + $0x10] sm:$0xff]
  %v33 = vld [vmem:[%s1 + $0x18] sm:$0xff]
  %v34 = vld [vmem:[%s1 + $0x20] sm:$0xff]
  %v35 = vld [vmem:[%s1 + $0x28] sm:$0xff]
  %v36 = vld [vmem:[%s1 + $0x30] sm:$0xff]
  %v37 = vld [vmem:[%s1 + $0x38] sm:$0xff]
  %v38 = vld [vmem:[%s1 + $0x40] sm:$0xff]
  %v39 = vld [vmem:[%s1 + $0x48] sm:$0xff]
  %v40 = vld [vmem:[%s1 + $0x50] sm:$0xff]
  %v41 = vld [vmem:[%s1 + $0x58] sm:$0xff]
  %v42 = vld [vmem:[%s1 + $0x60] sm:$0xff]
  %v43 = vld [vmem:[%s1 + $0x68] sm:$0xff]
  %v44 = vld [vmem:[%s1 + $0x70] sm:$0xff]
  %v45 = vld [vmem:[%s1 + $0x78] sm:$0xff]
  %v46 = vld [vmem:[%s2] sm:$0x1]
  %v48 = vlaneseq
  %v49 = vshrl.u32 %v48, 7
  %v50 = vsub.s32 0, %v49
  %v51 = vrot.slane %v46, %v50
  %53 = vmatprep.subr.mxu0 0.0
  %54 = vmatpush1.msra.mxu0 %v45
  %55 = vmatprep.subr.mxu0 0.0
  %56 = vmatpush1.msra.mxu0 %v44
  %57 = vmatprep.subr.mxu0 0.0
  %58 = vmatpush1.msra.mxu0 %v43
  %59 = vmatprep.subr.mxu0 0.0
  %60 = vmatpush1.msra.mxu0 %v42
  %61 = vmatprep.subr.mxu0 0.0
  %62 = vmatpush1.msra.mxu0 %v41
  %63 = vmatprep.subr.mxu0 0.0
  %64 = vmatpush1.msra.mxu0 %v40
  %65 = vmatprep.subr.mxu0 0.0
  %66 = vmatpush1.msra.mxu0 %v39
  %67 = vmatprep.subr.mxu0 0.0
  %68 = vmatpush1.msra.mxu0 %v38
  %69 = vmatprep.subr.mxu0 0.0
  %70 = vmatpush1.msra.mxu0 %v37
  %71 = vmatprep.subr.mxu0 0.0
  %72 = vmatpush1.msra.mxu0 %v36
  %73 = vmatprep.subr.mxu0 0.0
  %74 = vmatpush1.msra.mxu0 %v35
  %75 = vmatprep.subr.mxu0 0.0
  %76 = vmatpush1.msra.mxu0 %v34
  %77 = vmatprep.subr.mxu0 0.0
  %78 = vmatpush1.msra.mxu0 %v33
  %79 = vmatprep.subr.mxu0 0.0
  %80 = vmatpush1.msra.mxu0 %v32
  %81 = vmatprep.subr.mxu0 0.0
  %82 = vmatpush1.msra.mxu0 %v31
  %83 = vmatprep.subr.mxu0 0.0
  %84 = vmatpush1.msra.mxu0 %v30
  %85 = vmatprep.subr.mxu0 0.0
  %86 = vmatpush2.msra.mxu0 0.0
  %87 = vmatprep.subr.mxu0 0.0
  %88 = vmatpush2.msra.mxu0 0.0
  %89 = vmatprep.subr.mxu0 0.0
  %90 = vmatpush2.msra.mxu0 0.0
  %91 = vmatprep.subr.mxu0 0.0
  %92 = vmatpush2.msra.mxu0 0.0
  %93 = vmatprep.subr.mxu0 0.0
  %94 = vmatpush2.msra.mxu0 0.0
  %95 = vmatprep.subr.mxu0 0.0
  %96 = vmatpush2.msra.mxu0 0.0
  %97 = vmatprep.subr.mxu0 0.0
  %98 = vmatpush2.msra.mxu0 0.0
  %99 = vmatprep.subr.mxu0 0.0
  %100 = vmatpush2.msra.mxu0 0.0
  %101 = vmatprep.subr.mxu0 0.0
  %102 = vmatpush2.msra.mxu0 0.0
  %103 = vmatprep.subr.mxu0 0.0
  %104 = vmatpush2.msra.mxu0 0.0
  %105 = vmatprep.subr.mxu0 0.0
  %106 = vmatpush2.msra.mxu0 0.0
  %107 = vmatprep.subr.mxu0 0.0
  %108 = vmatpush2.msra.mxu0 0.0
  %109 = vmatprep.subr.mxu0 0.0
  %110 = vmatpush2.msra.mxu0 0.0
  %111 = vmatprep.subr.mxu0 0.0
  %112 = vmatpush2.msra.mxu0 0.0
  %113 = vmatprep.subr.mxu0 0.0
  %114 = vmatpush2.msra.mxu0 0.0
  %115 = vmatprep.subr.mxu0 0.0
  %116 = vmatpush2.msra.mxu0 0.0
  %117 = vmatprep.mubr.f32.mxu0 0.0
  %118 = vmatmul.mubr.f32.gmra.mxu0 %v14
  %v119 = vpop.f32.mrf.mxu0
  %v120 = vadd.f32 %v51, %v119
  %v121 = vpop.f32.mrf.mxu0
  %122 = vmatprep.mubr.f32.mxu0 0.0
  %123 = vmatmul.mubr.f32.gmra.mxu0 %v15
  %v124 = vpop.f32.mrf.mxu0
  %v125 = vadd.f32 %v51, %v124
  %v126 = vpop.f32.mrf.mxu0
  %127 = vmatprep.mubr.f32.mxu0 0.0
  %128 = vmatmul.mubr.f32.gmra.mxu0 %v16
  %v129 = vpop.f32.mrf.mxu0
  %v130 = vadd.f32 %v51, %v129
  %v131 = vpop.f32.mrf.mxu0
  %132 = vmatprep.mubr.f32.mxu0 0.0
  %133 = vmatmul.mubr.f32.gmra.mxu0 %v17
  %v134 = vpop.f32.mrf.mxu0
  %v135 = vadd.f32 %v51, %v134
  %v136 = vpop.f32.mrf.mxu0
  %137 = vmatprep.mubr.f32.mxu0 0.0
  %138 = vmatmul.mubr.f32.gmra.mxu0 %v18
  %v139 = vpop.f32.mrf.mxu0
  %v140 = vadd.f32 %v51, %v139
  %v141 = vpop.f32.mrf.mxu0
  %142 = vmatprep.mubr.f32.mxu0 0.0
  %143 = vmatmul.mubr.f32.gmra.mxu0 %v19
  %v144 = vpop.f32.mrf.mxu0
  %v145 = vadd.f32 %v51, %v144
  %v146 = vpop.f32.mrf.mxu0
  %147 = vmatprep.mubr.f32.mxu0 0.0
  %148 = vmatmul.mubr.f32.gmra.mxu0 %v20
  %v149 = vpop.f32.mrf.mxu0
  %v150 = vadd.f32 %v51, %v149
  %v151 = vpop.f32.mrf.mxu0
  %152 = vmatprep.mubr.f32.mxu0 0.0
  %153 = vmatmul.mubr.f32.gmra.mxu0 %v21
  %v154 = vpop.f32.mrf.mxu0
  %v155 = vadd.f32 %v51, %v154
  %v156 = vpop.f32.mrf.mxu0
  %157 = vmatprep.mubr.f32.mxu0 0.0
  %158 = vmatmul.mubr.f32.gmra.mxu0 %v22
  %v159 = vpop.f32.mrf.mxu0
  %v160 = vadd.f32 %v51, %v159
  %v161 = vpop.f32.mrf.mxu0
  %162 = vmatprep.mubr.f32.mxu0 0.0
  %163 = vmatmul.mubr.f32.gmra.mxu0 %v23
  %v164 = vpop.f32.mrf.mxu0
  %v165 = vadd.f32 %v51, %v164
  %v166 = vpop.f32.mrf.mxu0
  %167 = vmatprep.mubr.f32.mxu0 0.0
  %168 = vmatmul.mubr.f32.gmra.mxu0 %v24
  %v169 = vpop.f32.mrf.mxu0
  %v170 = vadd.f32 %v51, %v169
  %v171 = vpop.f32.mrf.mxu0
  %172 = vmatprep.mubr.f32.mxu0 0.0
  %173 = vmatmul.mubr.f32.gmra.mxu0 %v25
  %v174 = vpop.f32.mrf.mxu0
  %v175 = vadd.f32 %v51, %v174
  %v176 = vpop.f32.mrf.mxu0
  %177 = vmatprep.mubr.f32.mxu0 0.0
  %178 = vmatmul.mubr.f32.gmra.mxu0 %v26
  %v179 = vpop.f32.mrf.mxu0
  %v180 = vadd.f32 %v51, %v179
  %v181 = vpop.f32.mrf.mxu0
  %182 = vmatprep.mubr.f32.mxu0 0.0
  %183 = vmatmul.mubr.f32.gmra.mxu0 %v27
  %v184 = vpop.f32.mrf.mxu0
  %v185 = vadd.f32 %v51, %v184
  %v186 = vpop.f32.mrf.mxu0
  %187 = vmatprep.mubr.f32.mxu0 0.0
  %188 = vmatmul.mubr.f32.gmra.mxu0 %v28
  %v189 = vpop.f32.mrf.mxu0
  %v190 = vadd.f32 %v51, %v189
  %v191 = vpop.f32.mrf.mxu0
  %192 = vmatprep.mubr.f32.mxu0 0.0
  %193 = vmatmul.mubr.f32.gmra.mxu0 %v29
  %v194 = vpop.f32.mrf.mxu0
  %v195 = vadd.f32 %v51, %v194
  %v196 = vpop.f32.mrf.mxu0
  %197 = vdwg.mxu0
  %v198 = vmax.f32 %v120, 0.0
  %v199 = vmax.f32 %v125, 0.0
  %v200 = vmax.f32 %v130, 0.0
  %v201 = vmax.f32 %v135, 0.0
  %v202 = vmax.f32 %v140, 0.0
  %v203 = vmax.f32 %v145, 0.0
  %v204 = vmax.f32 %v150, 0.0
  %v205 = vmax.f32 %v155, 0.0
  %v206 = vmax.f32 %v160, 0.0
  %v207 = vmax.f32 %v165, 0.0
  %v208 = vmax.f32 %v170, 0.0
  %v209 = vmax.f32 %v175, 0.0
  %v210 = vmax.f32 %v180, 0.0
  %v211 = vmax.f32 %v185, 0.0
  %v212 = vmax.f32 %v190, 0.0
  %v213 = vmax.f32 %v195, 0.0
  %vm214 = vcmask 523264
  %215 = vst.msk [vmem:[%s3] sm:$0xff] %vm214, %v198
  %216 = vst.msk [vmem:[%s3 + $0x8] sm:$0xff] %vm214, %v199
  %217 = vst.msk [vmem:[%s3 + $0x10] sm:$0xff] %vm214, %v200
  %218 = vst.msk [vmem:[%s3 + $0x18] sm:$0xff] %vm214, %v201
  %219 = vst.msk [vmem:[%s3 + $0x20] sm:$0xff] %vm214, %v202
  %220 = vst.msk [vmem:[%s3 + $0x28] sm:$0xff] %vm214, %v203
  %221 = vst.msk [vmem:[%s3 + $0x30] sm:$0xff] %vm214, %v204
  %222 = vst.msk [vmem:[%s3 + $0x38] sm:$0xff] %vm214, %v205
  %223 = vst.msk [vmem:[%s3 + $0x40] sm:$0xff] %vm214, %v206
  %224 = vst.msk [vmem:[%s3 + $0x48] sm:$0xff] %vm214, %v207
  %225 = vst.msk [vmem:[%s3 + $0x50] sm:$0xff] %vm214, %v208
  %226 = vst.msk [vmem:[%s3 + $0x58] sm:$0xff] %vm214, %v209
  %227 = vst.msk [vmem:[%s3 + $0x60] sm:$0xff] %vm214, %v210
  %228 = vst.msk [vmem:[%s3 + $0x68] sm:$0xff] %vm214, %v211
  %229 = vst.msk [vmem:[%s3 + $0x70] sm:$0xff] %vm214, %v212
  %230 = vst.msk [vmem:[%s3 + $0x78] sm:$0xff] %vm214, %v213
  // Predicated region
  $region14: #{_lambda_.10} parent=0 // pred_check
    _
  $region15: #{_lambda_.10} parent=0 // pred_check_branch
    %232 = sbr.rel (0) target = $region17
  $region16: #{_lambda_.10} parent=0 // pred_region
    _
  $region17: #{_lambda_.10} parent=0 // pred_fallthru
    _
  // Predicated region
  $region18: #{_lambda_.10} parent=0 // pred_check
    _
  $region19: #{_lambda_.10} parent=0 // pred_check_branch
    %234 = sbr.rel (0) target = $region21
  $region20: #{_lambda_.10} parent=0 // pred_region
    _
  $region21: #{_lambda_.10} parent=0 // pred_fallthru
    _

// kernel: _lambda_.11
$region0: #{_lambda_.11}
  #allocation0 [shape = 'u32[]', space=smem, size = 0x4, offset = 0x4, fixed_abs, tag = 'smem constant byte address 0x4 - core index']
  #allocation1 [shape = 'u32[144,128]{1,0:T(1,128)}', space=vmem, size = 0x12000, scoped, tag = 'internal scratch']
  %s0 = inlined_call_operand.vmem [shape: f32[32,256], index: 0, kind: input, shape index: {}]
  %s1 = inlined_call_operand.vmem [shape: f32[256,160], index: 1, kind: input, shape index: {}]
  %s2 = inlined_call_operand.vmem [shape: f32[1,160], index: 2, kind: input, shape index: {}]
  %s3 = inlined_call_operand.vmem [shape: f32[32,160], index: 3, kind: output, shape index: {}]
  %s4 = sld [smem:[#allocation0]]
  $region22: #{_lambda_.11} parent=0
    _
  %s6 = ssub.s32 1, %s4
  %s7 = scalar_select 0, %s6, %s4
  // Predicated region
  $region2: #{_lambda_.11} parent=0 // pred_check
    _
  $region3: #{_lambda_.11} parent=0 // pred_check_branch
    %9 = sbr.rel (0) target = $region5
  $region4: #{_lambda_.11} parent=0 // pred_region
    _
  $region5: #{_lambda_.11} parent=0 // pred_fallthru
    _
  // Predicated region
  $region6: #{_lambda_.11} parent=0 // pred_check
    _
  $region7: #{_lambda_.11} parent=0 // pred_check_branch
    %11 = sbr.rel (0) target = $region9
  $region8: #{_lambda_.11} parent=0 // pred_region
    _
  $region9: #{_lambda_.11} parent=0 // pred_fallthru
    _
  // Predicated region
  $region10: #{_lambda_.11} parent=0 // pred_check
    _
  $region11: #{_lambda_.11} parent=0 // pred_check_branch
    %13 = sbr.rel (0) target = $region13
  $region12: #{_lambda_.11} parent=0 // pred_region
    _
  $region13: #{_lambda_.11} parent=0 // pred_fallthru
    _
  %v14 = vld [vmem:[%s0] sm:$0xff]
  %v15 = vld [vmem:[%s0 + $0x8] sm:$0xff]
  %v16 = vld [vmem:[%s0 + $0x10] sm:$0xff]
  %v17 = vld [vmem:[%s0 + $0x18] sm:$0xff]
  %v18 = vld [vmem:[%s0 + $0x20] sm:$0xff]
  %v19 = vld [vmem:[%s0 + $0x28] sm:$0xff]
  %v20 = vld [vmem:[%s0 + $0x30] sm:$0xff]
  %v21 = vld [vmem:[%s0 + $0x38] sm:$0xff]
  %v22 = vld [vmem:[%s1] sm:$0xff]
  %v23 = vld [vmem:[%s1 + $0x8] sm:$0xff]
  %v24 = vld [vmem:[%s1 + $0x10] sm:$0xff]
  %v25 = vld [vmem:[%s1 + $0x18] sm:$0xff]
  %v26 = vld [vmem:[%s1 + $0x20] sm:$0xff]
  %v27 = vld [vmem:[%s1 + $0x28] sm:$0xff]
  %v28 = vld [vmem:[%s1 + $0x30] sm:$0xff]
  %v29 = vld [vmem:[%s1 + $0x38] sm:$0xff]
  %v30 = vld [vmem:[%s1 + $0x40] sm:$0xff]
  %v31 = vld [vmem:[%s1 + $0x48] sm:$0xff]
  %v32 = vld [vmem:[%s1 + $0x50] sm:$0xff]
  %v33 = vld [vmem:[%s1 + $0x58] sm:$0xff]
  %v34 = vld [vmem:[%s1 + $0x60] sm:$0xff]
  %v35 = vld [vmem:[%s1 + $0x68] sm:$0xff]
  %v36 = vld [vmem:[%s1 + $0x70] sm:$0xff]
  %v37 = vld [vmem:[%s1 + $0x78] sm:$0xff]
  %v38 = vld [vmem:[%s1 + $0x80] sm:$0xff]
  %v39 = vld [vmem:[%s1 + $0x88] sm:$0xff]
  %v40 = vld [vmem:[%s1 + $0x90] sm:$0xff]
  %v41 = vld [vmem:[%s1 + $0x98] sm:$0xff]
  %v42 = vld [vmem:[%s1 + $0xa0] sm:$0xff]
  %v43 = vld [vmem:[%s1 + $0xa8] sm:$0xff]
  %v44 = vld [vmem:[%s1 + $0xb0] sm:$0xff]
  %v45 = vld [vmem:[%s1 + $0xb8] sm:$0xff]
  %v46 = vld [vmem:[%s1 + $0xc0] sm:$0xff]
  %v47 = vld [vmem:[%s1 + $0xc8] sm:$0xff]
  %v48 = vld [vmem:[%s1 + $0xd0] sm:$0xff]
  %v49 = vld [vmem:[%s1 + $0xd8] sm:$0xff]
  %v50 = vld [vmem:[%s1 + $0xe0] sm:$0xff]
  %v51 = vld [vmem:[%s1 + $0xe8] sm:$0xff]
  %v52 = vld [vmem:[%s1 + $0xf0] sm:$0xff]
  %v53 = vld [vmem:[%s1 + $0xf8] sm:$0xff]
  %v54 = vld [vmem:[%s1 + $0x100] sm:$0xff]
  %v55 = vld [vmem:[%s1 + $0x108] sm:$0xff]
  %v56 = vld [vmem:[%s1 + $0x110] sm:$0xff]
  %v57 = vld [vmem:[%s1 + $0x118] sm:$0xff]
  %v58 = vld [vmem:[%s1 + $0x120] sm:$0xff]
  %v59 = vld [vmem:[%s1 + $0x128] sm:$0xff]
  %v60 = vld [vmem:[%s1 + $0x130] sm:$0xff]
  %v61 = vld [vmem:[%s1 + $0x138] sm:$0xff]
  %v62 = vld [vmem:[%s1 + $0x140] sm:$0xff]
  %v63 = vld [vmem:[%s1 + $0x148] sm:$0xff]
  %v64 = vld [vmem:[%s1 + $0x150] sm:$0xff]
  %v65 = vld [vmem:[%s1 + $0x158] sm:$0xff]
  %v66 = vld [vmem:[%s1 + $0x160] sm:$0xff]
  %v67 = vld [vmem:[%s1 + $0x168] sm:$0xff]
  %v68 = vld [vmem:[%s1 + $0x170] sm:$0xff]
  %v69 = vld [vmem:[%s1 + $0x178] sm:$0xff]
  %v70 = vld [vmem:[%s1 + $0x180] sm:$0xff]
  %v71 = vld [vmem:[%s1 + $0x188] sm:$0xff]
  %v72 = vld [vmem:[%s1 + $0x190] sm:$0xff]
  %v73 = vld [vmem:[%s1 + $0x198] sm:$0xff]
  %v74 = vld [vmem:[%s1 + $0x1a0] sm:$0xff]
  %v75 = vld [vmem:[%s1 + $0x1a8] sm:$0xff]
  %v76 = vld [vmem:[%s1 + $0x1b0] sm:$0xff]
  %v77 = vld [vmem:[%s1 + $0x1b8] sm:$0xff]
  %v78 = vld [vmem:[%s1 + $0x1c0] sm:$0xff]
  %v79 = vld [vmem:[%s1 + $0x1c8] sm:$0xff]
  %v80 = vld [vmem:[%s1 + $0x1d0] sm:$0xff]
  %v81 = vld [vmem:[%s1 + $0x1d8] sm:$0xff]
  %v82 = vld [vmem:[%s1 + $0x1e0] sm:$0xff]
  %v83 = vld [vmem:[%s1 + $0x1e8] sm:$0xff]
  %v84 = vld [vmem:[%s1 + $0x1f0] sm:$0xff]
  %v85 = vld [vmem:[%s1 + $0x1f8] sm:$0xff]
  %v86 = vld [vmem:[%s2] sm:$0x3]
  %v88 = vlaneseq
  %v89 = vshrl.u32 %v88, 7
  %v90 = vsub.s32 0, %v89
  %v91 = vrot.slane %v86, %v90
  %v92 = vlaneseq
  %v93 = vshrl.u32 %v92, 7
  %v94 = vsub.s32 1, %v93
  %v95 = vrot.slane %v86, %v94
  %98 = vmatprep.subr.mxu0 %v53
  %99 = vmatpush1.msra.mxu0 %v52
  %100 = vmatprep.subr.mxu0 %v51
  %101 = vmatpush1.msra.mxu0 %v50
  %102 = vmatprep.subr.mxu0 %v49
  %103 = vmatpush1.msra.mxu0 %v48
  %104 = vmatprep.subr.mxu0 %v47
  %105 = vmatpush1.msra.mxu0 %v46
  %106 = vmatprep.subr.mxu0 %v45
  %107 = vmatpush1.msra.mxu0 %v44
  %108 = vmatprep.subr.mxu0 %v43
  %109 = vmatpush1.msra.mxu0 %v42
  %110 = vmatprep.subr.mxu0 %v41
  %111 = vmatpush1.msra.mxu0 %v40
  %112 = vmatprep.subr.mxu0 %v39
  %113 = vmatpush1.msra.mxu0 %v38
  %114 = vmatprep.subr.mxu0 %v37
  %115 = vmatpush1.msra.mxu0 %v36
  %116 = vmatprep.subr.mxu0 %v35
  %117 = vmatpush1.msra.mxu0 %v34
  %118 = vmatprep.subr.mxu0 %v33
  %119 = vmatpush1.msra.mxu0 %v32
  %120 = vmatprep.subr.mxu0 %v31
  %121 = vmatpush1.msra.mxu0 %v30
  %122 = vmatprep.subr.mxu0 %v29
  %123 = vmatpush1.msra.mxu0 %v28
  %124 = vmatprep.subr.mxu0 %v27
  %125 = vmatpush1.msra.mxu0 %v26
  %126 = vmatprep.subr.mxu0 %v25
  %127 = vmatpush1.msra.mxu0 %v24
  %128 = vmatprep.subr.mxu0 %v23
  %129 = vmatpush1.msra.mxu0 %v22
  %130 = vmatprep.subr.mxu0 %v85
  %131 = vmatpush2.msra.mxu0 %v84
  %132 = vmatprep.subr.mxu0 %v83
  %133 = vmatpush2.msra.mxu0 %v82
  %134 = vmatprep.subr.mxu0 %v81
  %135 = vmatpush2.msra.mxu0 %v80
  %136 = vmatprep.subr.mxu0 %v79
  %137 = vmatpush2.msra.mxu0 %v78
  %138 = vmatprep.subr.mxu0 %v77
  %139 = vmatpush2.msra.mxu0 %v76
  %140 = vmatprep.subr.mxu0 %v75
  %141 = vmatpush2.msra.mxu0 %v74
  %142 = vmatprep.subr.mxu0 %v73
  %143 = vmatpush2.msra.mxu0 %v72
  %144 = vmatprep.subr.mxu0 %v71
  %145 = vmatpush2.msra.mxu0 %v70
  %146 = vmatprep.subr.mxu0 %v69
  %147 = vmatpush2.msra.mxu0 %v68
  %148 = vmatprep.subr.mxu0 %v67
  %149 = vmatpush2.msra.mxu0 %v66
  %150 = vmatprep.subr.mxu0 %v65
  %151 = vmatpush2.msra.mxu0 %v64
  %152 = vmatprep.subr.mxu0 %v63
  %153 = vmatpush2.msra.mxu0 %v62
  %154 = vmatprep.subr.mxu0 %v61
  %155 = vmatpush2.msra.mxu0 %v60
  %156 = vmatprep.subr.mxu0 %v59
  %157 = vmatpush2.msra.mxu0 %v58
  %158 = vmatprep.subr.mxu0 %v57
  %159 = vmatpush2.msra.mxu0 %v56
  %160 = vmatprep.subr.mxu0 %v55
  %161 = vmatpush2.msra.mxu0 %v54
  %162 = vmatprep.mubr.f32.mxu0 %v15
  %163 = vmatmul.mubr.f32.gmra.mxu0 %v14
  %v164 = vpop.f32.mrf.mxu0
  %v165 = vadd.f32 %v91, %v164
  %v166 = vpop.f32.mrf.mxu0
  %v167 = vadd.f32 %v95, %v166
  %168 = vmatprep.mubr.f32.mxu0 %v17
  %169 = vmatmul.mubr.f32.gmra.mxu0 %v16
  %v170 = vpop.f32.mrf.mxu0
  %v171 = vadd.f32 %v91, %v170
  %v172 = vpop.f32.mrf.mxu0
  %v173 = vadd.f32 %v95, %v172
  %174 = vmatprep.mubr.f32.mxu0 %v19
  %175 = vmatmul.mubr.f32.gmra.mxu0 %v18
  %v176 = vpop.f32.mrf.mxu0
  %v177 = vadd.f32 %v91, %v176
  %v178 = vpop.f32.mrf.mxu0
  %v179 = vadd.f32 %v95, %v178
  %180 = vmatprep.mubr.f32.mxu0 %v21
  %181 = vmatmul.mubr.f32.gmra.mxu0 %v20
  %v182 = vpop.f32.mrf.mxu0
  %v183 = vadd.f32 %v91, %v182
  %v184 = vpop.f32.mrf.mxu0
  %v185 = vadd.f32 %v95, %v184
  %186 = vdwg.mxu0
  %v187 = vmax.f32 %v165, 0.0
  %v188 = vmax.f32 %v167, 0.0
  %v189 = vmax.f32 %v171, 0.0
  %v190 = vmax.f32 %v173, 0.0
  %v191 = vmax.f32 %v177, 0.0
  %v192 = vmax.f32 %v179, 0.0
  %v193 = vmax.f32 %v183, 0.0
  %v194 = vmax.f32 %v185, 0.0
  %195 = vst [vmem:[%s3] sm:$0xff] %v187
  %vm196 = vcmask 261120
  %197 = vst.msk [vmem:[%s3 + $0x8] sm:$0xff] %vm196, %v188
  %198 = vst [vmem:[%s3 + $0x10] sm:$0xff] %v189
  %199 = vst.msk [vmem:[%s3 + $0x18] sm:$0xff] %vm196, %v190
  %200 = vst [vmem:[%s3 + $0x20] sm:$0xff] %v191
  %201 = vst.msk [vmem:[%s3 + $0x28] sm:$0xff] %vm196, %v192
  %202 = vst [vmem:[%s3 + $0x30] sm:$0xff] %v193
  %203 = vst.msk [vmem:[%s3 + $0x38] sm:$0xff] %vm196, %v194
  // Predicated region
  $region14: #{_lambda_.11} parent=0 // pred_check
    _
  $region15: #{_lambda_.11} parent=0 // pred_check_branch
    %205 = sbr.rel (0) target = $region17
  $region16: #{_lambda_.11} parent=0 // pred_region
    _
  $region17: #{_lambda_.11} parent=0 // pred_fallthru
    _
  // Predicated region
  $region18: #{_lambda_.11} parent=0 // pred_check
    _
  $region19: #{_lambda_.11} parent=0 // pred_check_branch
    %207 = sbr.rel (0) target = $region21
  $region20: #{_lambda_.11} parent=0 // pred_region
    _
  $region21: #{_lambda_.11} parent=0 // pred_fallthru
    _

// kernel: _lambda_.12
$region0: #{_lambda_.12}
  #allocation0 [shape = 'u32[]', space=smem, size = 0x4, offset = 0x4, fixed_abs, tag = 'smem constant byte address 0x4 - core index']
  #allocation1 [shape = 'u32[144,128]{1,0:T(1,128)}', space=vmem, size = 0x12000, scoped, tag = 'internal scratch']
  %s0 = inlined_call_operand.vmem [shape: f32[8,640], index: 0, kind: input, shape index: {}]
  %s1 = inlined_call_operand.vmem [shape: f32[640,400], index: 1, kind: input, shape index: {}]
  %s2 = inlined_call_operand.vmem [shape: f32[1,400], index: 2, kind: input, shape index: {}]
  %s3 = inlined_call_operand.vmem [shape: f32[8,400], index: 3, kind: output, shape index: {}]
  %s4 = sld [smem:[#allocation0]]
  $region22: #{_lambda_.12} parent=0
    _
  %s6 = ssub.s32 1, %s4
  %s7 = scalar_select 0, %s6, %s4
  // Predicated region
  $region2: #{_lambda_.12} parent=0 // pred_check
    _
  $region3: #{_lambda_.12} parent=0 // pred_check_branch
    %9 = sbr.rel (0) target = $region5
  $region4: #{_lambda_.12} parent=0 // pred_region
    _
  $region5: #{_lambda_.12} parent=0 // pred_fallthru
    _
  // Predicated region
  $region6: #{_lambda_.12} parent=0 // pred_check
    _
  $region7: #{_lambda_.12} parent=0 // pred_check_branch
    %11 = sbr.rel (0) target = $region9
  $region8: #{_lambda_.12} parent=0 // pred_region
    _
  $region9: #{_lambda_.12} parent=0 // pred_fallthru
    _
  // Predicated region
  $region10: #{_lambda_.12} parent=0 // pred_check
    _
  $region11: #{_lambda_.12} parent=0 // pred_check_branch
    %13 = sbr.rel (0) target = $region13
  $region12: #{_lambda_.12} parent=0 // pred_region
    _
  $region13: #{_lambda_.12} parent=0 // pred_fallthru
    _
  %v14 = vld [vmem:[%s0] sm:$0xff]
  %v15 = vld [vmem:[%s0 + $0x8] sm:$0xff]
  %v16 = vld [vmem:[%s0 + $0x10] sm:$0xff]
  %v17 = vld [vmem:[%s0 + $0x18] sm:$0xff]
  %v18 = vld [vmem:[%s0 + $0x20] sm:$0xff]
  %v19 = vld [vmem:[%s1] sm:$0xff]
  %v20 = vld [vmem:[%s1 + $0x8] sm:$0xff]
  %v21 = vld [vmem:[%s1 + $0x10] sm:$0xff]
  %v22 = vld [vmem:[%s1 + $0x18] sm:$0xff]
  %v23 = vld [vmem:[%s1 + $0x20] sm:$0xff]
  %v24 = vld [vmem:[%s1 + $0x28] sm:$0xff]
  %v25 = vld [vmem:[%s1 + $0x30] sm:$0xff]
  %v26 = vld [vmem:[%s1 + $0x38] sm:$0xff]
  %v27 = vld [vmem:[%s1 + $0x40] sm:$0xff]
  %v28 = vld [vmem:[%s1 + $0x48] sm:$0xff]
  %v29 = vld [vmem:[%s1 + $0x50] sm:$0xff]
  %v30 = vld [vmem:[%s1 + $0x58] sm:$0xff]
  %v31 = vld [vmem:[%s1 + $0x60] sm:$0xff]
  %v32 = vld [vmem:[%s1 + $0x68] sm:$0xff]
  %v33 = vld [vmem:[%s1 + $0x70] sm:$0xff]
  %v34 = vld [vmem:[%s1 + $0x78] sm:$0xff]
  %v35 = vld [vmem:[%s1 + $0x80] sm:$0xff]
  %v36 = vld [vmem:[%s1 + $0x88] sm:$0xff]
  %v37 = vld [vmem:[%s1 + $0x90] sm:$0xff]
  %v38 = vld [vmem:[%s1 + $0x98] sm:$0xff]
  %v39 = vld [vmem:[%s1 + $0xa0] sm:$0xff]
  %v40 = vld [vmem:[%s1 + $0xa8] sm:$0xff]
  %v41 = vld [vmem:[%s1 + $0xb0] sm:$0xff]
  %v42 = vld [vmem:[%s1 + $0xb8] sm:$0xff]
  %v43 = vld [vmem:[%s1 + $0xc0] sm:$0xff]
  %v44 = vld [vmem:[%s1 + $0xc8] sm:$0xff]
  %v45 = vld [vmem:[%s1 + $0xd0] sm:$0xff]
  %v46 = vld [vmem:[%s1 + $0xd8] sm:$0xff]
  %v47 = vld [vmem:[%s1 + $0xe0] sm:$0xff]
  %v48 = vld [vmem:[%s1 + $0xe8] sm:$0xff]
  %v49 = vld [vmem:[%s1 + $0xf0] sm:$0xff]
  %v50 = vld [vmem:[%s1 + $0xf8] sm:$0xff]
  %v51 = vld [vmem:[%s1 + $0x100] sm:$0xff]
  %v52 = vld [vmem:[%s1 + $0x108] sm:$0xff]
  %v53 = vld [vmem:[%s1 + $0x110] sm:$0xff]
  %v54 = vld [vmem:[%s1 + $0x118] sm:$0xff]
  %v55 = vld [vmem:[%s1 + $0x120] sm:$0xff]
  %v56 = vld [vmem:[%s1 + $0x128] sm:$0xff]
  %v57 = vld [vmem:[%s1 + $0x130] sm:$0xff]
  %v58 = vld [vmem:[%s1 + $0x138] sm:$0xff]
  %v59 = vld [vmem:[%s1 + $0x140] sm:$0xff]
  %v60 = vld [vmem:[%s1 + $0x148] sm:$0xff]
  %v61 = vld [vmem:[%s1 + $0x150] sm:$0xff]
  %v62 = vld [vmem:[%s1 + $0x158] sm:$0xff]
  %v63 = vld [vmem:[%s1 + $0x160] sm:$0xff]
  %v64 = vld [vmem:[%s1 + $0x168] sm:$0xff]
  %v65 = vld [vmem:[%s1 + $0x170] sm:$0xff]
  %v66 = vld [vmem:[%s1 + $0x178] sm:$0xff]
  %v67 = vld [vmem:[%s1 + $0x180] sm:$0xff]
  %v68 = vld [vmem:[%s1 + $0x188] sm:$0xff]
  %v69 = vld [vmem:[%s1 + $0x190] sm:$0xff]
  %v70 = vld [vmem:[%s1 + $0x198] sm:$0xff]
  %v71 = vld [vmem:[%s1 + $0x1a0] sm:$0xff]
  %v72 = vld [vmem:[%s1 + $0x1a8] sm:$0xff]
  %v73 = vld [vmem:[%s1 + $0x1b0] sm:$0xff]
  %v74 = vld [vmem:[%s1 + $0x1b8] sm:$0xff]
  %v75 = vld [vmem:[%s1 + $0x1c0] sm:$0xff]
  %v76 = vld [vmem:[%s1 + $0x1c8] sm:$0xff]
  %v77 = vld [vmem:[%s1 + $0x1d0] sm:$0xff]
  %v78 = vld [vmem:[%s1 + $0x1d8] sm:$0xff]
  %v79 = vld [vmem:[%s1 + $0x1e0] sm:$0xff]
  %v80 = vld [vmem:[%s1 + $0x1e8] sm:$0xff]
  %v81 = vld [vmem:[%s1 + $0x1f0] sm:$0xff]
  %v82 = vld [vmem:[%s1 + $0x1f8] sm:$0xff]
  %v83 = vld [vmem:[%s1 + $0x200] sm:$0xff]
  %v84 = vld [vmem:[%s1 + $0x208] sm:$0xff]
  %v85 = vld [vmem:[%s1 + $0x210] sm:$0xff]
  %v86 = vld [vmem:[%s1 + $0x218] sm:$0xff]
  %v87 = vld [vmem:[%s1 + $0x220] sm:$0xff]
  %v88 = vld [vmem:[%s1 + $0x228] sm:$0xff]
  %v89 = vld [vmem:[%s1 + $0x230] sm:$0xff]
  %v90 = vld [vmem:[%s1 + $0x238] sm:$0xff]
  %v91 = vld [vmem:[%s1 + $0x240] sm:$0xff]
  %v92 = vld [vmem:[%s1 + $0x248] sm:$0xff]
  %v93 = vld [vmem:[%s1 + $0x250] sm:$0xff]
  %v94 = vld [vmem:[%s1 + $0x258] sm:$0xff]
  %v95 = vld [vmem:[%s1 + $0x260] sm:$0xff]
  %v96 = vld [vmem:[%s1 + $0x268] sm:$0xff]
  %v97 = vld [vmem:[%s1 + $0x270] sm:$0xff]
  %v98 = vld [vmem:[%s1 + $0x278] sm:$0xff]
  %v99 = vld [vmem:[%s1 + $0x280] sm:$0xff]
  %v100 = vld [vmem:[%s1 + $0x288] sm:$0xff]
  %v101 = vld [vmem:[%s1 + $0x290] sm:$0xff]
  %v102 = vld [vmem:[%s1 + $0x298] sm:$0xff]
  %v103 = vld [vmem:[%s1 + $0x2a0] sm:$0xff]
  %v104 = vld [vmem:[%s1 + $0x2a8] sm:$0xff]
  %v105 = vld [vmem:[%s1 + $0x2b0] sm:$0xff]
  %v106 = vld [vmem:[%s1 + $0x2b8] sm:$0xff]
  %v107 = vld [vmem:[%s1 + $0x2c0] sm:$0xff]
  %v108 = vld [vmem:[%s1 + $0x2c8] sm:$0xff]
  %v109 = vld [vmem:[%s1 + $0x2d0] sm:$0xff]
  %v110 = vld [vmem:[%s1 + $0x2d8] sm:$0xff]
  %v111 = vld [vmem:[%s1 + $0x2e0] sm:$0xff]
  %v112 = vld [vmem:[%s1 + $0x2e8] sm:$0xff]
  %v113 = vld [vmem:[%s1 + $0x2f0] sm:$0xff]
  %v114 = vld [vmem:[%s1 + $0x2f8] sm:$0xff]
  %v115 = vld [vmem:[%s1 + $0x300] sm:$0xff]
  %v116 = vld [vmem:[%s1 + $0x308] sm:$0xff]
  %v117 = vld [vmem:[%s1 + $0x310] sm:$0xff]
  %v118 = vld [vmem:[%s1 + $0x318] sm:$0xff]
  %v119 = vld [vmem:[%s1 + $0x320] sm:$0xff]
  %v120 = vld [vmem:[%s1 + $0x328] sm:$0xff]
  %v121 = vld [vmem:[%s1 + $0x330] sm:$0xff]
  %v122 = vld [vmem:[%s1 + $0x338] sm:$0xff]
  %v123 = vld [vmem:[%s1 + $0x340] sm:$0xff]
  %v124 = vld [vmem:[%s1 + $0x348] sm:$0xff]
  %v125 = vld [vmem:[%s1 + $0x350] sm:$0xff]
  %v126 = vld [vmem:[%s1 + $0x358] sm:$0xff]
  %v127 = vld [vmem:[%s1 + $0x360] sm:$0xff]
  %v128 = vld [vmem:[%s1 + $0x368] sm:$0xff]
  %v129 = vld [vmem:[%s1 + $0x370] sm:$0xff]
  %v130 = vld [vmem:[%s1 + $0x378] sm:$0xff]
  %v131 = vld [vmem:[%s1 + $0x380] sm:$0xff]
  %v132 = vld [vmem:[%s1 + $0x388] sm:$0xff]
  %v133 = vld [vmem:[%s1 + $0x390] sm:$0xff]
  %v134 = vld [vmem:[%s1 + $0x398] sm:$0xff]
  %v135 = vld [vmem:[%s1 + $0x3a0] sm:$0xff]
  %v136 = vld [vmem:[%s1 + $0x3a8] sm:$0xff]
  %v137 = vld [vmem:[%s1 + $0x3b0] sm:$0xff]
  %v138 = vld [vmem:[%s1 + $0x3b8] sm:$0xff]
  %v139 = vld [vmem:[%s1 + $0x3c0] sm:$0xff]
  %v140 = vld [vmem:[%s1 + $0x3c8] sm:$0xff]
  %v141 = vld [vmem:[%s1 + $0x3d0] sm:$0xff]
  %v142 = vld [vmem:[%s1 + $0x3d8] sm:$0xff]
  %v143 = vld [vmem:[%s1 + $0x3e0] sm:$0xff]
  %v144 = vld [vmem:[%s1 + $0x3e8] sm:$0xff]
  %v145 = vld [vmem:[%s1 + $0x3f0] sm:$0xff]
  %v146 = vld [vmem:[%s1 + $0x3f8] sm:$0xff]
  %v147 = vld [vmem:[%s1 + $0x400] sm:$0xff]
  %v148 = vld [vmem:[%s1 + $0x408] sm:$0xff]
  %v149 = vld [vmem:[%s1 + $0x410] sm:$0xff]
  %v150 = vld [vmem:[%s1 + $0x418] sm:$0xff]
  %v151 = vld [vmem:[%s1 + $0x420] sm:$0xff]
  %v152 = vld [vmem:[%s1 + $0x428] sm:$0xff]
  %v153 = vld [vmem:[%s1 + $0x430] sm:$0xff]
  %v154 = vld [vmem:[%s1 + $0x438] sm:$0xff]
  %v155 = vld [vmem:[%s1 + $0x440] sm:$0xff]
  %v156 = vld [vmem:[%s1 + $0x448] sm:$0xff]
  %v157 = vld [vmem:[%s1 + $0x450] sm:$0xff]
  %v158 = vld [vmem:[%s1 + $0x458] sm:$0xff]
  %v159 = vld [vmem:[%s1 + $0x460] sm:$0xff]
  %v160 = vld [vmem:[%s1 + $0x468] sm:$0xff]
  %v161 = vld [vmem:[%s1 + $0x470] sm:$0xff]
  %v162 = vld [vmem:[%s1 + $0x478] sm:$0xff]
  %v163 = vld [vmem:[%s1 + $0x480] sm:$0xff]
  %v164 = vld [vmem:[%s1 + $0x488] sm:$0xff]
  %v165 = vld [vmem:[%s1 + $0x490] sm:$0xff]
  %v166 = vld [vmem:[%s1 + $0x498] sm:$0xff]
  %v167 = vld [vmem:[%s1 + $0x4a0] sm:$0xff]
  %v168 = vld [vmem:[%s1 + $0x4a8] sm:$0xff]
  %v169 = vld [vmem:[%s1 + $0x4b0] sm:$0xff]
  %v170 = vld [vmem:[%s1 + $0x4b8] sm:$0xff]
  %v171 = vld [vmem:[%s1 + $0x4c0] sm:$0xff]
  %v172 = vld [vmem:[%s1 + $0x4c8] sm:$0xff]
  %v173 = vld [vmem:[%s1 + $0x4d0] sm:$0xff]
  %v174 = vld [vmem:[%s1 + $0x4d8] sm:$0xff]
  %v175 = vld [vmem:[%s1 + $0x4e0] sm:$0xff]
  %v176 = vld [vmem:[%s1 + $0x4e8] sm:$0xff]
  %v177 = vld [vmem:[%s1 + $0x4f0] sm:$0xff]
  %v178 = vld [vmem:[%s1 + $0x4f8] sm:$0xff]
  %v179 = vld [vmem:[%s1 + $0x500] sm:$0xff]
  %v180 = vld [vmem:[%s1 + $0x508] sm:$0xff]
  %v181 = vld [vmem:[%s1 + $0x510] sm:$0xff]
  %v182 = vld [vmem:[%s1 + $0x518] sm:$0xff]
  %v183 = vld [vmem:[%s1 + $0x520] sm:$0xff]
  %v184 = vld [vmem:[%s1 + $0x528] sm:$0xff]
  %v185 = vld [vmem:[%s1 + $0x530] sm:$0xff]
  %v186 = vld [vmem:[%s1 + $0x538] sm:$0xff]
  %v187 = vld [vmem:[%s1 + $0x540] sm:$0xff]
  %v188 = vld [vmem:[%s1 + $0x548] sm:$0xff]
  %v189 = vld [vmem:[%s1 + $0x550] sm:$0xff]
  %v190 = vld [vmem:[%s1 + $0x558] sm:$0xff]
  %v191 = vld [vmem:[%s1 + $0x560] sm:$0xff]
  %v192 = vld [vmem:[%s1 + $0x568] sm:$0xff]
  %v193 = vld [vmem:[%s1 + $0x570] sm:$0xff]
  %v194 = vld [vmem:[%s1 + $0x578] sm:$0xff]
  %v195 = vld [vmem:[%s1 + $0x580] sm:$0xff]
  %v196 = vld [vmem:[%s1 + $0x588] sm:$0xff]
  %v197 = vld [vmem:[%s1 + $0x590] sm:$0xff]
  %v198 = vld [vmem:[%s1 + $0x598] sm:$0xff]
  %v199 = vld [vmem:[%s1 + $0x5a0] sm:$0xff]
  %v200 = vld [vmem:[%s1 + $0x5a8] sm:$0xff]
  %v201 = vld [vmem:[%s1 + $0x5b0] sm:$0xff]
  %v202 = vld [vmem:[%s1 + $0x5b8] sm:$0xff]
  %v203 = vld [vmem:[%s1 + $0x5c0] sm:$0xff]
  %v204 = vld [vmem:[%s1 + $0x5c8] sm:$0xff]
  %v205 = vld [vmem:[%s1 + $0x5d0] sm:$0xff]
  %v206 = vld [vmem:[%s1 + $0x5d8] sm:$0xff]
  %v207 = vld [vmem:[%s1 + $0x5e0] sm:$0xff]
  %v208 = vld [vmem:[%s1 + $0x5e8] sm:$0xff]
  %v209 = vld [vmem:[%s1 + $0x5f0] sm:$0xff]
  %v210 = vld [vmem:[%s1 + $0x5f8] sm:$0xff]
  %v211 = vld [vmem:[%s1 + $0x600] sm:$0xff]
  %v212 = vld [vmem:[%s1 + $0x608] sm:$0xff]
  %v213 = vld [vmem:[%s1 + $0x610] sm:$0xff]
  %v214 = vld [vmem:[%s1 + $0x618] sm:$0xff]
  %v215 = vld [vmem:[%s1 + $0x620] sm:$0xff]
  %v216 = vld [vmem:[%s1 + $0x628] sm:$0xff]
  %v217 = vld [vmem:[%s1 + $0x630] sm:$0xff]
  %v218 = vld [vmem:[%s1 + $0x638] sm:$0xff]
  %v219 = vld [vmem:[%s1 + $0x640] sm:$0xff]
  %v220 = vld [vmem:[%s1 + $0x648] sm:$0xff]
  %v221 = vld [vmem:[%s1 + $0x650] sm:$0xff]
  %v222 = vld [vmem:[%s1 + $0x658] sm:$0xff]
  %v223 = vld [vmem:[%s1 + $0x660] sm:$0xff]
  %v224 = vld [vmem:[%s1 + $0x668] sm:$0xff]
  %v225 = vld [vmem:[%s1 + $0x670] sm:$0xff]
  %v226 = vld [vmem:[%s1 + $0x678] sm:$0xff]
  %v227 = vld [vmem:[%s1 + $0x680] sm:$0xff]
  %v228 = vld [vmem:[%s1 + $0x688] sm:$0xff]
  %v229 = vld [vmem:[%s1 + $0x690] sm:$0xff]
  %v230 = vld [vmem:[%s1 + $0x698] sm:$0xff]
  %v231 = vld [vmem:[%s1 + $0x6a0] sm:$0xff]
  %v232 = vld [vmem:[%s1 + $0x6a8] sm:$0xff]
  %v233 = vld [vmem:[%s1 + $0x6b0] sm:$0xff]
  %v234 = vld [vmem:[%s1 + $0x6b8] sm:$0xff]
  %v235 = vld [vmem:[%s1 + $0x6c0] sm:$0xff]
  %v236 = vld [vmem:[%s1 + $0x6c8] sm:$0xff]
  %v237 = vld [vmem:[%s1 + $0x6d0] sm:$0xff]
  %v238 = vld [vmem:[%s1 + $0x6d8] sm:$0xff]
  %v239 = vld [vmem:[%s1 + $0x6e0] sm:$0xff]
  %v240 = vld [vmem:[%s1 + $0x6e8] sm:$0xff]
  %v241 = vld [vmem:[%s1 + $0x6f0] sm:$0xff]
  %v242 = vld [vmem:[%s1 + $0x6f8] sm:$0xff]
  %v243 = vld [vmem:[%s1 + $0x700] sm:$0xff]
  %v244 = vld [vmem:[%s1 + $0x708] sm:$0xff]
  %v245 = vld [vmem:[%s1 + $0x710] sm:$0xff]
  %v246 = vld [vmem:[%s1 + $0x718] sm:$0xff]
  %v247 = vld [vmem:[%s1 + $0x720] sm:$0xff]
  %v248 = vld [vmem:[%s1 + $0x728] sm:$0xff]
  %v249 = vld [vmem:[%s1 + $0x730] sm:$0xff]
  %v250 = vld [vmem:[%s1 + $0x738] sm:$0xff]
  %v251 = vld [vmem:[%s1 + $0x740] sm:$0xff]
  %v252 = vld [vmem:[%s1 + $0x748] sm:$0xff]
  %v253 = vld [vmem:[%s1 + $0x750] sm:$0xff]
  %v254 = vld [vmem:[%s1 + $0x758] sm:$0xff]
  %v255 = vld [vmem:[%s1 + $0x760] sm:$0xff]
  %v256 = vld [vmem:[%s1 + $0x768] sm:$0xff]
  %v257 = vld [vmem:[%s1 + $0x770] sm:$0xff]
  %v258 = vld [vmem:[%s1 + $0x778] sm:$0xff]
  %v259 = vld [vmem:[%s1 + $0x780] sm:$0xff]
  %v260 = vld [vmem:[%s1 + $0x788] sm:$0xff]
  %v261 = vld [vmem:[%s1 + $0x790] sm:$0xff]
  %v262 = vld [vmem:[%s1 + $0x798] sm:$0xff]
  %v263 = vld [vmem:[%s1 + $0x7a0] sm:$0xff]
  %v264 = vld [vmem:[%s1 + $0x7a8] sm:$0xff]
  %v265 = vld [vmem:[%s1 + $0x7b0] sm:$0xff]
  %v266 = vld [vmem:[%s1 + $0x7b8] sm:$0xff]
  %v267 = vld [vmem:[%s1 + $0x7c0] sm:$0xff]
  %v268 = vld [vmem:[%s1 + $0x7c8] sm:$0xff]
  %v269 = vld [vmem:[%s1 + $0x7d0] sm:$0xff]
  %v270 = vld [vmem:[%s1 + $0x7d8] sm:$0xff]
  %v271 = vld [vmem:[%s1 + $0x7e0] sm:$0xff]
  %v272 = vld [vmem:[%s1 + $0x7e8] sm:$0xff]
  %v273 = vld [vmem:[%s1 + $0x7f0] sm:$0xff]
  %v274 = vld [vmem:[%s1 + $0x7f8] sm:$0xff]
  %v275 = vld [vmem:[%s1 + $0x800] sm:$0xff]
  %v276 = vld [vmem:[%s1 + $0x808] sm:$0xff]
  %v277 = vld [vmem:[%s1 + $0x810] sm:$0xff]
  %v278 = vld [vmem:[%s1 + $0x818] sm:$0xff]
  %v279 = vld [vmem:[%s1 + $0x820] sm:$0xff]
  %v280 = vld [vmem:[%s1 + $0x828] sm:$0xff]
  %v281 = vld [vmem:[%s1 + $0x830] sm:$0xff]
  %v282 = vld [vmem:[%s1 + $0x838] sm:$0xff]
  %v283 = vld [vmem:[%s1 + $0x840] sm:$0xff]
  %v284 = vld [vmem:[%s1 + $0x848] sm:$0xff]
  %v285 = vld [vmem:[%s1 + $0x850] sm:$0xff]
  %v286 = vld [vmem:[%s1 + $0x858] sm:$0xff]
  %v287 = vld [vmem:[%s1 + $0x860] sm:$0xff]
  %v288 = vld [vmem:[%s1 + $0x868] sm:$0xff]
  %v289 = vld [vmem:[%s1 + $0x870] sm:$0xff]
  %v290 = vld [vmem:[%s1 + $0x878] sm:$0xff]
  %v291 = vld [vmem:[%s1 + $0x880] sm:$0xff]
  %v292 = vld [vmem:[%s1 + $0x888] sm:$0xff]
  %v293 = vld [vmem:[%s1 + $0x890] sm:$0xff]
  %v294 = vld [vmem:[%s1 + $0x898] sm:$0xff]
  %v295 = vld [vmem:[%s1 + $0x8a0] sm:$0xff]
  %v296 = vld [vmem:[%s1 + $0x8a8] sm:$0xff]
  %v297 = vld [vmem:[%s1 + $0x8b0] sm:$0xff]
  %v298 = vld [vmem:[%s1 + $0x8b8] sm:$0xff]
  %v299 = vld [vmem:[%s1 + $0x8c0] sm:$0xff]
  %v300 = vld [vmem:[%s1 + $0x8c8] sm:$0xff]
  %v301 = vld [vmem:[%s1 + $0x8d0] sm:$0xff]
  %v302 = vld [vmem:[%s1 + $0x8d8] sm:$0xff]
  %v303 = vld [vmem:[%s1 + $0x8e0] sm:$0xff]
  %v304 = vld [vmem:[%s1 + $0x8e8] sm:$0xff]
  %v305 = vld [vmem:[%s1 + $0x8f0] sm:$0xff]
  %v306 = vld [vmem:[%s1 + $0x8f8] sm:$0xff]
  %v307 = vld [vmem:[%s1 + $0x900] sm:$0xff]
  %v308 = vld [vmem:[%s1 + $0x908] sm:$0xff]
  %v309 = vld [vmem:[%s1 + $0x910] sm:$0xff]
  %v310 = vld [vmem:[%s1 + $0x918] sm:$0xff]
  %v311 = vld [vmem:[%s1 + $0x920] sm:$0xff]
  %v312 = vld [vmem:[%s1 + $0x928] sm:$0xff]
  %v313 = vld [vmem:[%s1 + $0x930] sm:$0xff]
  %v314 = vld [vmem:[%s1 + $0x938] sm:$0xff]
  %v315 = vld [vmem:[%s1 + $0x940] sm:$0xff]
  %v316 = vld [vmem:[%s1 + $0x948] sm:$0xff]
  %v317 = vld [vmem:[%s1 + $0x950] sm:$0xff]
  %v318 = vld [vmem:[%s1 + $0x958] sm:$0xff]
  %v319 = vld [vmem:[%s1 + $0x960] sm:$0xff]
  %v320 = vld [vmem:[%s1 + $0x968] sm:$0xff]
  %v321 = vld [vmem:[%s1 + $0x970] sm:$0xff]
  %v322 = vld [vmem:[%s1 + $0x978] sm:$0xff]
  %v323 = vld [vmem:[%s1 + $0x980] sm:$0xff]
  %v324 = vld [vmem:[%s1 + $0x988] sm:$0xff]
  %v325 = vld [vmem:[%s1 + $0x990] sm:$0xff]
  %v326 = vld [vmem:[%s1 + $0x998] sm:$0xff]
  %v327 = vld [vmem:[%s1 + $0x9a0] sm:$0xff]
  %v328 = vld [vmem:[%s1 + $0x9a8] sm:$0xff]
  %v329 = vld [vmem:[%s1 + $0x9b0] sm:$0xff]
  %v330 = vld [vmem:[%s1 + $0x9b8] sm:$0xff]
  %v331 = vld [vmem:[%s1 + $0x9c0] sm:$0xff]
  %v332 = vld [vmem:[%s1 + $0x9c8] sm:$0xff]
  %v333 = vld [vmem:[%s1 + $0x9d0] sm:$0xff]
  %v334 = vld [vmem:[%s1 + $0x9d8] sm:$0xff]
  %v335 = vld [vmem:[%s1 + $0x9e0] sm:$0xff]
  %v336 = vld [vmem:[%s1 + $0x9e8] sm:$0xff]
  %v337 = vld [vmem:[%s1 + $0x9f0] sm:$0xff]
  %v338 = vld [vmem:[%s1 + $0x9f8] sm:$0xff]
  %v339 = vld [vmem:[%s2] sm:$0xf]
  %v341 = vlaneseq
  %v342 = vshrl.u32 %v341, 7
  %v343 = vsub.s32 0, %v342
  %v344 = vrot.slane %v339, %v343
  %v345 = vlaneseq
  %v346 = vshrl.u32 %v345, 7
  %v347 = vsub.s32 1, %v346
  %v348 = vrot.slane %v339, %v347
  %v349 = vlaneseq
  %v350 = vshrl.u32 %v349, 7
  %v351 = vsub.s32 2, %v350
  %v352 = vrot.slane %v339, %v351
  %v353 = vlaneseq
  %v354 = vshrl.u32 %v353, 7
  %v355 = vsub.s32 3, %v354
  %v356 = vrot.slane %v339, %v355
  %361 = vmatprep.subr.mxu0 %v80
  %362 = vmatpush1.msra.mxu0 %v79
  %363 = vmatprep.subr.mxu0 %v76
  %364 = vmatpush1.msra.mxu0 %v75
  %365 = vmatprep.subr.mxu0 %v72
  %366 = vmatpush1.msra.mxu0 %v71
  %367 = vmatprep.subr.mxu0 %v68
  %368 = vmatpush1.msra.mxu0 %v67
  %369 = vmatprep.subr.mxu0 %v64
  %370 = vmatpush1.msra.mxu0 %v63
  %371 = vmatprep.subr.mxu0 %v60
  %372 = vmatpush1.msra.mxu0 %v59
  %373 = vmatprep.subr.mxu0 %v56
  %374 = vmatpush1.msra.mxu0 %v55
  %375 = vmatprep.subr.mxu0 %v52
  %376 = vmatpush1.msra.mxu0 %v51
  %377 = vmatprep.subr.mxu0 %v48
  %378 = vmatpush1.msra.mxu0 %v47
  %379 = vmatprep.subr.mxu0 %v44
  %380 = vmatpush1.msra.mxu0 %v43
  %381 = vmatprep.subr.mxu0 %v40
  %382 = vmatpush1.msra.mxu0 %v39
  %383 = vmatprep.subr.mxu0 %v36
  %384 = vmatpush1.msra.mxu0 %v35
  %385 = vmatprep.subr.mxu0 %v32
  %386 = vmatpush1.msra.mxu0 %v31
  %387 = vmatprep.subr.mxu0 %v28
  %388 = vmatpush1.msra.mxu0 %v27
  %389 = vmatprep.subr.mxu0 %v24
  %390 = vmatpush1.msra.mxu0 %v23
  %391 = vmatprep.subr.mxu0 %v20
  %392 = vmatpush1.msra.mxu0 %v19
  %393 = vmatprep.subr.mxu0 %v144
  %394 = vmatpush2.msra.mxu0 %v143
  %395 = vmatprep.subr.mxu0 %v140
  %396 = vmatpush2.msra.mxu0 %v139
  %397 = vmatprep.subr.mxu0 %v136
  %398 = vmatpush2.msra.mxu0 %v135
  %399 = vmatprep.subr.mxu0 %v132
  %400 = vmatpush2.msra.mxu0 %v131
  %401 = vmatprep.subr.mxu0 %v128
  %402 = vmatpush2.msra.mxu0 %v127
  %403 = vmatprep.subr.mxu0 %v124
  %404 = vmatpush2.msra.mxu0 %v123
  %405 = vmatprep.subr.mxu0 %v120
  %406 = vmatpush2.msra.mxu0 %v119
  %407 = vmatprep.subr.mxu0 %v116
  %408 = vmatpush2.msra.mxu0 %v115
  %409 = vmatprep.subr.mxu0 %v112
  %410 = vmatpush2.msra.mxu0 %v111
  %411 = vmatprep.subr.mxu0 %v108
  %412 = vmatpush2.msra.mxu0 %v107
  %413 = vmatprep.subr.mxu0 %v104
  %414 = vmatpush2.msra.mxu0 %v103
  %415 = vmatprep.subr.mxu0 %v100
  %416 = vmatpush2.msra.mxu0 %v99
  %417 = vmatprep.subr.mxu0 %v96
  %418 = vmatpush2.msra.mxu0 %v95
  %419 = vmatprep.subr.mxu0 %v92
  %420 = vmatpush2.msra.mxu0 %v91
  %421 = vmatprep.subr.mxu0 %v88
  %422 = vmatpush2.msra.mxu0 %v87
  %423 = vmatprep.subr.mxu0 %v84
  %424 = vmatpush2.msra.mxu0 %v83
  %425 = vmatprep.mubr.f32.mxu0 %v15
  %426 = vmatmul.mubr.f32.gmra.mxu0 %v14
  %v427 = vpop.f32.mrf.mxu0
  %v428 = vadd.f32 %v344, %v427
  %v429 = vpop.f32.mrf.mxu0
  %v430 = vadd.f32 %v348, %v429
  %431 = vdwg.mxu0
  %432 = vmatprep.subr.mxu0 %v208
  %433 = vmatpush1.msra.mxu0 %v207
  %434 = vmatprep.subr.mxu0 %v204
  %435 = vmatpush1.msra.mxu0 %v203
  %436 = vmatprep.subr.mxu0 %v200
  %437 = vmatpush1.msra.mxu0 %v199
  %438 = vmatprep.subr.mxu0 %v196
  %439 = vmatpush1.msra.mxu0 %v195
  %440 = vmatprep.subr.mxu0 %v192
  %441 = vmatpush1.msra.mxu0 %v191
  %442 = vmatprep.subr.mxu0 %v188
  %443 = vmatpush1.msra.mxu0 %v187
  %444 = vmatprep.subr.mxu0 %v184
  %445 = vmatpush1.msra.mxu0 %v183
  %446 = vmatprep.subr.mxu0 %v180
  %447 = vmatpush1.msra.mxu0 %v179
  %448 = vmatprep.subr.mxu0 %v176
  %449 = vmatpush1.msra.mxu0 %v175
  %450 = vmatprep.subr.mxu0 %v172
  %451 = vmatpush1.msra.mxu0 %v171
  %452 = vmatprep.subr.mxu0 %v168
  %453 = vmatpush1.msra.mxu0 %v167
  %454 = vmatprep.subr.mxu0 %v164
  %455 = vmatpush1.msra.mxu0 %v163
  %456 = vmatprep.subr.mxu0 %v160
  %457 = vmatpush1.msra.mxu0 %v159
  %458 = vmatprep.subr.mxu0 %v156
  %459 = vmatpush1.msra.mxu0 %v155
  %460 = vmatprep.subr.mxu0 %v152
  %461 = vmatpush1.msra.mxu0 %v151
  %462 = vmatprep.subr.mxu0 %v148
  %463 = vmatpush1.msra.mxu0 %v147
  %464 = vmatprep.subr.mxu0 %v272
  %465 = vmatpush2.msra.mxu0 %v271
  %466 = vmatprep.subr.mxu0 %v268
  %467 = vmatpush2.msra.mxu0 %v267
  %468 = vmatprep.subr.mxu0 %v264
  %469 = vmatpush2.msra.mxu0 %v263
  %470 = vmatprep.subr.mxu0 %v260
  %471 = vmatpush2.msra.mxu0 %v259
  %472 = vmatprep.subr.mxu0 %v256
  %473 = vmatpush2.msra.mxu0 %v255
  %474 = vmatprep.subr.mxu0 %v252
  %475 = vmatpush2.msra.mxu0 %v251
  %476 = vmatprep.subr.mxu0 %v248
  %477 = vmatpush2.msra.mxu0 %v247
  %478 = vmatprep.subr.mxu0 %v244
  %479 = vmatpush2.msra.mxu0 %v243
  %480 = vmatprep.subr.mxu0 %v240
  %481 = vmatpush2.msra.mxu0 %v239
  %482 = vmatprep.subr.mxu0 %v236
  %483 = vmatpush2.msra.mxu0 %v235
  %484 = vmatprep.subr.mxu0 %v232
  %485 = vmatpush2.msra.mxu0 %v231
  %486 = vmatprep.subr.mxu0 %v228
  %487 = vmatpush2.msra.mxu0 %v227
  %488 = vmatprep.subr.mxu0 %v224
  %489 = vmatpush2.msra.mxu0 %v223
  %490 = vmatprep.subr.mxu0 %v220
  %491 = vmatpush2.msra.mxu0 %v219
  %492 = vmatprep.subr.mxu0 %v216
  %493 = vmatpush2.msra.mxu0 %v215
  %494 = vmatprep.subr.mxu0 %v212
  %495 = vmatpush2.msra.mxu0 %v211
  %496 = vmatprep.mubr.f32.mxu0 %v17
  %497 = vmatmul.mubr.f32.gmra.mxu0 %v16
  %v498 = vpop.f32.mrf.mxu0
  %v499 = vadd.f32 %v428, %v498
  %v500 = vpop.f32.mrf.mxu0
  %v501 = vadd.f32 %v430, %v500
  %502 = vdwg.mxu0
  %503 = vmatprep.subr.mxu0 %v336
  %504 = vmatpush1.msra.mxu0 %v335
  %505 = vmatprep.subr.mxu0 %v332
  %506 = vmatpush1.msra.mxu0 %v331
  %507 = vmatprep.subr.mxu0 %v328
  %508 = vmatpush1.msra.mxu0 %v327
  %509 = vmatprep.subr.mxu0 %v324
  %510 = vmatpush1.msra.mxu0 %v323
  %511 = vmatprep.subr.mxu0 %v320
  %512 = vmatpush1.msra.mxu0 %v319
  %513 = vmatprep.subr.mxu0 %v316
  %514 = vmatpush1.msra.mxu0 %v315
  %515 = vmatprep.subr.mxu0 %v312
  %516 = vmatpush1.msra.mxu0 %v311
  %517 = vmatprep.subr.mxu0 %v308
  %518 = vmatpush1.msra.mxu0 %v307
  %519 = vmatprep.subr.mxu0 %v304
  %520 = vmatpush1.msra.mxu0 %v303
  %521 = vmatprep.subr.mxu0 %v300
  %522 = vmatpush1.msra.mxu0 %v299
  %523 = vmatprep.subr.mxu0 %v296
  %524 = vmatpush1.msra.mxu0 %v295
  %525 = vmatprep.subr.mxu0 %v292
  %526 = vmatpush1.msra.mxu0 %v291
  %527 = vmatprep.subr.mxu0 %v288
  %528 = vmatpush1.msra.mxu0 %v287
  %529 = vmatprep.subr.mxu0 %v284
  %530 = vmatpush1.msra.mxu0 %v283
  %531 = vmatprep.subr.mxu0 %v280
  %532 = vmatpush1.msra.mxu0 %v279
  %533 = vmatprep.subr.mxu0 %v276
  %534 = vmatpush1.msra.mxu0 %v275
  %535 = vmatprep.subr.mxu0 0.0
  %536 = vmatpush2.msra.mxu0 0.0
  %537 = vmatprep.subr.mxu0 0.0
  %538 = vmatpush2.msra.mxu0 0.0
  %539 = vmatprep.subr.mxu0 0.0
  %540 = vmatpush2.msra.mxu0 0.0
  %541 = vmatprep.subr.mxu0 0.0
  %542 = vmatpush2.msra.mxu0 0.0
  %543 = vmatprep.subr.mxu0 0.0
  %544 = vmatpush2.msra.mxu0 0.0
  %545 = vmatprep.subr.mxu0 0.0
  %546 = vmatpush2.msra.mxu0 0.0
  %547 = vmatprep.subr.mxu0 0.0
  %548 = vmatpush2.msra.mxu0 0.0
  %549 = vmatprep.subr.mxu0 0.0
  %550 = vmatpush2.msra.mxu0 0.0
  %551 = vmatprep.subr.mxu0 0.0
  %552 = vmatpush2.msra.mxu0 0.0
  %553 = vmatprep.subr.mxu0 0.0
  %554 = vmatpush2.msra.mxu0 0.0
  %555 = vmatprep.subr.mxu0 0.0
  %556 = vmatpush2.msra.mxu0 0.0
  %557 = vmatprep.subr.mxu0 0.0
  %558 = vmatpush2.msra.mxu0 0.0
  %559 = vmatprep.subr.mxu0 0.0
  %560 = vmatpush2.msra.mxu0 0.0
  %561 = vmatprep.subr.mxu0 0.0
  %562 = vmatpush2.msra.mxu0 0.0
  %563 = vmatprep.subr.mxu0 0.0
  %564 = vmatpush2.msra.mxu0 0.0
  %565 = vmatprep.subr.mxu0 0.0
  %566 = vmatpush2.msra.mxu0 0.0
  %567 = vmatprep.mubr.f32.mxu0 0.0
  %568 = vmatmul.mubr.f32.gmra.mxu0 %v18
  %v569 = vpop.f32.mrf.mxu0
  %v570 = vadd.f32 %v499, %v569
  %v571 = vpop.f32.mrf.mxu0
  %v572 = vadd.f32 %v501, %v571
  %573 = vdwg.mxu0
  %574 = vmatprep.subr.mxu0 %v82
  %575 = vmatpush1.msra.mxu0 %v81
  %576 = vmatprep.subr.mxu0 %v78
  %577 = vmatpush1.msra.mxu0 %v77
  %578 = vmatprep.subr.mxu0 %v74
  %579 = vmatpush1.msra.mxu0 %v73
  %580 = vmatprep.subr.mxu0 %v70
  %581 = vmatpush1.msra.mxu0 %v69
  %582 = vmatprep.subr.mxu0 %v66
  %583 = vmatpush1.msra.mxu0 %v65
  %584 = vmatprep.subr.mxu0 %v62
  %585 = vmatpush1.msra.mxu0 %v61
  %586 = vmatprep.subr.mxu0 %v58
  %587 = vmatpush1.msra.mxu0 %v57
  %588 = vmatprep.subr.mxu0 %v54
  %589 = vmatpush1.msra.mxu0 %v53
  %590 = vmatprep.subr.mxu0 %v50
  %591 = vmatpush1.msra.mxu0 %v49
  %592 = vmatprep.subr.mxu0 %v46
  %593 = vmatpush1.msra.mxu0 %v45
  %594 = vmatprep.subr.mxu0 %v42
  %595 = vmatpush1.msra.mxu0 %v41
  %596 = vmatprep.subr.mxu0 %v38
  %597 = vmatpush1.msra.mxu0 %v37
  %598 = vmatprep.subr.mxu0 %v34
  %599 = vmatpush1.msra.mxu0 %v33
  %600 = vmatprep.subr.mxu0 %v30
  %601 = vmatpush1.msra.mxu0 %v29
  %602 = vmatprep.subr.mxu0 %v26
  %603 = vmatpush1.msra.mxu0 %v25
  %604 = vmatprep.subr.mxu0 %v22
  %605 = vmatpush1.msra.mxu0 %v21
  %606 = vmatprep.subr.mxu0 %v146
  %607 = vmatpush2.msra.mxu0 %v145
  %608 = vmatprep.subr.mxu0 %v142
  %609 = vmatpush2.msra.mxu0 %v141
  %610 = vmatprep.subr.mxu0 %v138
  %611 = vmatpush2.msra.mxu0 %v137
  %612 = vmatprep.subr.mxu0 %v134
  %613 = vmatpush2.msra.mxu0 %v133
  %614 = vmatprep.subr.mxu0 %v130
  %615 = vmatpush2.msra.mxu0 %v129
  %616 = vmatprep.subr.mxu0 %v126
  %617 = vmatpush2.msra.mxu0 %v125
  %618 = vmatprep.subr.mxu0 %v122
  %619 = vmatpush2.msra.mxu0 %v121
  %620 = vmatprep.subr.mxu0 %v118
  %621 = vmatpush2.msra.mxu0 %v117
  %622 = vmatprep.subr.mxu0 %v114
  %623 = vmatpush2.msra.mxu0 %v113
  %624 = vmatprep.subr.mxu0 %v110
  %625 = vmatpush2.msra.mxu0 %v109
  %626 = vmatprep.subr.mxu0 %v106
  %627 = vmatpush2.msra.mxu0 %v105
  %628 = vmatprep.subr.mxu0 %v102
  %629 = vmatpush2.msra.mxu0 %v101
  %630 = vmatprep.subr.mxu0 %v98
  %631 = vmatpush2.msra.mxu0 %v97
  %632 = vmatprep.subr.mxu0 %v94
  %633 = vmatpush2.msra.mxu0 %v93
  %634 = vmatprep.subr.mxu0 %v90
  %635 = vmatpush2.msra.mxu0 %v89
  %636 = vmatprep.subr.mxu0 %v86
  %637 = vmatpush2.msra.mxu0 %v85
  %638 = vmatprep.mubr.f32.mxu0 %v15
  %639 = vmatmul.mubr.f32.gmra.mxu0 %v14
  %v640 = vpop.f32.mrf.mxu0
  %v641 = vadd.f32 %v352, %v640
  %v642 = vpop.f32.mrf.mxu0
  %v643 = vadd.f32 %v356, %v642
  %644 = vdwg.mxu0
  %645 = vmatprep.subr.mxu0 %v210
  %646 = vmatpush1.msra.mxu0 %v209
  %647 = vmatprep.subr.mxu0 %v206
  %648 = vmatpush1.msra.mxu0 %v205
  %649 = vmatprep.subr.mxu0 %v202
  %650 = vmatpush1.msra.mxu0 %v201
  %651 = vmatprep.subr.mxu0 %v198
  %652 = vmatpush1.msra.mxu0 %v197
  %653 = vmatprep.subr.mxu0 %v194
  %654 = vmatpush1.msra.mxu0 %v193
  %655 = vmatprep.subr.mxu0 %v190
  %656 = vmatpush1.msra.mxu0 %v189
  %657 = vmatprep.subr.mxu0 %v186
  %658 = vmatpush1.msra.mxu0 %v185
  %659 = vmatprep.subr.mxu0 %v182
  %660 = vmatpush1.msra.mxu0 %v181
  %661 = vmatprep.subr.mxu0 %v178
  %662 = vmatpush1.msra.mxu0 %v177
  %663 = vmatprep.subr.mxu0 %v174
  %664 = vmatpush1.msra.mxu0 %v173
  %665 = vmatprep.subr.mxu0 %v170
  %666 = vmatpush1.msra.mxu0 %v169
  %667 = vmatprep.subr.mxu0 %v166
  %668 = vmatpush1.msra.mxu0 %v165
  %669 = vmatprep.subr.mxu0 %v162
  %670 = vmatpush1.msra.mxu0 %v161
  %671 = vmatprep.subr.mxu0 %v158
  %672 = vmatpush1.msra.mxu0 %v157
  %673 = vmatprep.subr.mxu0 %v154
  %674 = vmatpush1.msra.mxu0 %v153
  %675 = vmatprep.subr.mxu0 %v150
  %676 = vmatpush1.msra.mxu0 %v149
  %677 = vmatprep.subr.mxu0 %v274
  %678 = vmatpush2.msra.mxu0 %v273
  %679 = vmatprep.subr.mxu0 %v270
  %680 = vmatpush2.msra.mxu0 %v269
  %681 = vmatprep.subr.mxu0 %v266
  %682 = vmatpush2.msra.mxu0 %v265
  %683 = vmatprep.subr.mxu0 %v262
  %684 = vmatpush2.msra.mxu0 %v261
  %685 = vmatprep.subr.mxu0 %v258
  %686 = vmatpush2.msra.mxu0 %v257
  %687 = vmatprep.subr.mxu0 %v254
  %688 = vmatpush2.msra.mxu0 %v253
  %689 = vmatprep.subr.mxu0 %v250
  %690 = vmatpush2.msra.mxu0 %v249
  %691 = vmatprep.subr.mxu0 %v246
  %692 = vmatpush2.msra.mxu0 %v245
  %693 = vmatprep.subr.mxu0 %v242
  %694 = vmatpush2.msra.mxu0 %v241
  %695 = vmatprep.subr.mxu0 %v238
  %696 = vmatpush2.msra.mxu0 %v237
  %697 = vmatprep.subr.mxu0 %v234
  %698 = vmatpush2.msra.mxu0 %v233
  %699 = vmatprep.subr.mxu0 %v230
  %700 = vmatpush2.msra.mxu0 %v229
  %701 = vmatprep.subr.mxu0 %v226
  %702 = vmatpush2.msra.mxu0 %v225
  %703 = vmatprep.subr.mxu0 %v222
  %704 = vmatpush2.msra.mxu0 %v221
  %705 = vmatprep.subr.mxu0 %v218
  %706 = vmatpush2.msra.mxu0 %v217
  %707 = vmatprep.subr.mxu0 %v214
  %708 = vmatpush2.msra.mxu0 %v213
  %709 = vmatprep.mubr.f32.mxu0 %v17
  %710 = vmatmul.mubr.f32.gmra.mxu0 %v16
  %v711 = vpop.f32.mrf.mxu0
  %v712 = vadd.f32 %v641, %v711
  %v713 = vpop.f32.mrf.mxu0
  %v714 = vadd.f32 %v643, %v713
  %715 = vdwg.mxu0
  %716 = vmatprep.subr.mxu0 %v338
  %717 = vmatpush1.msra.mxu0 %v337
  %718 = vmatprep.subr.mxu0 %v334
  %719 = vmatpush1.msra.mxu0 %v333
  %720 = vmatprep.subr.mxu0 %v330
  %721 = vmatpush1.msra.mxu0 %v329
  %722 = vmatprep.subr.mxu0 %v326
  %723 = vmatpush1.msra.mxu0 %v325
  %724 = vmatprep.subr.mxu0 %v322
  %725 = vmatpush1.msra.mxu0 %v321
  %726 = vmatprep.subr.mxu0 %v318
  %727 = vmatpush1.msra.mxu0 %v317
  %728 = vmatprep.subr.mxu0 %v314
  %729 = vmatpush1.msra.mxu0 %v313
  %730 = vmatprep.subr.mxu0 %v310
  %731 = vmatpush1.msra.mxu0 %v309
  %732 = vmatprep.subr.mxu0 %v306
  %733 = vmatpush1.msra.mxu0 %v305
  %734 = vmatprep.subr.mxu0 %v302
  %735 = vmatpush1.msra.mxu0 %v301
  %736 = vmatprep.subr.mxu0 %v298
  %737 = vmatpush1.msra.mxu0 %v297
  %738 = vmatprep.subr.mxu0 %v294
  %739 = vmatpush1.msra.mxu0 %v293
  %740 = vmatprep.subr.mxu0 %v290
  %741 = vmatpush1.msra.mxu0 %v289
  %742 = vmatprep.subr.mxu0 %v286
  %743 = vmatpush1.msra.mxu0 %v285
  %744 = vmatprep.subr.mxu0 %v282
  %745 = vmatpush1.msra.mxu0 %v281
  %746 = vmatprep.subr.mxu0 %v278
  %747 = vmatpush1.msra.mxu0 %v277
  %748 = vmatprep.subr.mxu0 0.0
  %749 = vmatpush2.msra.mxu0 0.0
  %750 = vmatprep.subr.mxu0 0.0
  %751 = vmatpush2.msra.mxu0 0.0
  %752 = vmatprep.subr.mxu0 0.0
  %753 = vmatpush2.msra.mxu0 0.0
  %754 = vmatprep.subr.mxu0 0.0
  %755 = vmatpush2.msra.mxu0 0.0
  %756 = vmatprep.subr.mxu0 0.0
  %757 = vmatpush2.msra.mxu0 0.0
  %758 = vmatprep.subr.mxu0 0.0
  %759 = vmatpush2.msra.mxu0 0.0
  %760 = vmatprep.subr.mxu0 0.0
  %761 = vmatpush2.msra.mxu0 0.0
  %762 = vmatprep.subr.mxu0 0.0
  %763 = vmatpush2.msra.mxu0 0.0
  %764 = vmatprep.subr.mxu0 0.0
  %765 = vmatpush2.msra.mxu0 0.0
  %766 = vmatprep.subr.mxu0 0.0
  %767 = vmatpush2.msra.mxu0 0.0
  %768 = vmatprep.subr.mxu0 0.0
  %769 = vmatpush2.msra.mxu0 0.0
  %770 = vmatprep.subr.mxu0 0.0
  %771 = vmatpush2.msra.mxu0 0.0
  %772 = vmatprep.subr.mxu0 0.0
  %773 = vmatpush2.msra.mxu0 0.0
  %774 = vmatprep.subr.mxu0 0.0
  %775 = vmatpush2.msra.mxu0 0.0
  %776 = vmatprep.subr.mxu0 0.0
  %777 = vmatpush2.msra.mxu0 0.0
  %778 = vmatprep.subr.mxu0 0.0
  %779 = vmatpush2.msra.mxu0 0.0
  %780 = vmatprep.mubr.f32.mxu0 0.0
  %781 = vmatmul.mubr.f32.gmra.mxu0 %v18
  %v782 = vpop.f32.mrf.mxu0
  %v783 = vadd.f32 %v712, %v782
  %v784 = vpop.f32.mrf.mxu0
  %v785 = vadd.f32 %v714, %v784
  %786 = vdwg.mxu0
  %v787 = vmax.f32 %v570, 0.0
  %v788 = vmax.f32 %v572, 0.0
  %v789 = vmax.f32 %v783, 0.0
  %v790 = vmax.f32 %v785, 0.0
  %791 = vst [vmem:[%s3] sm:$0xff] %v787
  %792 = vst [vmem:[%s3 + $0x8] sm:$0xff] %v788
  %793 = vst [vmem:[%s3 + $0x10] sm:$0xff] %v789
  %vm794 = vcmask 130048
  %795 = vst.msk [vmem:[%s3 + $0x18] sm:$0xff] %vm794, %v790
  // Predicated region
  $region14: #{_lambda_.12} parent=0 // pred_check
    _
  $region15: #{_lambda_.12} parent=0 // pred_check_branch
    %797 = sbr.rel (0) target = $region17
  $region16: #{_lambda_.12} parent=0 // pred_region
    _
  $region17: #{_lambda_.12} parent=0 // pred_fallthru
    _
  // Predicated region
  $region18: #{_lambda_.12} parent=0 // pred_check
    _
  $region19: #{_lambda_.12} parent=0 // pred_check_branch
    %799 = sbr.rel (0) target = $region21
  $region20: #{_lambda_.12} parent=0 // pred_region
    _
  $region21: #{_lambda_.12} parent=0 // pred_fallthru
    _

// kernel: _lambda_.13
$region0: #{_lambda_.13}
  #allocation0 [shape = 'u32[]', space=smem, size = 0x4, offset = 0x4, fixed_abs, tag = 'smem constant byte address 0x4 - core index']
  #allocation1 [shape = 'u32[144,128]{1,0:T(1,128)}', space=vmem, size = 0x12000, scoped, tag = 'internal scratch']
  #allocation2 [shape = 'f32[10,64]{1,0:T(8,128)}', space=vmem, size = 0x2000, scoped, tag = 'scratch operand']
  %s0 = inlined_call_operand.vmem [shape: f32[2,4,400], index: 0, kind: input, shape index: {}]
  %s1 = inlined_call_operand.vmem [shape: f32[400,64], index: 1, kind: input, shape index: {}]
  %s2 = inlined_call_operand.vmem [shape: f32[1,64], index: 2, kind: input, shape index: {}]
  %s3 = inlined_call_operand.vmem [shape: f32[9,64,64], index: 3, kind: input, shape index: {}]
  %s4 = inlined_call_operand.vmem [shape: f32[1,64], index: 4, kind: input, shape index: {}]
  %s5 = inlined_call_operand.vmem [shape: f32[2,4,64], index: 5, kind: output, shape index: {}]
  %s6 = sld [smem:[#allocation0]]
  $region53: #{_lambda_.13} parent=0
    _
  %s8 = ssub.s32 1, %s6
  %s9 = scalar_select 0, %s8, %s6
  loop: start=0, step=1, limit=4
  $region2: #{_lambda_.13} parent=0 // loop_pre_header
    _
  $region3: #{_lambda_.13} parent=0 // loop_header
    %s11 = sphi 0, %s15
    %p12 = scmp.ge.s32.totalorder %s11, 4
    %s21 = sphi 0, %s23
    %s24 = sphi 0, %s21
    %s25 = sphi 0, %s24
    %s41 = sphi 0, %s25
    %s45 = sphi 0, %s45
    %s47 = sphi 0, %s45
    %s48 = sphi 0, %s47
    %s62 = sphi 0, %s48
    %s66 = sphi 0, %s66
    %s68 = sphi 0, %s66
    %s69 = sphi 0, %s68
    %s83 = sphi 0, %s69
    %s87 = sphi 0, %s87
    %s89 = sphi 0, %s87
    %s90 = sphi 0, %s89
    %s104 = sphi 0, %s90
    %s108 = sphi 0, %s108
    %s110 = sphi 0, %s108
    %s111 = sphi 0, %s110
    %s125 = sphi 0, %s111
    %s131 = sphi 0, %s133
    %s134 = sphi 0, %s131
    %s135 = sphi 0, %s134
    %s151 = sphi 0, %s135
  $region4: #{_lambda_.13} parent=0 // loop_header_branch
    %14 = sbr.rel (%p12) target = $region8
  $region5: #{_lambda_.13} parent=0 // loop_body
    %s16 = ssub.s32 %s11, 1
    %s17 = ssub.s32 %s11, 2
    %s18 = sadd.s32 %s11, 1
    %s19 = ssub.s32 %s11, %s18
    %p20 = scmp.eq.s32.totalorder %s19, 0
    %s22 = sadd.s32 %s21, 1
    %s23 = scalar_select %p20, %s21, %s22
    %p26 = pneg %p20
    %p27 = scmp.eq.s32.totalorder %s11, 1
    %p28 = por %p26, %p27
    %p29 = scmp.ne.s32.totalorder %s21, %s24
    %p30 = scmp.eq.s32.totalorder %s11, 0
    %p31 = por %p29, %p30
    %p32 = scmp.ne.s32.totalorder %s21, %s24
    %p33 = scmp.eq.s32.totalorder %s16, 1
    %p34 = por %p32, %p33
    %p35 = scmp.ne.s32.totalorder %s24, %s25
    %p36 = scmp.eq.s32.totalorder %s16, 0
    %p37 = por %p35, %p36
    %p38 = scmp.ne.s32.totalorder %s24, %s25
    %p39 = scmp.eq.s32.totalorder %s17, 1
    %p40 = por %p38, %p39
    %p42 = scmp.ne.s32.totalorder %s25, %s41
    %p43 = scmp.eq.s32.totalorder %s17, 0
    %p44 = por %p42, %p43
    %s46 = sadd.s32 %s45, 1
    %p49 = scmp.eq.s32.totalorder %s11, 1
    %p50 = scmp.ne.s32.totalorder %s45, %s47
    %p51 = scmp.eq.s32.totalorder %s11, 0
    %p52 = por %p50, %p51
    %p53 = scmp.ne.s32.totalorder %s45, %s47
    %p54 = scmp.eq.s32.totalorder %s16, 1
    %p55 = por %p53, %p54
    %p56 = scmp.ne.s32.totalorder %s47, %s48
    %p57 = scmp.eq.s32.totalorder %s16, 0
    %p58 = por %p56, %p57
    %p59 = scmp.ne.s32.totalorder %s47, %s48
    %p60 = scmp.eq.s32.totalorder %s17, 1
    %p61 = por %p59, %p60
    %p63 = scmp.ne.s32.totalorder %s48, %s62
    %p64 = scmp.eq.s32.totalorder %s17, 0
    %p65 = por %p63, %p64
    %s67 = sadd.s32 %s66, 1
    %p70 = scmp.eq.s32.totalorder %s11, 1
    %p71 = scmp.ne.s32.totalorder %s66, %s68
    %p72 = scmp.eq.s32.totalorder %s11, 0
    %p73 = por %p71, %p72
    %p74 = scmp.ne.s32.totalorder %s66, %s68
    %p75 = scmp.eq.s32.totalorder %s16, 1
    %p76 = por %p74, %p75
    %p77 = scmp.ne.s32.totalorder %s68, %s69
    %p78 = scmp.eq.s32.totalorder %s16, 0
    %p79 = por %p77, %p78
    %p80 = scmp.ne.s32.totalorder %s68, %s69
    %p81 = scmp.eq.s32.totalorder %s17, 1
    %p82 = por %p80, %p81
    %p84 = scmp.ne.s32.totalorder %s69, %s83
    %p85 = scmp.eq.s32.totalorder %s17, 0
    %p86 = por %p84, %p85
    %s88 = sadd.s32 %s87, 1
    %p91 = scmp.eq.s32.totalorder %s11, 1
    %p92 = scmp.ne.s32.totalorder %s87, %s89
    %p93 = scmp.eq.s32.totalorder %s11, 0
    %p94 = por %p92, %p93
    %p95 = scmp.ne.s32.totalorder %s87, %s89
    %p96 = scmp.eq.s32.totalorder %s16, 1
    %p97 = por %p95, %p96
    %p98 = scmp.ne.s32.totalorder %s89, %s90
    %p99 = scmp.eq.s32.totalorder %s16, 0
    %p100 = por %p98, %p99
    %p101 = scmp.ne.s32.totalorder %s89, %s90
    %p102 = scmp.eq.s32.totalorder %s17, 1
    %p103 = por %p101, %p102
    %p105 = scmp.ne.s32.totalorder %s90, %s104
    %p106 = scmp.eq.s32.totalorder %s17, 0
    %p107 = por %p105, %p106
    %s109 = sadd.s32 %s108, 1
    %p112 = scmp.eq.s32.totalorder %s11, 1
    %p113 = scmp.ne.s32.totalorder %s108, %s110
    %p114 = scmp.eq.s32.totalorder %s11, 0
    %p115 = por %p113, %p114
    %p116 = scmp.ne.s32.totalorder %s108, %s110
    %p117 = scmp.eq.s32.totalorder %s16, 1
    %p118 = por %p116, %p117
    %p119 = scmp.ne.s32.totalorder %s110, %s111
    %p120 = scmp.eq.s32.totalorder %s16, 0
    %p121 = por %p119, %p120
    %p122 = scmp.ne.s32.totalorder %s110, %s111
    %p123 = scmp.eq.s32.totalorder %s17, 1
    %p124 = por %p122, %p123
    %p126 = scmp.ne.s32.totalorder %s111, %s125
    %p127 = scmp.eq.s32.totalorder %s17, 0
    %p128 = por %p126, %p127
    %s129 = ssub.s32 %s11, %s18
    %p130 = scmp.eq.s32.totalorder %s129, 0
    %s132 = sadd.s32 %s131, 1
    %s133 = scalar_select %p130, %s131, %s132
    %p136 = pneg %p130
    %p137 = scmp.eq.s32.totalorder %s11, 1
    %p138 = por %p136, %p137
    %p139 = scmp.ne.s32.totalorder %s131, %s134
    %p140 = scmp.eq.s32.totalorder %s11, 0
    %p141 = por %p139, %p140
    %p142 = scmp.ne.s32.totalorder %s131, %s134
    %p143 = scmp.eq.s32.totalorder %s16, 1
    %p144 = por %p142, %p143
    %p145 = scmp.ne.s32.totalorder %s134, %s135
    %p146 = scmp.eq.s32.totalorder %s16, 0
    %p147 = por %p145, %p146
    %p148 = scmp.ne.s32.totalorder %s134, %s135
    %p149 = scmp.eq.s32.totalorder %s17, 1
    %p150 = por %p148, %p149
    %p152 = scmp.ne.s32.totalorder %s135, %s151
    %p153 = scmp.eq.s32.totalorder %s17, 0
    %p154 = por %p152, %p153
    %p155 = scmp.le.s32.totalorder 1, %s11
    %p156 = scmp.lt.s32.totalorder %s11, 3
    %p157 = pnand %p155, %p156
    %p158 = pneg %p157
    // Predicated region
    $region9: #{_lambda_.13} parent=5 // pred_check
      _
    $region10: #{_lambda_.13} parent=5 // pred_check_branch
      %160 = sbr.rel (%p157) target = $region12
    $region11: #{_lambda_.13} parent=5 // pred_region
      %s161 = ssub.s32 %s11, 1
      // Predicated region
      $region13: #{_lambda_.13} parent=11 // pred_check
        %p162 = pneg %p58
      $region14: #{_lambda_.13} parent=11 // pred_check_branch
        %164 = sbr.rel (%p162) target = $region16
      $region15: #{_lambda_.13} parent=11 // pred_region
        _
      $region16: #{_lambda_.13} parent=11 // pred_fallthru
        _
      // Predicated region
      $region17: #{_lambda_.13} parent=11 // pred_check
        %p165 = pneg %p79
      $region18: #{_lambda_.13} parent=11 // pred_check_branch
        %167 = sbr.rel (%p165) target = $region20
      $region19: #{_lambda_.13} parent=11 // pred_region
        _
      $region20: #{_lambda_.13} parent=11 // pred_fallthru
        _
      // Predicated region
      $region21: #{_lambda_.13} parent=11 // pred_check
        %p168 = pneg %p100
      $region22: #{_lambda_.13} parent=11 // pred_check_branch
        %170 = sbr.rel (%p168) target = $region24
      $region23: #{_lambda_.13} parent=11 // pred_region
        _
      $region24: #{_lambda_.13} parent=11 // pred_fallthru
        _
      // Predicated region
      $region25: #{_lambda_.13} parent=11 // pred_check
        %p171 = pneg %p121
      $region26: #{_lambda_.13} parent=11 // pred_check_branch
        %173 = sbr.rel (%p171) target = $region28
      $region27: #{_lambda_.13} parent=11 // pred_region
        _
      $region28: #{_lambda_.13} parent=11 // pred_fallthru
        _
    $region12: #{_lambda_.13} parent=5 // pred_fallthru
      _
    %p174 = scmp.lt.s32.totalorder %s11, 2
    // Predicated region
    $region29: #{_lambda_.13} parent=5 // pred_check
      %p175 = pneg %p174
    $region30: #{_lambda_.13} parent=5 // pred_check_branch
      %177 = sbr.rel (%p175) target = $region32
    $region31: #{_lambda_.13} parent=5 // pred_region
      // Predicated region
      $region33: #{_lambda_.13} parent=31 // pred_check
        %p178 = pneg %p31
      $region34: #{_lambda_.13} parent=31 // pred_check_branch
        %180 = sbr.rel (%p178) target = $region36
      $region35: #{_lambda_.13} parent=31 // pred_region
        %p181 = scmp.lt.s32.totalorder %s11, 1
        %s182 = scalar_select %p181, %s11, 1
        %s183 = smul.addr %s182, 4
        %s184 = smul.addr %s183, 4
        %s185 = scalar_lea.vmem %s0, %s184
      $region36: #{_lambda_.13} parent=31 // pred_fallthru
        _
    $region32: #{_lambda_.13} parent=5 // pred_fallthru
      _
    %p186 = scmp.le.s32.totalorder 1, %s11
    %p187 = scmp.lt.s32.totalorder %s11, 3
    %p188 = pnand %p186, %p187
    %p189 = pneg %p188
    // Predicated region
    $region37: #{_lambda_.13} parent=5 // pred_check
      _
    $region38: #{_lambda_.13} parent=5 // pred_check_branch
      %191 = sbr.rel (%p188) target = $region40
    $region39: #{_lambda_.13} parent=5 // pred_region
      %s192 = ssub.s32 %s11, 1
      %p193 = scmp.lt.s32.totalorder %s16, 1
      %s194 = scalar_select %p193, %s16, 1
      %s195 = smul.addr %s194, 4
      %s196 = smul.addr %s195, 4
      %s197 = scalar_lea.vmem %s0, %s196
      %p198 = pneg %p37
      %p199 = pneg %p34
      %p200 = pneg %p58
      %p201 = pneg %p55
      %p202 = pneg %p79
      %p203 = pneg %p76
      %p204 = pneg %p100
      %p205 = pneg %p97
      %p206 = pneg %p121
      %p207 = pneg %p118
      %p208 = pneg %p147
      %p209 = pneg %p144
      %p210 = scmp.lt.s32.totalorder %s16, 1
      %s211 = scalar_select %p210, %s16, 1
      %s212 = smul.addr %s211, 4
      %s213 = scalar_lea.vmem %s5, %s212
      %p214 = scmp.lt.s32.totalorder %s16, 1
      %s215 = scalar_select %p214, %s16, 1
      %s216 = smul.addr %s215, 4
      %s217 = smul.addr %s216, 4
      %s218 = scalar_lea.vmem %s0, %s217
      %p219 = scmp.lt.s32.totalorder %s16, 1
      %s220 = scalar_select %p219, %s16, 1
      %s221 = smul.addr %s220, 4
      %s222 = scalar_lea.vmem %s5, %s221
      %v223 = vld [vmem:[%s218] sm:$0xff]
      %v224 = vld [vmem:[%s218 + $0x8] sm:$0xff]
      %v225 = vld [vmem:[%s1] sm:$0xff]
      %v226 = vld [vmem:[%s1 + $0x8] sm:$0xff]
      %v227 = vld [vmem:[%s1 + $0x10] sm:$0xff]
      %v228 = vld [vmem:[%s1 + $0x18] sm:$0xff]
      %v229 = vld [vmem:[%s1 + $0x20] sm:$0xff]
      %v230 = vld [vmem:[%s1 + $0x28] sm:$0xff]
      %v231 = vld [vmem:[%s1 + $0x30] sm:$0xff]
      %v232 = vld [vmem:[%s1 + $0x38] sm:$0xff]
      %v233 = vld [vmem:[%s1 + $0x40] sm:$0xff]
      %v234 = vld [vmem:[%s1 + $0x48] sm:$0xff]
      %v235 = vld [vmem:[%s1 + $0x50] sm:$0xff]
      %v236 = vld [vmem:[%s1 + $0x58] sm:$0xff]
      %v237 = vld [vmem:[%s1 + $0x60] sm:$0xff]
      %v238 = vld [vmem:[%s1 + $0x68] sm:$0xff]
      %v239 = vld [vmem:[%s1 + $0x70] sm:$0xff]
      %v240 = vld [vmem:[%s1 + $0x78] sm:$0xff]
      %v241 = vld [vmem:[%s1 + $0x80] sm:$0xff]
      %v242 = vld [vmem:[%s1 + $0x88] sm:$0xff]
      %v243 = vld [vmem:[%s1 + $0x90] sm:$0xff]
      %v244 = vld [vmem:[%s1 + $0x98] sm:$0xff]
      %v245 = vld [vmem:[%s1 + $0xa0] sm:$0xff]
      %v246 = vld [vmem:[%s1 + $0xa8] sm:$0xff]
      %v247 = vld [vmem:[%s1 + $0xb0] sm:$0xff]
      %v248 = vld [vmem:[%s1 + $0xb8] sm:$0xff]
      %v249 = vld [vmem:[%s1 + $0xc0] sm:$0xff]
      %v250 = vld [vmem:[%s1 + $0xc8] sm:$0xff]
      %v251 = vld [vmem:[%s1 + $0xd0] sm:$0xff]
      %v252 = vld [vmem:[%s1 + $0xd8] sm:$0xff]
      %v253 = vld [vmem:[%s1 + $0xe0] sm:$0xff]
      %v254 = vld [vmem:[%s1 + $0xe8] sm:$0xff]
      %v255 = vld [vmem:[%s1 + $0xf0] sm:$0xff]
      %v256 = vld [vmem:[%s1 + $0xf8] sm:$0xff]
      %v257 = vld [vmem:[%s1 + $0x100] sm:$0xff]
      %v258 = vld [vmem:[%s1 + $0x108] sm:$0xff]
      %v259 = vld [vmem:[%s1 + $0x110] sm:$0xff]
      %v260 = vld [vmem:[%s1 + $0x118] sm:$0xff]
      %v261 = vld [vmem:[%s1 + $0x120] sm:$0xff]
      %v262 = vld [vmem:[%s1 + $0x128] sm:$0xff]
      %v263 = vld [vmem:[%s1 + $0x130] sm:$0xff]
      %v264 = vld [vmem:[%s1 + $0x138] sm:$0xff]
      %v265 = vld [vmem:[%s1 + $0x140] sm:$0xff]
      %v266 = vld [vmem:[%s1 + $0x148] sm:$0xff]
      %v267 = vld [vmem:[%s1 + $0x150] sm:$0xff]
      %v268 = vld [vmem:[%s1 + $0x158] sm:$0xff]
      %v269 = vld [vmem:[%s1 + $0x160] sm:$0xff]
      %v270 = vld [vmem:[%s1 + $0x168] sm:$0xff]
      %v271 = vld [vmem:[%s1 + $0x170] sm:$0xff]
      %v272 = vld [vmem:[%s1 + $0x178] sm:$0xff]
      %v273 = vld [vmem:[%s1 + $0x180] sm:$0xff]
      %v274 = vld [vmem:[%s1 + $0x188] sm:$0xff]
      %v275 = vld [vmem:[%s2] sm:$0x1]
      %v277 = vlaneseq
      %v278 = vshrl.u32 %v277, 7
      %v279 = vsub.s32 0, %v278
      %v280 = vrot.slane %v275, %v279
      %v284 = vcombine.high %v223, %v223
      %v285 = vcombine.high %v224, %v224
      %vm287 = vcmask 130048
      %v288 = vsel %vm287, %v285, 0
      %290 = vmatprep.subr.mxu0 0.0
      %291 = vmatpush1.msra.mxu0 %v240
      %292 = vmatprep.subr.mxu0 0.0
      %293 = vmatpush1.msra.mxu0 %v239
      %294 = vmatprep.subr.mxu0 0.0
      %295 = vmatpush1.msra.mxu0 %v238
      %296 = vmatprep.subr.mxu0 0.0
      %297 = vmatpush1.msra.mxu0 %v237
      %298 = vmatprep.subr.mxu0 0.0
      %299 = vmatpush1.msra.mxu0 %v236
      %300 = vmatprep.subr.mxu0 0.0
      %301 = vmatpush1.msra.mxu0 %v235
      %302 = vmatprep.subr.mxu0 0.0
      %303 = vmatpush1.msra.mxu0 %v234
      %304 = vmatprep.subr.mxu0 0.0
      %305 = vmatpush1.msra.mxu0 %v233
      %306 = vmatprep.subr.mxu0 0.0
      %307 = vmatpush1.msra.mxu0 %v232
      %308 = vmatprep.subr.mxu0 0.0
      %309 = vmatpush1.msra.mxu0 %v231
      %310 = vmatprep.subr.mxu0 0.0
      %311 = vmatpush1.msra.mxu0 %v230
      %312 = vmatprep.subr.mxu0 0.0
      %313 = vmatpush1.msra.mxu0 %v229
      %314 = vmatprep.subr.mxu0 0.0
      %315 = vmatpush1.msra.mxu0 %v228
      %316 = vmatprep.subr.mxu0 0.0
      %317 = vmatpush1.msra.mxu0 %v227
      %318 = vmatprep.subr.mxu0 0.0
      %319 = vmatpush1.msra.mxu0 %v226
      %320 = vmatprep.subr.mxu0 0.0
      %321 = vmatpush1.msra.mxu0 %v225
      %322 = vmatprep.subr.mxu0 0.0
      %323 = vmatpush2.msra.mxu0 %v256
      %324 = vmatprep.subr.mxu0 0.0
      %325 = vmatpush2.msra.mxu0 %v255
      %326 = vmatprep.subr.mxu0 0.0
      %327 = vmatpush2.msra.mxu0 %v254
      %328 = vmatprep.subr.mxu0 0.0
      %329 = vmatpush2.msra.mxu0 %v253
      %330 = vmatprep.subr.mxu0 0.0
      %331 = vmatpush2.msra.mxu0 %v252
      %332 = vmatprep.subr.mxu0 0.0
      %333 = vmatpush2.msra.mxu0 %v251
      %334 = vmatprep.subr.mxu0 0.0
      %335 = vmatpush2.msra.mxu0 %v250
      %336 = vmatprep.subr.mxu0 0.0
      %337 = vmatpush2.msra.mxu0 %v249
      %338 = vmatprep.subr.mxu0 0.0
      %339 = vmatpush2.msra.mxu0 %v248
      %340 = vmatprep.subr.mxu0 0.0
      %341 = vmatpush2.msra.mxu0 %v247
      %342 = vmatprep.subr.mxu0 0.0
      %343 = vmatpush2.msra.mxu0 %v246
      %344 = vmatprep.subr.mxu0 0.0
      %345 = vmatpush2.msra.mxu0 %v245
      %346 = vmatprep.subr.mxu0 0.0
      %347 = vmatpush2.msra.mxu0 %v244
      %348 = vmatprep.subr.mxu0 0.0
      %349 = vmatpush2.msra.mxu0 %v243
      %350 = vmatprep.subr.mxu0 0.0
      %351 = vmatpush2.msra.mxu0 %v242
      %352 = vmatprep.subr.mxu0 0.0
      %353 = vmatpush2.msra.mxu0 %v241
      %354 = vmatprep.mubr.f32.mxu0 %v284
      %355 = vmatmul.mubr.f32.gmra.mxu0 %v223
      %v356 = vpop.f32.mrf.mxu0
      %v357 = vadd.f32 %v280, %v356
      %v358 = vpop.f32.mrf.mxu0
      %359 = vdwg.mxu0
      %360 = vmatprep.subr.mxu0 0.0
      %361 = vmatpush1.msra.mxu0 %v272
      %362 = vmatprep.subr.mxu0 0.0
      %363 = vmatpush1.msra.mxu0 %v271
      %364 = vmatprep.subr.mxu0 0.0
      %365 = vmatpush1.msra.mxu0 %v270
      %366 = vmatprep.subr.mxu0 0.0
      %367 = vmatpush1.msra.mxu0 %v269
      %368 = vmatprep.subr.mxu0 0.0
      %369 = vmatpush1.msra.mxu0 %v268
      %370 = vmatprep.subr.mxu0 0.0
      %371 = vmatpush1.msra.mxu0 %v267
      %372 = vmatprep.subr.mxu0 0.0
      %373 = vmatpush1.msra.mxu0 %v266
      %374 = vmatprep.subr.mxu0 0.0
      %375 = vmatpush1.msra.mxu0 %v265
      %376 = vmatprep.subr.mxu0 0.0
      %377 = vmatpush1.msra.mxu0 %v264
      %378 = vmatprep.subr.mxu0 0.0
      %379 = vmatpush1.msra.mxu0 %v263
      %380 = vmatprep.subr.mxu0 0.0
      %381 = vmatpush1.msra.mxu0 %v262
      %382 = vmatprep.subr.mxu0 0.0
      %383 = vmatpush1.msra.mxu0 %v261
      %384 = vmatprep.subr.mxu0 0.0
      %385 = vmatpush1.msra.mxu0 %v260
      %386 = vmatprep.subr.mxu0 0.0
      %387 = vmatpush1.msra.mxu0 %v259
      %388 = vmatprep.subr.mxu0 0.0
      %389 = vmatpush1.msra.mxu0 %v258
      %390 = vmatprep.subr.mxu0 0.0
      %391 = vmatpush1.msra.mxu0 %v257
      %392 = vmatprep.subr.mxu0 0.0
      %393 = vmatpush2.msra.mxu0 0.0
      %394 = vmatprep.subr.mxu0 0.0
      %395 = vmatpush2.msra.mxu0 0.0
      %396 = vmatprep.subr.mxu0 0.0
      %397 = vmatpush2.msra.mxu0 0.0
      %398 = vmatprep.subr.mxu0 0.0
      %399 = vmatpush2.msra.mxu0 0.0
      %400 = vmatprep.subr.mxu0 0.0
      %401 = vmatpush2.msra.mxu0 0.0
      %402 = vmatprep.subr.mxu0 0.0
      %403 = vmatpush2.msra.mxu0 0.0
      %404 = vmatprep.subr.mxu0 0.0
      %405 = vmatpush2.msra.mxu0 0.0
      %406 = vmatprep.subr.mxu0 0.0
      %407 = vmatpush2.msra.mxu0 0.0
      %408 = vmatprep.subr.mxu0 0.0
      %409 = vmatpush2.msra.mxu0 0.0
      %410 = vmatprep.subr.mxu0 0.0
      %411 = vmatpush2.msra.mxu0 0.0
      %412 = vmatprep.subr.mxu0 0.0
      %413 = vmatpush2.msra.mxu0 0.0
      %414 = vmatprep.subr.mxu0 0.0
      %415 = vmatpush2.msra.mxu0 0.0
      %416 = vmatprep.subr.mxu0 0.0
      %417 = vmatpush2.msra.mxu0 0.0
      %418 = vmatprep.subr.mxu0 0.0
      %419 = vmatpush2.msra.mxu0 0.0
      %420 = vmatprep.subr.mxu0 0.0
      %421 = vmatpush2.msra.mxu0 %v274
      %422 = vmatprep.subr.mxu0 0.0
      %423 = vmatpush2.msra.mxu0 %v273
      %424 = vmatprep.mubr.f32.mxu0 %v288
      %425 = vmatmul.mubr.f32.gmra.mxu0 %v224
      %v426 = vpop.f32.mrf.mxu0
      %v427 = vadd.f32 %v357, %v426
      %v428 = vpop.f32.mrf.mxu0
      %429 = vdwg.mxu0
      %vm430 = vcmask 518144
      %431 = vst.msk [vmem:[#allocation2] sm:$0x7] %vm430, 0.0
      %432 = vst.msk [vmem:[#allocation2 + $0x7] sm:$0x7] %vm430, 0.0
      %vm433 = vcmask 519168
      %434 = vst.msk [vmem:[#allocation2 + $0x3] sm:$0xf] %vm433, %v427
      %v435 = vlaneseq
      %v436 = vshrl.u32 %v435, 7
      %vm437 = vcmp.lt.s32.totalorder %v436, 0
      %v438 = vsub.s32 0, %v436
      %v439 = vsel %vm437, %v438, %v436
      %v440 = vshrl.u32 %v439, 1
      %v441 = vand.u32 %v439, 1
      %v442 = vsub.s32 0, %v441
      %v443 = vsel %vm437, %v442, %v441
      %vm444 = vcmp.ne.s32.totalorder %v443, 0
      %vm445 = vcmp.lt.s32.totalorder %v443, 0
      %vm446 = vmand %vm445, %vm444
      %v447 = vadd.s32 %v443, 2
      %v448 = vsel %vm446, %v447, %v443
      %vm449 = vcmp.ge.s32.totalorder %v448, 1
      %v450 = vsel %vm449, 1, 0
      %v451 = vcvt.s32.f32 %v450
      %vm452 = vcmp.le.s32.totalorder %v448, 0
      %v453 = vsel %vm452, 1, 0
      %v454 = vcvt.s32.f32 %v453
      %v455 = vld [vmem:[#allocation2] sm:$0xf]
      %v456 = vmul.f32 %v455, %v451
      %v457 = vld [vmem:[%s3] sm:$0xff]
      %v458 = vld [vmem:[%s3 + $0x8] sm:$0xff]
      %v459 = vld [vmem:[%s3 + $0x10] sm:$0xff]
      %v460 = vld [vmem:[%s3 + $0x18] sm:$0xff]
      %v461 = vld [vmem:[%s3 + $0x20] sm:$0xff]
      %v462 = vld [vmem:[%s3 + $0x28] sm:$0xff]
      %v463 = vld [vmem:[%s3 + $0x30] sm:$0xff]
      %v464 = vld [vmem:[%s3 + $0x38] sm:$0xff]
      %v465 = vld [vmem:[#allocation2 + $0x1] sm:$0xf]
      %s466 = scalar_lea.vmem %s3, 64
      %v467 = vld [vmem:[%s466] sm:$0xff]
      %v468 = vld [vmem:[%s466 + $0x8] sm:$0xff]
      %v469 = vld [vmem:[%s466 + $0x10] sm:$0xff]
      %v470 = vld [vmem:[%s466 + $0x18] sm:$0xff]
      %v471 = vld [vmem:[%s466 + $0x20] sm:$0xff]
      %v472 = vld [vmem:[%s466 + $0x28] sm:$0xff]
      %v473 = vld [vmem:[%s466 + $0x30] sm:$0xff]
      %v474 = vld [vmem:[%s466 + $0x38] sm:$0xff]
      %vm475 = vcmask 523264
      %v477 = vsel %vm475, %v465, 0
      %479 = vmatprep.subr.mxu0 0.0
      %480 = vmatpush1.msra.mxu0 0.0
      %481 = vmatprep.subr.mxu0 0.0
      %482 = vmatpush1.msra.mxu0 0.0
      %483 = vmatprep.subr.mxu0 0.0
      %484 = vmatpush1.msra.mxu0 0.0
      %485 = vmatprep.subr.mxu0 0.0
      %486 = vmatpush1.msra.mxu0 0.0
      %487 = vmatprep.subr.mxu0 0.0
      %488 = vmatpush1.msra.mxu0 0.0
      %489 = vmatprep.subr.mxu0 0.0
      %490 = vmatpush1.msra.mxu0 0.0
      %491 = vmatprep.subr.mxu0 0.0
      %492 = vmatpush1.msra.mxu0 0.0
      %493 = vmatprep.subr.mxu0 0.0
      %494 = vmatpush1.msra.mxu0 0.0
      %495 = vmatprep.subr.mxu0 0.0
      %496 = vmatpush1.msra.mxu0 %v474
      %497 = vmatprep.subr.mxu0 0.0
      %498 = vmatpush1.msra.mxu0 %v473
      %499 = vmatprep.subr.mxu0 0.0
      %500 = vmatpush1.msra.mxu0 %v472
      %501 = vmatprep.subr.mxu0 0.0
      %502 = vmatpush1.msra.mxu0 %v471
      %503 = vmatprep.subr.mxu0 0.0
      %504 = vmatpush1.msra.mxu0 %v470
      %505 = vmatprep.subr.mxu0 0.0
      %506 = vmatpush1.msra.mxu0 %v469
      %507 = vmatprep.subr.mxu0 0.0
      %508 = vmatpush1.msra.mxu0 %v468
      %509 = vmatprep.subr.mxu0 0.0
      %510 = vmatpush1.msra.mxu0 %v467
      %511 = vmatprep.subr.mxu0 0.0
      %512 = vmatpush2.msra.mxu0 0.0
      %513 = vmatprep.subr.mxu0 0.0
      %514 = vmatpush2.msra.mxu0 0.0
      %515 = vmatprep.subr.mxu0 0.0
      %516 = vmatpush2.msra.mxu0 0.0
      %517 = vmatprep.subr.mxu0 0.0
      %518 = vmatpush2.msra.mxu0 0.0
      %519 = vmatprep.subr.mxu0 0.0
      %520 = vmatpush2.msra.mxu0 0.0
      %521 = vmatprep.subr.mxu0 0.0
      %522 = vmatpush2.msra.mxu0 0.0
      %523 = vmatprep.subr.mxu0 0.0
      %524 = vmatpush2.msra.mxu0 0.0
      %525 = vmatprep.subr.mxu0 0.0
      %526 = vmatpush2.msra.mxu0 0.0
      %527 = vmatprep.subr.mxu0 0.0
      %528 = vmatpush2.msra.mxu0 0.0
      %529 = vmatprep.subr.mxu0 0.0
      %530 = vmatpush2.msra.mxu0 0.0
      %531 = vmatprep.subr.mxu0 0.0
      %532 = vmatpush2.msra.mxu0 0.0
      %533 = vmatprep.subr.mxu0 0.0
      %534 = vmatpush2.msra.mxu0 0.0
      %535 = vmatprep.subr.mxu0 0.0
      %536 = vmatpush2.msra.mxu0 0.0
      %537 = vmatprep.subr.mxu0 0.0
      %538 = vmatpush2.msra.mxu0 0.0
      %539 = vmatprep.subr.mxu0 0.0
      %540 = vmatpush2.msra.mxu0 0.0
      %541 = vmatprep.subr.mxu0 0.0
      %542 = vmatpush2.msra.mxu0 0.0
      %543 = vmatprep.mubr.f32.mxu0 0.0
      %544 = vmatmul.mubr.f32.gmra.mxu0 %v477
      %v545 = vpop.f32.mrf.mxu0
      %v546 = vadd.f32 0.0, %v545
      %v547 = vpop.f32.mrf.mxu0
      %548 = vdwg.mxu0
      %v550 = vsel %vm475, %v456, 0
      %552 = vmatprep.subr.mxu0 0.0
      %553 = vmatpush1.msra.mxu0 0.0
      %554 = vmatprep.subr.mxu0 0.0
      %555 = vmatpush1.msra.mxu0 0.0
      %556 = vmatprep.subr.mxu0 0.0
      %557 = vmatpush1.msra.mxu0 0.0
      %558 = vmatprep.subr.mxu0 0.0
      %559 = vmatpush1.msra.mxu0 0.0
      %560 = vmatprep.subr.mxu0 0.0
      %561 = vmatpush1.msra.mxu0 0.0
      %562 = vmatprep.subr.mxu0 0.0
      %563 = vmatpush1.msra.mxu0 0.0
      %564 = vmatprep.subr.mxu0 0.0
      %565 = vmatpush1.msra.mxu0 0.0
      %566 = vmatprep.subr.mxu0 0.0
      %567 = vmatpush1.msra.mxu0 0.0
      %568 = vmatprep.subr.mxu0 0.0
      %569 = vmatpush1.msra.mxu0 %v464
      %570 = vmatprep.subr.mxu0 0.0
      %571 = vmatpush1.msra.mxu0 %v463
      %572 = vmatprep.subr.mxu0 0.0
      %573 = vmatpush1.msra.mxu0 %v462
      %574 = vmatprep.subr.mxu0 0.0
      %575 = vmatpush1.msra.mxu0 %v461
      %576 = vmatprep.subr.mxu0 0.0
      %577 = vmatpush1.msra.mxu0 %v460
      %578 = vmatprep.subr.mxu0 0.0
      %579 = vmatpush1.msra.mxu0 %v459
      %580 = vmatprep.subr.mxu0 0.0
      %581 = vmatpush1.msra.mxu0 %v458
      %582 = vmatprep.subr.mxu0 0.0
      %583 = vmatpush1.msra.mxu0 %v457
      %584 = vmatprep.subr.mxu0 0.0
      %585 = vmatpush2.msra.mxu0 0.0
      %586 = vmatprep.subr.mxu0 0.0
      %587 = vmatpush2.msra.mxu0 0.0
      %588 = vmatprep.subr.mxu0 0.0
      %589 = vmatpush2.msra.mxu0 0.0
      %590 = vmatprep.subr.mxu0 0.0
      %591 = vmatpush2.msra.mxu0 0.0
      %592 = vmatprep.subr.mxu0 0.0
      %593 = vmatpush2.msra.mxu0 0.0
      %594 = vmatprep.subr.mxu0 0.0
      %595 = vmatpush2.msra.mxu0 0.0
      %596 = vmatprep.subr.mxu0 0.0
      %597 = vmatpush2.msra.mxu0 0.0
      %598 = vmatprep.subr.mxu0 0.0
      %599 = vmatpush2.msra.mxu0 0.0
      %600 = vmatprep.subr.mxu0 0.0
      %601 = vmatpush2.msra.mxu0 0.0
      %602 = vmatprep.subr.mxu0 0.0
      %603 = vmatpush2.msra.mxu0 0.0
      %604 = vmatprep.subr.mxu0 0.0
      %605 = vmatpush2.msra.mxu0 0.0
      %606 = vmatprep.subr.mxu0 0.0
      %607 = vmatpush2.msra.mxu0 0.0
      %608 = vmatprep.subr.mxu0 0.0
      %609 = vmatpush2.msra.mxu0 0.0
      %610 = vmatprep.subr.mxu0 0.0
      %611 = vmatpush2.msra.mxu0 0.0
      %612 = vmatprep.subr.mxu0 0.0
      %613 = vmatpush2.msra.mxu0 0.0
      %614 = vmatprep.subr.mxu0 0.0
      %615 = vmatpush2.msra.mxu0 0.0
      %616 = vmatprep.mubr.f32.mxu0 0.0
      %617 = vmatmul.mubr.f32.gmra.mxu0 %v550
      %v618 = vpop.f32.mrf.mxu0
      %v619 = vadd.f32 %v546, %v618
      %v620 = vpop.f32.mrf.mxu0
      %621 = vdwg.mxu0
      %v622 = vld [vmem:[#allocation2 + $0x2] sm:$0xf]
      %v623 = vmul.f32 %v622, %v454
      %s624 = scalar_lea.vmem %s3, 128
      %v625 = vld [vmem:[%s624] sm:$0xff]
      %v626 = vld [vmem:[%s624 + $0x8] sm:$0xff]
      %v627 = vld [vmem:[%s624 + $0x10] sm:$0xff]
      %v628 = vld [vmem:[%s624 + $0x18] sm:$0xff]
      %v629 = vld [vmem:[%s624 + $0x20] sm:$0xff]
      %v630 = vld [vmem:[%s624 + $0x28] sm:$0xff]
      %v631 = vld [vmem:[%s624 + $0x30] sm:$0xff]
      %v632 = vld [vmem:[%s624 + $0x38] sm:$0xff]
      %v634 = vsel %vm475, %v623, 0
      %636 = vmatprep.subr.mxu0 0.0
      %637 = vmatpush1.msra.mxu0 0.0
      %638 = vmatprep.subr.mxu0 0.0
      %639 = vmatpush1.msra.mxu0 0.0
      %640 = vmatprep.subr.mxu0 0.0
      %641 = vmatpush1.msra.mxu0 0.0
      %642 = vmatprep.subr.mxu0 0.0
      %643 = vmatpush1.msra.mxu0 0.0
      %644 = vmatprep.subr.mxu0 0.0
      %645 = vmatpush1.msra.mxu0 0.0
      %646 = vmatprep.subr.mxu0 0.0
      %647 = vmatpush1.msra.mxu0 0.0
      %648 = vmatprep.subr.mxu0 0.0
      %649 = vmatpush1.msra.mxu0 0.0
      %650 = vmatprep.subr.mxu0 0.0
      %651 = vmatpush1.msra.mxu0 0.0
      %652 = vmatprep.subr.mxu0 0.0
      %653 = vmatpush1.msra.mxu0 %v632
      %654 = vmatprep.subr.mxu0 0.0
      %655 = vmatpush1.msra.mxu0 %v631
      %656 = vmatprep.subr.mxu0 0.0
      %657 = vmatpush1.msra.mxu0 %v630
      %658 = vmatprep.subr.mxu0 0.0
      %659 = vmatpush1.msra.mxu0 %v629
      %660 = vmatprep.subr.mxu0 0.0
      %661 = vmatpush1.msra.mxu0 %v628
      %662 = vmatprep.subr.mxu0 0.0
      %663 = vmatpush1.msra.mxu0 %v627
      %664 = vmatprep.subr.mxu0 0.0
      %665 = vmatpush1.msra.mxu0 %v626
      %666 = vmatprep.subr.mxu0 0.0
      %667 = vmatpush1.msra.mxu0 %v625
      %668 = vmatprep.subr.mxu0 0.0
      %669 = vmatpush2.msra.mxu0 0.0
      %670 = vmatprep.subr.mxu0 0.0
      %671 = vmatpush2.msra.mxu0 0.0
      %672 = vmatprep.subr.mxu0 0.0
      %673 = vmatpush2.msra.mxu0 0.0
      %674 = vmatprep.subr.mxu0 0.0
      %675 = vmatpush2.msra.mxu0 0.0
      %676 = vmatprep.subr.mxu0 0.0
      %677 = vmatpush2.msra.mxu0 0.0
      %678 = vmatprep.subr.mxu0 0.0
      %679 = vmatpush2.msra.mxu0 0.0
      %680 = vmatprep.subr.mxu0 0.0
      %681 = vmatpush2.msra.mxu0 0.0
      %682 = vmatprep.subr.mxu0 0.0
      %683 = vmatpush2.msra.mxu0 0.0
      %684 = vmatprep.subr.mxu0 0.0
      %685 = vmatpush2.msra.mxu0 0.0
      %686 = vmatprep.subr.mxu0 0.0
      %687 = vmatpush2.msra.mxu0 0.0
      %688 = vmatprep.subr.mxu0 0.0
      %689 = vmatpush2.msra.mxu0 0.0
      %690 = vmatprep.subr.mxu0 0.0
      %691 = vmatpush2.msra.mxu0 0.0
      %692 = vmatprep.subr.mxu0 0.0
      %693 = vmatpush2.msra.mxu0 0.0
      %694 = vmatprep.subr.mxu0 0.0
      %695 = vmatpush2.msra.mxu0 0.0
      %696 = vmatprep.subr.mxu0 0.0
      %697 = vmatpush2.msra.mxu0 0.0
      %698 = vmatprep.subr.mxu0 0.0
      %699 = vmatpush2.msra.mxu0 0.0
      %700 = vmatprep.mubr.f32.mxu0 0.0
      %701 = vmatmul.mubr.f32.gmra.mxu0 %v634
      %v702 = vpop.f32.mrf.mxu0
      %v703 = vadd.f32 0.0, %v702
      %v704 = vpop.f32.mrf.mxu0
      %705 = vdwg.mxu0
      %v706 = vadd.f32 %v619, %v703
      %v707 = vmul.f32 %v622, %v451
      %s708 = scalar_lea.vmem %s3, 192
      %v709 = vld [vmem:[%s708] sm:$0xff]
      %v710 = vld [vmem:[%s708 + $0x8] sm:$0xff]
      %v711 = vld [vmem:[%s708 + $0x10] sm:$0xff]
      %v712 = vld [vmem:[%s708 + $0x18] sm:$0xff]
      %v713 = vld [vmem:[%s708 + $0x20] sm:$0xff]
      %v714 = vld [vmem:[%s708 + $0x28] sm:$0xff]
      %v715 = vld [vmem:[%s708 + $0x30] sm:$0xff]
      %v716 = vld [vmem:[%s708 + $0x38] sm:$0xff]
      %v718 = vsel %vm475, %v707, 0
      %720 = vmatprep.subr.mxu0 0.0
      %721 = vmatpush1.msra.mxu0 0.0
      %722 = vmatprep.subr.mxu0 0.0
      %723 = vmatpush1.msra.mxu0 0.0
      %724 = vmatprep.subr.mxu0 0.0
      %725 = vmatpush1.msra.mxu0 0.0
      %726 = vmatprep.subr.mxu0 0.0
      %727 = vmatpush1.msra.mxu0 0.0
      %728 = vmatprep.subr.mxu0 0.0
      %729 = vmatpush1.msra.mxu0 0.0
      %730 = vmatprep.subr.mxu0 0.0
      %731 = vmatpush1.msra.mxu0 0.0
      %732 = vmatprep.subr.mxu0 0.0
      %733 = vmatpush1.msra.mxu0 0.0
      %734 = vmatprep.subr.mxu0 0.0
      %735 = vmatpush1.msra.mxu0 0.0
      %736 = vmatprep.subr.mxu0 0.0
      %737 = vmatpush1.msra.mxu0 %v716
      %738 = vmatprep.subr.mxu0 0.0
      %739 = vmatpush1.msra.mxu0 %v715
      %740 = vmatprep.subr.mxu0 0.0
      %741 = vmatpush1.msra.mxu0 %v714
      %742 = vmatprep.subr.mxu0 0.0
      %743 = vmatpush1.msra.mxu0 %v713
      %744 = vmatprep.subr.mxu0 0.0
      %745 = vmatpush1.msra.mxu0 %v712
      %746 = vmatprep.subr.mxu0 0.0
      %747 = vmatpush1.msra.mxu0 %v711
      %748 = vmatprep.subr.mxu0 0.0
      %749 = vmatpush1.msra.mxu0 %v710
      %750 = vmatprep.subr.mxu0 0.0
      %751 = vmatpush1.msra.mxu0 %v709
      %752 = vmatprep.subr.mxu0 0.0
      %753 = vmatpush2.msra.mxu0 0.0
      %754 = vmatprep.subr.mxu0 0.0
      %755 = vmatpush2.msra.mxu0 0.0
      %756 = vmatprep.subr.mxu0 0.0
      %757 = vmatpush2.msra.mxu0 0.0
      %758 = vmatprep.subr.mxu0 0.0
      %759 = vmatpush2.msra.mxu0 0.0
      %760 = vmatprep.subr.mxu0 0.0
      %761 = vmatpush2.msra.mxu0 0.0
      %762 = vmatprep.subr.mxu0 0.0
      %763 = vmatpush2.msra.mxu0 0.0
      %764 = vmatprep.subr.mxu0 0.0
      %765 = vmatpush2.msra.mxu0 0.0
      %766 = vmatprep.subr.mxu0 0.0
      %767 = vmatpush2.msra.mxu0 0.0
      %768 = vmatprep.subr.mxu0 0.0
      %769 = vmatpush2.msra.mxu0 0.0
      %770 = vmatprep.subr.mxu0 0.0
      %771 = vmatpush2.msra.mxu0 0.0
      %772 = vmatprep.subr.mxu0 0.0
      %773 = vmatpush2.msra.mxu0 0.0
      %774 = vmatprep.subr.mxu0 0.0
      %775 = vmatpush2.msra.mxu0 0.0
      %776 = vmatprep.subr.mxu0 0.0
      %777 = vmatpush2.msra.mxu0 0.0
      %778 = vmatprep.subr.mxu0 0.0
      %779 = vmatpush2.msra.mxu0 0.0
      %780 = vmatprep.subr.mxu0 0.0
      %781 = vmatpush2.msra.mxu0 0.0
      %782 = vmatprep.subr.mxu0 0.0
      %783 = vmatpush2.msra.mxu0 0.0
      %784 = vmatprep.mubr.f32.mxu0 0.0
      %785 = vmatmul.mubr.f32.gmra.mxu0 %v718
      %v786 = vpop.f32.mrf.mxu0
      %v787 = vadd.f32 0.0, %v786
      %v788 = vpop.f32.mrf.mxu0
      %789 = vdwg.mxu0
      %v790 = vadd.f32 %v706, %v787
      %v791 = vld [vmem:[#allocation2 + $0x3] sm:$0xf]
      %s792 = scalar_lea.vmem %s3, 256
      %v793 = vld [vmem:[%s792] sm:$0xff]
      %v794 = vld [vmem:[%s792 + $0x8] sm:$0xff]
      %v795 = vld [vmem:[%s792 + $0x10] sm:$0xff]
      %v796 = vld [vmem:[%s792 + $0x18] sm:$0xff]
      %v797 = vld [vmem:[%s792 + $0x20] sm:$0xff]
      %v798 = vld [vmem:[%s792 + $0x28] sm:$0xff]
      %v799 = vld [vmem:[%s792 + $0x30] sm:$0xff]
      %v800 = vld [vmem:[%s792 + $0x38] sm:$0xff]
      %v802 = vsel %vm475, %v791, 0
      %804 = vmatprep.subr.mxu0 0.0
      %805 = vmatpush1.msra.mxu0 0.0
      %806 = vmatprep.subr.mxu0 0.0
      %807 = vmatpush1.msra.mxu0 0.0
      %808 = vmatprep.subr.mxu0 0.0
      %809 = vmatpush1.msra.mxu0 0.0
      %810 = vmatprep.subr.mxu0 0.0
      %811 = vmatpush1.msra.mxu0 0.0
      %812 = vmatprep.subr.mxu0 0.0
      %813 = vmatpush1.msra.mxu0 0.0
      %814 = vmatprep.subr.mxu0 0.0
      %815 = vmatpush1.msra.mxu0 0.0
      %816 = vmatprep.subr.mxu0 0.0
      %817 = vmatpush1.msra.mxu0 0.0
      %818 = vmatprep.subr.mxu0 0.0
      %819 = vmatpush1.msra.mxu0 0.0
      %820 = vmatprep.subr.mxu0 0.0
      %821 = vmatpush1.msra.mxu0 %v800
      %822 = vmatprep.subr.mxu0 0.0
      %823 = vmatpush1.msra.mxu0 %v799
      %824 = vmatprep.subr.mxu0 0.0
      %825 = vmatpush1.msra.mxu0 %v798
      %826 = vmatprep.subr.mxu0 0.0
      %827 = vmatpush1.msra.mxu0 %v797
      %828 = vmatprep.subr.mxu0 0.0
      %829 = vmatpush1.msra.mxu0 %v796
      %830 = vmatprep.subr.mxu0 0.0
      %831 = vmatpush1.msra.mxu0 %v795
      %832 = vmatprep.subr.mxu0 0.0
      %833 = vmatpush1.msra.mxu0 %v794
      %834 = vmatprep.subr.mxu0 0.0
      %835 = vmatpush1.msra.mxu0 %v793
      %836 = vmatprep.subr.mxu0 0.0
      %837 = vmatpush2.msra.mxu0 0.0
      %838 = vmatprep.subr.mxu0 0.0
      %839 = vmatpush2.msra.mxu0 0.0
      %840 = vmatprep.subr.mxu0 0.0
      %841 = vmatpush2.msra.mxu0 0.0
      %842 = vmatprep.subr.mxu0 0.0
      %843 = vmatpush2.msra.mxu0 0.0
      %844 = vmatprep.subr.mxu0 0.0
      %845 = vmatpush2.msra.mxu0 0.0
      %846 = vmatprep.subr.mxu0 0.0
      %847 = vmatpush2.msra.mxu0 0.0
      %848 = vmatprep.subr.mxu0 0.0
      %849 = vmatpush2.msra.mxu0 0.0
      %850 = vmatprep.subr.mxu0 0.0
      %851 = vmatpush2.msra.mxu0 0.0
      %852 = vmatprep.subr.mxu0 0.0
      %853 = vmatpush2.msra.mxu0 0.0
      %854 = vmatprep.subr.mxu0 0.0
      %855 = vmatpush2.msra.mxu0 0.0
      %856 = vmatprep.subr.mxu0 0.0
      %857 = vmatpush2.msra.mxu0 0.0
      %858 = vmatprep.subr.mxu0 0.0
      %859 = vmatpush2.msra.mxu0 0.0
      %860 = vmatprep.subr.mxu0 0.0
      %861 = vmatpush2.msra.mxu0 0.0
      %862 = vmatprep.subr.mxu0 0.0
      %863 = vmatpush2.msra.mxu0 0.0
      %864 = vmatprep.subr.mxu0 0.0
      %865 = vmatpush2.msra.mxu0 0.0
      %866 = vmatprep.subr.mxu0 0.0
      %867 = vmatpush2.msra.mxu0 0.0
      %868 = vmatprep.mubr.f32.mxu0 0.0
      %869 = vmatmul.mubr.f32.gmra.mxu0 %v802
      %v870 = vpop.f32.mrf.mxu0
      %v871 = vadd.f32 0.0, %v870
      %v872 = vpop.f32.mrf.mxu0
      %873 = vdwg.mxu0
      %v874 = vadd.f32 %v790, %v871
      %v875 = vld [vmem:[#allocation2 + $0x4] sm:$0xf]
      %v876 = vmul.f32 %v875, %v454
      %s877 = scalar_lea.vmem %s3, 320
      %v878 = vld [vmem:[%s877] sm:$0xff]
      %v879 = vld [vmem:[%s877 + $0x8] sm:$0xff]
      %v880 = vld [vmem:[%s877 + $0x10] sm:$0xff]
      %v881 = vld [vmem:[%s877 + $0x18] sm:$0xff]
      %v882 = vld [vmem:[%s877 + $0x20] sm:$0xff]
      %v883 = vld [vmem:[%s877 + $0x28] sm:$0xff]
      %v884 = vld [vmem:[%s877 + $0x30] sm:$0xff]
      %v885 = vld [vmem:[%s877 + $0x38] sm:$0xff]
      %v887 = vsel %vm475, %v876, 0
      %889 = vmatprep.subr.mxu0 0.0
      %890 = vmatpush1.msra.mxu0 0.0
      %891 = vmatprep.subr.mxu0 0.0
      %892 = vmatpush1.msra.mxu0 0.0
      %893 = vmatprep.subr.mxu0 0.0
      %894 = vmatpush1.msra.mxu0 0.0
      %895 = vmatprep.subr.mxu0 0.0
      %896 = vmatpush1.msra.mxu0 0.0
      %897 = vmatprep.subr.mxu0 0.0
      %898 = vmatpush1.msra.mxu0 0.0
      %899 = vmatprep.subr.mxu0 0.0
      %900 = vmatpush1.msra.mxu0 0.0
      %901 = vmatprep.subr.mxu0 0.0
      %902 = vmatpush1.msra.mxu0 0.0
      %903 = vmatprep.subr.mxu0 0.0
      %904 = vmatpush1.msra.mxu0 0.0
      %905 = vmatprep.subr.mxu0 0.0
      %906 = vmatpush1.msra.mxu0 %v885
      %907 = vmatprep.subr.mxu0 0.0
      %908 = vmatpush1.msra.mxu0 %v884
      %909 = vmatprep.subr.mxu0 0.0
      %910 = vmatpush1.msra.mxu0 %v883
      %911 = vmatprep.subr.mxu0 0.0
      %912 = vmatpush1.msra.mxu0 %v882
      %913 = vmatprep.subr.mxu0 0.0
      %914 = vmatpush1.msra.mxu0 %v881
      %915 = vmatprep.subr.mxu0 0.0
      %916 = vmatpush1.msra.mxu0 %v880
      %917 = vmatprep.subr.mxu0 0.0
      %918 = vmatpush1.msra.mxu0 %v879
      %919 = vmatprep.subr.mxu0 0.0
      %920 = vmatpush1.msra.mxu0 %v878
      %921 = vmatprep.subr.mxu0 0.0
      %922 = vmatpush2.msra.mxu0 0.0
      %923 = vmatprep.subr.mxu0 0.0
      %924 = vmatpush2.msra.mxu0 0.0
      %925 = vmatprep.subr.mxu0 0.0
      %926 = vmatpush2.msra.mxu0 0.0
      %927 = vmatprep.subr.mxu0 0.0
      %928 = vmatpush2.msra.mxu0 0.0
      %929 = vmatprep.subr.mxu0 0.0
      %930 = vmatpush2.msra.mxu0 0.0
      %931 = vmatprep.subr.mxu0 0.0
      %932 = vmatpush2.msra.mxu0 0.0
      %933 = vmatprep.subr.mxu0 0.0
      %934 = vmatpush2.msra.mxu0 0.0
      %935 = vmatprep.subr.mxu0 0.0
      %936 = vmatpush2.msra.mxu0 0.0
      %937 = vmatprep.subr.mxu0 0.0
      %938 = vmatpush2.msra.mxu0 0.0
      %939 = vmatprep.subr.mxu0 0.0
      %940 = vmatpush2.msra.mxu0 0.0
      %941 = vmatprep.subr.mxu0 0.0
      %942 = vmatpush2.msra.mxu0 0.0
      %943 = vmatprep.subr.mxu0 0.0
      %944 = vmatpush2.msra.mxu0 0.0
      %945 = vmatprep.subr.mxu0 0.0
      %946 = vmatpush2.msra.mxu0 0.0
      %947 = vmatprep.subr.mxu0 0.0
      %948 = vmatpush2.msra.mxu0 0.0
      %949 = vmatprep.subr.mxu0 0.0
      %950 = vmatpush2.msra.mxu0 0.0
      %951 = vmatprep.subr.mxu0 0.0
      %952 = vmatpush2.msra.mxu0 0.0
      %953 = vmatprep.mubr.f32.mxu0 0.0
      %954 = vmatmul.mubr.f32.gmra.mxu0 %v887
      %v955 = vpop.f32.mrf.mxu0
      %v956 = vadd.f32 0.0, %v955
      %v957 = vpop.f32.mrf.mxu0
      %958 = vdwg.mxu0
      %v959 = vadd.f32 %v874, %v956
      %v960 = vmul.f32 %v875, %v451
      %s961 = scalar_lea.vmem %s3, 384
      %v962 = vld [vmem:[%s961] sm:$0xff]
      %v963 = vld [vmem:[%s961 + $0x8] sm:$0xff]
      %v964 = vld [vmem:[%s961 + $0x10] sm:$0xff]
      %v965 = vld [vmem:[%s961 + $0x18] sm:$0xff]
      %v966 = vld [vmem:[%s961 + $0x20] sm:$0xff]
      %v967 = vld [vmem:[%s961 + $0x28] sm:$0xff]
      %v968 = vld [vmem:[%s961 + $0x30] sm:$0xff]
      %v969 = vld [vmem:[%s961 + $0x38] sm:$0xff]
      %v971 = vsel %vm475, %v960, 0
      %973 = vmatprep.subr.mxu0 0.0
      %974 = vmatpush1.msra.mxu0 0.0
      %975 = vmatprep.subr.mxu0 0.0
      %976 = vmatpush1.msra.mxu0 0.0
      %977 = vmatprep.subr.mxu0 0.0
      %978 = vmatpush1.msra.mxu0 0.0
      %979 = vmatprep.subr.mxu0 0.0
      %980 = vmatpush1.msra.mxu0 0.0
      %981 = vmatprep.subr.mxu0 0.0
      %982 = vmatpush1.msra.mxu0 0.0
      %983 = vmatprep.subr.mxu0 0.0
      %984 = vmatpush1.msra.mxu0 0.0
      %985 = vmatprep.subr.mxu0 0.0
      %986 = vmatpush1.msra.mxu0 0.0
      %987 = vmatprep.subr.mxu0 0.0
      %988 = vmatpush1.msra.mxu0 0.0
      %989 = vmatprep.subr.mxu0 0.0
      %990 = vmatpush1.msra.mxu0 %v969
      %991 = vmatprep.subr.mxu0 0.0
      %992 = vmatpush1.msra.mxu0 %v968
      %993 = vmatprep.subr.mxu0 0.0
      %994 = vmatpush1.msra.mxu0 %v967
      %995 = vmatprep.subr.mxu0 0.0
      %996 = vmatpush1.msra.mxu0 %v966
      %997 = vmatprep.subr.mxu0 0.0
      %998 = vmatpush1.msra.mxu0 %v965
      %999 = vmatprep.subr.mxu0 0.0
      %1000 = vmatpush1.msra.mxu0 %v964
      %1001 = vmatprep.subr.mxu0 0.0
      %1002 = vmatpush1.msra.mxu0 %v963
      %1003 = vmatprep.subr.mxu0 0.0
      %1004 = vmatpush1.msra.mxu0 %v962
      %1005 = vmatprep.subr.mxu0 0.0
      %1006 = vmatpush2.msra.mxu0 0.0
      %1007 = vmatprep.subr.mxu0 0.0
      %1008 = vmatpush2.msra.mxu0 0.0
      %1009 = vmatprep.subr.mxu0 0.0
      %1010 = vmatpush2.msra.mxu0 0.0
      %1011 = vmatprep.subr.mxu0 0.0
      %1012 = vmatpush2.msra.mxu0 0.0
      %1013 = vmatprep.subr.mxu0 0.0
      %1014 = vmatpush2.msra.mxu0 0.0
      %1015 = vmatprep.subr.mxu0 0.0
      %1016 = vmatpush2.msra.mxu0 0.0
      %1017 = vmatprep.subr.mxu0 0.0
      %1018 = vmatpush2.msra.mxu0 0.0
      %1019 = vmatprep.subr.mxu0 0.0
      %1020 = vmatpush2.msra.mxu0 0.0
      %1021 = vmatprep.subr.mxu0 0.0
      %1022 = vmatpush2.msra.mxu0 0.0
      %1023 = vmatprep.subr.mxu0 0.0
      %1024 = vmatpush2.msra.mxu0 0.0
      %1025 = vmatprep.subr.mxu0 0.0
      %1026 = vmatpush2.msra.mxu0 0.0
      %1027 = vmatprep.subr.mxu0 0.0
      %1028 = vmatpush2.msra.mxu0 0.0
      %1029 = vmatprep.subr.mxu0 0.0
      %1030 = vmatpush2.msra.mxu0 0.0
      %1031 = vmatprep.subr.mxu0 0.0
      %1032 = vmatpush2.msra.mxu0 0.0
      %1033 = vmatprep.subr.mxu0 0.0
      %1034 = vmatpush2.msra.mxu0 0.0
      %1035 = vmatprep.subr.mxu0 0.0
      %1036 = vmatpush2.msra.mxu0 0.0
      %1037 = vmatprep.mubr.f32.mxu0 0.0
      %1038 = vmatmul.mubr.f32.gmra.mxu0 %v971
      %v1039 = vpop.f32.mrf.mxu0
      %v1040 = vadd.f32 0.0, %v1039
      %v1041 = vpop.f32.mrf.mxu0
      %1042 = vdwg.mxu0
      %v1043 = vadd.f32 %v959, %v1040
      %v1044 = vld [vmem:[#allocation2 + $0x5] sm:$0xf]
      %s1045 = scalar_lea.vmem %s3, 448
      %v1046 = vld [vmem:[%s1045] sm:$0xff]
      %v1047 = vld [vmem:[%s1045 + $0x8] sm:$0xff]
      %v1048 = vld [vmem:[%s1045 + $0x10] sm:$0xff]
      %v1049 = vld [vmem:[%s1045 + $0x18] sm:$0xff]
      %v1050 = vld [vmem:[%s1045 + $0x20] sm:$0xff]
      %v1051 = vld [vmem:[%s1045 + $0x28] sm:$0xff]
      %v1052 = vld [vmem:[%s1045 + $0x30] sm:$0xff]
      %v1053 = vld [vmem:[%s1045 + $0x38] sm:$0xff]
      %v1055 = vsel %vm475, %v1044, 0
      %1057 = vmatprep.subr.mxu0 0.0
      %1058 = vmatpush1.msra.mxu0 0.0
      %1059 = vmatprep.subr.mxu0 0.0
      %1060 = vmatpush1.msra.mxu0 0.0
      %1061 = vmatprep.subr.mxu0 0.0
      %1062 = vmatpush1.msra.mxu0 0.0
      %1063 = vmatprep.subr.mxu0 0.0
      %1064 = vmatpush1.msra.mxu0 0.0
      %1065 = vmatprep.subr.mxu0 0.0
      %1066 = vmatpush1.msra.mxu0 0.0
      %1067 = vmatprep.subr.mxu0 0.0
      %1068 = vmatpush1.msra.mxu0 0.0
      %1069 = vmatprep.subr.mxu0 0.0
      %1070 = vmatpush1.msra.mxu0 0.0
      %1071 = vmatprep.subr.mxu0 0.0
      %1072 = vmatpush1.msra.mxu0 0.0
      %1073 = vmatprep.subr.mxu0 0.0
      %1074 = vmatpush1.msra.mxu0 %v1053
      %1075 = vmatprep.subr.mxu0 0.0
      %1076 = vmatpush1.msra.mxu0 %v1052
      %1077 = vmatprep.subr.mxu0 0.0
      %1078 = vmatpush1.msra.mxu0 %v1051
      %1079 = vmatprep.subr.mxu0 0.0
      %1080 = vmatpush1.msra.mxu0 %v1050
      %1081 = vmatprep.subr.mxu0 0.0
      %1082 = vmatpush1.msra.mxu0 %v1049
      %1083 = vmatprep.subr.mxu0 0.0
      %1084 = vmatpush1.msra.mxu0 %v1048
      %1085 = vmatprep.subr.mxu0 0.0
      %1086 = vmatpush1.msra.mxu0 %v1047
      %1087 = vmatprep.subr.mxu0 0.0
      %1088 = vmatpush1.msra.mxu0 %v1046
      %1089 = vmatprep.subr.mxu0 0.0
      %1090 = vmatpush2.msra.mxu0 0.0
      %1091 = vmatprep.subr.mxu0 0.0
      %1092 = vmatpush2.msra.mxu0 0.0
      %1093 = vmatprep.subr.mxu0 0.0
      %1094 = vmatpush2.msra.mxu0 0.0
      %1095 = vmatprep.subr.mxu0 0.0
      %1096 = vmatpush2.msra.mxu0 0.0
      %1097 = vmatprep.subr.mxu0 0.0
      %1098 = vmatpush2.msra.mxu0 0.0
      %1099 = vmatprep.subr.mxu0 0.0
      %1100 = vmatpush2.msra.mxu0 0.0
      %1101 = vmatprep.subr.mxu0 0.0
      %1102 = vmatpush2.msra.mxu0 0.0
      %1103 = vmatprep.subr.mxu0 0.0
      %1104 = vmatpush2.msra.mxu0 0.0
      %1105 = vmatprep.subr.mxu0 0.0
      %1106 = vmatpush2.msra.mxu0 0.0
      %1107 = vmatprep.subr.mxu0 0.0
      %1108 = vmatpush2.msra.mxu0 0.0
      %1109 = vmatprep.subr.mxu0 0.0
      %1110 = vmatpush2.msra.mxu0 0.0
      %1111 = vmatprep.subr.mxu0 0.0
      %1112 = vmatpush2.msra.mxu0 0.0
      %1113 = vmatprep.subr.mxu0 0.0
      %1114 = vmatpush2.msra.mxu0 0.0
      %1115 = vmatprep.subr.mxu0 0.0
      %1116 = vmatpush2.msra.mxu0 0.0
      %1117 = vmatprep.subr.mxu0 0.0
      %1118 = vmatpush2.msra.mxu0 0.0
      %1119 = vmatprep.subr.mxu0 0.0
      %1120 = vmatpush2.msra.mxu0 0.0
      %1121 = vmatprep.mubr.f32.mxu0 0.0
      %1122 = vmatmul.mubr.f32.gmra.mxu0 %v1055
      %v1123 = vpop.f32.mrf.mxu0
      %v1124 = vadd.f32 0.0, %v1123
      %v1125 = vpop.f32.mrf.mxu0
      %1126 = vdwg.mxu0
      %v1127 = vadd.f32 %v1043, %v1124
      %v1128 = vld [vmem:[#allocation2 + $0x6] sm:$0xf]
      %v1129 = vmul.f32 %v1128, %v454
      %s1130 = scalar_lea.vmem %s3, 512
      %v1131 = vld [vmem:[%s1130] sm:$0xff]
      %v1132 = vld [vmem:[%s1130 + $0x8] sm:$0xff]
      %v1133 = vld [vmem:[%s1130 + $0x10] sm:$0xff]
      %v1134 = vld [vmem:[%s1130 + $0x18] sm:$0xff]
      %v1135 = vld [vmem:[%s1130 + $0x20] sm:$0xff]
      %v1136 = vld [vmem:[%s1130 + $0x28] sm:$0xff]
      %v1137 = vld [vmem:[%s1130 + $0x30] sm:$0xff]
      %v1138 = vld [vmem:[%s1130 + $0x38] sm:$0xff]
      %v1140 = vsel %vm475, %v1129, 0
      %1142 = vmatprep.subr.mxu0 0.0
      %1143 = vmatpush1.msra.mxu0 0.0
      %1144 = vmatprep.subr.mxu0 0.0
      %1145 = vmatpush1.msra.mxu0 0.0
      %1146 = vmatprep.subr.mxu0 0.0
      %1147 = vmatpush1.msra.mxu0 0.0
      %1148 = vmatprep.subr.mxu0 0.0
      %1149 = vmatpush1.msra.mxu0 0.0
      %1150 = vmatprep.subr.mxu0 0.0
      %1151 = vmatpush1.msra.mxu0 0.0
      %1152 = vmatprep.subr.mxu0 0.0
      %1153 = vmatpush1.msra.mxu0 0.0
      %1154 = vmatprep.subr.mxu0 0.0
      %1155 = vmatpush1.msra.mxu0 0.0
      %1156 = vmatprep.subr.mxu0 0.0
      %1157 = vmatpush1.msra.mxu0 0.0
      %1158 = vmatprep.subr.mxu0 0.0
      %1159 = vmatpush1.msra.mxu0 %v1138
      %1160 = vmatprep.subr.mxu0 0.0
      %1161 = vmatpush1.msra.mxu0 %v1137
      %1162 = vmatprep.subr.mxu0 0.0
      %1163 = vmatpush1.msra.mxu0 %v1136
      %1164 = vmatprep.subr.mxu0 0.0
      %1165 = vmatpush1.msra.mxu0 %v1135
      %1166 = vmatprep.subr.mxu0 0.0
      %1167 = vmatpush1.msra.mxu0 %v1134
      %1168 = vmatprep.subr.mxu0 0.0
      %1169 = vmatpush1.msra.mxu0 %v1133
      %1170 = vmatprep.subr.mxu0 0.0
      %1171 = vmatpush1.msra.mxu0 %v1132
      %1172 = vmatprep.subr.mxu0 0.0
      %1173 = vmatpush1.msra.mxu0 %v1131
      %1174 = vmatprep.subr.mxu0 0.0
      %1175 = vmatpush2.msra.mxu0 0.0
      %1176 = vmatprep.subr.mxu0 0.0
      %1177 = vmatpush2.msra.mxu0 0.0
      %1178 = vmatprep.subr.mxu0 0.0
      %1179 = vmatpush2.msra.mxu0 0.0
      %1180 = vmatprep.subr.mxu0 0.0
      %1181 = vmatpush2.msra.mxu0 0.0
      %1182 = vmatprep.subr.mxu0 0.0
      %1183 = vmatpush2.msra.mxu0 0.0
      %1184 = vmatprep.subr.mxu0 0.0
      %1185 = vmatpush2.msra.mxu0 0.0
      %1186 = vmatprep.subr.mxu0 0.0
      %1187 = vmatpush2.msra.mxu0 0.0
      %1188 = vmatprep.subr.mxu0 0.0
      %1189 = vmatpush2.msra.mxu0 0.0
      %1190 = vmatprep.subr.mxu0 0.0
      %1191 = vmatpush2.msra.mxu0 0.0
      %1192 = vmatprep.subr.mxu0 0.0
      %1193 = vmatpush2.msra.mxu0 0.0
      %1194 = vmatprep.subr.mxu0 0.0
      %1195 = vmatpush2.msra.mxu0 0.0
      %1196 = vmatprep.subr.mxu0 0.0
      %1197 = vmatpush2.msra.mxu0 0.0
      %1198 = vmatprep.subr.mxu0 0.0
      %1199 = vmatpush2.msra.mxu0 0.0
      %1200 = vmatprep.subr.mxu0 0.0
      %1201 = vmatpush2.msra.mxu0 0.0
      %1202 = vmatprep.subr.mxu0 0.0
      %1203 = vmatpush2.msra.mxu0 0.0
      %1204 = vmatprep.subr.mxu0 0.0
      %1205 = vmatpush2.msra.mxu0 0.0
      %1206 = vmatprep.mubr.f32.mxu0 0.0
      %1207 = vmatmul.mubr.f32.gmra.mxu0 %v1140
      %v1208 = vpop.f32.mrf.mxu0
      %v1209 = vadd.f32 0.0, %v1208
      %v1210 = vpop.f32.mrf.mxu0
      %1211 = vdwg.mxu0
      %v1212 = vadd.f32 %v1127, %v1209
      %v1213 = vld [vmem:[%s4] sm:$0x1]
      %v1215 = vlaneseq
      %v1216 = vshrl.u32 %v1215, 7
      %v1217 = vsub.s32 0, %v1216
      %v1218 = vrot.slane %v1213, %v1217
      %v1220 = vadd.f32 %v1212, %v1218
      %1221 = vst.msk [vmem:[%s222] sm:$0xf] %vm433, %v1220
      %p1222 = scmp.lt.s32.totalorder %s16, 1
      %s1223 = scalar_select %p1222, %s16, 1
      %s1224 = smul.addr %s1223, 4
      %s1225 = scalar_lea.vmem %s5, %s1224
      // Predicated region
      $region41: #{_lambda_.13} parent=39 // pred_check
        %p1226 = pneg %p144
      $region42: #{_lambda_.13} parent=39 // pred_check_branch
        %1228 = sbr.rel (%p1226) target = $region44
      $region43: #{_lambda_.13} parent=39 // pred_region
        _
      $region44: #{_lambda_.13} parent=39 // pred_fallthru
        _
    $region40: #{_lambda_.13} parent=5 // pred_fallthru
      _
    %p1229 = scmp.le.s32.totalorder 2, %s11
    // Predicated region
    $region45: #{_lambda_.13} parent=5 // pred_check
      %p1230 = pneg %p1229
    $region46: #{_lambda_.13} parent=5 // pred_check_branch
      %1232 = sbr.rel (%p1230) target = $region48
    $region47: #{_lambda_.13} parent=5 // pred_region
      %s1233 = ssub.s32 %s11, 2
      // Predicated region
      $region49: #{_lambda_.13} parent=47 // pred_check
        %p1234 = pneg %p150
      $region50: #{_lambda_.13} parent=47 // pred_check_branch
        %1236 = sbr.rel (%p1234) target = $region52
      $region51: #{_lambda_.13} parent=47 // pred_region
        %p1237 = scmp.lt.s32.totalorder %s17, 1
        %s1238 = scalar_select %p1237, %s17, 1
        %s1239 = smul.addr %s1238, 4
        %s1240 = scalar_lea.vmem %s5, %s1239
      $region52: #{_lambda_.13} parent=47 // pred_fallthru
        _
    $region48: #{_lambda_.13} parent=5 // pred_fallthru
      _
  $region6: #{_lambda_.13} parent=0 // loop_footer
    %s15 = sadd.s32 1, %s11
  $region7: #{_lambda_.13} parent=0 // loop_footer_branch
    %10 = sbr.rel target = $region3
  $region8: #{_lambda_.13} parent=0 // loop_exit
    _

// kernel: _lambda_.14
$region0: #{_lambda_.14}
  #allocation0 [shape = 'u32[]', space=smem, size = 0x4, offset = 0x4, fixed_abs, tag = 'smem constant byte address 0x4 - core index']
  #allocation1 [shape = 'u32[144,128]{1,0:T(1,128)}', space=vmem, size = 0x12000, scoped, tag = 'internal scratch']
  #allocation2 [shape = 'f32[26,64]{1,0:T(8,128)}', space=vmem, size = 0x4000, scoped, tag = 'scratch operand']
  %s0 = inlined_call_operand.vmem [shape: f32[2,16,160], index: 0, kind: input, shape index: {}]
  %s1 = inlined_call_operand.vmem [shape: f32[2,16,64], index: 1, kind: input, shape index: {}]
  %s2 = inlined_call_operand.vmem [shape: f32[160,64], index: 2, kind: input, shape index: {}]
  %s3 = inlined_call_operand.vmem [shape: f32[1,64], index: 3, kind: input, shape index: {}]
  %s4 = inlined_call_operand.vmem [shape: f32[9,64,64], index: 4, kind: input, shape index: {}]
  %s5 = inlined_call_operand.vmem [shape: f32[1,64], index: 5, kind: input, shape index: {}]
  %s6 = inlined_call_operand.vmem [shape: f32[2,16,64], index: 6, kind: output, shape index: {}]
  %s7 = sld [smem:[#allocation0]]
  $region57: #{_lambda_.14} parent=0
    _
  %s9 = ssub.s32 1, %s7
  %s10 = scalar_select 0, %s9, %s7
  loop: start=0, step=1, limit=4
  $region2: #{_lambda_.14} parent=0 // loop_pre_header
    _
  $region3: #{_lambda_.14} parent=0 // loop_header
    %s12 = sphi 0, %s16
    %p13 = scmp.ge.s32.totalorder %s12, 4
    %s22 = sphi 0, %s24
    %s25 = sphi 0, %s22
    %s26 = sphi 0, %s25
    %s42 = sphi 0, %s26
    %s48 = sphi 0, %s50
    %s51 = sphi 0, %s48
    %s52 = sphi 0, %s51
    %s68 = sphi 0, %s52
    %s72 = sphi 0, %s72
    %s74 = sphi 0, %s72
    %s75 = sphi 0, %s74
    %s89 = sphi 0, %s75
    %s93 = sphi 0, %s93
    %s95 = sphi 0, %s93
    %s96 = sphi 0, %s95
    %s110 = sphi 0, %s96
    %s114 = sphi 0, %s114
    %s116 = sphi 0, %s114
    %s117 = sphi 0, %s116
    %s131 = sphi 0, %s117
    %s135 = sphi 0, %s135
    %s137 = sphi 0, %s135
    %s138 = sphi 0, %s137
    %s152 = sphi 0, %s138
    %s158 = sphi 0, %s160
    %s161 = sphi 0, %s158
    %s162 = sphi 0, %s161
    %s178 = sphi 0, %s162
  $region4: #{_lambda_.14} parent=0 // loop_header_branch
    %15 = sbr.rel (%p13) target = $region8
  $region5: #{_lambda_.14} parent=0 // loop_body
    %s17 = ssub.s32 %s12, 1
    %s18 = ssub.s32 %s12, 2
    %s19 = sadd.s32 %s12, 1
    %s20 = ssub.s32 %s12, %s19
    %p21 = scmp.eq.s32.totalorder %s20, 0
    %s23 = sadd.s32 %s22, 1
    %s24 = scalar_select %p21, %s22, %s23
    %p27 = pneg %p21
    %p28 = scmp.eq.s32.totalorder %s12, 1
    %p29 = por %p27, %p28
    %p30 = scmp.ne.s32.totalorder %s22, %s25
    %p31 = scmp.eq.s32.totalorder %s12, 0
    %p32 = por %p30, %p31
    %p33 = scmp.ne.s32.totalorder %s22, %s25
    %p34 = scmp.eq.s32.totalorder %s17, 1
    %p35 = por %p33, %p34
    %p36 = scmp.ne.s32.totalorder %s25, %s26
    %p37 = scmp.eq.s32.totalorder %s17, 0
    %p38 = por %p36, %p37
    %p39 = scmp.ne.s32.totalorder %s25, %s26
    %p40 = scmp.eq.s32.totalorder %s18, 1
    %p41 = por %p39, %p40
    %p43 = scmp.ne.s32.totalorder %s26, %s42
    %p44 = scmp.eq.s32.totalorder %s18, 0
    %p45 = por %p43, %p44
    %s46 = ssub.s32 %s12, %s19
    %p47 = scmp.eq.s32.totalorder %s46, 0
    %s49 = sadd.s32 %s48, 1
    %s50 = scalar_select %p47, %s48, %s49
    %p53 = pneg %p47
    %p54 = scmp.eq.s32.totalorder %s12, 1
    %p55 = por %p53, %p54
    %p56 = scmp.ne.s32.totalorder %s48, %s51
    %p57 = scmp.eq.s32.totalorder %s12, 0
    %p58 = por %p56, %p57
    %p59 = scmp.ne.s32.totalorder %s48, %s51
    %p60 = scmp.eq.s32.totalorder %s17, 1
    %p61 = por %p59, %p60
    %p62 = scmp.ne.s32.totalorder %s51, %s52
    %p63 = scmp.eq.s32.totalorder %s17, 0
    %p64 = por %p62, %p63
    %p65 = scmp.ne.s32.totalorder %s51, %s52
    %p66 = scmp.eq.s32.totalorder %s18, 1
    %p67 = por %p65, %p66
    %p69 = scmp.ne.s32.totalorder %s52, %s68
    %p70 = scmp.eq.s32.totalorder %s18, 0
    %p71 = por %p69, %p70
    %s73 = sadd.s32 %s72, 1
    %p76 = scmp.eq.s32.totalorder %s12, 1
    %p77 = scmp.ne.s32.totalorder %s72, %s74
    %p78 = scmp.eq.s32.totalorder %s12, 0
    %p79 = por %p77, %p78
    %p80 = scmp.ne.s32.totalorder %s72, %s74
    %p81 = scmp.eq.s32.totalorder %s17, 1
    %p82 = por %p80, %p81
    %p83 = scmp.ne.s32.totalorder %s74, %s75
    %p84 = scmp.eq.s32.totalorder %s17, 0
    %p85 = por %p83, %p84
    %p86 = scmp.ne.s32.totalorder %s74, %s75
    %p87 = scmp.eq.s32.totalorder %s18, 1
    %p88 = por %p86, %p87
    %p90 = scmp.ne.s32.totalorder %s75, %s89
    %p91 = scmp.eq.s32.totalorder %s18, 0
    %p92 = por %p90, %p91
    %s94 = sadd.s32 %s93, 1
    %p97 = scmp.eq.s32.totalorder %s12, 1
    %p98 = scmp.ne.s32.totalorder %s93, %s95
    %p99 = scmp.eq.s32.totalorder %s12, 0
    %p100 = por %p98, %p99
    %p101 = scmp.ne.s32.totalorder %s93, %s95
    %p102 = scmp.eq.s32.totalorder %s17, 1
    %p103 = por %p101, %p102
    %p104 = scmp.ne.s32.totalorder %s95, %s96
    %p105 = scmp.eq.s32.totalorder %s17, 0
    %p106 = por %p104, %p105
    %p107 = scmp.ne.s32.totalorder %s95, %s96
    %p108 = scmp.eq.s32.totalorder %s18, 1
    %p109 = por %p107, %p108
    %p111 = scmp.ne.s32.totalorder %s96, %s110
    %p112 = scmp.eq.s32.totalorder %s18, 0
    %p113 = por %p111, %p112
    %s115 = sadd.s32 %s114, 1
    %p118 = scmp.eq.s32.totalorder %s12, 1
    %p119 = scmp.ne.s32.totalorder %s114, %s116
    %p120 = scmp.eq.s32.totalorder %s12, 0
    %p121 = por %p119, %p120
    %p122 = scmp.ne.s32.totalorder %s114, %s116
    %p123 = scmp.eq.s32.totalorder %s17, 1
    %p124 = por %p122, %p123
    %p125 = scmp.ne.s32.totalorder %s116, %s117
    %p126 = scmp.eq.s32.totalorder %s17, 0
    %p127 = por %p125, %p126
    %p128 = scmp.ne.s32.totalorder %s116, %s117
    %p129 = scmp.eq.s32.totalorder %s18, 1
    %p130 = por %p128, %p129
    %p132 = scmp.ne.s32.totalorder %s117, %s131
    %p133 = scmp.eq.s32.totalorder %s18, 0
    %p134 = por %p132, %p133
    %s136 = sadd.s32 %s135, 1
    %p139 = scmp.eq.s32.totalorder %s12, 1
    %p140 = scmp.ne.s32.totalorder %s135, %s137
    %p141 = scmp.eq.s32.totalorder %s12, 0
    %p142 = por %p140, %p141
    %p143 = scmp.ne.s32.totalorder %s135, %s137
    %p144 = scmp.eq.s32.totalorder %s17, 1
    %p145 = por %p143, %p144
    %p146 = scmp.ne.s32.totalorder %s137, %s138
    %p147 = scmp.eq.s32.totalorder %s17, 0
    %p148 = por %p146, %p147
    %p149 = scmp.ne.s32.totalorder %s137, %s138
    %p150 = scmp.eq.s32.totalorder %s18, 1
    %p151 = por %p149, %p150
    %p153 = scmp.ne.s32.totalorder %s138, %s152
    %p154 = scmp.eq.s32.totalorder %s18, 0
    %p155 = por %p153, %p154
    %s156 = ssub.s32 %s12, %s19
    %p157 = scmp.eq.s32.totalorder %s156, 0
    %s159 = sadd.s32 %s158, 1
    %s160 = scalar_select %p157, %s158, %s159
    %p163 = pneg %p157
    %p164 = scmp.eq.s32.totalorder %s12, 1
    %p165 = por %p163, %p164
    %p166 = scmp.ne.s32.totalorder %s158, %s161
    %p167 = scmp.eq.s32.totalorder %s12, 0
    %p168 = por %p166, %p167
    %p169 = scmp.ne.s32.totalorder %s158, %s161
    %p170 = scmp.eq.s32.totalorder %s17, 1
    %p171 = por %p169, %p170
    %p172 = scmp.ne.s32.totalorder %s161, %s162
    %p173 = scmp.eq.s32.totalorder %s17, 0
    %p174 = por %p172, %p173
    %p175 = scmp.ne.s32.totalorder %s161, %s162
    %p176 = scmp.eq.s32.totalorder %s18, 1
    %p177 = por %p175, %p176
    %p179 = scmp.ne.s32.totalorder %s162, %s178
    %p180 = scmp.eq.s32.totalorder %s18, 0
    %p181 = por %p179, %p180
    %p182 = scmp.le.s32.totalorder 1, %s12
    %p183 = scmp.lt.s32.totalorder %s12, 3
    %p184 = pnand %p182, %p183
    %p185 = pneg %p184
    // Predicated region
    $region9: #{_lambda_.14} parent=5 // pred_check
      _
    $region10: #{_lambda_.14} parent=5 // pred_check_branch
      %187 = sbr.rel (%p184) target = $region12
    $region11: #{_lambda_.14} parent=5 // pred_region
      %s188 = ssub.s32 %s12, 1
      // Predicated region
      $region13: #{_lambda_.14} parent=11 // pred_check
        %p189 = pneg %p85
      $region14: #{_lambda_.14} parent=11 // pred_check_branch
        %191 = sbr.rel (%p189) target = $region16
      $region15: #{_lambda_.14} parent=11 // pred_region
        _
      $region16: #{_lambda_.14} parent=11 // pred_fallthru
        _
      // Predicated region
      $region17: #{_lambda_.14} parent=11 // pred_check
        %p192 = pneg %p106
      $region18: #{_lambda_.14} parent=11 // pred_check_branch
        %194 = sbr.rel (%p192) target = $region20
      $region19: #{_lambda_.14} parent=11 // pred_region
        _
      $region20: #{_lambda_.14} parent=11 // pred_fallthru
        _
      // Predicated region
      $region21: #{_lambda_.14} parent=11 // pred_check
        %p195 = pneg %p127
      $region22: #{_lambda_.14} parent=11 // pred_check_branch
        %197 = sbr.rel (%p195) target = $region24
      $region23: #{_lambda_.14} parent=11 // pred_region
        _
      $region24: #{_lambda_.14} parent=11 // pred_fallthru
        _
      // Predicated region
      $region25: #{_lambda_.14} parent=11 // pred_check
        %p198 = pneg %p148
      $region26: #{_lambda_.14} parent=11 // pred_check_branch
        %200 = sbr.rel (%p198) target = $region28
      $region27: #{_lambda_.14} parent=11 // pred_region
        _
      $region28: #{_lambda_.14} parent=11 // pred_fallthru
        _
    $region12: #{_lambda_.14} parent=5 // pred_fallthru
      _
    %p201 = scmp.lt.s32.totalorder %s12, 2
    // Predicated region
    $region29: #{_lambda_.14} parent=5 // pred_check
      %p202 = pneg %p201
    $region30: #{_lambda_.14} parent=5 // pred_check_branch
      %204 = sbr.rel (%p202) target = $region32
    $region31: #{_lambda_.14} parent=5 // pred_region
      // Predicated region
      $region33: #{_lambda_.14} parent=31 // pred_check
        %p205 = pneg %p32
      $region34: #{_lambda_.14} parent=31 // pred_check_branch
        %207 = sbr.rel (%p205) target = $region36
      $region35: #{_lambda_.14} parent=31 // pred_region
        %p208 = scmp.lt.s32.totalorder %s12, 1
        %s209 = scalar_select %p208, %s12, 1
        %s210 = smul.addr %s209, 4
        %s211 = smul.addr %s210, 8
        %s212 = scalar_lea.vmem %s0, %s211
      $region36: #{_lambda_.14} parent=31 // pred_fallthru
        _
      // Predicated region
      $region37: #{_lambda_.14} parent=31 // pred_check
        %p213 = pneg %p58
      $region38: #{_lambda_.14} parent=31 // pred_check_branch
        %215 = sbr.rel (%p213) target = $region40
      $region39: #{_lambda_.14} parent=31 // pred_region
        %p216 = scmp.lt.s32.totalorder %s12, 1
        %s217 = scalar_select %p216, %s12, 1
        %s218 = smul.addr %s217, 2
        %s219 = smul.addr %s218, 8
        %s220 = scalar_lea.vmem %s1, %s219
      $region40: #{_lambda_.14} parent=31 // pred_fallthru
        _
    $region32: #{_lambda_.14} parent=5 // pred_fallthru
      _
    %p221 = scmp.le.s32.totalorder 1, %s12
    %p222 = scmp.lt.s32.totalorder %s12, 3
    %p223 = pnand %p221, %p222
    %p224 = pneg %p223
    // Predicated region
    $region41: #{_lambda_.14} parent=5 // pred_check
      _
    $region42: #{_lambda_.14} parent=5 // pred_check_branch
      %226 = sbr.rel (%p223) target = $region44
    $region43: #{_lambda_.14} parent=5 // pred_region
      %s227 = ssub.s32 %s12, 1
      %p228 = scmp.lt.s32.totalorder %s17, 1
      %s229 = scalar_select %p228, %s17, 1
      %s230 = smul.addr %s229, 4
      %s231 = smul.addr %s230, 8
      %s232 = scalar_lea.vmem %s0, %s231
      %p233 = pneg %p38
      %p234 = pneg %p35
      %p235 = scmp.lt.s32.totalorder %s17, 1
      %s236 = scalar_select %p235, %s17, 1
      %s237 = smul.addr %s236, 2
      %s238 = smul.addr %s237, 8
      %s239 = scalar_lea.vmem %s1, %s238
      %p240 = pneg %p64
      %p241 = pneg %p61
      %p242 = pneg %p85
      %p243 = pneg %p82
      %p244 = pneg %p106
      %p245 = pneg %p103
      %p246 = pneg %p127
      %p247 = pneg %p124
      %p248 = pneg %p148
      %p249 = pneg %p145
      %p250 = pneg %p174
      %p251 = pneg %p171
      %p252 = scmp.lt.s32.totalorder %s17, 1
      %s253 = scalar_select %p252, %s17, 1
      %s254 = smul.addr %s253, 2
      %s255 = smul.addr %s254, 8
      %s256 = scalar_lea.vmem %s6, %s255
      %p257 = scmp.lt.s32.totalorder %s17, 1
      %s258 = scalar_select %p257, %s17, 1
      %s259 = smul.addr %s258, 4
      %s260 = smul.addr %s259, 8
      %s261 = scalar_lea.vmem %s0, %s260
      %p262 = scmp.lt.s32.totalorder %s17, 1
      %s263 = scalar_select %p262, %s17, 1
      %s264 = smul.addr %s263, 2
      %s265 = smul.addr %s264, 8
      %s266 = scalar_lea.vmem %s1, %s265
      %p267 = scmp.lt.s32.totalorder %s17, 1
      %s268 = scalar_select %p267, %s17, 1
      %s269 = smul.addr %s268, 2
      %s270 = smul.addr %s269, 8
      %s271 = scalar_lea.vmem %s6, %s270
      %v272 = vld [vmem:[%s261] sm:$0xff]
      %v273 = vld [vmem:[%s261 + $0x8] sm:$0xff]
      %v274 = vld [vmem:[%s261 + $0x10] sm:$0xff]
      %v275 = vld [vmem:[%s261 + $0x18] sm:$0xff]
      %v276 = vld [vmem:[%s2] sm:$0xff]
      %v277 = vld [vmem:[%s2 + $0x8] sm:$0xff]
      %v278 = vld [vmem:[%s2 + $0x10] sm:$0xff]
      %v279 = vld [vmem:[%s2 + $0x18] sm:$0xff]
      %v280 = vld [vmem:[%s2 + $0x20] sm:$0xff]
      %v281 = vld [vmem:[%s2 + $0x28] sm:$0xff]
      %v282 = vld [vmem:[%s2 + $0x30] sm:$0xff]
      %v283 = vld [vmem:[%s2 + $0x38] sm:$0xff]
      %v284 = vld [vmem:[%s2 + $0x40] sm:$0xff]
      %v285 = vld [vmem:[%s2 + $0x48] sm:$0xff]
      %v286 = vld [vmem:[%s2 + $0x50] sm:$0xff]
      %v287 = vld [vmem:[%s2 + $0x58] sm:$0xff]
      %v288 = vld [vmem:[%s2 + $0x60] sm:$0xff]
      %v289 = vld [vmem:[%s2 + $0x68] sm:$0xff]
      %v290 = vld [vmem:[%s2 + $0x70] sm:$0xff]
      %v291 = vld [vmem:[%s2 + $0x78] sm:$0xff]
      %v292 = vld [vmem:[%s2 + $0x80] sm:$0xff]
      %v293 = vld [vmem:[%s2 + $0x88] sm:$0xff]
      %v294 = vld [vmem:[%s2 + $0x90] sm:$0xff]
      %v295 = vld [vmem:[%s2 + $0x98] sm:$0xff]
      %v296 = vld [vmem:[%s3] sm:$0x1]
      %v298 = vlaneseq
      %v299 = vshrl.u32 %v298, 7
      %v300 = vsub.s32 0, %v299
      %v301 = vrot.slane %v296, %v300
      %vm303 = vcmask 261120
      %v305 = vsel %vm303, %v273, 0
      %v308 = vsel %vm303, %v275, 0
      %310 = vmatprep.subr.mxu0 0.0
      %311 = vmatpush1.msra.mxu0 %v291
      %312 = vmatprep.subr.mxu0 0.0
      %313 = vmatpush1.msra.mxu0 %v290
      %314 = vmatprep.subr.mxu0 0.0
      %315 = vmatpush1.msra.mxu0 %v289
      %316 = vmatprep.subr.mxu0 0.0
      %317 = vmatpush1.msra.mxu0 %v288
      %318 = vmatprep.subr.mxu0 0.0
      %319 = vmatpush1.msra.mxu0 %v287
      %320 = vmatprep.subr.mxu0 0.0
      %321 = vmatpush1.msra.mxu0 %v286
      %322 = vmatprep.subr.mxu0 0.0
      %323 = vmatpush1.msra.mxu0 %v285
      %324 = vmatprep.subr.mxu0 0.0
      %325 = vmatpush1.msra.mxu0 %v284
      %326 = vmatprep.subr.mxu0 0.0
      %327 = vmatpush1.msra.mxu0 %v283
      %328 = vmatprep.subr.mxu0 0.0
      %329 = vmatpush1.msra.mxu0 %v282
      %330 = vmatprep.subr.mxu0 0.0
      %331 = vmatpush1.msra.mxu0 %v281
      %332 = vmatprep.subr.mxu0 0.0
      %333 = vmatpush1.msra.mxu0 %v280
      %334 = vmatprep.subr.mxu0 0.0
      %335 = vmatpush1.msra.mxu0 %v279
      %336 = vmatprep.subr.mxu0 0.0
      %337 = vmatpush1.msra.mxu0 %v278
      %338 = vmatprep.subr.mxu0 0.0
      %339 = vmatpush1.msra.mxu0 %v277
      %340 = vmatprep.subr.mxu0 0.0
      %341 = vmatpush1.msra.mxu0 %v276
      %342 = vmatprep.subr.mxu0 0.0
      %343 = vmatpush2.msra.mxu0 0.0
      %344 = vmatprep.subr.mxu0 0.0
      %345 = vmatpush2.msra.mxu0 0.0
      %346 = vmatprep.subr.mxu0 0.0
      %347 = vmatpush2.msra.mxu0 0.0
      %348 = vmatprep.subr.mxu0 0.0
      %349 = vmatpush2.msra.mxu0 0.0
      %350 = vmatprep.subr.mxu0 0.0
      %351 = vmatpush2.msra.mxu0 0.0
      %352 = vmatprep.subr.mxu0 0.0
      %353 = vmatpush2.msra.mxu0 0.0
      %354 = vmatprep.subr.mxu0 0.0
      %355 = vmatpush2.msra.mxu0 0.0
      %356 = vmatprep.subr.mxu0 0.0
      %357 = vmatpush2.msra.mxu0 0.0
      %358 = vmatprep.subr.mxu0 0.0
      %359 = vmatpush2.msra.mxu0 0.0
      %360 = vmatprep.subr.mxu0 0.0
      %361 = vmatpush2.msra.mxu0 0.0
      %362 = vmatprep.subr.mxu0 0.0
      %363 = vmatpush2.msra.mxu0 0.0
      %364 = vmatprep.subr.mxu0 0.0
      %365 = vmatpush2.msra.mxu0 0.0
      %366 = vmatprep.subr.mxu0 0.0
      %367 = vmatpush2.msra.mxu0 %v295
      %368 = vmatprep.subr.mxu0 0.0
      %369 = vmatpush2.msra.mxu0 %v294
      %370 = vmatprep.subr.mxu0 0.0
      %371 = vmatpush2.msra.mxu0 %v293
      %372 = vmatprep.subr.mxu0 0.0
      %373 = vmatpush2.msra.mxu0 %v292
      %374 = vmatprep.mubr.f32.mxu0 %v305
      %375 = vmatmul.mubr.f32.gmra.mxu0 %v272
      %v376 = vpop.f32.mrf.mxu0
      %v377 = vadd.f32 %v301, %v376
      %v378 = vpop.f32.mrf.mxu0
      %379 = vmatprep.mubr.f32.mxu0 %v308
      %380 = vmatmul.mubr.f32.gmra.mxu0 %v274
      %v381 = vpop.f32.mrf.mxu0
      %v382 = vadd.f32 %v301, %v381
      %v383 = vpop.f32.mrf.mxu0
      %384 = vdwg.mxu0
      %v385 = vld [vmem:[%s266] sm:$0xff]
      %v386 = vld [vmem:[%s266 + $0x8] sm:$0xff]
      %v387 = vadd.f32 %v377, %v385
      %v388 = vadd.f32 %v382, %v386
      %vm389 = vcmask 520192
      %390 = vst.msk [vmem:[#allocation2] sm:$0x1f] %vm389, 0.0
      %391 = vst.msk [vmem:[#allocation2 + $0x15] sm:$0x1f] %vm389, 0.0
      %vm392 = vcmask 523264
      %393 = vst.msk [vmem:[#allocation2 + $0x5] sm:$0xff] %vm392, %v387
      %394 = vst.msk [vmem:[#allocation2 + $0xd] sm:$0xff] %vm392, %v388
      %v395 = vlaneseq
      %v396 = vshrl.u32 %v395, 7
      %v397 = vadd.s32 %v396, 8
      %vm398 = vcmp.lt.s32.totalorder %v396, 0
      %v399 = vsub.s32 0, %v396
      %v400 = vsel %vm398, %v399, %v396
      %v401 = vshrl.u32 %v400, 2
      %v402 = vand.u32 %v400, 3
      %v403 = vsub.s32 0, %v402
      %v404 = vsel %vm398, %v403, %v402
      %vm405 = vcmp.lt.s32.totalorder %v397, 0
      %v406 = vsub.s32 0, %v397
      %v407 = vsel %vm405, %v406, %v397
      %v408 = vshrl.u32 %v407, 2
      %v409 = vand.u32 %v407, 3
      %v410 = vsub.s32 0, %v409
      %v411 = vsel %vm405, %v410, %v409
      %vm412 = vcmp.ne.s32.totalorder %v404, 0
      %vm413 = vcmp.ne.s32.totalorder %v411, 0
      %vm414 = vcmp.lt.s32.totalorder %v404, 0
      %vm415 = vcmp.lt.s32.totalorder %v411, 0
      %vm416 = vmand %vm414, %vm412
      %vm417 = vmand %vm415, %vm413
      %v418 = vadd.s32 %v404, 4
      %v419 = vadd.s32 %v411, 4
      %v420 = vsel %vm416, %v418, %v404
      %v421 = vsel %vm417, %v419, %v411
      %vm422 = vcmp.ge.s32.totalorder %v420, 1
      %vm423 = vcmp.ge.s32.totalorder %v421, 1
      %v424 = vsel %vm422, 1, 0
      %v425 = vsel %vm423, 1, 0
      %v426 = vcvt.s32.f32 %v424
      %v427 = vcvt.s32.f32 %v425
      %vm428 = vcmp.le.s32.totalorder %v420, 2
      %vm429 = vcmp.le.s32.totalorder %v421, 2
      %v430 = vsel %vm428, 1, 0
      %v431 = vsel %vm429, 1, 0
      %v432 = vcvt.s32.f32 %v430
      %v433 = vcvt.s32.f32 %v431
      %v434 = vld [vmem:[#allocation2] sm:$0xff]
      %v435 = vld [vmem:[#allocation2 + $0x8] sm:$0xff]
      %v436 = vmul.f32 %v434, %v426
      %v437 = vmul.f32 %v435, %v427
      %v438 = vld [vmem:[%s4] sm:$0xff]
      %v439 = vld [vmem:[%s4 + $0x8] sm:$0xff]
      %v440 = vld [vmem:[%s4 + $0x10] sm:$0xff]
      %v441 = vld [vmem:[%s4 + $0x18] sm:$0xff]
      %v442 = vld [vmem:[%s4 + $0x20] sm:$0xff]
      %v443 = vld [vmem:[%s4 + $0x28] sm:$0xff]
      %v444 = vld [vmem:[%s4 + $0x30] sm:$0xff]
      %v445 = vld [vmem:[%s4 + $0x38] sm:$0xff]
      %v446 = vld [vmem:[#allocation2 + $0x1] sm:$0xff]
      %v447 = vld [vmem:[#allocation2 + $0x9] sm:$0xff]
      %s448 = scalar_lea.vmem %s4, 64
      %v449 = vld [vmem:[%s448] sm:$0xff]
      %v450 = vld [vmem:[%s448 + $0x8] sm:$0xff]
      %v451 = vld [vmem:[%s448 + $0x10] sm:$0xff]
      %v452 = vld [vmem:[%s448 + $0x18] sm:$0xff]
      %v453 = vld [vmem:[%s448 + $0x20] sm:$0xff]
      %v454 = vld [vmem:[%s448 + $0x28] sm:$0xff]
      %v455 = vld [vmem:[%s448 + $0x30] sm:$0xff]
      %v456 = vld [vmem:[%s448 + $0x38] sm:$0xff]
      %v458 = vsel %vm392, %v446, 0
      %v461 = vsel %vm392, %v447, 0
      %463 = vmatprep.subr.mxu0 0.0
      %464 = vmatpush1.msra.mxu0 0.0
      %465 = vmatprep.subr.mxu0 0.0
      %466 = vmatpush1.msra.mxu0 0.0
      %467 = vmatprep.subr.mxu0 0.0
      %468 = vmatpush1.msra.mxu0 0.0
      %469 = vmatprep.subr.mxu0 0.0
      %470 = vmatpush1.msra.mxu0 0.0
      %471 = vmatprep.subr.mxu0 0.0
      %472 = vmatpush1.msra.mxu0 0.0
      %473 = vmatprep.subr.mxu0 0.0
      %474 = vmatpush1.msra.mxu0 0.0
      %475 = vmatprep.subr.mxu0 0.0
      %476 = vmatpush1.msra.mxu0 0.0
      %477 = vmatprep.subr.mxu0 0.0
      %478 = vmatpush1.msra.mxu0 0.0
      %479 = vmatprep.subr.mxu0 0.0
      %480 = vmatpush1.msra.mxu0 %v456
      %481 = vmatprep.subr.mxu0 0.0
      %482 = vmatpush1.msra.mxu0 %v455
      %483 = vmatprep.subr.mxu0 0.0
      %484 = vmatpush1.msra.mxu0 %v454
      %485 = vmatprep.subr.mxu0 0.0
      %486 = vmatpush1.msra.mxu0 %v453
      %487 = vmatprep.subr.mxu0 0.0
      %488 = vmatpush1.msra.mxu0 %v452
      %489 = vmatprep.subr.mxu0 0.0
      %490 = vmatpush1.msra.mxu0 %v451
      %491 = vmatprep.subr.mxu0 0.0
      %492 = vmatpush1.msra.mxu0 %v450
      %493 = vmatprep.subr.mxu0 0.0
      %494 = vmatpush1.msra.mxu0 %v449
      %495 = vmatprep.subr.mxu0 0.0
      %496 = vmatpush2.msra.mxu0 0.0
      %497 = vmatprep.subr.mxu0 0.0
      %498 = vmatpush2.msra.mxu0 0.0
      %499 = vmatprep.subr.mxu0 0.0
      %500 = vmatpush2.msra.mxu0 0.0
      %501 = vmatprep.subr.mxu0 0.0
      %502 = vmatpush2.msra.mxu0 0.0
      %503 = vmatprep.subr.mxu0 0.0
      %504 = vmatpush2.msra.mxu0 0.0
      %505 = vmatprep.subr.mxu0 0.0
      %506 = vmatpush2.msra.mxu0 0.0
      %507 = vmatprep.subr.mxu0 0.0
      %508 = vmatpush2.msra.mxu0 0.0
      %509 = vmatprep.subr.mxu0 0.0
      %510 = vmatpush2.msra.mxu0 0.0
      %511 = vmatprep.subr.mxu0 0.0
      %512 = vmatpush2.msra.mxu0 0.0
      %513 = vmatprep.subr.mxu0 0.0
      %514 = vmatpush2.msra.mxu0 0.0
      %515 = vmatprep.subr.mxu0 0.0
      %516 = vmatpush2.msra.mxu0 0.0
      %517 = vmatprep.subr.mxu0 0.0
      %518 = vmatpush2.msra.mxu0 0.0
      %519 = vmatprep.subr.mxu0 0.0
      %520 = vmatpush2.msra.mxu0 0.0
      %521 = vmatprep.subr.mxu0 0.0
      %522 = vmatpush2.msra.mxu0 0.0
      %523 = vmatprep.subr.mxu0 0.0
      %524 = vmatpush2.msra.mxu0 0.0
      %525 = vmatprep.subr.mxu0 0.0
      %526 = vmatpush2.msra.mxu0 0.0
      %527 = vmatprep.mubr.f32.mxu0 0.0
      %528 = vmatmul.mubr.f32.gmra.mxu0 %v458
      %v529 = vpop.f32.mrf.mxu0
      %v530 = vadd.f32 0.0, %v529
      %v531 = vpop.f32.mrf.mxu0
      %532 = vmatprep.mubr.f32.mxu0 0.0
      %533 = vmatmul.mubr.f32.gmra.mxu0 %v461
      %v534 = vpop.f32.mrf.mxu0
      %v535 = vadd.f32 0.0, %v534
      %v536 = vpop.f32.mrf.mxu0
      %537 = vdwg.mxu0
      %v539 = vsel %vm392, %v436, 0
      %v542 = vsel %vm392, %v437, 0
      %544 = vmatprep.subr.mxu0 0.0
      %545 = vmatpush1.msra.mxu0 0.0
      %546 = vmatprep.subr.mxu0 0.0
      %547 = vmatpush1.msra.mxu0 0.0
      %548 = vmatprep.subr.mxu0 0.0
      %549 = vmatpush1.msra.mxu0 0.0
      %550 = vmatprep.subr.mxu0 0.0
      %551 = vmatpush1.msra.mxu0 0.0
      %552 = vmatprep.subr.mxu0 0.0
      %553 = vmatpush1.msra.mxu0 0.0
      %554 = vmatprep.subr.mxu0 0.0
      %555 = vmatpush1.msra.mxu0 0.0
      %556 = vmatprep.subr.mxu0 0.0
      %557 = vmatpush1.msra.mxu0 0.0
      %558 = vmatprep.subr.mxu0 0.0
      %559 = vmatpush1.msra.mxu0 0.0
      %560 = vmatprep.subr.mxu0 0.0
      %561 = vmatpush1.msra.mxu0 %v445
      %562 = vmatprep.subr.mxu0 0.0
      %563 = vmatpush1.msra.mxu0 %v444
      %564 = vmatprep.subr.mxu0 0.0
      %565 = vmatpush1.msra.mxu0 %v443
      %566 = vmatprep.subr.mxu0 0.0
      %567 = vmatpush1.msra.mxu0 %v442
      %568 = vmatprep.subr.mxu0 0.0
      %569 = vmatpush1.msra.mxu0 %v441
      %570 = vmatprep.subr.mxu0 0.0
      %571 = vmatpush1.msra.mxu0 %v440
      %572 = vmatprep.subr.mxu0 0.0
      %573 = vmatpush1.msra.mxu0 %v439
      %574 = vmatprep.subr.mxu0 0.0
      %575 = vmatpush1.msra.mxu0 %v438
      %576 = vmatprep.subr.mxu0 0.0
      %577 = vmatpush2.msra.mxu0 0.0
      %578 = vmatprep.subr.mxu0 0.0
      %579 = vmatpush2.msra.mxu0 0.0
      %580 = vmatprep.subr.mxu0 0.0
      %581 = vmatpush2.msra.mxu0 0.0
      %582 = vmatprep.subr.mxu0 0.0
      %583 = vmatpush2.msra.mxu0 0.0
      %584 = vmatprep.subr.mxu0 0.0
      %585 = vmatpush2.msra.mxu0 0.0
      %586 = vmatprep.subr.mxu0 0.0
      %587 = vmatpush2.msra.mxu0 0.0
      %588 = vmatprep.subr.mxu0 0.0
      %589 = vmatpush2.msra.mxu0 0.0
      %590 = vmatprep.subr.mxu0 0.0
      %591 = vmatpush2.msra.mxu0 0.0
      %592 = vmatprep.subr.mxu0 0.0
      %593 = vmatpush2.msra.mxu0 0.0
      %594 = vmatprep.subr.mxu0 0.0
      %595 = vmatpush2.msra.mxu0 0.0
      %596 = vmatprep.subr.mxu0 0.0
      %597 = vmatpush2.msra.mxu0 0.0
      %598 = vmatprep.subr.mxu0 0.0
      %599 = vmatpush2.msra.mxu0 0.0
      %600 = vmatprep.subr.mxu0 0.0
      %601 = vmatpush2.msra.mxu0 0.0
      %602 = vmatprep.subr.mxu0 0.0
      %603 = vmatpush2.msra.mxu0 0.0
      %604 = vmatprep.subr.mxu0 0.0
      %605 = vmatpush2.msra.mxu0 0.0
      %606 = vmatprep.subr.mxu0 0.0
      %607 = vmatpush2.msra.mxu0 0.0
      %608 = vmatprep.mubr.f32.mxu0 0.0
      %609 = vmatmul.mubr.f32.gmra.mxu0 %v539
      %v610 = vpop.f32.mrf.mxu0
      %v611 = vadd.f32 %v530, %v610
      %v612 = vpop.f32.mrf.mxu0
      %613 = vmatprep.mubr.f32.mxu0 0.0
      %614 = vmatmul.mubr.f32.gmra.mxu0 %v542
      %v615 = vpop.f32.mrf.mxu0
      %v616 = vadd.f32 %v535, %v615
      %v617 = vpop.f32.mrf.mxu0
      %618 = vdwg.mxu0
      %v619 = vld [vmem:[#allocation2 + $0x2] sm:$0xff]
      %v620 = vld [vmem:[#allocation2 + $0xa] sm:$0xff]
      %v621 = vmul.f32 %v619, %v432
      %v622 = vmul.f32 %v620, %v433
      %s623 = scalar_lea.vmem %s4, 128
      %v624 = vld [vmem:[%s623] sm:$0xff]
      %v625 = vld [vmem:[%s623 + $0x8] sm:$0xff]
      %v626 = vld [vmem:[%s623 + $0x10] sm:$0xff]
      %v627 = vld [vmem:[%s623 + $0x18] sm:$0xff]
      %v628 = vld [vmem:[%s623 + $0x20] sm:$0xff]
      %v629 = vld [vmem:[%s623 + $0x28] sm:$0xff]
      %v630 = vld [vmem:[%s623 + $0x30] sm:$0xff]
      %v631 = vld [vmem:[%s623 + $0x38] sm:$0xff]
      %v633 = vsel %vm392, %v621, 0
      %v636 = vsel %vm392, %v622, 0
      %638 = vmatprep.subr.mxu0 0.0
      %639 = vmatpush1.msra.mxu0 0.0
      %640 = vmatprep.subr.mxu0 0.0
      %641 = vmatpush1.msra.mxu0 0.0
      %642 = vmatprep.subr.mxu0 0.0
      %643 = vmatpush1.msra.mxu0 0.0
      %644 = vmatprep.subr.mxu0 0.0
      %645 = vmatpush1.msra.mxu0 0.0
      %646 = vmatprep.subr.mxu0 0.0
      %647 = vmatpush1.msra.mxu0 0.0
      %648 = vmatprep.subr.mxu0 0.0
      %649 = vmatpush1.msra.mxu0 0.0
      %650 = vmatprep.subr.mxu0 0.0
      %651 = vmatpush1.msra.mxu0 0.0
      %652 = vmatprep.subr.mxu0 0.0
      %653 = vmatpush1.msra.mxu0 0.0
      %654 = vmatprep.subr.mxu0 0.0
      %655 = vmatpush1.msra.mxu0 %v631
      %656 = vmatprep.subr.mxu0 0.0
      %657 = vmatpush1.msra.mxu0 %v630
      %658 = vmatprep.subr.mxu0 0.0
      %659 = vmatpush1.msra.mxu0 %v629
      %660 = vmatprep.subr.mxu0 0.0
      %661 = vmatpush1.msra.mxu0 %v628
      %662 = vmatprep.subr.mxu0 0.0
      %663 = vmatpush1.msra.mxu0 %v627
      %664 = vmatprep.subr.mxu0 0.0
      %665 = vmatpush1.msra.mxu0 %v626
      %666 = vmatprep.subr.mxu0 0.0
      %667 = vmatpush1.msra.mxu0 %v625
      %668 = vmatprep.subr.mxu0 0.0
      %669 = vmatpush1.msra.mxu0 %v624
      %670 = vmatprep.subr.mxu0 0.0
      %671 = vmatpush2.msra.mxu0 0.0
      %672 = vmatprep.subr.mxu0 0.0
      %673 = vmatpush2.msra.mxu0 0.0
      %674 = vmatprep.subr.mxu0 0.0
      %675 = vmatpush2.msra.mxu0 0.0
      %676 = vmatprep.subr.mxu0 0.0
      %677 = vmatpush2.msra.mxu0 0.0
      %678 = vmatprep.subr.mxu0 0.0
      %679 = vmatpush2.msra.mxu0 0.0
      %680 = vmatprep.subr.mxu0 0.0
      %681 = vmatpush2.msra.mxu0 0.0
      %682 = vmatprep.subr.mxu0 0.0
      %683 = vmatpush2.msra.mxu0 0.0
      %684 = vmatprep.subr.mxu0 0.0
      %685 = vmatpush2.msra.mxu0 0.0
      %686 = vmatprep.subr.mxu0 0.0
      %687 = vmatpush2.msra.mxu0 0.0
      %688 = vmatprep.subr.mxu0 0.0
      %689 = vmatpush2.msra.mxu0 0.0
      %690 = vmatprep.subr.mxu0 0.0
      %691 = vmatpush2.msra.mxu0 0.0
      %692 = vmatprep.subr.mxu0 0.0
      %693 = vmatpush2.msra.mxu0 0.0
      %694 = vmatprep.subr.mxu0 0.0
      %695 = vmatpush2.msra.mxu0 0.0
      %696 = vmatprep.subr.mxu0 0.0
      %697 = vmatpush2.msra.mxu0 0.0
      %698 = vmatprep.subr.mxu0 0.0
      %699 = vmatpush2.msra.mxu0 0.0
      %700 = vmatprep.subr.mxu0 0.0
      %701 = vmatpush2.msra.mxu0 0.0
      %702 = vmatprep.mubr.f32.mxu0 0.0
      %703 = vmatmul.mubr.f32.gmra.mxu0 %v633
      %v704 = vpop.f32.mrf.mxu0
      %v705 = vadd.f32 0.0, %v704
      %v706 = vpop.f32.mrf.mxu0
      %707 = vmatprep.mubr.f32.mxu0 0.0
      %708 = vmatmul.mubr.f32.gmra.mxu0 %v636
      %v709 = vpop.f32.mrf.mxu0
      %v710 = vadd.f32 0.0, %v709
      %v711 = vpop.f32.mrf.mxu0
      %712 = vdwg.mxu0
      %v713 = vadd.f32 %v611, %v705
      %v714 = vadd.f32 %v616, %v710
      %v715 = vld [vmem:[#allocation2 + $0x4] sm:$0xff]
      %v716 = vld [vmem:[#allocation2 + $0xc] sm:$0xff]
      %v717 = vmul.f32 %v715, %v426
      %v718 = vmul.f32 %v716, %v427
      %s719 = scalar_lea.vmem %s4, 192
      %v720 = vld [vmem:[%s719] sm:$0xff]
      %v721 = vld [vmem:[%s719 + $0x8] sm:$0xff]
      %v722 = vld [vmem:[%s719 + $0x10] sm:$0xff]
      %v723 = vld [vmem:[%s719 + $0x18] sm:$0xff]
      %v724 = vld [vmem:[%s719 + $0x20] sm:$0xff]
      %v725 = vld [vmem:[%s719 + $0x28] sm:$0xff]
      %v726 = vld [vmem:[%s719 + $0x30] sm:$0xff]
      %v727 = vld [vmem:[%s719 + $0x38] sm:$0xff]
      %v729 = vsel %vm392, %v717, 0
      %v732 = vsel %vm392, %v718, 0
      %734 = vmatprep.subr.mxu0 0.0
      %735 = vmatpush1.msra.mxu0 0.0
      %736 = vmatprep.subr.mxu0 0.0
      %737 = vmatpush1.msra.mxu0 0.0
      %738 = vmatprep.subr.mxu0 0.0
      %739 = vmatpush1.msra.mxu0 0.0
      %740 = vmatprep.subr.mxu0 0.0
      %741 = vmatpush1.msra.mxu0 0.0
      %742 = vmatprep.subr.mxu0 0.0
      %743 = vmatpush1.msra.mxu0 0.0
      %744 = vmatprep.subr.mxu0 0.0
      %745 = vmatpush1.msra.mxu0 0.0
      %746 = vmatprep.subr.mxu0 0.0
      %747 = vmatpush1.msra.mxu0 0.0
      %748 = vmatprep.subr.mxu0 0.0
      %749 = vmatpush1.msra.mxu0 0.0
      %750 = vmatprep.subr.mxu0 0.0
      %751 = vmatpush1.msra.mxu0 %v727
      %752 = vmatprep.subr.mxu0 0.0
      %753 = vmatpush1.msra.mxu0 %v726
      %754 = vmatprep.subr.mxu0 0.0
      %755 = vmatpush1.msra.mxu0 %v725
      %756 = vmatprep.subr.mxu0 0.0
      %757 = vmatpush1.msra.mxu0 %v724
      %758 = vmatprep.subr.mxu0 0.0
      %759 = vmatpush1.msra.mxu0 %v723
      %760 = vmatprep.subr.mxu0 0.0
      %761 = vmatpush1.msra.mxu0 %v722
      %762 = vmatprep.subr.mxu0 0.0
      %763 = vmatpush1.msra.mxu0 %v721
      %764 = vmatprep.subr.mxu0 0.0
      %765 = vmatpush1.msra.mxu0 %v720
      %766 = vmatprep.subr.mxu0 0.0
      %767 = vmatpush2.msra.mxu0 0.0
      %768 = vmatprep.subr.mxu0 0.0
      %769 = vmatpush2.msra.mxu0 0.0
      %770 = vmatprep.subr.mxu0 0.0
      %771 = vmatpush2.msra.mxu0 0.0
      %772 = vmatprep.subr.mxu0 0.0
      %773 = vmatpush2.msra.mxu0 0.0
      %774 = vmatprep.subr.mxu0 0.0
      %775 = vmatpush2.msra.mxu0 0.0
      %776 = vmatprep.subr.mxu0 0.0
      %777 = vmatpush2.msra.mxu0 0.0
      %778 = vmatprep.subr.mxu0 0.0
      %779 = vmatpush2.msra.mxu0 0.0
      %780 = vmatprep.subr.mxu0 0.0
      %781 = vmatpush2.msra.mxu0 0.0
      %782 = vmatprep.subr.mxu0 0.0
      %783 = vmatpush2.msra.mxu0 0.0
      %784 = vmatprep.subr.mxu0 0.0
      %785 = vmatpush2.msra.mxu0 0.0
      %786 = vmatprep.subr.mxu0 0.0
      %787 = vmatpush2.msra.mxu0 0.0
      %788 = vmatprep.subr.mxu0 0.0
      %789 = vmatpush2.msra.mxu0 0.0
      %790 = vmatprep.subr.mxu0 0.0
      %791 = vmatpush2.msra.mxu0 0.0
      %792 = vmatprep.subr.mxu0 0.0
      %793 = vmatpush2.msra.mxu0 0.0
      %794 = vmatprep.subr.mxu0 0.0
      %795 = vmatpush2.msra.mxu0 0.0
      %796 = vmatprep.subr.mxu0 0.0
      %797 = vmatpush2.msra.mxu0 0.0
      %798 = vmatprep.mubr.f32.mxu0 0.0
      %799 = vmatmul.mubr.f32.gmra.mxu0 %v729
      %v800 = vpop.f32.mrf.mxu0
      %v801 = vadd.f32 0.0, %v800
      %v802 = vpop.f32.mrf.mxu0
      %803 = vmatprep.mubr.f32.mxu0 0.0
      %804 = vmatmul.mubr.f32.gmra.mxu0 %v732
      %v805 = vpop.f32.mrf.mxu0
      %v806 = vadd.f32 0.0, %v805
      %v807 = vpop.f32.mrf.mxu0
      %808 = vdwg.mxu0
      %v809 = vadd.f32 %v713, %v801
      %v810 = vadd.f32 %v714, %v806
      %v811 = vld [vmem:[#allocation2 + $0x5] sm:$0xff]
      %v812 = vld [vmem:[#allocation2 + $0xd] sm:$0xff]
      %s813 = scalar_lea.vmem %s4, 256
      %v814 = vld [vmem:[%s813] sm:$0xff]
      %v815 = vld [vmem:[%s813 + $0x8] sm:$0xff]
      %v816 = vld [vmem:[%s813 + $0x10] sm:$0xff]
      %v817 = vld [vmem:[%s813 + $0x18] sm:$0xff]
      %v818 = vld [vmem:[%s813 + $0x20] sm:$0xff]
      %v819 = vld [vmem:[%s813 + $0x28] sm:$0xff]
      %v820 = vld [vmem:[%s813 + $0x30] sm:$0xff]
      %v821 = vld [vmem:[%s813 + $0x38] sm:$0xff]
      %v823 = vsel %vm392, %v811, 0
      %v826 = vsel %vm392, %v812, 0
      %828 = vmatprep.subr.mxu0 0.0
      %829 = vmatpush1.msra.mxu0 0.0
      %830 = vmatprep.subr.mxu0 0.0
      %831 = vmatpush1.msra.mxu0 0.0
      %832 = vmatprep.subr.mxu0 0.0
      %833 = vmatpush1.msra.mxu0 0.0
      %834 = vmatprep.subr.mxu0 0.0
      %835 = vmatpush1.msra.mxu0 0.0
      %836 = vmatprep.subr.mxu0 0.0
      %837 = vmatpush1.msra.mxu0 0.0
      %838 = vmatprep.subr.mxu0 0.0
      %839 = vmatpush1.msra.mxu0 0.0
      %840 = vmatprep.subr.mxu0 0.0
      %841 = vmatpush1.msra.mxu0 0.0
      %842 = vmatprep.subr.mxu0 0.0
      %843 = vmatpush1.msra.mxu0 0.0
      %844 = vmatprep.subr.mxu0 0.0
      %845 = vmatpush1.msra.mxu0 %v821
      %846 = vmatprep.subr.mxu0 0.0
      %847 = vmatpush1.msra.mxu0 %v820
      %848 = vmatprep.subr.mxu0 0.0
      %849 = vmatpush1.msra.mxu0 %v819
      %850 = vmatprep.subr.mxu0 0.0
      %851 = vmatpush1.msra.mxu0 %v818
      %852 = vmatprep.subr.mxu0 0.0
      %853 = vmatpush1.msra.mxu0 %v817
      %854 = vmatprep.subr.mxu0 0.0
      %855 = vmatpush1.msra.mxu0 %v816
      %856 = vmatprep.subr.mxu0 0.0
      %857 = vmatpush1.msra.mxu0 %v815
      %858 = vmatprep.subr.mxu0 0.0
      %859 = vmatpush1.msra.mxu0 %v814
      %860 = vmatprep.subr.mxu0 0.0
      %861 = vmatpush2.msra.mxu0 0.0
      %862 = vmatprep.subr.mxu0 0.0
      %863 = vmatpush2.msra.mxu0 0.0
      %864 = vmatprep.subr.mxu0 0.0
      %865 = vmatpush2.msra.mxu0 0.0
      %866 = vmatprep.subr.mxu0 0.0
      %867 = vmatpush2.msra.mxu0 0.0
      %868 = vmatprep.subr.mxu0 0.0
      %869 = vmatpush2.msra.mxu0 0.0
      %870 = vmatprep.subr.mxu0 0.0
      %871 = vmatpush2.msra.mxu0 0.0
      %872 = vmatprep.subr.mxu0 0.0
      %873 = vmatpush2.msra.mxu0 0.0
      %874 = vmatprep.subr.mxu0 0.0
      %875 = vmatpush2.msra.mxu0 0.0
      %876 = vmatprep.subr.mxu0 0.0
      %877 = vmatpush2.msra.mxu0 0.0
      %878 = vmatprep.subr.mxu0 0.0
      %879 = vmatpush2.msra.mxu0 0.0
      %880 = vmatprep.subr.mxu0 0.0
      %881 = vmatpush2.msra.mxu0 0.0
      %882 = vmatprep.subr.mxu0 0.0
      %883 = vmatpush2.msra.mxu0 0.0
      %884 = vmatprep.subr.mxu0 0.0
      %885 = vmatpush2.msra.mxu0 0.0
      %886 = vmatprep.subr.mxu0 0.0
      %887 = vmatpush2.msra.mxu0 0.0
      %888 = vmatprep.subr.mxu0 0.0
      %889 = vmatpush2.msra.mxu0 0.0
      %890 = vmatprep.subr.mxu0 0.0
      %891 = vmatpush2.msra.mxu0 0.0
      %892 = vmatprep.mubr.f32.mxu0 0.0
      %893 = vmatmul.mubr.f32.gmra.mxu0 %v823
      %v894 = vpop.f32.mrf.mxu0
      %v895 = vadd.f32 0.0, %v894
      %v896 = vpop.f32.mrf.mxu0
      %897 = vmatprep.mubr.f32.mxu0 0.0
      %898 = vmatmul.mubr.f32.gmra.mxu0 %v826
      %v899 = vpop.f32.mrf.mxu0
      %v900 = vadd.f32 0.0, %v899
      %v901 = vpop.f32.mrf.mxu0
      %902 = vdwg.mxu0
      %v903 = vadd.f32 %v809, %v895
      %v904 = vadd.f32 %v810, %v900
      %v905 = vld [vmem:[#allocation2 + $0x6] sm:$0xff]
      %v906 = vld [vmem:[#allocation2 + $0xe] sm:$0xff]
      %v907 = vmul.f32 %v905, %v432
      %v908 = vmul.f32 %v906, %v433
      %s909 = scalar_lea.vmem %s4, 320
      %v910 = vld [vmem:[%s909] sm:$0xff]
      %v911 = vld [vmem:[%s909 + $0x8] sm:$0xff]
      %v912 = vld [vmem:[%s909 + $0x10] sm:$0xff]
      %v913 = vld [vmem:[%s909 + $0x18] sm:$0xff]
      %v914 = vld [vmem:[%s909 + $0x20] sm:$0xff]
      %v915 = vld [vmem:[%s909 + $0x28] sm:$0xff]
      %v916 = vld [vmem:[%s909 + $0x30] sm:$0xff]
      %v917 = vld [vmem:[%s909 + $0x38] sm:$0xff]
      %v919 = vsel %vm392, %v907, 0
      %v922 = vsel %vm392, %v908, 0
      %924 = vmatprep.subr.mxu0 0.0
      %925 = vmatpush1.msra.mxu0 0.0
      %926 = vmatprep.subr.mxu0 0.0
      %927 = vmatpush1.msra.mxu0 0.0
      %928 = vmatprep.subr.mxu0 0.0
      %929 = vmatpush1.msra.mxu0 0.0
      %930 = vmatprep.subr.mxu0 0.0
      %931 = vmatpush1.msra.mxu0 0.0
      %932 = vmatprep.subr.mxu0 0.0
      %933 = vmatpush1.msra.mxu0 0.0
      %934 = vmatprep.subr.mxu0 0.0
      %935 = vmatpush1.msra.mxu0 0.0
      %936 = vmatprep.subr.mxu0 0.0
      %937 = vmatpush1.msra.mxu0 0.0
      %938 = vmatprep.subr.mxu0 0.0
      %939 = vmatpush1.msra.mxu0 0.0
      %940 = vmatprep.subr.mxu0 0.0
      %941 = vmatpush1.msra.mxu0 %v917
      %942 = vmatprep.subr.mxu0 0.0
      %943 = vmatpush1.msra.mxu0 %v916
      %944 = vmatprep.subr.mxu0 0.0
      %945 = vmatpush1.msra.mxu0 %v915
      %946 = vmatprep.subr.mxu0 0.0
      %947 = vmatpush1.msra.mxu0 %v914
      %948 = vmatprep.subr.mxu0 0.0
      %949 = vmatpush1.msra.mxu0 %v913
      %950 = vmatprep.subr.mxu0 0.0
      %951 = vmatpush1.msra.mxu0 %v912
      %952 = vmatprep.subr.mxu0 0.0
      %953 = vmatpush1.msra.mxu0 %v911
      %954 = vmatprep.subr.mxu0 0.0
      %955 = vmatpush1.msra.mxu0 %v910
      %956 = vmatprep.subr.mxu0 0.0
      %957 = vmatpush2.msra.mxu0 0.0
      %958 = vmatprep.subr.mxu0 0.0
      %959 = vmatpush2.msra.mxu0 0.0
      %960 = vmatprep.subr.mxu0 0.0
      %961 = vmatpush2.msra.mxu0 0.0
      %962 = vmatprep.subr.mxu0 0.0
      %963 = vmatpush2.msra.mxu0 0.0
      %964 = vmatprep.subr.mxu0 0.0
      %965 = vmatpush2.msra.mxu0 0.0
      %966 = vmatprep.subr.mxu0 0.0
      %967 = vmatpush2.msra.mxu0 0.0
      %968 = vmatprep.subr.mxu0 0.0
      %969 = vmatpush2.msra.mxu0 0.0
      %970 = vmatprep.subr.mxu0 0.0
      %971 = vmatpush2.msra.mxu0 0.0
      %972 = vmatprep.subr.mxu0 0.0
      %973 = vmatpush2.msra.mxu0 0.0
      %974 = vmatprep.subr.mxu0 0.0
      %975 = vmatpush2.msra.mxu0 0.0
      %976 = vmatprep.subr.mxu0 0.0
      %977 = vmatpush2.msra.mxu0 0.0
      %978 = vmatprep.subr.mxu0 0.0
      %979 = vmatpush2.msra.mxu0 0.0
      %980 = vmatprep.subr.mxu0 0.0
      %981 = vmatpush2.msra.mxu0 0.0
      %982 = vmatprep.subr.mxu0 0.0
      %983 = vmatpush2.msra.mxu0 0.0
      %984 = vmatprep.subr.mxu0 0.0
      %985 = vmatpush2.msra.mxu0 0.0
      %986 = vmatprep.subr.mxu0 0.0
      %987 = vmatpush2.msra.mxu0 0.0
      %988 = vmatprep.mubr.f32.mxu0 0.0
      %989 = vmatmul.mubr.f32.gmra.mxu0 %v919
      %v990 = vpop.f32.mrf.mxu0
      %v991 = vadd.f32 0.0, %v990
      %v992 = vpop.f32.mrf.mxu0
      %993 = vmatprep.mubr.f32.mxu0 0.0
      %994 = vmatmul.mubr.f32.gmra.mxu0 %v922
      %v995 = vpop.f32.mrf.mxu0
      %v996 = vadd.f32 0.0, %v995
      %v997 = vpop.f32.mrf.mxu0
      %998 = vdwg.mxu0
      %v999 = vadd.f32 %v903, %v991
      %v1000 = vadd.f32 %v904, %v996
      %v1001 = vld [vmem:[#allocation2 + $0x8] sm:$0xff]
      %v1002 = vld [vmem:[#allocation2 + $0x10] sm:$0xff]
      %v1003 = vmul.f32 %v1001, %v426
      %v1004 = vmul.f32 %v1002, %v427
      %s1005 = scalar_lea.vmem %s4, 384
      %v1006 = vld [vmem:[%s1005] sm:$0xff]
      %v1007 = vld [vmem:[%s1005 + $0x8] sm:$0xff]
      %v1008 = vld [vmem:[%s1005 + $0x10] sm:$0xff]
      %v1009 = vld [vmem:[%s1005 + $0x18] sm:$0xff]
      %v1010 = vld [vmem:[%s1005 + $0x20] sm:$0xff]
      %v1011 = vld [vmem:[%s1005 + $0x28] sm:$0xff]
      %v1012 = vld [vmem:[%s1005 + $0x30] sm:$0xff]
      %v1013 = vld [vmem:[%s1005 + $0x38] sm:$0xff]
      %v1015 = vsel %vm392, %v1003, 0
      %v1018 = vsel %vm392, %v1004, 0
      %1020 = vmatprep.subr.mxu0 0.0
      %1021 = vmatpush1.msra.mxu0 0.0
      %1022 = vmatprep.subr.mxu0 0.0
      %1023 = vmatpush1.msra.mxu0 0.0
      %1024 = vmatprep.subr.mxu0 0.0
      %1025 = vmatpush1.msra.mxu0 0.0
      %1026 = vmatprep.subr.mxu0 0.0
      %1027 = vmatpush1.msra.mxu0 0.0
      %1028 = vmatprep.subr.mxu0 0.0
      %1029 = vmatpush1.msra.mxu0 0.0
      %1030 = vmatprep.subr.mxu0 0.0
      %1031 = vmatpush1.msra.mxu0 0.0
      %1032 = vmatprep.subr.mxu0 0.0
      %1033 = vmatpush1.msra.mxu0 0.0
      %1034 = vmatprep.subr.mxu0 0.0
      %1035 = vmatpush1.msra.mxu0 0.0
      %1036 = vmatprep.subr.mxu0 0.0
      %1037 = vmatpush1.msra.mxu0 %v1013
      %1038 = vmatprep.subr.mxu0 0.0
      %1039 = vmatpush1.msra.mxu0 %v1012
      %1040 = vmatprep.subr.mxu0 0.0
      %1041 = vmatpush1.msra.mxu0 %v1011
      %1042 = vmatprep.subr.mxu0 0.0
      %1043 = vmatpush1.msra.mxu0 %v1010
      %1044 = vmatprep.subr.mxu0 0.0
      %1045 = vmatpush1.msra.mxu0 %v1009
      %1046 = vmatprep.subr.mxu0 0.0
      %1047 = vmatpush1.msra.mxu0 %v1008
      %1048 = vmatprep.subr.mxu0 0.0
      %1049 = vmatpush1.msra.mxu0 %v1007
      %1050 = vmatprep.subr.mxu0 0.0
      %1051 = vmatpush1.msra.mxu0 %v1006
      %1052 = vmatprep.subr.mxu0 0.0
      %1053 = vmatpush2.msra.mxu0 0.0
      %1054 = vmatprep.subr.mxu0 0.0
      %1055 = vmatpush2.msra.mxu0 0.0
      %1056 = vmatprep.subr.mxu0 0.0
      %1057 = vmatpush2.msra.mxu0 0.0
      %1058 = vmatprep.subr.mxu0 0.0
      %1059 = vmatpush2.msra.mxu0 0.0
      %1060 = vmatprep.subr.mxu0 0.0
      %1061 = vmatpush2.msra.mxu0 0.0
      %1062 = vmatprep.subr.mxu0 0.0
      %1063 = vmatpush2.msra.mxu0 0.0
      %1064 = vmatprep.subr.mxu0 0.0
      %1065 = vmatpush2.msra.mxu0 0.0
      %1066 = vmatprep.subr.mxu0 0.0
      %1067 = vmatpush2.msra.mxu0 0.0
      %1068 = vmatprep.subr.mxu0 0.0
      %1069 = vmatpush2.msra.mxu0 0.0
      %1070 = vmatprep.subr.mxu0 0.0
      %1071 = vmatpush2.msra.mxu0 0.0
      %1072 = vmatprep.subr.mxu0 0.0
      %1073 = vmatpush2.msra.mxu0 0.0
      %1074 = vmatprep.subr.mxu0 0.0
      %1075 = vmatpush2.msra.mxu0 0.0
      %1076 = vmatprep.subr.mxu0 0.0
      %1077 = vmatpush2.msra.mxu0 0.0
      %1078 = vmatprep.subr.mxu0 0.0
      %1079 = vmatpush2.msra.mxu0 0.0
      %1080 = vmatprep.subr.mxu0 0.0
      %1081 = vmatpush2.msra.mxu0 0.0
      %1082 = vmatprep.subr.mxu0 0.0
      %1083 = vmatpush2.msra.mxu0 0.0
      %1084 = vmatprep.mubr.f32.mxu0 0.0
      %1085 = vmatmul.mubr.f32.gmra.mxu0 %v1015
      %v1086 = vpop.f32.mrf.mxu0
      %v1087 = vadd.f32 0.0, %v1086
      %v1088 = vpop.f32.mrf.mxu0
      %1089 = vmatprep.mubr.f32.mxu0 0.0
      %1090 = vmatmul.mubr.f32.gmra.mxu0 %v1018
      %v1091 = vpop.f32.mrf.mxu0
      %v1092 = vadd.f32 0.0, %v1091
      %v1093 = vpop.f32.mrf.mxu0
      %1094 = vdwg.mxu0
      %v1095 = vadd.f32 %v999, %v1087
      %v1096 = vadd.f32 %v1000, %v1092
      %v1097 = vld [vmem:[#allocation2 + $0x9] sm:$0xff]
      %v1098 = vld [vmem:[#allocation2 + $0x11] sm:$0xff]
      %s1099 = scalar_lea.vmem %s4, 448
      %v1100 = vld [vmem:[%s1099] sm:$0xff]
      %v1101 = vld [vmem:[%s1099 + $0x8] sm:$0xff]
      %v1102 = vld [vmem:[%s1099 + $0x10] sm:$0xff]
      %v1103 = vld [vmem:[%s1099 + $0x18] sm:$0xff]
      %v1104 = vld [vmem:[%s1099 + $0x20] sm:$0xff]
      %v1105 = vld [vmem:[%s1099 + $0x28] sm:$0xff]
      %v1106 = vld [vmem:[%s1099 + $0x30] sm:$0xff]
      %v1107 = vld [vmem:[%s1099 + $0x38] sm:$0xff]
      %v1109 = vsel %vm392, %v1097, 0
      %v1112 = vsel %vm392, %v1098, 0
      %1114 = vmatprep.subr.mxu0 0.0
      %1115 = vmatpush1.msra.mxu0 0.0
      %1116 = vmatprep.subr.mxu0 0.0
      %1117 = vmatpush1.msra.mxu0 0.0
      %1118 = vmatprep.subr.mxu0 0.0
      %1119 = vmatpush1.msra.mxu0 0.0
      %1120 = vmatprep.subr.mxu0 0.0
      %1121 = vmatpush1.msra.mxu0 0.0
      %1122 = vmatprep.subr.mxu0 0.0
      %1123 = vmatpush1.msra.mxu0 0.0
      %1124 = vmatprep.subr.mxu0 0.0
      %1125 = vmatpush1.msra.mxu0 0.0
      %1126 = vmatprep.subr.mxu0 0.0
      %1127 = vmatpush1.msra.mxu0 0.0
      %1128 = vmatprep.subr.mxu0 0.0
      %1129 = vmatpush1.msra.mxu0 0.0
      %1130 = vmatprep.subr.mxu0 0.0
      %1131 = vmatpush1.msra.mxu0 %v1107
      %1132 = vmatprep.subr.mxu0 0.0
      %1133 = vmatpush1.msra.mxu0 %v1106
      %1134 = vmatprep.subr.mxu0 0.0
      %1135 = vmatpush1.msra.mxu0 %v1105
      %1136 = vmatprep.subr.mxu0 0.0
      %1137 = vmatpush1.msra.mxu0 %v1104
      %1138 = vmatprep.subr.mxu0 0.0
      %1139 = vmatpush1.msra.mxu0 %v1103
      %1140 = vmatprep.subr.mxu0 0.0
      %1141 = vmatpush1.msra.mxu0 %v1102
      %1142 = vmatprep.subr.mxu0 0.0
      %1143 = vmatpush1.msra.mxu0 %v1101
      %1144 = vmatprep.subr.mxu0 0.0
      %1145 = vmatpush1.msra.mxu0 %v1100
      %1146 = vmatprep.subr.mxu0 0.0
      %1147 = vmatpush2.msra.mxu0 0.0
      %1148 = vmatprep.subr.mxu0 0.0
      %1149 = vmatpush2.msra.mxu0 0.0
      %1150 = vmatprep.subr.mxu0 0.0
      %1151 = vmatpush2.msra.mxu0 0.0
      %1152 = vmatprep.subr.mxu0 0.0
      %1153 = vmatpush2.msra.mxu0 0.0
      %1154 = vmatprep.subr.mxu0 0.0
      %1155 = vmatpush2.msra.mxu0 0.0
      %1156 = vmatprep.subr.mxu0 0.0
      %1157 = vmatpush2.msra.mxu0 0.0
      %1158 = vmatprep.subr.mxu0 0.0
      %1159 = vmatpush2.msra.mxu0 0.0
      %1160 = vmatprep.subr.mxu0 0.0
      %1161 = vmatpush2.msra.mxu0 0.0
      %1162 = vmatprep.subr.mxu0 0.0
      %1163 = vmatpush2.msra.mxu0 0.0
      %1164 = vmatprep.subr.mxu0 0.0
      %1165 = vmatpush2.msra.mxu0 0.0
      %1166 = vmatprep.subr.mxu0 0.0
      %1167 = vmatpush2.msra.mxu0 0.0
      %1168 = vmatprep.subr.mxu0 0.0
      %1169 = vmatpush2.msra.mxu0 0.0
      %1170 = vmatprep.subr.mxu0 0.0
      %1171 = vmatpush2.msra.mxu0 0.0
      %1172 = vmatprep.subr.mxu0 0.0
      %1173 = vmatpush2.msra.mxu0 0.0
      %1174 = vmatprep.subr.mxu0 0.0
      %1175 = vmatpush2.msra.mxu0 0.0
      %1176 = vmatprep.subr.mxu0 0.0
      %1177 = vmatpush2.msra.mxu0 0.0
      %1178 = vmatprep.mubr.f32.mxu0 0.0
      %1179 = vmatmul.mubr.f32.gmra.mxu0 %v1109
      %v1180 = vpop.f32.mrf.mxu0
      %v1181 = vadd.f32 0.0, %v1180
      %v1182 = vpop.f32.mrf.mxu0
      %1183 = vmatprep.mubr.f32.mxu0 0.0
      %1184 = vmatmul.mubr.f32.gmra.mxu0 %v1112
      %v1185 = vpop.f32.mrf.mxu0
      %v1186 = vadd.f32 0.0, %v1185
      %v1187 = vpop.f32.mrf.mxu0
      %1188 = vdwg.mxu0
      %v1189 = vadd.f32 %v1095, %v1181
      %v1190 = vadd.f32 %v1096, %v1186
      %v1191 = vld [vmem:[#allocation2 + $0xa] sm:$0xff]
      %v1192 = vld [vmem:[#allocation2 + $0x12] sm:$0xff]
      %v1193 = vmul.f32 %v1191, %v432
      %v1194 = vmul.f32 %v1192, %v433
      %s1195 = scalar_lea.vmem %s4, 512
      %v1196 = vld [vmem:[%s1195] sm:$0xff]
      %v1197 = vld [vmem:[%s1195 + $0x8] sm:$0xff]
      %v1198 = vld [vmem:[%s1195 + $0x10] sm:$0xff]
      %v1199 = vld [vmem:[%s1195 + $0x18] sm:$0xff]
      %v1200 = vld [vmem:[%s1195 + $0x20] sm:$0xff]
      %v1201 = vld [vmem:[%s1195 + $0x28] sm:$0xff]
      %v1202 = vld [vmem:[%s1195 + $0x30] sm:$0xff]
      %v1203 = vld [vmem:[%s1195 + $0x38] sm:$0xff]
      %v1205 = vsel %vm392, %v1193, 0
      %v1208 = vsel %vm392, %v1194, 0
      %1210 = vmatprep.subr.mxu0 0.0
      %1211 = vmatpush1.msra.mxu0 0.0
      %1212 = vmatprep.subr.mxu0 0.0
      %1213 = vmatpush1.msra.mxu0 0.0
      %1214 = vmatprep.subr.mxu0 0.0
      %1215 = vmatpush1.msra.mxu0 0.0
      %1216 = vmatprep.subr.mxu0 0.0
      %1217 = vmatpush1.msra.mxu0 0.0
      %1218 = vmatprep.subr.mxu0 0.0
      %1219 = vmatpush1.msra.mxu0 0.0
      %1220 = vmatprep.subr.mxu0 0.0
      %1221 = vmatpush1.msra.mxu0 0.0
      %1222 = vmatprep.subr.mxu0 0.0
      %1223 = vmatpush1.msra.mxu0 0.0
      %1224 = vmatprep.subr.mxu0 0.0
      %1225 = vmatpush1.msra.mxu0 0.0
      %1226 = vmatprep.subr.mxu0 0.0
      %1227 = vmatpush1.msra.mxu0 %v1203
      %1228 = vmatprep.subr.mxu0 0.0
      %1229 = vmatpush1.msra.mxu0 %v1202
      %1230 = vmatprep.subr.mxu0 0.0
      %1231 = vmatpush1.msra.mxu0 %v1201
      %1232 = vmatprep.subr.mxu0 0.0
      %1233 = vmatpush1.msra.mxu0 %v1200
      %1234 = vmatprep.subr.mxu0 0.0
      %1235 = vmatpush1.msra.mxu0 %v1199
      %1236 = vmatprep.subr.mxu0 0.0
      %1237 = vmatpush1.msra.mxu0 %v1198
      %1238 = vmatprep.subr.mxu0 0.0
      %1239 = vmatpush1.msra.mxu0 %v1197
      %1240 = vmatprep.subr.mxu0 0.0
      %1241 = vmatpush1.msra.mxu0 %v1196
      %1242 = vmatprep.subr.mxu0 0.0
      %1243 = vmatpush2.msra.mxu0 0.0
      %1244 = vmatprep.subr.mxu0 0.0
      %1245 = vmatpush2.msra.mxu0 0.0
      %1246 = vmatprep.subr.mxu0 0.0
      %1247 = vmatpush2.msra.mxu0 0.0
      %1248 = vmatprep.subr.mxu0 0.0
      %1249 = vmatpush2.msra.mxu0 0.0
      %1250 = vmatprep.subr.mxu0 0.0
      %1251 = vmatpush2.msra.mxu0 0.0
      %1252 = vmatprep.subr.mxu0 0.0
      %1253 = vmatpush2.msra.mxu0 0.0
      %1254 = vmatprep.subr.mxu0 0.0
      %1255 = vmatpush2.msra.mxu0 0.0
      %1256 = vmatprep.subr.mxu0 0.0
      %1257 = vmatpush2.msra.mxu0 0.0
      %1258 = vmatprep.subr.mxu0 0.0
      %1259 = vmatpush2.msra.mxu0 0.0
      %1260 = vmatprep.subr.mxu0 0.0
      %1261 = vmatpush2.msra.mxu0 0.0
      %1262 = vmatprep.subr.mxu0 0.0
      %1263 = vmatpush2.msra.mxu0 0.0
      %1264 = vmatprep.subr.mxu0 0.0
      %1265 = vmatpush2.msra.mxu0 0.0
      %1266 = vmatprep.subr.mxu0 0.0
      %1267 = vmatpush2.msra.mxu0 0.0
      %1268 = vmatprep.subr.mxu0 0.0
      %1269 = vmatpush2.msra.mxu0 0.0
      %1270 = vmatprep.subr.mxu0 0.0
      %1271 = vmatpush2.msra.mxu0 0.0
      %1272 = vmatprep.subr.mxu0 0.0
      %1273 = vmatpush2.msra.mxu0 0.0
      %1274 = vmatprep.mubr.f32.mxu0 0.0
      %1275 = vmatmul.mubr.f32.gmra.mxu0 %v1205
      %v1276 = vpop.f32.mrf.mxu0
      %v1277 = vadd.f32 0.0, %v1276
      %v1278 = vpop.f32.mrf.mxu0
      %1279 = vmatprep.mubr.f32.mxu0 0.0
      %1280 = vmatmul.mubr.f32.gmra.mxu0 %v1208
      %v1281 = vpop.f32.mrf.mxu0
      %v1282 = vadd.f32 0.0, %v1281
      %v1283 = vpop.f32.mrf.mxu0
      %1284 = vdwg.mxu0
      %v1285 = vadd.f32 %v1189, %v1277
      %v1286 = vadd.f32 %v1190, %v1282
      %v1287 = vld [vmem:[%s5] sm:$0x1]
      %v1289 = vlaneseq
      %v1290 = vshrl.u32 %v1289, 7
      %v1291 = vsub.s32 0, %v1290
      %v1292 = vrot.slane %v1287, %v1291
      %v1294 = vadd.f32 %v1285, %v1292
      %v1295 = vadd.f32 %v1286, %v1292
      %1296 = vst.msk [vmem:[%s271] sm:$0xff] %vm392, %v1294
      %1297 = vst.msk [vmem:[%s271 + $0x8] sm:$0xff] %vm392, %v1295
      %p1298 = scmp.lt.s32.totalorder %s17, 1
      %s1299 = scalar_select %p1298, %s17, 1
      %s1300 = smul.addr %s1299, 2
      %s1301 = smul.addr %s1300, 8
      %s1302 = scalar_lea.vmem %s6, %s1301
      // Predicated region
      $region45: #{_lambda_.14} parent=43 // pred_check
        %p1303 = pneg %p171
      $region46: #{_lambda_.14} parent=43 // pred_check_branch
        %1305 = sbr.rel (%p1303) target = $region48
      $region47: #{_lambda_.14} parent=43 // pred_region
        _
      $region48: #{_lambda_.14} parent=43 // pred_fallthru
        _
    $region44: #{_lambda_.14} parent=5 // pred_fallthru
      _
    %p1306 = scmp.le.s32.totalorder 2, %s12
    // Predicated region
    $region49: #{_lambda_.14} parent=5 // pred_check
      %p1307 = pneg %p1306
    $region50: #{_lambda_.14} parent=5 // pred_check_branch
      %1309 = sbr.rel (%p1307) target = $region52
    $region51: #{_lambda_.14} parent=5 // pred_region
      %s1310 = ssub.s32 %s12, 2
      // Predicated region
      $region53: #{_lambda_.14} parent=51 // pred_check
        %p1311 = pneg %p177
      $region54: #{_lambda_.14} parent=51 // pred_check_branch
        %1313 = sbr.rel (%p1311) target = $region56
      $region55: #{_lambda_.14} parent=51 // pred_region
        %p1314 = scmp.lt.s32.totalorder %s18, 1
        %s1315 = scalar_select %p1314, %s18, 1
        %s1316 = smul.addr %s1315, 2
        %s1317 = smul.addr %s1316, 8
        %s1318 = scalar_lea.vmem %s6, %s1317
      $region56: #{_lambda_.14} parent=51 // pred_fallthru
        _
    $region52: #{_lambda_.14} parent=5 // pred_fallthru
      _
  $region6: #{_lambda_.14} parent=0 // loop_footer
    %s16 = sadd.s32 1, %s12
  $region7: #{_lambda_.14} parent=0 // loop_footer_branch
    %11 = sbr.rel target = $region3
  $region8: #{_lambda_.14} parent=0 // loop_exit
    _

// kernel: _lambda_.15
$region0: #{_lambda_.15}
  #allocation0 [shape = 'u32[]', space=smem, size = 0x4, offset = 0x4, fixed_abs, tag = 'smem constant byte address 0x4 - core index']
  #allocation1 [shape = 'u32[144,128]{1,0:T(1,128)}', space=vmem, size = 0x12000, scoped, tag = 'internal scratch']
  #allocation2 [shape = 'f32[82,64]{1,0:T(8,128)}', space=vmem, size = 0xb000, scoped, tag = 'scratch operand']
  %s0 = inlined_call_operand.vmem [shape: f32[2,64,64], index: 0, kind: input, shape index: {}]
  %s1 = inlined_call_operand.vmem [shape: f32[2,64,64], index: 1, kind: input, shape index: {}]
  %s2 = inlined_call_operand.vmem [shape: f32[64,64], index: 2, kind: input, shape index: {}]
  %s3 = inlined_call_operand.vmem [shape: f32[1,64], index: 3, kind: input, shape index: {}]
  %s4 = inlined_call_operand.vmem [shape: f32[9,64,64], index: 4, kind: input, shape index: {}]
  %s5 = inlined_call_operand.vmem [shape: f32[1,64], index: 5, kind: input, shape index: {}]
  %s6 = inlined_call_operand.hbm [shape: f32[2,64,64], index: 6, kind: output, shape index: {}]
  %s7 = sld [smem:[#allocation0]]
  $region57: #{_lambda_.15} parent=0
    _
  %s9 = ssub.s32 1, %s7
  %s10 = scalar_select 0, %s9, %s7
  $region1: #{_lambda_.15} parent=0
    #allocation3 [shape = 'u8[65536]{0}', space=vmem, size = 0x10000, scoped, tag = 'output window, operand 0']
    #allocation4 [shape = 's32[2]{0}', space=sflag, size = 0x8, scoped, tag = 'scoped memory for _lambda_.15']
    %11 = vsyncpa [#allocation4], 0
    %s12 = scalar_lea.sflag [#allocation4], 1
    %13 = vsyncpa %s12, 0
    loop: start=0, step=1, limit=4
    $region2: #{_lambda_.15} parent=1 // loop_pre_header
      _
    $region3: #{_lambda_.15} parent=1 // loop_header
      %s15 = sphi 0, %s19
      %p16 = scmp.ge.s32.totalorder %s15, 4
      %s25 = sphi 0, %s27
      %s28 = sphi 0, %s25
      %s29 = sphi 0, %s28
      %s45 = sphi 0, %s29
      %s51 = sphi 0, %s53
      %s54 = sphi 0, %s51
      %s55 = sphi 0, %s54
      %s71 = sphi 0, %s55
      %s75 = sphi 0, %s75
      %s77 = sphi 0, %s75
      %s78 = sphi 0, %s77
      %s92 = sphi 0, %s78
      %s96 = sphi 0, %s96
      %s98 = sphi 0, %s96
      %s99 = sphi 0, %s98
      %s113 = sphi 0, %s99
      %s117 = sphi 0, %s117
      %s119 = sphi 0, %s117
      %s120 = sphi 0, %s119
      %s134 = sphi 0, %s120
      %s138 = sphi 0, %s138
      %s140 = sphi 0, %s138
      %s141 = sphi 0, %s140
      %s155 = sphi 0, %s141
      %s161 = sphi 0, %s163
      %s164 = sphi 0, %s161
      %s165 = sphi 0, %s164
      %s181 = sphi 0, %s165
    $region4: #{_lambda_.15} parent=1 // loop_header_branch
      %18 = sbr.rel (%p16) target = $region8
    $region5: #{_lambda_.15} parent=1 // loop_body
      %s20 = ssub.s32 %s15, 1
      %s21 = ssub.s32 %s15, 2
      %s22 = sadd.s32 %s15, 1
      %s23 = ssub.s32 %s15, %s22
      %p24 = scmp.eq.s32.totalorder %s23, 0
      %s26 = sadd.s32 %s25, 1
      %s27 = scalar_select %p24, %s25, %s26
      %p30 = pneg %p24
      %p31 = scmp.eq.s32.totalorder %s15, 1
      %p32 = por %p30, %p31
      %p33 = scmp.ne.s32.totalorder %s25, %s28
      %p34 = scmp.eq.s32.totalorder %s15, 0
      %p35 = por %p33, %p34
      %p36 = scmp.ne.s32.totalorder %s25, %s28
      %p37 = scmp.eq.s32.totalorder %s20, 1
      %p38 = por %p36, %p37
      %p39 = scmp.ne.s32.totalorder %s28, %s29
      %p40 = scmp.eq.s32.totalorder %s20, 0
      %p41 = por %p39, %p40
      %p42 = scmp.ne.s32.totalorder %s28, %s29
      %p43 = scmp.eq.s32.totalorder %s21, 1
      %p44 = por %p42, %p43
      %p46 = scmp.ne.s32.totalorder %s29, %s45
      %p47 = scmp.eq.s32.totalorder %s21, 0
      %p48 = por %p46, %p47
      %s49 = ssub.s32 %s15, %s22
      %p50 = scmp.eq.s32.totalorder %s49, 0
      %s52 = sadd.s32 %s51, 1
      %s53 = scalar_select %p50, %s51, %s52
      %p56 = pneg %p50
      %p57 = scmp.eq.s32.totalorder %s15, 1
      %p58 = por %p56, %p57
      %p59 = scmp.ne.s32.totalorder %s51, %s54
      %p60 = scmp.eq.s32.totalorder %s15, 0
      %p61 = por %p59, %p60
      %p62 = scmp.ne.s32.totalorder %s51, %s54
      %p63 = scmp.eq.s32.totalorder %s20, 1
      %p64 = por %p62, %p63
      %p65 = scmp.ne.s32.totalorder %s54, %s55
      %p66 = scmp.eq.s32.totalorder %s20, 0
      %p67 = por %p65, %p66
      %p68 = scmp.ne.s32.totalorder %s54, %s55
      %p69 = scmp.eq.s32.totalorder %s21, 1
      %p70 = por %p68, %p69
      %p72 = scmp.ne.s32.totalorder %s55, %s71
      %p73 = scmp.eq.s32.totalorder %s21, 0
      %p74 = por %p72, %p73
      %s76 = sadd.s32 %s75, 1
      %p79 = scmp.eq.s32.totalorder %s15, 1
      %p80 = scmp.ne.s32.totalorder %s75, %s77
      %p81 = scmp.eq.s32.totalorder %s15, 0
      %p82 = por %p80, %p81
      %p83 = scmp.ne.s32.totalorder %s75, %s77
      %p84 = scmp.eq.s32.totalorder %s20, 1
      %p85 = por %p83, %p84
      %p86 = scmp.ne.s32.totalorder %s77, %s78
      %p87 = scmp.eq.s32.totalorder %s20, 0
      %p88 = por %p86, %p87
      %p89 = scmp.ne.s32.totalorder %s77, %s78
      %p90 = scmp.eq.s32.totalorder %s21, 1
      %p91 = por %p89, %p90
      %p93 = scmp.ne.s32.totalorder %s78, %s92
      %p94 = scmp.eq.s32.totalorder %s21, 0
      %p95 = por %p93, %p94
      %s97 = sadd.s32 %s96, 1
      %p100 = scmp.eq.s32.totalorder %s15, 1
      %p101 = scmp.ne.s32.totalorder %s96, %s98
      %p102 = scmp.eq.s32.totalorder %s15, 0
      %p103 = por %p101, %p102
      %p104 = scmp.ne.s32.totalorder %s96, %s98
      %p105 = scmp.eq.s32.totalorder %s20, 1
      %p106 = por %p104, %p105
      %p107 = scmp.ne.s32.totalorder %s98, %s99
      %p108 = scmp.eq.s32.totalorder %s20, 0
      %p109 = por %p107, %p108
      %p110 = scmp.ne.s32.totalorder %s98, %s99
      %p111 = scmp.eq.s32.totalorder %s21, 1
      %p112 = por %p110, %p111
      %p114 = scmp.ne.s32.totalorder %s99, %s113
      %p115 = scmp.eq.s32.totalorder %s21, 0
      %p116 = por %p114, %p115
      %s118 = sadd.s32 %s117, 1
      %p121 = scmp.eq.s32.totalorder %s15, 1
      %p122 = scmp.ne.s32.totalorder %s117, %s119
      %p123 = scmp.eq.s32.totalorder %s15, 0
      %p124 = por %p122, %p123
      %p125 = scmp.ne.s32.totalorder %s117, %s119
      %p126 = scmp.eq.s32.totalorder %s20, 1
      %p127 = por %p125, %p126
      %p128 = scmp.ne.s32.totalorder %s119, %s120
      %p129 = scmp.eq.s32.totalorder %s20, 0
      %p130 = por %p128, %p129
      %p131 = scmp.ne.s32.totalorder %s119, %s120
      %p132 = scmp.eq.s32.totalorder %s21, 1
      %p133 = por %p131, %p132
      %p135 = scmp.ne.s32.totalorder %s120, %s134
      %p136 = scmp.eq.s32.totalorder %s21, 0
      %p137 = por %p135, %p136
      %s139 = sadd.s32 %s138, 1
      %p142 = scmp.eq.s32.totalorder %s15, 1
      %p143 = scmp.ne.s32.totalorder %s138, %s140
      %p144 = scmp.eq.s32.totalorder %s15, 0
      %p145 = por %p143, %p144
      %p146 = scmp.ne.s32.totalorder %s138, %s140
      %p147 = scmp.eq.s32.totalorder %s20, 1
      %p148 = por %p146, %p147
      %p149 = scmp.ne.s32.totalorder %s140, %s141
      %p150 = scmp.eq.s32.totalorder %s20, 0
      %p151 = por %p149, %p150
      %p152 = scmp.ne.s32.totalorder %s140, %s141
      %p153 = scmp.eq.s32.totalorder %s21, 1
      %p154 = por %p152, %p153
      %p156 = scmp.ne.s32.totalorder %s141, %s155
      %p157 = scmp.eq.s32.totalorder %s21, 0
      %p158 = por %p156, %p157
      %s159 = ssub.s32 %s15, %s22
      %p160 = scmp.eq.s32.totalorder %s159, 0
      %s162 = sadd.s32 %s161, 1
      %s163 = scalar_select %p160, %s161, %s162
      %p166 = pneg %p160
      %p167 = scmp.eq.s32.totalorder %s15, 1
      %p168 = por %p166, %p167
      %p169 = scmp.ne.s32.totalorder %s161, %s164
      %p170 = scmp.eq.s32.totalorder %s15, 0
      %p171 = por %p169, %p170
      %p172 = scmp.ne.s32.totalorder %s161, %s164
      %p173 = scmp.eq.s32.totalorder %s20, 1
      %p174 = por %p172, %p173
      %p175 = scmp.ne.s32.totalorder %s164, %s165
      %p176 = scmp.eq.s32.totalorder %s20, 0
      %p177 = por %p175, %p176
      %p178 = scmp.ne.s32.totalorder %s164, %s165
      %p179 = scmp.eq.s32.totalorder %s21, 1
      %p180 = por %p178, %p179
      %p182 = scmp.ne.s32.totalorder %s165, %s181
      %p183 = scmp.eq.s32.totalorder %s21, 0
      %p184 = por %p182, %p183
      %p185 = scmp.le.s32.totalorder 1, %s15
      %p186 = scmp.lt.s32.totalorder %s15, 3
      %p187 = pnand %p185, %p186
      %p188 = pneg %p187
      // Predicated region
      $region9: #{_lambda_.15} parent=5 // pred_check
        _
      $region10: #{_lambda_.15} parent=5 // pred_check_branch
        %190 = sbr.rel (%p187) target = $region12
      $region11: #{_lambda_.15} parent=5 // pred_region
        %s191 = ssub.s32 %s15, 1
        // Predicated region
        $region13: #{_lambda_.15} parent=11 // pred_check
          %p192 = pneg %p88
        $region14: #{_lambda_.15} parent=11 // pred_check_branch
          %194 = sbr.rel (%p192) target = $region16
        $region15: #{_lambda_.15} parent=11 // pred_region
          _
        $region16: #{_lambda_.15} parent=11 // pred_fallthru
          _
        // Predicated region
        $region17: #{_lambda_.15} parent=11 // pred_check
          %p195 = pneg %p109
        $region18: #{_lambda_.15} parent=11 // pred_check_branch
          %197 = sbr.rel (%p195) target = $region20
        $region19: #{_lambda_.15} parent=11 // pred_region
          _
        $region20: #{_lambda_.15} parent=11 // pred_fallthru
          _
        // Predicated region
        $region21: #{_lambda_.15} parent=11 // pred_check
          %p198 = pneg %p130
        $region22: #{_lambda_.15} parent=11 // pred_check_branch
          %200 = sbr.rel (%p198) target = $region24
        $region23: #{_lambda_.15} parent=11 // pred_region
          _
        $region24: #{_lambda_.15} parent=11 // pred_fallthru
          _
        // Predicated region
        $region25: #{_lambda_.15} parent=11 // pred_check
          %p201 = pneg %p151
        $region26: #{_lambda_.15} parent=11 // pred_check_branch
          %203 = sbr.rel (%p201) target = $region28
        $region27: #{_lambda_.15} parent=11 // pred_region
          _
        $region28: #{_lambda_.15} parent=11 // pred_fallthru
          _
      $region12: #{_lambda_.15} parent=5 // pred_fallthru
        _
      %p204 = scmp.lt.s32.totalorder %s15, 2
      // Predicated region
      $region29: #{_lambda_.15} parent=5 // pred_check
        %p205 = pneg %p204
      $region30: #{_lambda_.15} parent=5 // pred_check_branch
        %207 = sbr.rel (%p205) target = $region32
      $region31: #{_lambda_.15} parent=5 // pred_region
        // Predicated region
        $region33: #{_lambda_.15} parent=31 // pred_check
          %p208 = pneg %p35
        $region34: #{_lambda_.15} parent=31 // pred_check_branch
          %210 = sbr.rel (%p208) target = $region36
        $region35: #{_lambda_.15} parent=31 // pred_region
          %p211 = scmp.lt.s32.totalorder %s15, 1
          %s212 = scalar_select %p211, %s15, 1
          %s213 = smul.addr %s212, 8
          %s214 = smul.addr %s213, 8
          %s215 = scalar_lea.vmem %s0, %s214
        $region36: #{_lambda_.15} parent=31 // pred_fallthru
          _
        // Predicated region
        $region37: #{_lambda_.15} parent=31 // pred_check
          %p216 = pneg %p61
        $region38: #{_lambda_.15} parent=31 // pred_check_branch
          %218 = sbr.rel (%p216) target = $region40
        $region39: #{_lambda_.15} parent=31 // pred_region
          %p219 = scmp.lt.s32.totalorder %s15, 1
          %s220 = scalar_select %p219, %s15, 1
          %s221 = smul.addr %s220, 8
          %s222 = smul.addr %s221, 8
          %s223 = scalar_lea.vmem %s1, %s222
        $region40: #{_lambda_.15} parent=31 // pred_fallthru
          _
      $region32: #{_lambda_.15} parent=5 // pred_fallthru
        _
      %p224 = scmp.le.s32.totalorder 1, %s15
      %p225 = scmp.lt.s32.totalorder %s15, 3
      %p226 = pnand %p224, %p225
      %p227 = pneg %p226
      // Predicated region
      $region41: #{_lambda_.15} parent=5 // pred_check
        _
      $region42: #{_lambda_.15} parent=5 // pred_check_branch
        %229 = sbr.rel (%p226) target = $region44
      $region43: #{_lambda_.15} parent=5 // pred_region
        %s230 = ssub.s32 %s15, 1
        %p231 = scmp.lt.s32.totalorder %s20, 1
        %s232 = scalar_select %p231, %s20, 1
        %s233 = smul.addr %s232, 8
        %s234 = smul.addr %s233, 8
        %s235 = scalar_lea.vmem %s0, %s234
        %p236 = pneg %p41
        %p237 = pneg %p38
        %p238 = scmp.lt.s32.totalorder %s20, 1
        %s239 = scalar_select %p238, %s20, 1
        %s240 = smul.addr %s239, 8
        %s241 = smul.addr %s240, 8
        %s242 = scalar_lea.vmem %s1, %s241
        %p243 = pneg %p67
        %p244 = pneg %p64
        %p245 = pneg %p88
        %p246 = pneg %p85
        %p247 = pneg %p109
        %p248 = pneg %p106
        %p249 = pneg %p130
        %p250 = pneg %p127
        %p251 = pneg %p151
        %p252 = pneg %p148
        %p253 = pneg %p177
        %p254 = pneg %p174
        %s255 = sand.u32 %s164, 1
        %s256 = scalar_lea.sflag [#allocation4], %s255
        %s257 = sand.u32 %s164, 1
        %s258 = smul.addr %s257, 64
        %s259 = scalar_lea.vmem [#allocation3], %s258
        %p260 = scmp.lt.s32.totalorder %s20, 1
        %s261 = scalar_select %p260, %s20, 1
        %s262 = smul.addr %s261, 8
        %s263 = smul.addr %s262, 8
        %s264 = scalar_lea.vmem %s0, %s263
        %p265 = scmp.lt.s32.totalorder %s20, 1
        %s266 = scalar_select %p265, %s20, 1
        %s267 = smul.addr %s266, 8
        %s268 = smul.addr %s267, 8
        %s269 = scalar_lea.vmem %s1, %s268
        %v270 = vld [vmem:[%s264] sm:$0xff]
        %v271 = vld [vmem:[%s264 + $0x8] sm:$0xff]
        %v272 = vld [vmem:[%s264 + $0x10] sm:$0xff]
        %v273 = vld [vmem:[%s264 + $0x18] sm:$0xff]
        %v274 = vld [vmem:[%s264 + $0x20] sm:$0xff]
        %v275 = vld [vmem:[%s264 + $0x28] sm:$0xff]
        %v276 = vld [vmem:[%s264 + $0x30] sm:$0xff]
        %v277 = vld [vmem:[%s264 + $0x38] sm:$0xff]
        %v278 = vld [vmem:[%s2] sm:$0xff]
        %v279 = vld [vmem:[%s2 + $0x8] sm:$0xff]
        %v280 = vld [vmem:[%s2 + $0x10] sm:$0xff]
        %v281 = vld [vmem:[%s2 + $0x18] sm:$0xff]
        %v282 = vld [vmem:[%s2 + $0x20] sm:$0xff]
        %v283 = vld [vmem:[%s2 + $0x28] sm:$0xff]
        %v284 = vld [vmem:[%s2 + $0x30] sm:$0xff]
        %v285 = vld [vmem:[%s2 + $0x38] sm:$0xff]
        %v286 = vld [vmem:[%s3] sm:$0x1]
        %v288 = vlaneseq
        %v289 = vshrl.u32 %v288, 7
        %v290 = vsub.s32 0, %v289
        %v291 = vrot.slane %v286, %v290
        %vm293 = vcmask 523264
        %v295 = vsel %vm293, %v270, 0
        %v298 = vsel %vm293, %v271, 0
        %v301 = vsel %vm293, %v272, 0
        %v304 = vsel %vm293, %v273, 0
        %v307 = vsel %vm293, %v274, 0
        %v310 = vsel %vm293, %v275, 0
        %v313 = vsel %vm293, %v276, 0
        %v316 = vsel %vm293, %v277, 0
        %318 = vmatprep.subr.mxu0 0.0
        %319 = vmatpush1.msra.mxu0 0.0
        %320 = vmatprep.subr.mxu0 0.0
        %321 = vmatpush1.msra.mxu0 0.0
        %322 = vmatprep.subr.mxu0 0.0
        %323 = vmatpush1.msra.mxu0 0.0
        %324 = vmatprep.subr.mxu0 0.0
        %325 = vmatpush1.msra.mxu0 0.0
        %326 = vmatprep.subr.mxu0 0.0
        %327 = vmatpush1.msra.mxu0 0.0
        %328 = vmatprep.subr.mxu0 0.0
        %329 = vmatpush1.msra.mxu0 0.0
        %330 = vmatprep.subr.mxu0 0.0
        %331 = vmatpush1.msra.mxu0 0.0
        %332 = vmatprep.subr.mxu0 0.0
        %333 = vmatpush1.msra.mxu0 0.0
        %334 = vmatprep.subr.mxu0 0.0
        %335 = vmatpush1.msra.mxu0 %v285
        %336 = vmatprep.subr.mxu0 0.0
        %337 = vmatpush1.msra.mxu0 %v284
        %338 = vmatprep.subr.mxu0 0.0
        %339 = vmatpush1.msra.mxu0 %v283
        %340 = vmatprep.subr.mxu0 0.0
        %341 = vmatpush1.msra.mxu0 %v282
        %342 = vmatprep.subr.mxu0 0.0
        %343 = vmatpush1.msra.mxu0 %v281
        %344 = vmatprep.subr.mxu0 0.0
        %345 = vmatpush1.msra.mxu0 %v280
        %346 = vmatprep.subr.mxu0 0.0
        %347 = vmatpush1.msra.mxu0 %v279
        %348 = vmatprep.subr.mxu0 0.0
        %349 = vmatpush1.msra.mxu0 %v278
        %350 = vmatprep.subr.mxu0 0.0
        %351 = vmatpush2.msra.mxu0 0.0
        %352 = vmatprep.subr.mxu0 0.0
        %353 = vmatpush2.msra.mxu0 0.0
        %354 = vmatprep.subr.mxu0 0.0
        %355 = vmatpush2.msra.mxu0 0.0
        %356 = vmatprep.subr.mxu0 0.0
        %357 = vmatpush2.msra.mxu0 0.0
        %358 = vmatprep.subr.mxu0 0.0
        %359 = vmatpush2.msra.mxu0 0.0
        %360 = vmatprep.subr.mxu0 0.0
        %361 = vmatpush2.msra.mxu0 0.0
        %362 = vmatprep.subr.mxu0 0.0
        %363 = vmatpush2.msra.mxu0 0.0
        %364 = vmatprep.subr.mxu0 0.0
        %365 = vmatpush2.msra.mxu0 0.0
        %366 = vmatprep.subr.mxu0 0.0
        %367 = vmatpush2.msra.mxu0 0.0
        %368 = vmatprep.subr.mxu0 0.0
        %369 = vmatpush2.msra.mxu0 0.0
        %370 = vmatprep.subr.mxu0 0.0
        %371 = vmatpush2.msra.mxu0 0.0
        %372 = vmatprep.subr.mxu0 0.0
        %373 = vmatpush2.msra.mxu0 0.0
        %374 = vmatprep.subr.mxu0 0.0
        %375 = vmatpush2.msra.mxu0 0.0
        %376 = vmatprep.subr.mxu0 0.0
        %377 = vmatpush2.msra.mxu0 0.0
        %378 = vmatprep.subr.mxu0 0.0
        %379 = vmatpush2.msra.mxu0 0.0
        %380 = vmatprep.subr.mxu0 0.0
        %381 = vmatpush2.msra.mxu0 0.0
        %382 = vmatprep.mubr.f32.mxu0 0.0
        %383 = vmatmul.mubr.f32.gmra.mxu0 %v295
        %v384 = vpop.f32.mrf.mxu0
        %v385 = vadd.f32 %v291, %v384
        %v386 = vpop.f32.mrf.mxu0
        %387 = vmatprep.mubr.f32.mxu0 0.0
        %388 = vmatmul.mubr.f32.gmra.mxu0 %v298
        %v389 = vpop.f32.mrf.mxu0
        %v390 = vadd.f32 %v291, %v389
        %v391 = vpop.f32.mrf.mxu0
        %392 = vmatprep.mubr.f32.mxu0 0.0
        %393 = vmatmul.mubr.f32.gmra.mxu0 %v301
        %v394 = vpop.f32.mrf.mxu0
        %v395 = vadd.f32 %v291, %v394
        %v396 = vpop.f32.mrf.mxu0
        %397 = vmatprep.mubr.f32.mxu0 0.0
        %398 = vmatmul.mubr.f32.gmra.mxu0 %v304
        %v399 = vpop.f32.mrf.mxu0
        %v400 = vadd.f32 %v291, %v399
        %v401 = vpop.f32.mrf.mxu0
        %402 = vmatprep.mubr.f32.mxu0 0.0
        %403 = vmatmul.mubr.f32.gmra.mxu0 %v307
        %v404 = vpop.f32.mrf.mxu0
        %v405 = vadd.f32 %v291, %v404
        %v406 = vpop.f32.mrf.mxu0
        %407 = vmatprep.mubr.f32.mxu0 0.0
        %408 = vmatmul.mubr.f32.gmra.mxu0 %v310
        %v409 = vpop.f32.mrf.mxu0
        %v410 = vadd.f32 %v291, %v409
        %v411 = vpop.f32.mrf.mxu0
        %412 = vmatprep.mubr.f32.mxu0 0.0
        %413 = vmatmul.mubr.f32.gmra.mxu0 %v313
        %v414 = vpop.f32.mrf.mxu0
        %v415 = vadd.f32 %v291, %v414
        %v416 = vpop.f32.mrf.mxu0
        %417 = vmatprep.mubr.f32.mxu0 0.0
        %418 = vmatmul.mubr.f32.gmra.mxu0 %v316
        %v419 = vpop.f32.mrf.mxu0
        %v420 = vadd.f32 %v291, %v419
        %v421 = vpop.f32.mrf.mxu0
        %422 = vdwg.mxu0
        %v423 = vld [vmem:[%s269] sm:$0xff]
        %v424 = vld [vmem:[%s269 + $0x8] sm:$0xff]
        %v425 = vld [vmem:[%s269 + $0x10] sm:$0xff]
        %v426 = vld [vmem:[%s269 + $0x18] sm:$0xff]
        %v427 = vld [vmem:[%s269 + $0x20] sm:$0xff]
        %v428 = vld [vmem:[%s269 + $0x28] sm:$0xff]
        %v429 = vld [vmem:[%s269 + $0x30] sm:$0xff]
        %v430 = vld [vmem:[%s269 + $0x38] sm:$0xff]
        %v431 = vadd.f32 %v385, %v423
        %v432 = vadd.f32 %v390, %v424
        %v433 = vadd.f32 %v395, %v425
        %v434 = vadd.f32 %v400, %v426
        %v435 = vadd.f32 %v405, %v427
        %v436 = vadd.f32 %v410, %v428
        %v437 = vadd.f32 %v415, %v429
        %v438 = vadd.f32 %v420, %v430
        %439 = vst.msk [vmem:[#allocation2] sm:$0xff] %vm293, 0.0
        %vm440 = vcmask 516096
        %441 = vst.msk [vmem:[#allocation2 + $0x8] sm:$0x1] %vm440, 0.0
        %442 = vst.msk [vmem:[#allocation2 + $0x49] sm:$0xff] %vm293, 0.0
        %443 = vst.msk [vmem:[#allocation2 + $0x51] sm:$0x1] %vm440, 0.0
        %444 = vst.msk [vmem:[#allocation2 + $0x9] sm:$0xff] %vm293, %v431
        %445 = vst.msk [vmem:[#allocation2 + $0x11] sm:$0xff] %vm293, %v432
        %446 = vst.msk [vmem:[#allocation2 + $0x19] sm:$0xff] %vm293, %v433
        %447 = vst.msk [vmem:[#allocation2 + $0x21] sm:$0xff] %vm293, %v434
        %448 = vst.msk [vmem:[#allocation2 + $0x29] sm:$0xff] %vm293, %v435
        %449 = vst.msk [vmem:[#allocation2 + $0x31] sm:$0xff] %vm293, %v436
        %450 = vst.msk [vmem:[#allocation2 + $0x39] sm:$0xff] %vm293, %v437
        %451 = vst.msk [vmem:[#allocation2 + $0x41] sm:$0xff] %vm293, %v438
        %v452 = vlaneseq
        %v453 = vshrl.u32 %v452, 7
        %v454 = vadd.s32 %v453, 8
        %v455 = vadd.s32 %v453, 16
        %v456 = vadd.s32 %v453, 24
        %v457 = vadd.s32 %v453, 32
        %v458 = vadd.s32 %v453, 40
        %v459 = vadd.s32 %v453, 48
        %v460 = vadd.s32 %v453, 56
        %vm461 = vcmp.lt.s32.totalorder %v453, 0
        %v462 = vsub.s32 0, %v453
        %v463 = vsel %vm461, %v462, %v453
        %v464 = vshrl.u32 %v463, 3
        %v465 = vand.u32 %v463, 7
        %v466 = vsub.s32 0, %v465
        %v467 = vsel %vm461, %v466, %v465
        %vm468 = vcmp.lt.s32.totalorder %v454, 0
        %v469 = vsub.s32 0, %v454
        %v470 = vsel %vm468, %v469, %v454
        %v471 = vshrl.u32 %v470, 3
        %v472 = vand.u32 %v470, 7
        %v473 = vsub.s32 0, %v472
        %v474 = vsel %vm468, %v473, %v472
        %vm475 = vcmp.lt.s32.totalorder %v455, 0
        %v476 = vsub.s32 0, %v455
        %v477 = vsel %vm475, %v476, %v455
        %v478 = vshrl.u32 %v477, 3
        %v479 = vand.u32 %v477, 7
        %v480 = vsub.s32 0, %v479
        %v481 = vsel %vm475, %v480, %v479
        %vm482 = vcmp.lt.s32.totalorder %v456, 0
        %v483 = vsub.s32 0, %v456
        %v484 = vsel %vm482, %v483, %v456
        %v485 = vshrl.u32 %v484, 3
        %v486 = vand.u32 %v484, 7
        %v487 = vsub.s32 0, %v486
        %v488 = vsel %vm482, %v487, %v486
        %vm489 = vcmp.lt.s32.totalorder %v457, 0
        %v490 = vsub.s32 0, %v457
        %v491 = vsel %vm489, %v490, %v457
        %v492 = vshrl.u32 %v491, 3
        %v493 = vand.u32 %v491, 7
        %v494 = vsub.s32 0, %v493
        %v495 = vsel %vm489, %v494, %v493
        %vm496 = vcmp.lt.s32.totalorder %v458, 0
        %v497 = vsub.s32 0, %v458
        %v498 = vsel %vm496, %v497, %v458
        %v499 = vshrl.u32 %v498, 3
        %v500 = vand.u32 %v498, 7
        %v501 = vsub.s32 0, %v500
        %v502 = vsel %vm496, %v501, %v500
        %vm503 = vcmp.lt.s32.totalorder %v459, 0
        %v504 = vsub.s32 0, %v459
        %v505 = vsel %vm503, %v504, %v459
        %v506 = vshrl.u32 %v505, 3
        %v507 = vand.u32 %v505, 7
        %v508 = vsub.s32 0, %v507
        %v509 = vsel %vm503, %v508, %v507
        %vm510 = vcmp.lt.s32.totalorder %v460, 0
        %v511 = vsub.s32 0, %v460
        %v512 = vsel %vm510, %v511, %v460
        %v513 = vshrl.u32 %v512, 3
        %v514 = vand.u32 %v512, 7
        %v515 = vsub.s32 0, %v514
        %v516 = vsel %vm510, %v515, %v514
        %vm517 = vcmp.ne.s32.totalorder %v467, 0
        %vm518 = vcmp.ne.s32.totalorder %v474, 0
        %vm519 = vcmp.ne.s32.totalorder %v481, 0
        %vm520 = vcmp.ne.s32.totalorder %v488, 0
        %vm521 = vcmp.ne.s32.totalorder %v495, 0
        %vm522 = vcmp.ne.s32.totalorder %v502, 0
        %vm523 = vcmp.ne.s32.totalorder %v509, 0
        %vm524 = vcmp.ne.s32.totalorder %v516, 0
        %vm525 = vcmp.lt.s32.totalorder %v467, 0
        %vm526 = vcmp.lt.s32.totalorder %v474, 0
        %vm527 = vcmp.lt.s32.totalorder %v481, 0
        %vm528 = vcmp.lt.s32.totalorder %v488, 0
        %vm529 = vcmp.lt.s32.totalorder %v495, 0
        %vm530 = vcmp.lt.s32.totalorder %v502, 0
        %vm531 = vcmp.lt.s32.totalorder %v509, 0
        %vm532 = vcmp.lt.s32.totalorder %v516, 0
        %vm533 = vmand %vm525, %vm517
        %vm534 = vmand %vm526, %vm518
        %vm535 = vmand %vm527, %vm519
        %vm536 = vmand %vm528, %vm520
        %vm537 = vmand %vm529, %vm521
        %vm538 = vmand %vm530, %vm522
        %vm539 = vmand %vm531, %vm523
        %vm540 = vmand %vm532, %vm524
        %v541 = vadd.s32 %v467, 8
        %v542 = vadd.s32 %v474, 8
        %v543 = vadd.s32 %v481, 8
        %v544 = vadd.s32 %v488, 8
        %v545 = vadd.s32 %v495, 8
        %v546 = vadd.s32 %v502, 8
        %v547 = vadd.s32 %v509, 8
        %v548 = vadd.s32 %v516, 8
        %v549 = vsel %vm533, %v541, %v467
        %v550 = vsel %vm534, %v542, %v474
        %v551 = vsel %vm535, %v543, %v481
        %v552 = vsel %vm536, %v544, %v488
        %v553 = vsel %vm537, %v545, %v495
        %v554 = vsel %vm538, %v546, %v502
        %v555 = vsel %vm539, %v547, %v509
        %v556 = vsel %vm540, %v548, %v516
        %vm557 = vcmp.ge.s32.totalorder %v549, 1
        %vm558 = vcmp.ge.s32.totalorder %v550, 1
        %vm559 = vcmp.ge.s32.totalorder %v551, 1
        %vm560 = vcmp.ge.s32.totalorder %v552, 1
        %vm561 = vcmp.ge.s32.totalorder %v553, 1
        %vm562 = vcmp.ge.s32.totalorder %v554, 1
        %vm563 = vcmp.ge.s32.totalorder %v555, 1
        %vm564 = vcmp.ge.s32.totalorder %v556, 1
        %v565 = vsel %vm557, 1, 0
        %v566 = vsel %vm558, 1, 0
        %v567 = vsel %vm559, 1, 0
        %v568 = vsel %vm560, 1, 0
        %v569 = vsel %vm561, 1, 0
        %v570 = vsel %vm562, 1, 0
        %v571 = vsel %vm563, 1, 0
        %v572 = vsel %vm564, 1, 0
        %v573 = vcvt.s32.f32 %v565
        %v574 = vcvt.s32.f32 %v566
        %v575 = vcvt.s32.f32 %v567
        %v576 = vcvt.s32.f32 %v568
        %v577 = vcvt.s32.f32 %v569
        %v578 = vcvt.s32.f32 %v570
        %v579 = vcvt.s32.f32 %v571
        %v580 = vcvt.s32.f32 %v572
        %vm581 = vcmp.le.s32.totalorder %v549, 6
        %vm582 = vcmp.le.s32.totalorder %v550, 6
        %vm583 = vcmp.le.s32.totalorder %v551, 6
        %vm584 = vcmp.le.s32.totalorder %v552, 6
        %vm585 = vcmp.le.s32.totalorder %v553, 6
        %vm586 = vcmp.le.s32.totalorder %v554, 6
        %vm587 = vcmp.le.s32.totalorder %v555, 6
        %vm588 = vcmp.le.s32.totalorder %v556, 6
        %v589 = vsel %vm581, 1, 0
        %v590 = vsel %vm582, 1, 0
        %v591 = vsel %vm583, 1, 0
        %v592 = vsel %vm584, 1, 0
        %v593 = vsel %vm585, 1, 0
        %v594 = vsel %vm586, 1, 0
        %v595 = vsel %vm587, 1, 0
        %v596 = vsel %vm588, 1, 0
        %v597 = vcvt.s32.f32 %v589
        %v598 = vcvt.s32.f32 %v590
        %v599 = vcvt.s32.f32 %v591
        %v600 = vcvt.s32.f32 %v592
        %v601 = vcvt.s32.f32 %v593
        %v602 = vcvt.s32.f32 %v594
        %v603 = vcvt.s32.f32 %v595
        %v604 = vcvt.s32.f32 %v596
        %v605 = vld [vmem:[#allocation2] sm:$0xff]
        %v606 = vld [vmem:[#allocation2 + $0x8] sm:$0xff]
        %v607 = vld [vmem:[#allocation2 + $0x10] sm:$0xff]
        %v608 = vld [vmem:[#allocation2 + $0x18] sm:$0xff]
        %v609 = vld [vmem:[#allocation2 + $0x20] sm:$0xff]
        %v610 = vld [vmem:[#allocation2 + $0x28] sm:$0xff]
        %v611 = vld [vmem:[#allocation2 + $0x30] sm:$0xff]
        %v612 = vld [vmem:[#allocation2 + $0x38] sm:$0xff]
        %v613 = vmul.f32 %v605, %v573
        %v614 = vmul.f32 %v606, %v574
        %v615 = vmul.f32 %v607, %v575
        %v616 = vmul.f32 %v608, %v576
        %v617 = vmul.f32 %v609, %v577
        %v618 = vmul.f32 %v610, %v578
        %v619 = vmul.f32 %v611, %v579
        %v620 = vmul.f32 %v612, %v580
        %v621 = vld [vmem:[%s4] sm:$0xff]
        %v622 = vld [vmem:[%s4 + $0x8] sm:$0xff]
        %v623 = vld [vmem:[%s4 + $0x10] sm:$0xff]
        %v624 = vld [vmem:[%s4 + $0x18] sm:$0xff]
        %v625 = vld [vmem:[%s4 + $0x20] sm:$0xff]
        %v626 = vld [vmem:[%s4 + $0x28] sm:$0xff]
        %v627 = vld [vmem:[%s4 + $0x30] sm:$0xff]
        %v628 = vld [vmem:[%s4 + $0x38] sm:$0xff]
        %v629 = vld [vmem:[#allocation2 + $0x1] sm:$0xff]
        %v630 = vld [vmem:[#allocation2 + $0x9] sm:$0xff]
        %v631 = vld [vmem:[#allocation2 + $0x11] sm:$0xff]
        %v632 = vld [vmem:[#allocation2 + $0x19] sm:$0xff]
        %v633 = vld [vmem:[#allocation2 + $0x21] sm:$0xff]
        %v634 = vld [vmem:[#allocation2 + $0x29] sm:$0xff]
        %v635 = vld [vmem:[#allocation2 + $0x31] sm:$0xff]
        %v636 = vld [vmem:[#allocation2 + $0x39] sm:$0xff]
        %s637 = scalar_lea.vmem %s4, 64
        %v638 = vld [vmem:[%s637] sm:$0xff]
        %v639 = vld [vmem:[%s637 + $0x8] sm:$0xff]
        %v640 = vld [vmem:[%s637 + $0x10] sm:$0xff]
        %v641 = vld [vmem:[%s637 + $0x18] sm:$0xff]
        %v642 = vld [vmem:[%s637 + $0x20] sm:$0xff]
        %v643 = vld [vmem:[%s637 + $0x28] sm:$0xff]
        %v644 = vld [vmem:[%s637 + $0x30] sm:$0xff]
        %v645 = vld [vmem:[%s637 + $0x38] sm:$0xff]
        %v647 = vsel %vm293, %v629, 0
        %v650 = vsel %vm293, %v630, 0
        %v653 = vsel %vm293, %v631, 0
        %v656 = vsel %vm293, %v632, 0
        %v659 = vsel %vm293, %v633, 0
        %v662 = vsel %vm293, %v634, 0
        %v665 = vsel %vm293, %v635, 0
        %v668 = vsel %vm293, %v636, 0
        %670 = vmatprep.subr.mxu0 0.0
        %671 = vmatpush1.msra.mxu0 0.0
        %672 = vmatprep.subr.mxu0 0.0
        %673 = vmatpush1.msra.mxu0 0.0
        %674 = vmatprep.subr.mxu0 0.0
        %675 = vmatpush1.msra.mxu0 0.0
        %676 = vmatprep.subr.mxu0 0.0
        %677 = vmatpush1.msra.mxu0 0.0
        %678 = vmatprep.subr.mxu0 0.0
        %679 = vmatpush1.msra.mxu0 0.0
        %680 = vmatprep.subr.mxu0 0.0
        %681 = vmatpush1.msra.mxu0 0.0
        %682 = vmatprep.subr.mxu0 0.0
        %683 = vmatpush1.msra.mxu0 0.0
        %684 = vmatprep.subr.mxu0 0.0
        %685 = vmatpush1.msra.mxu0 0.0
        %686 = vmatprep.subr.mxu0 0.0
        %687 = vmatpush1.msra.mxu0 %v645
        %688 = vmatprep.subr.mxu0 0.0
        %689 = vmatpush1.msra.mxu0 %v644
        %690 = vmatprep.subr.mxu0 0.0
        %691 = vmatpush1.msra.mxu0 %v643
        %692 = vmatprep.subr.mxu0 0.0
        %693 = vmatpush1.msra.mxu0 %v642
        %694 = vmatprep.subr.mxu0 0.0
        %695 = vmatpush1.msra.mxu0 %v641
        %696 = vmatprep.subr.mxu0 0.0
        %697 = vmatpush1.msra.mxu0 %v640
        %698 = vmatprep.subr.mxu0 0.0
        %699 = vmatpush1.msra.mxu0 %v639
        %700 = vmatprep.subr.mxu0 0.0
        %701 = vmatpush1.msra.mxu0 %v638
        %702 = vmatprep.subr.mxu0 0.0
        %703 = vmatpush2.msra.mxu0 0.0
        %704 = vmatprep.subr.mxu0 0.0
        %705 = vmatpush2.msra.mxu0 0.0
        %706 = vmatprep.subr.mxu0 0.0
        %707 = vmatpush2.msra.mxu0 0.0
        %708 = vmatprep.subr.mxu0 0.0
        %709 = vmatpush2.msra.mxu0 0.0
        %710 = vmatprep.subr.mxu0 0.0
        %711 = vmatpush2.msra.mxu0 0.0
        %712 = vmatprep.subr.mxu0 0.0
        %713 = vmatpush2.msra.mxu0 0.0
        %714 = vmatprep.subr.mxu0 0.0
        %715 = vmatpush2.msra.mxu0 0.0
        %716 = vmatprep.subr.mxu0 0.0
        %717 = vmatpush2.msra.mxu0 0.0
        %718 = vmatprep.subr.mxu0 0.0
        %719 = vmatpush2.msra.mxu0 0.0
        %720 = vmatprep.subr.mxu0 0.0
        %721 = vmatpush2.msra.mxu0 0.0
        %722 = vmatprep.subr.mxu0 0.0
        %723 = vmatpush2.msra.mxu0 0.0
        %724 = vmatprep.subr.mxu0 0.0
        %725 = vmatpush2.msra.mxu0 0.0
        %726 = vmatprep.subr.mxu0 0.0
        %727 = vmatpush2.msra.mxu0 0.0
        %728 = vmatprep.subr.mxu0 0.0
        %729 = vmatpush2.msra.mxu0 0.0
        %730 = vmatprep.subr.mxu0 0.0
        %731 = vmatpush2.msra.mxu0 0.0
        %732 = vmatprep.subr.mxu0 0.0
        %733 = vmatpush2.msra.mxu0 0.0
        %734 = vmatprep.mubr.f32.mxu0 0.0
        %735 = vmatmul.mubr.f32.gmra.mxu0 %v647
        %v736 = vpop.f32.mrf.mxu0
        %v737 = vadd.f32 0.0, %v736
        %v738 = vpop.f32.mrf.mxu0
        %739 = vmatprep.mubr.f32.mxu0 0.0
        %740 = vmatmul.mubr.f32.gmra.mxu0 %v650
        %v741 = vpop.f32.mrf.mxu0
        %v742 = vadd.f32 0.0, %v741
        %v743 = vpop.f32.mrf.mxu0
        %744 = vmatprep.mubr.f32.mxu0 0.0
        %745 = vmatmul.mubr.f32.gmra.mxu0 %v653
        %v746 = vpop.f32.mrf.mxu0
        %v747 = vadd.f32 0.0, %v746
        %v748 = vpop.f32.mrf.mxu0
        %749 = vmatprep.mubr.f32.mxu0 0.0
        %750 = vmatmul.mubr.f32.gmra.mxu0 %v656
        %v751 = vpop.f32.mrf.mxu0
        %v752 = vadd.f32 0.0, %v751
        %v753 = vpop.f32.mrf.mxu0
        %754 = vmatprep.mubr.f32.mxu0 0.0
        %755 = vmatmul.mubr.f32.gmra.mxu0 %v659
        %v756 = vpop.f32.mrf.mxu0
        %v757 = vadd.f32 0.0, %v756
        %v758 = vpop.f32.mrf.mxu0
        %759 = vmatprep.mubr.f32.mxu0 0.0
        %760 = vmatmul.mubr.f32.gmra.mxu0 %v662
        %v761 = vpop.f32.mrf.mxu0
        %v762 = vadd.f32 0.0, %v761
        %v763 = vpop.f32.mrf.mxu0
        %764 = vmatprep.mubr.f32.mxu0 0.0
        %765 = vmatmul.mubr.f32.gmra.mxu0 %v665
        %v766 = vpop.f32.mrf.mxu0
        %v767 = vadd.f32 0.0, %v766
        %v768 = vpop.f32.mrf.mxu0
        %769 = vmatprep.mubr.f32.mxu0 0.0
        %770 = vmatmul.mubr.f32.gmra.mxu0 %v668
        %v771 = vpop.f32.mrf.mxu0
        %v772 = vadd.f32 0.0, %v771
        %v773 = vpop.f32.mrf.mxu0
        %774 = vdwg.mxu0
        %v776 = vsel %vm293, %v613, 0
        %v779 = vsel %vm293, %v614, 0
        %v782 = vsel %vm293, %v615, 0
        %v785 = vsel %vm293, %v616, 0
        %v788 = vsel %vm293, %v617, 0
        %v791 = vsel %vm293, %v618, 0
        %v794 = vsel %vm293, %v619, 0
        %v797 = vsel %vm293, %v620, 0
        %799 = vmatprep.subr.mxu0 0.0
        %800 = vmatpush1.msra.mxu0 0.0
        %801 = vmatprep.subr.mxu0 0.0
        %802 = vmatpush1.msra.mxu0 0.0
        %803 = vmatprep.subr.mxu0 0.0
        %804 = vmatpush1.msra.mxu0 0.0
        %805 = vmatprep.subr.mxu0 0.0
        %806 = vmatpush1.msra.mxu0 0.0
        %807 = vmatprep.subr.mxu0 0.0
        %808 = vmatpush1.msra.mxu0 0.0
        %809 = vmatprep.subr.mxu0 0.0
        %810 = vmatpush1.msra.mxu0 0.0
        %811 = vmatprep.subr.mxu0 0.0
        %812 = vmatpush1.msra.mxu0 0.0
        %813 = vmatprep.subr.mxu0 0.0
        %814 = vmatpush1.msra.mxu0 0.0
        %815 = vmatprep.subr.mxu0 0.0
        %816 = vmatpush1.msra.mxu0 %v628
        %817 = vmatprep.subr.mxu0 0.0
        %818 = vmatpush1.msra.mxu0 %v627
        %819 = vmatprep.subr.mxu0 0.0
        %820 = vmatpush1.msra.mxu0 %v626
        %821 = vmatprep.subr.mxu0 0.0
        %822 = vmatpush1.msra.mxu0 %v625
        %823 = vmatprep.subr.mxu0 0.0
        %824 = vmatpush1.msra.mxu0 %v624
        %825 = vmatprep.subr.mxu0 0.0
        %826 = vmatpush1.msra.mxu0 %v623
        %827 = vmatprep.subr.mxu0 0.0
        %828 = vmatpush1.msra.mxu0 %v622
        %829 = vmatprep.subr.mxu0 0.0
        %830 = vmatpush1.msra.mxu0 %v621
        %831 = vmatprep.subr.mxu0 0.0
        %832 = vmatpush2.msra.mxu0 0.0
        %833 = vmatprep.subr.mxu0 0.0
        %834 = vmatpush2.msra.mxu0 0.0
        %835 = vmatprep.subr.mxu0 0.0
        %836 = vmatpush2.msra.mxu0 0.0
        %837 = vmatprep.subr.mxu0 0.0
        %838 = vmatpush2.msra.mxu0 0.0
        %839 = vmatprep.subr.mxu0 0.0
        %840 = vmatpush2.msra.mxu0 0.0
        %841 = vmatprep.subr.mxu0 0.0
        %842 = vmatpush2.msra.mxu0 0.0
        %843 = vmatprep.subr.mxu0 0.0
        %844 = vmatpush2.msra.mxu0 0.0
        %845 = vmatprep.subr.mxu0 0.0
        %846 = vmatpush2.msra.mxu0 0.0
        %847 = vmatprep.subr.mxu0 0.0
        %848 = vmatpush2.msra.mxu0 0.0
        %849 = vmatprep.subr.mxu0 0.0
        %850 = vmatpush2.msra.mxu0 0.0
        %851 = vmatprep.subr.mxu0 0.0
        %852 = vmatpush2.msra.mxu0 0.0
        %853 = vmatprep.subr.mxu0 0.0
        %854 = vmatpush2.msra.mxu0 0.0
        %855 = vmatprep.subr.mxu0 0.0
        %856 = vmatpush2.msra.mxu0 0.0
        %857 = vmatprep.subr.mxu0 0.0
        %858 = vmatpush2.msra.mxu0 0.0
        %859 = vmatprep.subr.mxu0 0.0
        %860 = vmatpush2.msra.mxu0 0.0
        %861 = vmatprep.subr.mxu0 0.0
        %862 = vmatpush2.msra.mxu0 0.0
        %863 = vmatprep.mubr.f32.mxu0 0.0
        %864 = vmatmul.mubr.f32.gmra.mxu0 %v776
        %v865 = vpop.f32.mrf.mxu0
        %v866 = vadd.f32 %v737, %v865
        %v867 = vpop.f32.mrf.mxu0
        %868 = vmatprep.mubr.f32.mxu0 0.0
        %869 = vmatmul.mubr.f32.gmra.mxu0 %v779
        %v870 = vpop.f32.mrf.mxu0
        %v871 = vadd.f32 %v742, %v870
        %v872 = vpop.f32.mrf.mxu0
        %873 = vmatprep.mubr.f32.mxu0 0.0
        %874 = vmatmul.mubr.f32.gmra.mxu0 %v782
        %v875 = vpop.f32.mrf.mxu0
        %v876 = vadd.f32 %v747, %v875
        %v877 = vpop.f32.mrf.mxu0
        %878 = vmatprep.mubr.f32.mxu0 0.0
        %879 = vmatmul.mubr.f32.gmra.mxu0 %v785
        %v880 = vpop.f32.mrf.mxu0
        %v881 = vadd.f32 %v752, %v880
        %v882 = vpop.f32.mrf.mxu0
        %883 = vmatprep.mubr.f32.mxu0 0.0
        %884 = vmatmul.mubr.f32.gmra.mxu0 %v788
        %v885 = vpop.f32.mrf.mxu0
        %v886 = vadd.f32 %v757, %v885
        %v887 = vpop.f32.mrf.mxu0
        %888 = vmatprep.mubr.f32.mxu0 0.0
        %889 = vmatmul.mubr.f32.gmra.mxu0 %v791
        %v890 = vpop.f32.mrf.mxu0
        %v891 = vadd.f32 %v762, %v890
        %v892 = vpop.f32.mrf.mxu0
        %893 = vmatprep.mubr.f32.mxu0 0.0
        %894 = vmatmul.mubr.f32.gmra.mxu0 %v794
        %v895 = vpop.f32.mrf.mxu0
        %v896 = vadd.f32 %v767, %v895
        %v897 = vpop.f32.mrf.mxu0
        %898 = vmatprep.mubr.f32.mxu0 0.0
        %899 = vmatmul.mubr.f32.gmra.mxu0 %v797
        %v900 = vpop.f32.mrf.mxu0
        %v901 = vadd.f32 %v772, %v900
        %v902 = vpop.f32.mrf.mxu0
        %903 = vdwg.mxu0
        %v904 = vld [vmem:[#allocation2 + $0x2] sm:$0xff]
        %v905 = vld [vmem:[#allocation2 + $0xa] sm:$0xff]
        %v906 = vld [vmem:[#allocation2 + $0x12] sm:$0xff]
        %v907 = vld [vmem:[#allocation2 + $0x1a] sm:$0xff]
        %v908 = vld [vmem:[#allocation2 + $0x22] sm:$0xff]
        %v909 = vld [vmem:[#allocation2 + $0x2a] sm:$0xff]
        %v910 = vld [vmem:[#allocation2 + $0x32] sm:$0xff]
        %v911 = vld [vmem:[#allocation2 + $0x3a] sm:$0xff]
        %v912 = vmul.f32 %v904, %v597
        %v913 = vmul.f32 %v905, %v598
        %v914 = vmul.f32 %v906, %v599
        %v915 = vmul.f32 %v907, %v600
        %v916 = vmul.f32 %v908, %v601
        %v917 = vmul.f32 %v909, %v602
        %v918 = vmul.f32 %v910, %v603
        %v919 = vmul.f32 %v911, %v604
        %s920 = scalar_lea.vmem %s4, 128
        %v921 = vld [vmem:[%s920] sm:$0xff]
        %v922 = vld [vmem:[%s920 + $0x8] sm:$0xff]
        %v923 = vld [vmem:[%s920 + $0x10] sm:$0xff]
        %v924 = vld [vmem:[%s920 + $0x18] sm:$0xff]
        %v925 = vld [vmem:[%s920 + $0x20] sm:$0xff]
        %v926 = vld [vmem:[%s920 + $0x28] sm:$0xff]
        %v927 = vld [vmem:[%s920 + $0x30] sm:$0xff]
        %v928 = vld [vmem:[%s920 + $0x38] sm:$0xff]
        %v930 = vsel %vm293, %v912, 0
        %v933 = vsel %vm293, %v913, 0
        %v936 = vsel %vm293, %v914, 0
        %v939 = vsel %vm293, %v915, 0
        %v942 = vsel %vm293, %v916, 0
        %v945 = vsel %vm293, %v917, 0
        %v948 = vsel %vm293, %v918, 0
        %v951 = vsel %vm293, %v919, 0
        %953 = vmatprep.subr.mxu0 0.0
        %954 = vmatpush1.msra.mxu0 0.0
        %955 = vmatprep.subr.mxu0 0.0
        %956 = vmatpush1.msra.mxu0 0.0
        %957 = vmatprep.subr.mxu0 0.0
        %958 = vmatpush1.msra.mxu0 0.0
        %959 = vmatprep.subr.mxu0 0.0
        %960 = vmatpush1.msra.mxu0 0.0
        %961 = vmatprep.subr.mxu0 0.0
        %962 = vmatpush1.msra.mxu0 0.0
        %963 = vmatprep.subr.mxu0 0.0
        %964 = vmatpush1.msra.mxu0 0.0
        %965 = vmatprep.subr.mxu0 0.0
        %966 = vmatpush1.msra.mxu0 0.0
        %967 = vmatprep.subr.mxu0 0.0
        %968 = vmatpush1.msra.mxu0 0.0
        %969 = vmatprep.subr.mxu0 0.0
        %970 = vmatpush1.msra.mxu0 %v928
        %971 = vmatprep.subr.mxu0 0.0
        %972 = vmatpush1.msra.mxu0 %v927
        %973 = vmatprep.subr.mxu0 0.0
        %974 = vmatpush1.msra.mxu0 %v926
        %975 = vmatprep.subr.mxu0 0.0
        %976 = vmatpush1.msra.mxu0 %v925
        %977 = vmatprep.subr.mxu0 0.0
        %978 = vmatpush1.msra.mxu0 %v924
        %979 = vmatprep.subr.mxu0 0.0
        %980 = vmatpush1.msra.mxu0 %v923
        %981 = vmatprep.subr.mxu0 0.0
        %982 = vmatpush1.msra.mxu0 %v922
        %983 = vmatprep.subr.mxu0 0.0
        %984 = vmatpush1.msra.mxu0 %v921
        %985 = vmatprep.subr.mxu0 0.0
        %986 = vmatpush2.msra.mxu0 0.0
        %987 = vmatprep.subr.mxu0 0.0
        %988 = vmatpush2.msra.mxu0 0.0
        %989 = vmatprep.subr.mxu0 0.0
        %990 = vmatpush2.msra.mxu0 0.0
        %991 = vmatprep.subr.mxu0 0.0
        %992 = vmatpush2.msra.mxu0 0.0
        %993 = vmatprep.subr.mxu0 0.0
        %994 = vmatpush2.msra.mxu0 0.0
        %995 = vmatprep.subr.mxu0 0.0
        %996 = vmatpush2.msra.mxu0 0.0
        %997 = vmatprep.subr.mxu0 0.0
        %998 = vmatpush2.msra.mxu0 0.0
        %999 = vmatprep.subr.mxu0 0.0
        %1000 = vmatpush2.msra.mxu0 0.0
        %1001 = vmatprep.subr.mxu0 0.0
        %1002 = vmatpush2.msra.mxu0 0.0
        %1003 = vmatprep.subr.mxu0 0.0
        %1004 = vmatpush2.msra.mxu0 0.0
        %1005 = vmatprep.subr.mxu0 0.0
        %1006 = vmatpush2.msra.mxu0 0.0
        %1007 = vmatprep.subr.mxu0 0.0
        %1008 = vmatpush2.msra.mxu0 0.0
        %1009 = vmatprep.subr.mxu0 0.0
        %1010 = vmatpush2.msra.mxu0 0.0
        %1011 = vmatprep.subr.mxu0 0.0
        %1012 = vmatpush2.msra.mxu0 0.0
        %1013 = vmatprep.subr.mxu0 0.0
        %1014 = vmatpush2.msra.mxu0 0.0
        %1015 = vmatprep.subr.mxu0 0.0
        %1016 = vmatpush2.msra.mxu0 0.0
        %1017 = vmatprep.mubr.f32.mxu0 0.0
        %1018 = vmatmul.mubr.f32.gmra.mxu0 %v930
        %v1019 = vpop.f32.mrf.mxu0
        %v1020 = vadd.f32 0.0, %v1019
        %v1021 = vpop.f32.mrf.mxu0
        %1022 = vmatprep.mubr.f32.mxu0 0.0
        %1023 = vmatmul.mubr.f32.gmra.mxu0 %v933
        %v1024 = vpop.f32.mrf.mxu0
        %v1025 = vadd.f32 0.0, %v1024
        %v1026 = vpop.f32.mrf.mxu0
        %1027 = vmatprep.mubr.f32.mxu0 0.0
        %1028 = vmatmul.mubr.f32.gmra.mxu0 %v936
        %v1029 = vpop.f32.mrf.mxu0
        %v1030 = vadd.f32 0.0, %v1029
        %v1031 = vpop.f32.mrf.mxu0
        %1032 = vmatprep.mubr.f32.mxu0 0.0
        %1033 = vmatmul.mubr.f32.gmra.mxu0 %v939
        %v1034 = vpop.f32.mrf.mxu0
        %v1035 = vadd.f32 0.0, %v1034
        %v1036 = vpop.f32.mrf.mxu0
        %1037 = vmatprep.mubr.f32.mxu0 0.0
        %1038 = vmatmul.mubr.f32.gmra.mxu0 %v942
        %v1039 = vpop.f32.mrf.mxu0
        %v1040 = vadd.f32 0.0, %v1039
        %v1041 = vpop.f32.mrf.mxu0
        %1042 = vmatprep.mubr.f32.mxu0 0.0
        %1043 = vmatmul.mubr.f32.gmra.mxu0 %v945
        %v1044 = vpop.f32.mrf.mxu0
        %v1045 = vadd.f32 0.0, %v1044
        %v1046 = vpop.f32.mrf.mxu0
        %1047 = vmatprep.mubr.f32.mxu0 0.0
        %1048 = vmatmul.mubr.f32.gmra.mxu0 %v948
        %v1049 = vpop.f32.mrf.mxu0
        %v1050 = vadd.f32 0.0, %v1049
        %v1051 = vpop.f32.mrf.mxu0
        %1052 = vmatprep.mubr.f32.mxu0 0.0
        %1053 = vmatmul.mubr.f32.gmra.mxu0 %v951
        %v1054 = vpop.f32.mrf.mxu0
        %v1055 = vadd.f32 0.0, %v1054
        %v1056 = vpop.f32.mrf.mxu0
        %1057 = vdwg.mxu0
        %v1058 = vadd.f32 %v866, %v1020
        %v1059 = vadd.f32 %v871, %v1025
        %v1060 = vadd.f32 %v876, %v1030
        %v1061 = vadd.f32 %v881, %v1035
        %v1062 = vadd.f32 %v886, %v1040
        %v1063 = vadd.f32 %v891, %v1045
        %v1064 = vadd.f32 %v896, %v1050
        %v1065 = vadd.f32 %v901, %v1055
        %v1066 = vld [vmem:[#allocation2 + $0x8] sm:$0xff]
        %v1067 = vld [vmem:[#allocation2 + $0x10] sm:$0xff]
        %v1068 = vld [vmem:[#allocation2 + $0x18] sm:$0xff]
        %v1069 = vld [vmem:[#allocation2 + $0x20] sm:$0xff]
        %v1070 = vld [vmem:[#allocation2 + $0x28] sm:$0xff]
        %v1071 = vld [vmem:[#allocation2 + $0x30] sm:$0xff]
        %v1072 = vld [vmem:[#allocation2 + $0x38] sm:$0xff]
        %v1073 = vld [vmem:[#allocation2 + $0x40] sm:$0xff]
        %v1074 = vmul.f32 %v1066, %v573
        %v1075 = vmul.f32 %v1067, %v574
        %v1076 = vmul.f32 %v1068, %v575
        %v1077 = vmul.f32 %v1069, %v576
        %v1078 = vmul.f32 %v1070, %v577
        %v1079 = vmul.f32 %v1071, %v578
        %v1080 = vmul.f32 %v1072, %v579
        %v1081 = vmul.f32 %v1073, %v580
        %s1082 = scalar_lea.vmem %s4, 192
        %v1083 = vld [vmem:[%s1082] sm:$0xff]
        %v1084 = vld [vmem:[%s1082 + $0x8] sm:$0xff]
        %v1085 = vld [vmem:[%s1082 + $0x10] sm:$0xff]
        %v1086 = vld [vmem:[%s1082 + $0x18] sm:$0xff]
        %v1087 = vld [vmem:[%s1082 + $0x20] sm:$0xff]
        %v1088 = vld [vmem:[%s1082 + $0x28] sm:$0xff]
        %v1089 = vld [vmem:[%s1082 + $0x30] sm:$0xff]
        %v1090 = vld [vmem:[%s1082 + $0x38] sm:$0xff]
        %v1092 = vsel %vm293, %v1074, 0
        %v1095 = vsel %vm293, %v1075, 0
        %v1098 = vsel %vm293, %v1076, 0
        %v1101 = vsel %vm293, %v1077, 0
        %v1104 = vsel %vm293, %v1078, 0
        %v1107 = vsel %vm293, %v1079, 0
        %v1110 = vsel %vm293, %v1080, 0
        %v1113 = vsel %vm293, %v1081, 0
        %1115 = vmatprep.subr.mxu0 0.0
        %1116 = vmatpush1.msra.mxu0 0.0
        %1117 = vmatprep.subr.mxu0 0.0
        %1118 = vmatpush1.msra.mxu0 0.0
        %1119 = vmatprep.subr.mxu0 0.0
        %1120 = vmatpush1.msra.mxu0 0.0
        %1121 = vmatprep.subr.mxu0 0.0
        %1122 = vmatpush1.msra.mxu0 0.0
        %1123 = vmatprep.subr.mxu0 0.0
        %1124 = vmatpush1.msra.mxu0 0.0
        %1125 = vmatprep.subr.mxu0 0.0
        %1126 = vmatpush1.msra.mxu0 0.0
        %1127 = vmatprep.subr.mxu0 0.0
        %1128 = vmatpush1.msra.mxu0 0.0
        %1129 = vmatprep.subr.mxu0 0.0
        %1130 = vmatpush1.msra.mxu0 0.0
        %1131 = vmatprep.subr.mxu0 0.0
        %1132 = vmatpush1.msra.mxu0 %v1090
        %1133 = vmatprep.subr.mxu0 0.0
        %1134 = vmatpush1.msra.mxu0 %v1089
        %1135 = vmatprep.subr.mxu0 0.0
        %1136 = vmatpush1.msra.mxu0 %v1088
        %1137 = vmatprep.subr.mxu0 0.0
        %1138 = vmatpush1.msra.mxu0 %v1087
        %1139 = vmatprep.subr.mxu0 0.0
        %1140 = vmatpush1.msra.mxu0 %v1086
        %1141 = vmatprep.subr.mxu0 0.0
        %1142 = vmatpush1.msra.mxu0 %v1085
        %1143 = vmatprep.subr.mxu0 0.0
        %1144 = vmatpush1.msra.mxu0 %v1084
        %1145 = vmatprep.subr.mxu0 0.0
        %1146 = vmatpush1.msra.mxu0 %v1083
        %1147 = vmatprep.subr.mxu0 0.0
        %1148 = vmatpush2.msra.mxu0 0.0
        %1149 = vmatprep.subr.mxu0 0.0
        %1150 = vmatpush2.msra.mxu0 0.0
        %1151 = vmatprep.subr.mxu0 0.0
        %1152 = vmatpush2.msra.mxu0 0.0
        %1153 = vmatprep.subr.mxu0 0.0
        %1154 = vmatpush2.msra.mxu0 0.0
        %1155 = vmatprep.subr.mxu0 0.0
        %1156 = vmatpush2.msra.mxu0 0.0
        %1157 = vmatprep.subr.mxu0 0.0
        %1158 = vmatpush2.msra.mxu0 0.0
        %1159 = vmatprep.subr.mxu0 0.0
        %1160 = vmatpush2.msra.mxu0 0.0
        %1161 = vmatprep.subr.mxu0 0.0
        %1162 = vmatpush2.msra.mxu0 0.0
        %1163 = vmatprep.subr.mxu0 0.0
        %1164 = vmatpush2.msra.mxu0 0.0
        %1165 = vmatprep.subr.mxu0 0.0
        %1166 = vmatpush2.msra.mxu0 0.0
        %1167 = vmatprep.subr.mxu0 0.0
        %1168 = vmatpush2.msra.mxu0 0.0
        %1169 = vmatprep.subr.mxu0 0.0
        %1170 = vmatpush2.msra.mxu0 0.0
        %1171 = vmatprep.subr.mxu0 0.0
        %1172 = vmatpush2.msra.mxu0 0.0
        %1173 = vmatprep.subr.mxu0 0.0
        %1174 = vmatpush2.msra.mxu0 0.0
        %1175 = vmatprep.subr.mxu0 0.0
        %1176 = vmatpush2.msra.mxu0 0.0
        %1177 = vmatprep.subr.mxu0 0.0
        %1178 = vmatpush2.msra.mxu0 0.0
        %1179 = vmatprep.mubr.f32.mxu0 0.0
        %1180 = vmatmul.mubr.f32.gmra.mxu0 %v1092
        %v1181 = vpop.f32.mrf.mxu0
        %v1182 = vadd.f32 0.0, %v1181
        %v1183 = vpop.f32.mrf.mxu0
        %1184 = vmatprep.mubr.f32.mxu0 0.0
        %1185 = vmatmul.mubr.f32.gmra.mxu0 %v1095
        %v1186 = vpop.f32.mrf.mxu0
        %v1187 = vadd.f32 0.0, %v1186
        %v1188 = vpop.f32.mrf.mxu0
        %1189 = vmatprep.mubr.f32.mxu0 0.0
        %1190 = vmatmul.mubr.f32.gmra.mxu0 %v1098
        %v1191 = vpop.f32.mrf.mxu0
        %v1192 = vadd.f32 0.0, %v1191
        %v1193 = vpop.f32.mrf.mxu0
        %1194 = vmatprep.mubr.f32.mxu0 0.0
        %1195 = vmatmul.mubr.f32.gmra.mxu0 %v1101
        %v1196 = vpop.f32.mrf.mxu0
        %v1197 = vadd.f32 0.0, %v1196
        %v1198 = vpop.f32.mrf.mxu0
        %1199 = vmatprep.mubr.f32.mxu0 0.0
        %1200 = vmatmul.mubr.f32.gmra.mxu0 %v1104
        %v1201 = vpop.f32.mrf.mxu0
        %v1202 = vadd.f32 0.0, %v1201
        %v1203 = vpop.f32.mrf.mxu0
        %1204 = vmatprep.mubr.f32.mxu0 0.0
        %1205 = vmatmul.mubr.f32.gmra.mxu0 %v1107
        %v1206 = vpop.f32.mrf.mxu0
        %v1207 = vadd.f32 0.0, %v1206
        %v1208 = vpop.f32.mrf.mxu0
        %1209 = vmatprep.mubr.f32.mxu0 0.0
        %1210 = vmatmul.mubr.f32.gmra.mxu0 %v1110
        %v1211 = vpop.f32.mrf.mxu0
        %v1212 = vadd.f32 0.0, %v1211
        %v1213 = vpop.f32.mrf.mxu0
        %1214 = vmatprep.mubr.f32.mxu0 0.0
        %1215 = vmatmul.mubr.f32.gmra.mxu0 %v1113
        %v1216 = vpop.f32.mrf.mxu0
        %v1217 = vadd.f32 0.0, %v1216
        %v1218 = vpop.f32.mrf.mxu0
        %1219 = vdwg.mxu0
        %v1220 = vadd.f32 %v1058, %v1182
        %v1221 = vadd.f32 %v1059, %v1187
        %v1222 = vadd.f32 %v1060, %v1192
        %v1223 = vadd.f32 %v1061, %v1197
        %v1224 = vadd.f32 %v1062, %v1202
        %v1225 = vadd.f32 %v1063, %v1207
        %v1226 = vadd.f32 %v1064, %v1212
        %v1227 = vadd.f32 %v1065, %v1217
        %v1228 = vld [vmem:[#allocation2 + $0x9] sm:$0xff]
        %v1229 = vld [vmem:[#allocation2 + $0x11] sm:$0xff]
        %v1230 = vld [vmem:[#allocation2 + $0x19] sm:$0xff]
        %v1231 = vld [vmem:[#allocation2 + $0x21] sm:$0xff]
        %v1232 = vld [vmem:[#allocation2 + $0x29] sm:$0xff]
        %v1233 = vld [vmem:[#allocation2 + $0x31] sm:$0xff]
        %v1234 = vld [vmem:[#allocation2 + $0x39] sm:$0xff]
        %v1235 = vld [vmem:[#allocation2 + $0x41] sm:$0xff]
        %s1236 = scalar_lea.vmem %s4, 256
        %v1237 = vld [vmem:[%s1236] sm:$0xff]
        %v1238 = vld [vmem:[%s1236 + $0x8] sm:$0xff]
        %v1239 = vld [vmem:[%s1236 + $0x10] sm:$0xff]
        %v1240 = vld [vmem:[%s1236 + $0x18] sm:$0xff]
        %v1241 = vld [vmem:[%s1236 + $0x20] sm:$0xff]
        %v1242 = vld [vmem:[%s1236 + $0x28] sm:$0xff]
        %v1243 = vld [vmem:[%s1236 + $0x30] sm:$0xff]
        %v1244 = vld [vmem:[%s1236 + $0x38] sm:$0xff]
        %v1246 = vsel %vm293, %v1228, 0
        %v1249 = vsel %vm293, %v1229, 0
        %v1252 = vsel %vm293, %v1230, 0
        %v1255 = vsel %vm293, %v1231, 0
        %v1258 = vsel %vm293, %v1232, 0
        %v1261 = vsel %vm293, %v1233, 0
        %v1264 = vsel %vm293, %v1234, 0
        %v1267 = vsel %vm293, %v1235, 0
        %1269 = vmatprep.subr.mxu0 0.0
        %1270 = vmatpush1.msra.mxu0 0.0
        %1271 = vmatprep.subr.mxu0 0.0
        %1272 = vmatpush1.msra.mxu0 0.0
        %1273 = vmatprep.subr.mxu0 0.0
        %1274 = vmatpush1.msra.mxu0 0.0
        %1275 = vmatprep.subr.mxu0 0.0
        %1276 = vmatpush1.msra.mxu0 0.0
        %1277 = vmatprep.subr.mxu0 0.0
        %1278 = vmatpush1.msra.mxu0 0.0
        %1279 = vmatprep.subr.mxu0 0.0
        %1280 = vmatpush1.msra.mxu0 0.0
        %1281 = vmatprep.subr.mxu0 0.0
        %1282 = vmatpush1.msra.mxu0 0.0
        %1283 = vmatprep.subr.mxu0 0.0
        %1284 = vmatpush1.msra.mxu0 0.0
        %1285 = vmatprep.subr.mxu0 0.0
        %1286 = vmatpush1.msra.mxu0 %v1244
        %1287 = vmatprep.subr.mxu0 0.0
        %1288 = vmatpush1.msra.mxu0 %v1243
        %1289 = vmatprep.subr.mxu0 0.0
        %1290 = vmatpush1.msra.mxu0 %v1242
        %1291 = vmatprep.subr.mxu0 0.0
        %1292 = vmatpush1.msra.mxu0 %v1241
        %1293 = vmatprep.subr.mxu0 0.0
        %1294 = vmatpush1.msra.mxu0 %v1240
        %1295 = vmatprep.subr.mxu0 0.0
        %1296 = vmatpush1.msra.mxu0 %v1239
        %1297 = vmatprep.subr.mxu0 0.0
        %1298 = vmatpush1.msra.mxu0 %v1238
        %1299 = vmatprep.subr.mxu0 0.0
        %1300 = vmatpush1.msra.mxu0 %v1237
        %1301 = vmatprep.subr.mxu0 0.0
        %1302 = vmatpush2.msra.mxu0 0.0
        %1303 = vmatprep.subr.mxu0 0.0
        %1304 = vmatpush2.msra.mxu0 0.0
        %1305 = vmatprep.subr.mxu0 0.0
        %1306 = vmatpush2.msra.mxu0 0.0
        %1307 = vmatprep.subr.mxu0 0.0
        %1308 = vmatpush2.msra.mxu0 0.0
        %1309 = vmatprep.subr.mxu0 0.0
        %1310 = vmatpush2.msra.mxu0 0.0
        %1311 = vmatprep.subr.mxu0 0.0
        %1312 = vmatpush2.msra.mxu0 0.0
        %1313 = vmatprep.subr.mxu0 0.0
        %1314 = vmatpush2.msra.mxu0 0.0
        %1315 = vmatprep.subr.mxu0 0.0
        %1316 = vmatpush2.msra.mxu0 0.0
        %1317 = vmatprep.subr.mxu0 0.0
        %1318 = vmatpush2.msra.mxu0 0.0
        %1319 = vmatprep.subr.mxu0 0.0
        %1320 = vmatpush2.msra.mxu0 0.0
        %1321 = vmatprep.subr.mxu0 0.0
        %1322 = vmatpush2.msra.mxu0 0.0
        %1323 = vmatprep.subr.mxu0 0.0
        %1324 = vmatpush2.msra.mxu0 0.0
        %1325 = vmatprep.subr.mxu0 0.0
        %1326 = vmatpush2.msra.mxu0 0.0
        %1327 = vmatprep.subr.mxu0 0.0
        %1328 = vmatpush2.msra.mxu0 0.0
        %1329 = vmatprep.subr.mxu0 0.0
        %1330 = vmatpush2.msra.mxu0 0.0
        %1331 = vmatprep.subr.mxu0 0.0
        %1332 = vmatpush2.msra.mxu0 0.0
        %1333 = vmatprep.mubr.f32.mxu0 0.0
        %1334 = vmatmul.mubr.f32.gmra.mxu0 %v1246
        %v1335 = vpop.f32.mrf.mxu0
        %v1336 = vadd.f32 0.0, %v1335
        %v1337 = vpop.f32.mrf.mxu0
        %1338 = vmatprep.mubr.f32.mxu0 0.0
        %1339 = vmatmul.mubr.f32.gmra.mxu0 %v1249
        %v1340 = vpop.f32.mrf.mxu0
        %v1341 = vadd.f32 0.0, %v1340
        %v1342 = vpop.f32.mrf.mxu0
        %1343 = vmatprep.mubr.f32.mxu0 0.0
        %1344 = vmatmul.mubr.f32.gmra.mxu0 %v1252
        %v1345 = vpop.f32.mrf.mxu0
        %v1346 = vadd.f32 0.0, %v1345
        %v1347 = vpop.f32.mrf.mxu0
        %1348 = vmatprep.mubr.f32.mxu0 0.0
        %1349 = vmatmul.mubr.f32.gmra.mxu0 %v1255
        %v1350 = vpop.f32.mrf.mxu0
        %v1351 = vadd.f32 0.0, %v1350
        %v1352 = vpop.f32.mrf.mxu0
        %1353 = vmatprep.mubr.f32.mxu0 0.0
        %1354 = vmatmul.mubr.f32.gmra.mxu0 %v1258
        %v1355 = vpop.f32.mrf.mxu0
        %v1356 = vadd.f32 0.0, %v1355
        %v1357 = vpop.f32.mrf.mxu0
        %1358 = vmatprep.mubr.f32.mxu0 0.0
        %1359 = vmatmul.mubr.f32.gmra.mxu0 %v1261
        %v1360 = vpop.f32.mrf.mxu0
        %v1361 = vadd.f32 0.0, %v1360
        %v1362 = vpop.f32.mrf.mxu0
        %1363 = vmatprep.mubr.f32.mxu0 0.0
        %1364 = vmatmul.mubr.f32.gmra.mxu0 %v1264
        %v1365 = vpop.f32.mrf.mxu0
        %v1366 = vadd.f32 0.0, %v1365
        %v1367 = vpop.f32.mrf.mxu0
        %1368 = vmatprep.mubr.f32.mxu0 0.0
        %1369 = vmatmul.mubr.f32.gmra.mxu0 %v1267
        %v1370 = vpop.f32.mrf.mxu0
        %v1371 = vadd.f32 0.0, %v1370
        %v1372 = vpop.f32.mrf.mxu0
        %1373 = vdwg.mxu0
        %v1374 = vadd.f32 %v1220, %v1336
        %v1375 = vadd.f32 %v1221, %v1341
        %v1376 = vadd.f32 %v1222, %v1346
        %v1377 = vadd.f32 %v1223, %v1351
        %v1378 = vadd.f32 %v1224, %v1356
        %v1379 = vadd.f32 %v1225, %v1361
        %v1380 = vadd.f32 %v1226, %v1366
        %v1381 = vadd.f32 %v1227, %v1371
        %v1382 = vld [vmem:[#allocation2 + $0xa] sm:$0xff]
        %v1383 = vld [vmem:[#allocation2 + $0x12] sm:$0xff]
        %v1384 = vld [vmem:[#allocation2 + $0x1a] sm:$0xff]
        %v1385 = vld [vmem:[#allocation2 + $0x22] sm:$0xff]
        %v1386 = vld [vmem:[#allocation2 + $0x2a] sm:$0xff]
        %v1387 = vld [vmem:[#allocation2 + $0x32] sm:$0xff]
        %v1388 = vld [vmem:[#allocation2 + $0x3a] sm:$0xff]
        %v1389 = vld [vmem:[#allocation2 + $0x42] sm:$0xff]
        %v1390 = vmul.f32 %v1382, %v597
        %v1391 = vmul.f32 %v1383, %v598
        %v1392 = vmul.f32 %v1384, %v599
        %v1393 = vmul.f32 %v1385, %v600
        %v1394 = vmul.f32 %v1386, %v601
        %v1395 = vmul.f32 %v1387, %v602
        %v1396 = vmul.f32 %v1388, %v603
        %v1397 = vmul.f32 %v1389, %v604
        %s1398 = scalar_lea.vmem %s4, 320
        %v1399 = vld [vmem:[%s1398] sm:$0xff]
        %v1400 = vld [vmem:[%s1398 + $0x8] sm:$0xff]
        %v1401 = vld [vmem:[%s1398 + $0x10] sm:$0xff]
        %v1402 = vld [vmem:[%s1398 + $0x18] sm:$0xff]
        %v1403 = vld [vmem:[%s1398 + $0x20] sm:$0xff]
        %v1404 = vld [vmem:[%s1398 + $0x28] sm:$0xff]
        %v1405 = vld [vmem:[%s1398 + $0x30] sm:$0xff]
        %v1406 = vld [vmem:[%s1398 + $0x38] sm:$0xff]
        %v1408 = vsel %vm293, %v1390, 0
        %v1411 = vsel %vm293, %v1391, 0
        %v1414 = vsel %vm293, %v1392, 0
        %v1417 = vsel %vm293, %v1393, 0
        %v1420 = vsel %vm293, %v1394, 0
        %v1423 = vsel %vm293, %v1395, 0
        %v1426 = vsel %vm293, %v1396, 0
        %v1429 = vsel %vm293, %v1397, 0
        %1431 = vmatprep.subr.mxu0 0.0
        %1432 = vmatpush1.msra.mxu0 0.0
        %1433 = vmatprep.subr.mxu0 0.0
        %1434 = vmatpush1.msra.mxu0 0.0
        %1435 = vmatprep.subr.mxu0 0.0
        %1436 = vmatpush1.msra.mxu0 0.0
        %1437 = vmatprep.subr.mxu0 0.0
        %1438 = vmatpush1.msra.mxu0 0.0
        %1439 = vmatprep.subr.mxu0 0.0
        %1440 = vmatpush1.msra.mxu0 0.0
        %1441 = vmatprep.subr.mxu0 0.0
        %1442 = vmatpush1.msra.mxu0 0.0
        %1443 = vmatprep.subr.mxu0 0.0
        %1444 = vmatpush1.msra.mxu0 0.0
        %1445 = vmatprep.subr.mxu0 0.0
        %1446 = vmatpush1.msra.mxu0 0.0
        %1447 = vmatprep.subr.mxu0 0.0
        %1448 = vmatpush1.msra.mxu0 %v1406
        %1449 = vmatprep.subr.mxu0 0.0
        %1450 = vmatpush1.msra.mxu0 %v1405
        %1451 = vmatprep.subr.mxu0 0.0
        %1452 = vmatpush1.msra.mxu0 %v1404
        %1453 = vmatprep.subr.mxu0 0.0
        %1454 = vmatpush1.msra.mxu0 %v1403
        %1455 = vmatprep.subr.mxu0 0.0
        %1456 = vmatpush1.msra.mxu0 %v1402
        %1457 = vmatprep.subr.mxu0 0.0
        %1458 = vmatpush1.msra.mxu0 %v1401
        %1459 = vmatprep.subr.mxu0 0.0
        %1460 = vmatpush1.msra.mxu0 %v1400
        %1461 = vmatprep.subr.mxu0 0.0
        %1462 = vmatpush1.msra.mxu0 %v1399
        %1463 = vmatprep.subr.mxu0 0.0
        %1464 = vmatpush2.msra.mxu0 0.0
        %1465 = vmatprep.subr.mxu0 0.0
        %1466 = vmatpush2.msra.mxu0 0.0
        %1467 = vmatprep.subr.mxu0 0.0
        %1468 = vmatpush2.msra.mxu0 0.0
        %1469 = vmatprep.subr.mxu0 0.0
        %1470 = vmatpush2.msra.mxu0 0.0
        %1471 = vmatprep.subr.mxu0 0.0
        %1472 = vmatpush2.msra.mxu0 0.0
        %1473 = vmatprep.subr.mxu0 0.0
        %1474 = vmatpush2.msra.mxu0 0.0
        %1475 = vmatprep.subr.mxu0 0.0
        %1476 = vmatpush2.msra.mxu0 0.0
        %1477 = vmatprep.subr.mxu0 0.0
        %1478 = vmatpush2.msra.mxu0 0.0
        %1479 = vmatprep.subr.mxu0 0.0
        %1480 = vmatpush2.msra.mxu0 0.0
        %1481 = vmatprep.subr.mxu0 0.0
        %1482 = vmatpush2.msra.mxu0 0.0
        %1483 = vmatprep.subr.mxu0 0.0
        %1484 = vmatpush2.msra.mxu0 0.0
        %1485 = vmatprep.subr.mxu0 0.0
        %1486 = vmatpush2.msra.mxu0 0.0
        %1487 = vmatprep.subr.mxu0 0.0
        %1488 = vmatpush2.msra.mxu0 0.0
        %1489 = vmatprep.subr.mxu0 0.0
        %1490 = vmatpush2.msra.mxu0 0.0
        %1491 = vmatprep.subr.mxu0 0.0
        %1492 = vmatpush2.msra.mxu0 0.0
        %1493 = vmatprep.subr.mxu0 0.0
        %1494 = vmatpush2.msra.mxu0 0.0
        %1495 = vmatprep.mubr.f32.mxu0 0.0
        %1496 = vmatmul.mubr.f32.gmra.mxu0 %v1408
        %v1497 = vpop.f32.mrf.mxu0
        %v1498 = vadd.f32 0.0, %v1497
        %v1499 = vpop.f32.mrf.mxu0
        %1500 = vmatprep.mubr.f32.mxu0 0.0
        %1501 = vmatmul.mubr.f32.gmra.mxu0 %v1411
        %v1502 = vpop.f32.mrf.mxu0
        %v1503 = vadd.f32 0.0, %v1502
        %v1504 = vpop.f32.mrf.mxu0
        %1505 = vmatprep.mubr.f32.mxu0 0.0
        %1506 = vmatmul.mubr.f32.gmra.mxu0 %v1414
        %v1507 = vpop.f32.mrf.mxu0
        %v1508 = vadd.f32 0.0, %v1507
        %v1509 = vpop.f32.mrf.mxu0
        %1510 = vmatprep.mubr.f32.mxu0 0.0
        %1511 = vmatmul.mubr.f32.gmra.mxu0 %v1417
        %v1512 = vpop.f32.mrf.mxu0
        %v1513 = vadd.f32 0.0, %v1512
        %v1514 = vpop.f32.mrf.mxu0
        %1515 = vmatprep.mubr.f32.mxu0 0.0
        %1516 = vmatmul.mubr.f32.gmra.mxu0 %v1420
        %v1517 = vpop.f32.mrf.mxu0
        %v1518 = vadd.f32 0.0, %v1517
        %v1519 = vpop.f32.mrf.mxu0
        %1520 = vmatprep.mubr.f32.mxu0 0.0
        %1521 = vmatmul.mubr.f32.gmra.mxu0 %v1423
        %v1522 = vpop.f32.mrf.mxu0
        %v1523 = vadd.f32 0.0, %v1522
        %v1524 = vpop.f32.mrf.mxu0
        %1525 = vmatprep.mubr.f32.mxu0 0.0
        %1526 = vmatmul.mubr.f32.gmra.mxu0 %v1426
        %v1527 = vpop.f32.mrf.mxu0
        %v1528 = vadd.f32 0.0, %v1527
        %v1529 = vpop.f32.mrf.mxu0
        %1530 = vmatprep.mubr.f32.mxu0 0.0
        %1531 = vmatmul.mubr.f32.gmra.mxu0 %v1429
        %v1532 = vpop.f32.mrf.mxu0
        %v1533 = vadd.f32 0.0, %v1532
        %v1534 = vpop.f32.mrf.mxu0
        %1535 = vdwg.mxu0
        %v1536 = vadd.f32 %v1374, %v1498
        %v1537 = vadd.f32 %v1375, %v1503
        %v1538 = vadd.f32 %v1376, %v1508
        %v1539 = vadd.f32 %v1377, %v1513
        %v1540 = vadd.f32 %v1378, %v1518
        %v1541 = vadd.f32 %v1379, %v1523
        %v1542 = vadd.f32 %v1380, %v1528
        %v1543 = vadd.f32 %v1381, %v1533
        %v1544 = vld [vmem:[#allocation2 + $0x10] sm:$0xff]
        %v1545 = vld [vmem:[#allocation2 + $0x18] sm:$0xff]
        %v1546 = vld [vmem:[#allocation2 + $0x20] sm:$0xff]
        %v1547 = vld [vmem:[#allocation2 + $0x28] sm:$0xff]
        %v1548 = vld [vmem:[#allocation2 + $0x30] sm:$0xff]
        %v1549 = vld [vmem:[#allocation2 + $0x38] sm:$0xff]
        %v1550 = vld [vmem:[#allocation2 + $0x40] sm:$0xff]
        %v1551 = vld [vmem:[#allocation2 + $0x48] sm:$0xff]
        %v1552 = vmul.f32 %v1544, %v573
        %v1553 = vmul.f32 %v1545, %v574
        %v1554 = vmul.f32 %v1546, %v575
        %v1555 = vmul.f32 %v1547, %v576
        %v1556 = vmul.f32 %v1548, %v577
        %v1557 = vmul.f32 %v1549, %v578
        %v1558 = vmul.f32 %v1550, %v579
        %v1559 = vmul.f32 %v1551, %v580
        %s1560 = scalar_lea.vmem %s4, 384
        %v1561 = vld [vmem:[%s1560] sm:$0xff]
        %v1562 = vld [vmem:[%s1560 + $0x8] sm:$0xff]
        %v1563 = vld [vmem:[%s1560 + $0x10] sm:$0xff]
        %v1564 = vld [vmem:[%s1560 + $0x18] sm:$0xff]
        %v1565 = vld [vmem:[%s1560 + $0x20] sm:$0xff]
        %v1566 = vld [vmem:[%s1560 + $0x28] sm:$0xff]
        %v1567 = vld [vmem:[%s1560 + $0x30] sm:$0xff]
        %v1568 = vld [vmem:[%s1560 + $0x38] sm:$0xff]
        %v1570 = vsel %vm293, %v1552, 0
        %v1573 = vsel %vm293, %v1553, 0
        %v1576 = vsel %vm293, %v1554, 0
        %v1579 = vsel %vm293, %v1555, 0
        %v1582 = vsel %vm293, %v1556, 0
        %v1585 = vsel %vm293, %v1557, 0
        %v1588 = vsel %vm293, %v1558, 0
        %v1591 = vsel %vm293, %v1559, 0
        %1593 = vmatprep.subr.mxu0 0.0
        %1594 = vmatpush1.msra.mxu0 0.0
        %1595 = vmatprep.subr.mxu0 0.0
        %1596 = vmatpush1.msra.mxu0 0.0
        %1597 = vmatprep.subr.mxu0 0.0
        %1598 = vmatpush1.msra.mxu0 0.0
        %1599 = vmatprep.subr.mxu0 0.0
        %1600 = vmatpush1.msra.mxu0 0.0
        %1601 = vmatprep.subr.mxu0 0.0
        %1602 = vmatpush1.msra.mxu0 0.0
        %1603 = vmatprep.subr.mxu0 0.0
        %1604 = vmatpush1.msra.mxu0 0.0
        %1605 = vmatprep.subr.mxu0 0.0
        %1606 = vmatpush1.msra.mxu0 0.0
        %1607 = vmatprep.subr.mxu0 0.0
        %1608 = vmatpush1.msra.mxu0 0.0
        %1609 = vmatprep.subr.mxu0 0.0
        %1610 = vmatpush1.msra.mxu0 %v1568
        %1611 = vmatprep.subr.mxu0 0.0
        %1612 = vmatpush1.msra.mxu0 %v1567
        %1613 = vmatprep.subr.mxu0 0.0
        %1614 = vmatpush1.msra.mxu0 %v1566
        %1615 = vmatprep.subr.mxu0 0.0
        %1616 = vmatpush1.msra.mxu0 %v1565
        %1617 = vmatprep.subr.mxu0 0.0
        %1618 = vmatpush1.msra.mxu0 %v1564
        %1619 = vmatprep.subr.mxu0 0.0
        %1620 = vmatpush1.msra.mxu0 %v1563
        %1621 = vmatprep.subr.mxu0 0.0
        %1622 = vmatpush1.msra.mxu0 %v1562
        %1623 = vmatprep.subr.mxu0 0.0
        %1624 = vmatpush1.msra.mxu0 %v1561
        %1625 = vmatprep.subr.mxu0 0.0
        %1626 = vmatpush2.msra.mxu0 0.0
        %1627 = vmatprep.subr.mxu0 0.0
        %1628 = vmatpush2.msra.mxu0 0.0
        %1629 = vmatprep.subr.mxu0 0.0
        %1630 = vmatpush2.msra.mxu0 0.0
        %1631 = vmatprep.subr.mxu0 0.0
        %1632 = vmatpush2.msra.mxu0 0.0
        %1633 = vmatprep.subr.mxu0 0.0
        %1634 = vmatpush2.msra.mxu0 0.0
        %1635 = vmatprep.subr.mxu0 0.0
        %1636 = vmatpush2.msra.mxu0 0.0
        %1637 = vmatprep.subr.mxu0 0.0
        %1638 = vmatpush2.msra.mxu0 0.0
        %1639 = vmatprep.subr.mxu0 0.0
        %1640 = vmatpush2.msra.mxu0 0.0
        %1641 = vmatprep.subr.mxu0 0.0
        %1642 = vmatpush2.msra.mxu0 0.0
        %1643 = vmatprep.subr.mxu0 0.0
        %1644 = vmatpush2.msra.mxu0 0.0
        %1645 = vmatprep.subr.mxu0 0.0
        %1646 = vmatpush2.msra.mxu0 0.0
        %1647 = vmatprep.subr.mxu0 0.0
        %1648 = vmatpush2.msra.mxu0 0.0
        %1649 = vmatprep.subr.mxu0 0.0
        %1650 = vmatpush2.msra.mxu0 0.0
        %1651 = vmatprep.subr.mxu0 0.0
        %1652 = vmatpush2.msra.mxu0 0.0
        %1653 = vmatprep.subr.mxu0 0.0
        %1654 = vmatpush2.msra.mxu0 0.0
        %1655 = vmatprep.subr.mxu0 0.0
        %1656 = vmatpush2.msra.mxu0 0.0
        %1657 = vmatprep.mubr.f32.mxu0 0.0
        %1658 = vmatmul.mubr.f32.gmra.mxu0 %v1570
        %v1659 = vpop.f32.mrf.mxu0
        %v1660 = vadd.f32 0.0, %v1659
        %v1661 = vpop.f32.mrf.mxu0
        %1662 = vmatprep.mubr.f32.mxu0 0.0
        %1663 = vmatmul.mubr.f32.gmra.mxu0 %v1573
        %v1664 = vpop.f32.mrf.mxu0
        %v1665 = vadd.f32 0.0, %v1664
        %v1666 = vpop.f32.mrf.mxu0
        %1667 = vmatprep.mubr.f32.mxu0 0.0
        %1668 = vmatmul.mubr.f32.gmra.mxu0 %v1576
        %v1669 = vpop.f32.mrf.mxu0
        %v1670 = vadd.f32 0.0, %v1669
        %v1671 = vpop.f32.mrf.mxu0
        %1672 = vmatprep.mubr.f32.mxu0 0.0
        %1673 = vmatmul.mubr.f32.gmra.mxu0 %v1579
        %v1674 = vpop.f32.mrf.mxu0
        %v1675 = vadd.f32 0.0, %v1674
        %v1676 = vpop.f32.mrf.mxu0
        %1677 = vmatprep.mubr.f32.mxu0 0.0
        %1678 = vmatmul.mubr.f32.gmra.mxu0 %v1582
        %v1679 = vpop.f32.mrf.mxu0
        %v1680 = vadd.f32 0.0, %v1679
        %v1681 = vpop.f32.mrf.mxu0
        %1682 = vmatprep.mubr.f32.mxu0 0.0
        %1683 = vmatmul.mubr.f32.gmra.mxu0 %v1585
        %v1684 = vpop.f32.mrf.mxu0
        %v1685 = vadd.f32 0.0, %v1684
        %v1686 = vpop.f32.mrf.mxu0
        %1687 = vmatprep.mubr.f32.mxu0 0.0
        %1688 = vmatmul.mubr.f32.gmra.mxu0 %v1588
        %v1689 = vpop.f32.mrf.mxu0
        %v1690 = vadd.f32 0.0, %v1689
        %v1691 = vpop.f32.mrf.mxu0
        %1692 = vmatprep.mubr.f32.mxu0 0.0
        %1693 = vmatmul.mubr.f32.gmra.mxu0 %v1591
        %v1694 = vpop.f32.mrf.mxu0
        %v1695 = vadd.f32 0.0, %v1694
        %v1696 = vpop.f32.mrf.mxu0
        %1697 = vdwg.mxu0
        %v1698 = vadd.f32 %v1536, %v1660
        %v1699 = vadd.f32 %v1537, %v1665
        %v1700 = vadd.f32 %v1538, %v1670
        %v1701 = vadd.f32 %v1539, %v1675
        %v1702 = vadd.f32 %v1540, %v1680
        %v1703 = vadd.f32 %v1541, %v1685
        %v1704 = vadd.f32 %v1542, %v1690
        %v1705 = vadd.f32 %v1543, %v1695
        %v1706 = vld [vmem:[#allocation2 + $0x11] sm:$0xff]
        %v1707 = vld [vmem:[#allocation2 + $0x19] sm:$0xff]
        %v1708 = vld [vmem:[#allocation2 + $0x21] sm:$0xff]
        %v1709 = vld [vmem:[#allocation2 + $0x29] sm:$0xff]
        %v1710 = vld [vmem:[#allocation2 + $0x31] sm:$0xff]
        %v1711 = vld [vmem:[#allocation2 + $0x39] sm:$0xff]
        %v1712 = vld [vmem:[#allocation2 + $0x41] sm:$0xff]
        %v1713 = vld [vmem:[#allocation2 + $0x49] sm:$0xff]
        %s1714 = scalar_lea.vmem %s4, 448
        %v1715 = vld [vmem:[%s1714] sm:$0xff]
        %v1716 = vld [vmem:[%s1714 + $0x8] sm:$0xff]
        %v1717 = vld [vmem:[%s1714 + $0x10] sm:$0xff]
        %v1718 = vld [vmem:[%s1714 + $0x18] sm:$0xff]
        %v1719 = vld [vmem:[%s1714 + $0x20] sm:$0xff]
        %v1720 = vld [vmem:[%s1714 + $0x28] sm:$0xff]
        %v1721 = vld [vmem:[%s1714 + $0x30] sm:$0xff]
        %v1722 = vld [vmem:[%s1714 + $0x38] sm:$0xff]
        %v1724 = vsel %vm293, %v1706, 0
        %v1727 = vsel %vm293, %v1707, 0
        %v1730 = vsel %vm293, %v1708, 0
        %v1733 = vsel %vm293, %v1709, 0
        %v1736 = vsel %vm293, %v1710, 0
        %v1739 = vsel %vm293, %v1711, 0
        %v1742 = vsel %vm293, %v1712, 0
        %v1745 = vsel %vm293, %v1713, 0
        %1747 = vmatprep.subr.mxu0 0.0
        %1748 = vmatpush1.msra.mxu0 0.0
        %1749 = vmatprep.subr.mxu0 0.0
        %1750 = vmatpush1.msra.mxu0 0.0
        %1751 = vmatprep.subr.mxu0 0.0
        %1752 = vmatpush1.msra.mxu0 0.0
        %1753 = vmatprep.subr.mxu0 0.0
        %1754 = vmatpush1.msra.mxu0 0.0
        %1755 = vmatprep.subr.mxu0 0.0
        %1756 = vmatpush1.msra.mxu0 0.0
        %1757 = vmatprep.subr.mxu0 0.0
        %1758 = vmatpush1.msra.mxu0 0.0
        %1759 = vmatprep.subr.mxu0 0.0
        %1760 = vmatpush1.msra.mxu0 0.0
        %1761 = vmatprep.subr.mxu0 0.0
        %1762 = vmatpush1.msra.mxu0 0.0
        %1763 = vmatprep.subr.mxu0 0.0
        %1764 = vmatpush1.msra.mxu0 %v1722
        %1765 = vmatprep.subr.mxu0 0.0
        %1766 = vmatpush1.msra.mxu0 %v1721
        %1767 = vmatprep.subr.mxu0 0.0
        %1768 = vmatpush1.msra.mxu0 %v1720
        %1769 = vmatprep.subr.mxu0 0.0
        %1770 = vmatpush1.msra.mxu0 %v1719
        %1771 = vmatprep.subr.mxu0 0.0
        %1772 = vmatpush1.msra.mxu0 %v1718
        %1773 = vmatprep.subr.mxu0 0.0
        %1774 = vmatpush1.msra.mxu0 %v1717
        %1775 = vmatprep.subr.mxu0 0.0
        %1776 = vmatpush1.msra.mxu0 %v1716
        %1777 = vmatprep.subr.mxu0 0.0
        %1778 = vmatpush1.msra.mxu0 %v1715
        %1779 = vmatprep.subr.mxu0 0.0
        %1780 = vmatpush2.msra.mxu0 0.0
        %1781 = vmatprep.subr.mxu0 0.0
        %1782 = vmatpush2.msra.mxu0 0.0
        %1783 = vmatprep.subr.mxu0 0.0
        %1784 = vmatpush2.msra.mxu0 0.0
        %1785 = vmatprep.subr.mxu0 0.0
        %1786 = vmatpush2.msra.mxu0 0.0
        %1787 = vmatprep.subr.mxu0 0.0
        %1788 = vmatpush2.msra.mxu0 0.0
        %1789 = vmatprep.subr.mxu0 0.0
        %1790 = vmatpush2.msra.mxu0 0.0
        %1791 = vmatprep.subr.mxu0 0.0
        %1792 = vmatpush2.msra.mxu0 0.0
        %1793 = vmatprep.subr.mxu0 0.0
        %1794 = vmatpush2.msra.mxu0 0.0
        %1795 = vmatprep.subr.mxu0 0.0
        %1796 = vmatpush2.msra.mxu0 0.0
        %1797 = vmatprep.subr.mxu0 0.0
        %1798 = vmatpush2.msra.mxu0 0.0
        %1799 = vmatprep.subr.mxu0 0.0
        %1800 = vmatpush2.msra.mxu0 0.0
        %1801 = vmatprep.subr.mxu0 0.0
        %1802 = vmatpush2.msra.mxu0 0.0
        %1803 = vmatprep.subr.mxu0 0.0
        %1804 = vmatpush2.msra.mxu0 0.0
        %1805 = vmatprep.subr.mxu0 0.0
        %1806 = vmatpush2.msra.mxu0 0.0
        %1807 = vmatprep.subr.mxu0 0.0
        %1808 = vmatpush2.msra.mxu0 0.0
        %1809 = vmatprep.subr.mxu0 0.0
        %1810 = vmatpush2.msra.mxu0 0.0
        %1811 = vmatprep.mubr.f32.mxu0 0.0
        %1812 = vmatmul.mubr.f32.gmra.mxu0 %v1724
        %v1813 = vpop.f32.mrf.mxu0
        %v1814 = vadd.f32 0.0, %v1813
        %v1815 = vpop.f32.mrf.mxu0
        %1816 = vmatprep.mubr.f32.mxu0 0.0
        %1817 = vmatmul.mubr.f32.gmra.mxu0 %v1727
        %v1818 = vpop.f32.mrf.mxu0
        %v1819 = vadd.f32 0.0, %v1818
        %v1820 = vpop.f32.mrf.mxu0
        %1821 = vmatprep.mubr.f32.mxu0 0.0
        %1822 = vmatmul.mubr.f32.gmra.mxu0 %v1730
        %v1823 = vpop.f32.mrf.mxu0
        %v1824 = vadd.f32 0.0, %v1823
        %v1825 = vpop.f32.mrf.mxu0
        %1826 = vmatprep.mubr.f32.mxu0 0.0
        %1827 = vmatmul.mubr.f32.gmra.mxu0 %v1733
        %v1828 = vpop.f32.mrf.mxu0
        %v1829 = vadd.f32 0.0, %v1828
        %v1830 = vpop.f32.mrf.mxu0
        %1831 = vmatprep.mubr.f32.mxu0 0.0
        %1832 = vmatmul.mubr.f32.gmra.mxu0 %v1736
        %v1833 = vpop.f32.mrf.mxu0
        %v1834 = vadd.f32 0.0, %v1833
        %v1835 = vpop.f32.mrf.mxu0
        %1836 = vmatprep.mubr.f32.mxu0 0.0
        %1837 = vmatmul.mubr.f32.gmra.mxu0 %v1739
        %v1838 = vpop.f32.mrf.mxu0
        %v1839 = vadd.f32 0.0, %v1838
        %v1840 = vpop.f32.mrf.mxu0
        %1841 = vmatprep.mubr.f32.mxu0 0.0
        %1842 = vmatmul.mubr.f32.gmra.mxu0 %v1742
        %v1843 = vpop.f32.mrf.mxu0
        %v1844 = vadd.f32 0.0, %v1843
        %v1845 = vpop.f32.mrf.mxu0
        %1846 = vmatprep.mubr.f32.mxu0 0.0
        %1847 = vmatmul.mubr.f32.gmra.mxu0 %v1745
        %v1848 = vpop.f32.mrf.mxu0
        %v1849 = vadd.f32 0.0, %v1848
        %v1850 = vpop.f32.mrf.mxu0
        %1851 = vdwg.mxu0
        %v1852 = vadd.f32 %v1698, %v1814
        %v1853 = vadd.f32 %v1699, %v1819
        %v1854 = vadd.f32 %v1700, %v1824
        %v1855 = vadd.f32 %v1701, %v1829
        %v1856 = vadd.f32 %v1702, %v1834
        %v1857 = vadd.f32 %v1703, %v1839
        %v1858 = vadd.f32 %v1704, %v1844
        %v1859 = vadd.f32 %v1705, %v1849
        %v1860 = vld [vmem:[#allocation2 + $0x12] sm:$0xff]
        %v1861 = vld [vmem:[#allocation2 + $0x1a] sm:$0xff]
        %v1862 = vld [vmem:[#allocation2 + $0x22] sm:$0xff]
        %v1863 = vld [vmem:[#allocation2 + $0x2a] sm:$0xff]
        %v1864 = vld [vmem:[#allocation2 + $0x32] sm:$0xff]
        %v1865 = vld [vmem:[#allocation2 + $0x3a] sm:$0xff]
        %v1866 = vld [vmem:[#allocation2 + $0x42] sm:$0xff]
        %v1867 = vld [vmem:[#allocation2 + $0x4a] sm:$0xff]
        %v1868 = vmul.f32 %v1860, %v597
        %v1869 = vmul.f32 %v1861, %v598
        %v1870 = vmul.f32 %v1862, %v599
        %v1871 = vmul.f32 %v1863, %v600
        %v1872 = vmul.f32 %v1864, %v601
        %v1873 = vmul.f32 %v1865, %v602
        %v1874 = vmul.f32 %v1866, %v603
        %v1875 = vmul.f32 %v1867, %v604
        %s1876 = scalar_lea.vmem %s4, 512
        %v1877 = vld [vmem:[%s1876] sm:$0xff]
        %v1878 = vld [vmem:[%s1876 + $0x8] sm:$0xff]
        %v1879 = vld [vmem:[%s1876 + $0x10] sm:$0xff]
        %v1880 = vld [vmem:[%s1876 + $0x18] sm:$0xff]
        %v1881 = vld [vmem:[%s1876 + $0x20] sm:$0xff]
        %v1882 = vld [vmem:[%s1876 + $0x28] sm:$0xff]
        %v1883 = vld [vmem:[%s1876 + $0x30] sm:$0xff]
        %v1884 = vld [vmem:[%s1876 + $0x38] sm:$0xff]
        %v1886 = vsel %vm293, %v1868, 0
        %v1889 = vsel %vm293, %v1869, 0
        %v1892 = vsel %vm293, %v1870, 0
        %v1895 = vsel %vm293, %v1871, 0
        %v1898 = vsel %vm293, %v1872, 0
        %v1901 = vsel %vm293, %v1873, 0
        %v1904 = vsel %vm293, %v1874, 0
        %v1907 = vsel %vm293, %v1875, 0
        %1909 = vmatprep.subr.mxu0 0.0
        %1910 = vmatpush1.msra.mxu0 0.0
        %1911 = vmatprep.subr.mxu0 0.0
        %1912 = vmatpush1.msra.mxu0 0.0
        %1913 = vmatprep.subr.mxu0 0.0
        %1914 = vmatpush1.msra.mxu0 0.0
        %1915 = vmatprep.subr.mxu0 0.0
        %1916 = vmatpush1.msra.mxu0 0.0
        %1917 = vmatprep.subr.mxu0 0.0
        %1918 = vmatpush1.msra.mxu0 0.0
        %1919 = vmatprep.subr.mxu0 0.0
        %1920 = vmatpush1.msra.mxu0 0.0
        %1921 = vmatprep.subr.mxu0 0.0
        %1922 = vmatpush1.msra.mxu0 0.0
        %1923 = vmatprep.subr.mxu0 0.0
        %1924 = vmatpush1.msra.mxu0 0.0
        %1925 = vmatprep.subr.mxu0 0.0
        %1926 = vmatpush1.msra.mxu0 %v1884
        %1927 = vmatprep.subr.mxu0 0.0
        %1928 = vmatpush1.msra.mxu0 %v1883
        %1929 = vmatprep.subr.mxu0 0.0
        %1930 = vmatpush1.msra.mxu0 %v1882
        %1931 = vmatprep.subr.mxu0 0.0
        %1932 = vmatpush1.msra.mxu0 %v1881
        %1933 = vmatprep.subr.mxu0 0.0
        %1934 = vmatpush1.msra.mxu0 %v1880
        %1935 = vmatprep.subr.mxu0 0.0
        %1936 = vmatpush1.msra.mxu0 %v1879
        %1937 = vmatprep.subr.mxu0 0.0
        %1938 = vmatpush1.msra.mxu0 %v1878
        %1939 = vmatprep.subr.mxu0 0.0
        %1940 = vmatpush1.msra.mxu0 %v1877
        %1941 = vmatprep.subr.mxu0 0.0
        %1942 = vmatpush2.msra.mxu0 0.0
        %1943 = vmatprep.subr.mxu0 0.0
        %1944 = vmatpush2.msra.mxu0 0.0
        %1945 = vmatprep.subr.mxu0 0.0
        %1946 = vmatpush2.msra.mxu0 0.0
        %1947 = vmatprep.subr.mxu0 0.0
        %1948 = vmatpush2.msra.mxu0 0.0
        %1949 = vmatprep.subr.mxu0 0.0
        %1950 = vmatpush2.msra.mxu0 0.0
        %1951 = vmatprep.subr.mxu0 0.0
        %1952 = vmatpush2.msra.mxu0 0.0
        %1953 = vmatprep.subr.mxu0 0.0
        %1954 = vmatpush2.msra.mxu0 0.0
        %1955 = vmatprep.subr.mxu0 0.0
        %1956 = vmatpush2.msra.mxu0 0.0
        %1957 = vmatprep.subr.mxu0 0.0
        %1958 = vmatpush2.msra.mxu0 0.0
        %1959 = vmatprep.subr.mxu0 0.0
        %1960 = vmatpush2.msra.mxu0 0.0
        %1961 = vmatprep.subr.mxu0 0.0
        %1962 = vmatpush2.msra.mxu0 0.0
        %1963 = vmatprep.subr.mxu0 0.0
        %1964 = vmatpush2.msra.mxu0 0.0
        %1965 = vmatprep.subr.mxu0 0.0
        %1966 = vmatpush2.msra.mxu0 0.0
        %1967 = vmatprep.subr.mxu0 0.0
        %1968 = vmatpush2.msra.mxu0 0.0
        %1969 = vmatprep.subr.mxu0 0.0
        %1970 = vmatpush2.msra.mxu0 0.0
        %1971 = vmatprep.subr.mxu0 0.0
        %1972 = vmatpush2.msra.mxu0 0.0
        %1973 = vmatprep.mubr.f32.mxu0 0.0
        %1974 = vmatmul.mubr.f32.gmra.mxu0 %v1886
        %v1975 = vpop.f32.mrf.mxu0
        %v1976 = vadd.f32 0.0, %v1975
        %v1977 = vpop.f32.mrf.mxu0
        %1978 = vmatprep.mubr.f32.mxu0 0.0
        %1979 = vmatmul.mubr.f32.gmra.mxu0 %v1889
        %v1980 = vpop.f32.mrf.mxu0
        %v1981 = vadd.f32 0.0, %v1980
        %v1982 = vpop.f32.mrf.mxu0
        %1983 = vmatprep.mubr.f32.mxu0 0.0
        %1984 = vmatmul.mubr.f32.gmra.mxu0 %v1892
        %v1985 = vpop.f32.mrf.mxu0
        %v1986 = vadd.f32 0.0, %v1985
        %v1987 = vpop.f32.mrf.mxu0
        %1988 = vmatprep.mubr.f32.mxu0 0.0
        %1989 = vmatmul.mubr.f32.gmra.mxu0 %v1895
        %v1990 = vpop.f32.mrf.mxu0
        %v1991 = vadd.f32 0.0, %v1990
        %v1992 = vpop.f32.mrf.mxu0
        %1993 = vmatprep.mubr.f32.mxu0 0.0
        %1994 = vmatmul.mubr.f32.gmra.mxu0 %v1898
        %v1995 = vpop.f32.mrf.mxu0
        %v1996 = vadd.f32 0.0, %v1995
        %v1997 = vpop.f32.mrf.mxu0
        %1998 = vmatprep.mubr.f32.mxu0 0.0
        %1999 = vmatmul.mubr.f32.gmra.mxu0 %v1901
        %v2000 = vpop.f32.mrf.mxu0
        %v2001 = vadd.f32 0.0, %v2000
        %v2002 = vpop.f32.mrf.mxu0
        %2003 = vmatprep.mubr.f32.mxu0 0.0
        %2004 = vmatmul.mubr.f32.gmra.mxu0 %v1904
        %v2005 = vpop.f32.mrf.mxu0
        %v2006 = vadd.f32 0.0, %v2005
        %v2007 = vpop.f32.mrf.mxu0
        %2008 = vmatprep.mubr.f32.mxu0 0.0
        %2009 = vmatmul.mubr.f32.gmra.mxu0 %v1907
        %v2010 = vpop.f32.mrf.mxu0
        %v2011 = vadd.f32 0.0, %v2010
        %v2012 = vpop.f32.mrf.mxu0
        %2013 = vdwg.mxu0
        %v2014 = vadd.f32 %v1852, %v1976
        %v2015 = vadd.f32 %v1853, %v1981
        %v2016 = vadd.f32 %v1854, %v1986
        %v2017 = vadd.f32 %v1855, %v1991
        %v2018 = vadd.f32 %v1856, %v1996
        %v2019 = vadd.f32 %v1857, %v2001
        %v2020 = vadd.f32 %v1858, %v2006
        %v2021 = vadd.f32 %v1859, %v2011
        %v2022 = vld [vmem:[%s5] sm:$0x1]
        %v2024 = vlaneseq
        %v2025 = vshrl.u32 %v2024, 7
        %v2026 = vsub.s32 0, %v2025
        %v2027 = vrot.slane %v2022, %v2026
        %v2029 = vadd.f32 %v2014, %v2027
        %v2030 = vadd.f32 %v2015, %v2027
        %v2031 = vadd.f32 %v2016, %v2027
        %v2032 = vadd.f32 %v2017, %v2027
        %v2033 = vadd.f32 %v2018, %v2027
        %v2034 = vadd.f32 %v2019, %v2027
        %v2035 = vadd.f32 %v2020, %v2027
        %v2036 = vadd.f32 %v2021, %v2027
        %2037 = vst.msk [vmem:[%s259] sm:$0xff] %vm293, %v2029
        %2038 = vst.msk [vmem:[%s259 + $0x8] sm:$0xff] %vm293, %v2030
        %2039 = vst.msk [vmem:[%s259 + $0x10] sm:$0xff] %vm293, %v2031
        %2040 = vst.msk [vmem:[%s259 + $0x18] sm:$0xff] %vm293, %v2032
        %2041 = vst.msk [vmem:[%s259 + $0x20] sm:$0xff] %vm293, %v2033
        %2042 = vst.msk [vmem:[%s259 + $0x28] sm:$0xff] %vm293, %v2034
        %2043 = vst.msk [vmem:[%s259 + $0x30] sm:$0xff] %vm293, %v2035
        %2044 = vst.msk [vmem:[%s259 + $0x38] sm:$0xff] %vm293, %v2036
        %s2045 = sand.u32 %s164, 1
        %s2046 = scalar_lea.sflag [#allocation4], %s2045
        %s2047 = sand.u32 %s164, 1
        %s2048 = smul.addr %s2047, 64
        %s2049 = scalar_lea.vmem [#allocation3], %s2048
        // Predicated region
        $region45: #{_lambda_.15} parent=43 // pred_check
          %p2050 = pneg %p174
        $region46: #{_lambda_.15} parent=43 // pred_check_branch
          %2052 = sbr.rel (%p2050) target = $region48
        $region47: #{_lambda_.15} parent=43 // pred_region
          %s2054 = ssub.s32 1024, 1024
          %2055 = vsyncadd %s2046, %s2054
          %s2056 = smul.addr %s20, 8
          %s2057 = smul.addr %s2056, 128
          %s2058 = scalar_lea.hbm %s6, %s2057
          %s2059 = sshll.u32 %s2049, 4
          %s2060 = int_to_ptr.vmem [resolvable:$true] %s2059
          %2065 = dma.vmem_to_hbm [thread:$0]  %s2060, 1024, %s2058, %s2046, 128, 128, 8
        $region48: #{_lambda_.15} parent=43 // pred_fallthru
          _
      $region44: #{_lambda_.15} parent=5 // pred_fallthru
        _
      %p2066 = scmp.le.s32.totalorder 2, %s15
      // Predicated region
      $region49: #{_lambda_.15} parent=5 // pred_check
        %p2067 = pneg %p2066
      $region50: #{_lambda_.15} parent=5 // pred_check_branch
        %2069 = sbr.rel (%p2067) target = $region52
      $region51: #{_lambda_.15} parent=5 // pred_region
        %s2070 = ssub.s32 %s15, 2
        // Predicated region
        $region53: #{_lambda_.15} parent=51 // pred_check
          %p2071 = pneg %p180
        $region54: #{_lambda_.15} parent=51 // pred_check_branch
          %2073 = sbr.rel (%p2071) target = $region56
        $region55: #{_lambda_.15} parent=51 // pred_region
          %s2074 = sand.u32 %s165, 1
          %s2075 = scalar_lea.sflag [#allocation4], %s2074
          %s2076 = sand.u32 %s165, 1
          %s2077 = smul.addr %s2076, 64
          %s2078 = scalar_lea.vmem [#allocation3], %s2077
          %2079 = dma.done %s2075, 1024
        $region56: #{_lambda_.15} parent=51 // pred_fallthru
          _
      $region52: #{_lambda_.15} parent=5 // pred_fallthru
        _
    $region6: #{_lambda_.15} parent=1 // loop_footer
      %s19 = sadd.s32 1, %s15
    $region7: #{_lambda_.15} parent=1 // loop_footer_branch
      %14 = sbr.rel target = $region3
    $region8: #{_lambda_.15} parent=1 // loop_exit
      _
    %2080 = vsyncpa [#allocation4], 1
    %s2081 = scalar_lea.sflag [#allocation4], 1
    %2082 = vsyncpa %s2081, 1

</llo_original>
